<compile_context>
chip_gen: v7x
topology: tpu7x:2x2x1
jax: 0.10.0
libtpu: 0.0.40
codegen_flags: <defaults>
</compile_context>

<pallas_src>
import functools

import numpy as np

import jax
import jax.numpy as jnp
from jax.experimental import pallas as pl
from jax.experimental.pallas import tpu as pltpu


_VMEM = pl.BlockSpec(memory_space=pltpu.MemorySpace.VMEM)
_BF16 = jnp.bfloat16
_F32 = jnp.float32


# ------------------------------ fused Pallas kernel ------------------------------ #

def _dih_fused_kernel(*refs):
    """Whole DeepImageHarmonization forward in one kernel.

    Activation layout: X[n*H + h, w*C + c]  (rows = image rows, lanes = W*C).
    Every conv-like layer is   Y = sum_ky (R[ky] @ X) @ Q[ky] + bias   with
    host-precomputed constants R (one-hot row gather) and Q (column gather fused
    with BN-folded weights), followed by a fused ELU epilogue.
    """
    x0_ref, rds_ref, cm_ref = refs[0:3]
    layer_refs = refs[3:27]                       # 8 layers x (R, Q, bias_row)
    rgb_q_ref, rgb_b_ref = refs[27:29]
    out_ref, fmap_ref, bmap_ref, fdec_ref = refs[29:33]

    def conv(x, r_ref, q_ref, b_ref, act):
        kh = q_ref.shape[0]
        rows = x.shape[0] if r_ref is None else r_ref.shape[1]
        acc = jnp.zeros((rows, q_ref.shape[2]), _F32)
        for ky in range(kh):                      # static unroll (kh <= 4)
            if r_ref is None:                     # identity row map (1x1 conv)
                a = x
            else:
                a = jnp.dot(r_ref[ky], x,
                            preferred_element_type=_F32).astype(_BF16)
            acc = acc + jnp.dot(a, q_ref[ky], preferred_element_type=_F32)
        y = acc + b_ref[...]                      # conv bias + folded BatchNorm
        if act:                                   # ELU(alpha=1), fused epilogue
            # (exp(min(y,0)) - 1 is used instead of expm1 for guaranteed lowering)
            y = jnp.where(y > 0.0, y, jnp.exp(jnp.minimum(y, 0.0)) - 1.0)
        return y                                  # float32

    def layer(x, idx, act=True):
        r_ref, q_ref, b_ref = layer_refs[3 * idx:3 * idx + 3]
        return conv(x, r_ref, q_ref, b_ref, act)

    x0 = x0_ref[...]                              # bf16, (N*H, W*4)

    # ---- encoder: Conv2d(k4, s2) + BN + ELU ----
    e0 = layer(x0, 0)                             # (N*16, 16*8)
    e1 = layer(e0.astype(_BF16), 1)               # (N*8,   8*8)
    e2 = layer(e1.astype(_BF16), 2)               # (N*4,   4*16)
    e3 = layer(e2.astype(_BF16), 3)               # (N*1,   1*16)

    # ---- decoder: ConvTranspose2d(k4, s2) + BN + ELU, with skip connections ----
    d0 = layer(e3.astype(_BF16), 4) + e2
    d1 = layer(d0.astype(_BF16), 5) + e1
    d2 = layer(d1.astype(_BF16), 6) + e0
    d3 = layer(d2.astype(_BF16), 7)               # F_dec, (N*32, 32*4)

    # to_rgb: 1x1 conv, no norm, no activation
    rgb = conv(d3.astype(_BF16), None, rgb_q_ref, rgb_b_ref, act=False)

    # ---- bottleneck fg/bg maps: nearest-downsampled mask * e1 (fused, no extra call) ----
    m = jnp.dot(rds_ref[...], x0, preferred_element_type=_F32).astype(_BF16)
    m = jnp.dot(m, cm_ref[...], preferred_element_type=_F32)   # (N*8, 8*8)

    out_ref[...] = rgb.astype(out_ref.dtype)
    fmap_ref[...] = (m * e1).astype(fmap_ref.dtype)
    bmap_ref[...] = ((1.0 - m) * e1).astype(bmap_ref.dtype)
    fdec_ref[...] = d3.astype(fdec_ref.dtype)


# --------------------- host-side constant (R, Q, bias) builders ------------------ #

def _fold_bn(bias, bn, cout):
    if bn is None:
        scale = jnp.ones((cout,), _F32)
        shift = jnp.zeros((cout,), _F32)
    else:
        gamma, beta, mean, var = bn               # eval-mode BatchNorm2d
        scale = gamma / jnp.sqrt(var + 1e-5)
        shift = beta - mean * scale
    return scale, bias * scale + shift


def _conv_rqb(w_oihw, bias, bn, n, hi, wi, stride, pad):
    """Conv2d (OIHW weights) -> (R, Q, bias_row) operands for the fused kernel."""
    co, ci, kh, kw = w_oihw.shape
    ho = (hi + 2 * pad - kh) // stride + 1
    wo = (wi + 2 * pad - kw) // stride + 1
    scale, b_eff = _fold_bn(bias, bn, co)
    w_eff = w_oihw * scale[:, None, None, None]   # BN scale folded into weights

    r = np.zeros((kh, n * ho, n * hi), np.float32)
    for ky in range(kh):
        for oh in range(ho):
            iy = stride * oh - pad + ky
            if 0 <= iy < hi:
                for b in range(n):
                    r[ky, b * ho + oh, b * hi + iy] = 1.0

    s = np.zeros((kw, wi, wo), np.float32)
    for kx in range(kw):
        for ow in range(wo):
            iw = stride * ow - pad + kx
            if 0 <= iw < wi:
                s[kx, iw, ow] = 1.0
    # Q[ky, iw*Ci + ci, ow*Co + co] = sum_kx S[kx, iw, ow] * w_eff[co, ci, ky, kx]
    q = jnp.einsum('xiw,ocyx->yicwo', s, w_eff).reshape(kh, wi * ci, wo * co)
    brow = jnp.tile(b_eff, wo).reshape(1, wo * co)
    return (r, q, brow), ho, wo, co


def _deconv_rqb(w_iohw, bias, bn, n, hi, wi, stride, pad):
    """ConvTranspose2d (IOHW weights) -> (R, Q, bias_row); no dilated tensor, no zero MACs."""
    ci, co, kh, kw = w_iohw.shape
    ho = (hi - 1) * stride - 2 * pad + kh
    wo = (wi - 1) * stride - 2 * pad + kw
    scale, b_eff = _fold_bn(bias, bn, co)
    w_eff = w_iohw * scale[None, :, None, None]

    r = np.zeros((kh, n * ho, n * hi), np.float32)
    for ky in range(kh):
        for oy in range(ho):
            t = oy + pad - ky
            if t % stride == 0:
                iy = t // stride
                if 0 <= iy < hi:
                    for b in range(n):
                        r[ky, b * ho + oy, b * hi + iy] = 1.0

    s = np.zeros((kw, wi, wo), np.float32)
    for kx in range(kw):
        for ow in range(wo):
            t = ow + pad - kx
            if t % stride == 0:
                iw = t // stride
                if 0 <= iw < wi:
                    s[kx, iw, ow] = 1.0
    q = jnp.einsum('xiw,coyx->yicwo', s, w_eff).reshape(kh, wi * ci, wo * co)
    brow = jnp.tile(b_eff, wo).reshape(1, wo * co)
    return (r, q, brow), ho, wo, co


def prepare(params, n=2, h=32, w=32):
    """Precompute every constant kernel operand (per-layer R/Q/bias + mask gather)."""
    layers = []
    hi, wi = h, w
    enc_dims = []
    for name, pad in (('enc0', 1), ('enc1', 1), ('enc2', 1), ('enc3', 0)):
        wgt, bias, bn = params[name]
        (r, q, brow), hi, wi, ci = _conv_rqb(wgt, bias, bn, n, hi, wi, 2, pad)
        layers.append((r, q, brow))
        enc_dims.append((hi, wi, ci))
    for name, pad in (('dec0', 0), ('dec1', 1), ('dec2', 1), ('dec3', 1)):
        wgt, bias, bn = params[name]
        (r, q, brow), hi, wi, ci = _deconv_rqb(wgt, bias, bn, n, hi, wi, 2, pad)
        layers.append((r, q, brow))
    w_rgb, b_rgb = params['to_rgb']
    (_, q_rgb, b_rgb_row), _, _, c_rgb = _conv_rqb(w_rgb, b_rgb, None, n, hi, wi, 1, 0)

    # Nearest-neighbour mask downsample to the bottleneck (encoder block-1 output)
    # resolution, expressed as two one-hot gather matrices (row gather + column
    # gather broadcast over the bottleneck channels).  Mask is channel 3 of x0.
    hb, wb, cb = enc_dims[1]
    rds = np.zeros((n * hb, n * h), np.float32)
    for b in range(n):
        for hh in range(hb):
            rds[b * hb + hh, b * h + (hh * h) // hb] = 1.0
    cm = np.zeros((w * 4, wb * cb), np.float32)
    for ww in range(wb):
        src = (ww * w) // wb
        for c in range(cb):
            cm[src * 4 + 3, ww * cb + c] = 1.0

    consts = [jnp.asarray(rds, _BF16), jnp.asarray(cm, _BF16)]
    for r, q, brow in layers:
        consts += [jnp.asarray(r, _BF16), q.astype(_BF16), brow.astype(_F32)]
    consts += [q_rgb.astype(_BF16), b_rgb_row.astype(_F32)]

    return dict(consts=consts, bottleneck=(hb, wb, cb),
                rgb_channels=c_rgb, dec_channels=ci)


# ------------------------------------ model -------------------------------------- #

def init_params(key):
    def conv_p(k, cout, cin, ksz):
        k1, k2 = jax.random.split(k)
        w = 0.1 * jax.random.normal(k1, (cout, cin, ksz, ksz), jnp.float32)
        b = 0.05 * jax.random.normal(k2, (cout,), jnp.float32)
        return w, b

    def bn_p(k, c):
        k1, k2, k3, k4 = jax.random.split(k, 4)
        gamma = 1.0 + 0.05 * jax.random.normal(k1, (c,), jnp.float32)
        beta = 0.05 * jax.random.normal(k2, (c,), jnp.float32)
        mean = 0.05 * jax.random.normal(k3, (c,), jnp.float32)
        var = 0.8 + 0.2 * jax.random.uniform(k4, (c,), jnp.float32)
        return gamma, beta, mean, var

    keys = jax.random.split(key, 32)
    p = {}
    # encoder ConvBlocks (k=4, s=2): channels 4 -> 8 -> 8 -> 16 -> 16
    enc_io = [(4, 8), (8, 8), (8, 16), (16, 16)]
    for i, (cin, cout) in enumerate(enc_io):
        w, b = conv_p(keys[2 * i], cout, cin, 4)
        p[f'enc{i}'] = (w, b, bn_p(keys[2 * i + 1], cout))
    # decoder SEDeconvBlocks (k=4, s=2): channels 16 -> 16 -> 8 -> 8 -> 4
    dec_io = [(16, 16), (16, 8), (8, 8), (8, 4)]
    for i, (cin, cout) in enumerate(dec_io):
        k1, k2 = jax.random.split(keys[8 + 2 * i])
        w = 0.1 * jax.random.normal(k1, (cin, cout, 4, 4), jnp.float32)  # IOHW
        b = 0.05 * jax.random.normal(k2, (cout,), jnp.float32)
        p[f'dec{i}'] = (w, b, bn_p(keys[9 + 2 * i], cout))
    # to_rgb: Conv2d(4, 3, kernel_size=1)
    p['to_rgb'] = conv_p(keys[16], 3, 4, 1)
    return p


def deep_image_harmonization(prepared, image_nchw, mask_nchw):
    n, _, h, w = image_nchw.shape
    hb, wb, cb = prepared['bottleneck']
    c_rgb = prepared['rgb_channels']
    c_dec = prepared['dec_channels']
    consts = prepared['consts']

    # NCHW -> fused-kernel activation layout X[n*H + y, x*C + c]  (C = RGB + mask).
    x = jnp.concatenate([image_nchw, mask_nchw], axis=1)          # torch.cat(dim=1)
    x0 = jnp.transpose(x, (0, 2, 3, 1)).reshape(n * h, w * 4).astype(_BF16)

    out_shapes = (
        jax.ShapeDtypeStruct((n * h, w * c_rgb), _F32),    # to_rgb output
        jax.ShapeDtypeStruct((n * hb, wb * cb), _F32),     # f_map
        jax.ShapeDtypeStruct((n * hb, wb * cb), _F32),     # b_map
        jax.ShapeDtypeStruct((n * h, w * c_dec), _F32),    # F_dec
    )
    # All operands total ~1 MB, so a single un-gridded VMEM-resident call is optimal
    # here; for much larger resolution/batch one would add a grid over the row axis
    # (dimension_semantics=("parallel",)) to fit v7x's smaller VMEM and use megacore.
    out, fmap, bmap, fdec = pl.pallas_call(
        _dih_fused_kernel,
        out_shape=out_shapes,
        in_specs=[_VMEM] * (1 + len(consts)),
        out_specs=(_VMEM, _VMEM, _VMEM, _VMEM),
    )(x0, *consts)

    def to_nchw(t, hh, ww, cc):
        return jnp.transpose(t.reshape(n, hh, ww, cc), (0, 3, 1, 2))

    # TODO(synk): DeconvDecoder source not provided; F_dec is taken to be the decoder
    # feature map right before the 1x1 to_rgb projection (as in the previous version).
    output = to_nchw(out, h, w, c_rgb)
    f_map = to_nchw(fmap, hb, wb, cb)
    b_map = to_nchw(bmap, hb, wb, cb)
    f_dec = to_nchw(fdec, h, w, c_dec)
    return output, f_map, b_map, f_dec


if __name__ == "__main__":
    key = jax.random.PRNGKey(0)
    kp, ki, km = jax.random.split(key, 3)
    params = init_params(kp)
    image = jax.random.normal(ki, (2, 3, 32, 32), jnp.float32)
    mask = (jax.random.uniform(km, (2, 1, 32, 32)) > 0.5).astype(jnp.float32)

    prepared = prepare(params, n=2, h=32, w=32)
    fwd = jax.jit(functools.partial(deep_image_harmonization, prepared))
    output, f_map, b_map, f_dec = fwd(image, mask)
    jax.tree_util.tree_map(jax.block_until_ready, (output, f_map, b_map, f_dec))

    assert output.shape == (2, 3, 32, 32)
    assert f_map.shape == (2, 8, 8, 8)
    assert b_map.shape == (2, 8, 8, 8)
    assert f_dec.shape == (2, 4, 32, 32)
    print("KERNEL_OK")
</pallas_src>

<mosaic_0001>
module attributes {stable_mosaic.version = 11 : i64} {
  func.func @_dih_fused_kernel(%arg0: memref<64x128xbf16, #tpu.memory_space<vmem>>, %arg1: memref<16x64xbf16, #tpu.memory_space<vmem>>, %arg2: memref<128x64xbf16, #tpu.memory_space<vmem>>, %arg3: memref<4x32x64xbf16, #tpu.memory_space<vmem>>, %arg4: memref<4x128x128xbf16, #tpu.memory_space<vmem>>, %arg5: memref<1x128xf32, #tpu.memory_space<vmem>>, %arg6: memref<4x16x32xbf16, #tpu.memory_space<vmem>>, %arg7: memref<4x128x64xbf16, #tpu.memory_space<vmem>>, %arg8: memref<1x64xf32, #tpu.memory_space<vmem>>, %arg9: memref<4x8x16xbf16, #tpu.memory_space<vmem>>, %arg10: memref<4x64x64xbf16, #tpu.memory_space<vmem>>, %arg11: memref<1x64xf32, #tpu.memory_space<vmem>>, %arg12: memref<4x2x8xbf16, #tpu.memory_space<vmem>>, %arg13: memref<4x64x16xbf16, #tpu.memory_space<vmem>>, %arg14: memref<1x16xf32, #tpu.memory_space<vmem>>, %arg15: memref<4x8x2xbf16, #tpu.memory_space<vmem>>, %arg16: memref<4x16x64xbf16, #tpu.memory_space<vmem>>, %arg17: memref<1x64xf32, #tpu.memory_space<vmem>>, %arg18: memref<4x16x8xbf16, #tpu.memory_space<vmem>>, %arg19: memref<4x64x64xbf16, #tpu.memory_space<vmem>>, %arg20: memref<1x64xf32, #tpu.memory_space<vmem>>, %arg21: memref<4x32x16xbf16, #tpu.memory_space<vmem>>, %arg22: memref<4x64x128xbf16, #tpu.memory_space<vmem>>, %arg23: memref<1x128xf32, #tpu.memory_space<vmem>>, %arg24: memref<4x64x32xbf16, #tpu.memory_space<vmem>>, %arg25: memref<4x128x128xbf16, #tpu.memory_space<vmem>>, %arg26: memref<1x128xf32, #tpu.memory_space<vmem>>, %arg27: memref<1x128x96xbf16, #tpu.memory_space<vmem>>, %arg28: memref<1x96xf32, #tpu.memory_space<vmem>>, %arg29: memref<64x96xf32, #tpu.memory_space<vmem>>, %arg30: memref<16x64xf32, #tpu.memory_space<vmem>>, %arg31: memref<16x64xf32, #tpu.memory_space<vmem>>, %arg32: memref<64x128xf32, #tpu.memory_space<vmem>>) attributes {dimension_semantics = [], scalar_prefetch = 0 : i64, scratch_operands = 0 : i64, tpu.core_type = #tpu.core_type<tc>} {
    %c0 = arith.constant 0 : index
    %c0_0 = arith.constant 0 : index
    %0 = vector.load %arg0[%c0, %c0_0] : memref<64x128xbf16, #tpu.memory_space<vmem>>, vector<64x128xbf16>
    %cst = arith.constant 0.000000e+00 : f32
    %1 = vector.broadcast %cst : f32 to vector<32x128xf32>
    %c0_1 = arith.constant 0 : index
    %c0_2 = arith.constant 0 : index
    %c0_3 = arith.constant 0 : index
    %2 = vector.load %arg3[%c0_1, %c0_2, %c0_3] : memref<4x32x64xbf16, #tpu.memory_space<vmem>>, vector<1x32x64xbf16>
    %3 = vector.shape_cast %2 : vector<1x32x64xbf16> to vector<32x64xbf16>
    %cst_4 = arith.constant dense<0.000000e+00> : vector<32x128xf32>
    %4 = tpu.matmul %3, %0, %cst_4 {dimension_numbers = #tpu.dot_dimension_numbers<[1], [0], [0], [1], [0, 0, 1, 1], [], []>} : vector<32x64xbf16>, vector<64x128xbf16>, vector<32x128xf32> -> vector<32x128xf32>
    %5 = arith.truncf %4 : vector<32x128xf32> to vector<32x128xbf16>
    %c0_5 = arith.constant 0 : index
    %c0_6 = arith.constant 0 : index
    %c0_7 = arith.constant 0 : index
    %6 = vector.load %arg4[%c0_5, %c0_6, %c0_7] : memref<4x128x128xbf16, #tpu.memory_space<vmem>>, vector<1x128x128xbf16>
    %7 = vector.shape_cast %6 : vector<1x128x128xbf16> to vector<128x128xbf16>
    %cst_8 = arith.constant dense<0.000000e+00> : vector<32x128xf32>
    %8 = tpu.matmul %5, %7, %cst_8 {dimension_numbers = #tpu.dot_dimension_numbers<[1], [0], [0], [1], [0, 0, 1, 1], [], []>} : vector<32x128xbf16>, vector<128x128xbf16>, vector<32x128xf32> -> vector<32x128xf32>
    %9 = arith.addf %1, %8 : vector<32x128xf32>
    %c1 = arith.constant 1 : index
    %c0_9 = arith.constant 0 : index
    %c0_10 = arith.constant 0 : index
    %10 = vector.load %arg3[%c1, %c0_9, %c0_10] : memref<4x32x64xbf16, #tpu.memory_space<vmem>>, vector<1x32x64xbf16>
    %11 = vector.shape_cast %10 : vector<1x32x64xbf16> to vector<32x64xbf16>
    %cst_11 = arith.constant dense<0.000000e+00> : vector<32x128xf32>
    %12 = tpu.matmul %11, %0, %cst_11 {dimension_numbers = #tpu.dot_dimension_numbers<[1], [0], [0], [1], [0, 0, 1, 1], [], []>} : vector<32x64xbf16>, vector<64x128xbf16>, vector<32x128xf32> -> vector<32x128xf32>
    %13 = arith.truncf %12 : vector<32x128xf32> to vector<32x128xbf16>
    %c1_12 = arith.constant 1 : index
    %c0_13 = arith.constant 0 : index
    %c0_14 = arith.constant 0 : index
    %14 = vector.load %arg4[%c1_12, %c0_13, %c0_14] : memref<4x128x128xbf16, #tpu.memory_space<vmem>>, vector<1x128x128xbf16>
    %15 = vector.shape_cast %14 : vector<1x128x128xbf16> to vector<128x128xbf16>
    %cst_15 = arith.constant dense<0.000000e+00> : vector<32x128xf32>
    %16 = tpu.matmul %13, %15, %cst_15 {dimension_numbers = #tpu.dot_dimension_numbers<[1], [0], [0], [1], [0, 0, 1, 1], [], []>} : vector<32x128xbf16>, vector<128x128xbf16>, vector<32x128xf32> -> vector<32x128xf32>
    %17 = arith.addf %9, %16 : vector<32x128xf32>
    %c2 = arith.constant 2 : index
    %c0_16 = arith.constant 0 : index
    %c0_17 = arith.constant 0 : index
    %18 = vector.load %arg3[%c2, %c0_16, %c0_17] : memref<4x32x64xbf16, #tpu.memory_space<vmem>>, vector<1x32x64xbf16>
    %19 = vector.shape_cast %18 : vector<1x32x64xbf16> to vector<32x64xbf16>
    %cst_18 = arith.constant dense<0.000000e+00> : vector<32x128xf32>
    %20 = tpu.matmul %19, %0, %cst_18 {dimension_numbers = #tpu.dot_dimension_numbers<[1], [0], [0], [1], [0, 0, 1, 1], [], []>} : vector<32x64xbf16>, vector<64x128xbf16>, vector<32x128xf32> -> vector<32x128xf32>
    %21 = arith.truncf %20 : vector<32x128xf32> to vector<32x128xbf16>
    %c2_19 = arith.constant 2 : index
    %c0_20 = arith.constant 0 : index
    %c0_21 = arith.constant 0 : index
    %22 = vector.load %arg4[%c2_19, %c0_20, %c0_21] : memref<4x128x128xbf16, #tpu.memory_space<vmem>>, vector<1x128x128xbf16>
    %23 = vector.shape_cast %22 : vector<1x128x128xbf16> to vector<128x128xbf16>
    %cst_22 = arith.constant dense<0.000000e+00> : vector<32x128xf32>
    %24 = tpu.matmul %21, %23, %cst_22 {dimension_numbers = #tpu.dot_dimension_numbers<[1], [0], [0], [1], [0, 0, 1, 1], [], []>} : vector<32x128xbf16>, vector<128x128xbf16>, vector<32x128xf32> -> vector<32x128xf32>
    %25 = arith.addf %17, %24 : vector<32x128xf32>
    %c3 = arith.constant 3 : index
    %c0_23 = arith.constant 0 : index
    %c0_24 = arith.constant 0 : index
    %26 = vector.load %arg3[%c3, %c0_23, %c0_24] : memref<4x32x64xbf16, #tpu.memory_space<vmem>>, vector<1x32x64xbf16>
    %27 = vector.shape_cast %26 : vector<1x32x64xbf16> to vector<32x64xbf16>
    %cst_25 = arith.constant dense<0.000000e+00> : vector<32x128xf32>
    %28 = tpu.matmul %27, %0, %cst_25 {dimension_numbers = #tpu.dot_dimension_numbers<[1], [0], [0], [1], [0, 0, 1, 1], [], []>} : vector<32x64xbf16>, vector<64x128xbf16>, vector<32x128xf32> -> vector<32x128xf32>
    %29 = arith.truncf %28 : vector<32x128xf32> to vector<32x128xbf16>
    %c3_26 = arith.constant 3 : index
    %c0_27 = arith.constant 0 : index
    %c0_28 = arith.constant 0 : index
    %30 = vector.load %arg4[%c3_26, %c0_27, %c0_28] : memref<4x128x128xbf16, #tpu.memory_space<vmem>>, vector<1x128x128xbf16>
    %31 = vector.shape_cast %30 : vector<1x128x128xbf16> to vector<128x128xbf16>
    %cst_29 = arith.constant dense<0.000000e+00> : vector<32x128xf32>
    %32 = tpu.matmul %29, %31, %cst_29 {dimension_numbers = #tpu.dot_dimension_numbers<[1], [0], [0], [1], [0, 0, 1, 1], [], []>} : vector<32x128xbf16>, vector<128x128xbf16>, vector<32x128xf32> -> vector<32x128xf32>
    %33 = arith.addf %25, %32 : vector<32x128xf32>
    %c0_30 = arith.constant 0 : index
    %c0_31 = arith.constant 0 : index
    %34 = vector.load %arg5[%c0_30, %c0_31] : memref<1x128xf32, #tpu.memory_space<vmem>>, vector<1x128xf32>
    %35 = vector.broadcast %34 : vector<1x128xf32> to vector<32x128xf32>
    %36 = arith.addf %33, %35 : vector<32x128xf32>
    %cst_32 = arith.constant 0.000000e+00 : f32
    %37 = vector.broadcast %cst_32 : f32 to vector<32x128xf32>
    %38 = arith.cmpf ogt, %36, %37 : vector<32x128xf32>
    %cst_33 = arith.constant 0.000000e+00 : f32
    %39 = vector.broadcast %cst_33 : f32 to vector<32x128xf32>
    %40 = arith.minimumf %36, %39 : vector<32x128xf32>
    %41 = math.exp %40 : vector<32x128xf32>
    %cst_34 = arith.constant 1.000000e+00 : f32
    %42 = vector.broadcast %cst_34 : f32 to vector<32x128xf32>
    %43 = arith.subf %41, %42 : vector<32x128xf32>
    %44 = arith.select %38, %36, %43 : vector<32x128xi1>, vector<32x128xf32>
    %45 = arith.truncf %44 : vector<32x128xf32> to vector<32x128xbf16>
    %cst_35 = arith.constant 0.000000e+00 : f32
    %46 = vector.broadcast %cst_35 : f32 to vector<16x64xf32>
    %c0_36 = arith.constant 0 : index
    %c0_37 = arith.constant 0 : index
    %c0_38 = arith.constant 0 : index
    %47 = vector.load %arg6[%c0_36, %c0_37, %c0_38] : memref<4x16x32xbf16, #tpu.memory_space<vmem>>, vector<1x16x32xbf16>
    %48 = vector.shape_cast %47 : vector<1x16x32xbf16> to vector<16x32xbf16>
    %cst_39 = arith.constant dense<0.000000e+00> : vector<16x128xf32>
    %49 = tpu.matmul %48, %45, %cst_39 {dimension_numbers = #tpu.dot_dimension_numbers<[1], [0], [0], [1], [0, 0, 1, 1], [], []>} : vector<16x32xbf16>, vector<32x128xbf16>, vector<16x128xf32> -> vector<16x128xf32>
    %50 = arith.truncf %49 : vector<16x128xf32> to vector<16x128xbf16>
    %c0_40 = arith.constant 0 : index
    %c0_41 = arith.constant 0 : index
    %c0_42 = arith.constant 0 : index
    %51 = vector.load %arg7[%c0_40, %c0_41, %c0_42] : memref<4x128x64xbf16, #tpu.memory_space<vmem>>, vector<1x128x64xbf16>
    %52 = vector.shape_cast %51 : vector<1x128x64xbf16> to vector<128x64xbf16>
    %cst_43 = arith.constant dense<0.000000e+00> : vector<16x64xf32>
    %53 = tpu.matmul %50, %52, %cst_43 {dimension_numbers = #tpu.dot_dimension_numbers<[1], [0], [0], [1], [0, 0, 1, 1], [], []>} : vector<16x128xbf16>, vector<128x64xbf16>, vector<16x64xf32> -> vector<16x64xf32>
    %54 = arith.addf %46, %53 : vector<16x64xf32>
    %c1_44 = arith.constant 1 : index
    %c0_45 = arith.constant 0 : index
    %c0_46 = arith.constant 0 : index
    %55 = vector.load %arg6[%c1_44, %c0_45, %c0_46] : memref<4x16x32xbf16, #tpu.memory_space<vmem>>, vector<1x16x32xbf16>
    %56 = vector.shape_cast %55 : vector<1x16x32xbf16> to vector<16x32xbf16>
    %cst_47 = arith.constant dense<0.000000e+00> : vector<16x128xf32>
    %57 = tpu.matmul %56, %45, %cst_47 {dimension_numbers = #tpu.dot_dimension_numbers<[1], [0], [0], [1], [0, 0, 1, 1], [], []>} : vector<16x32xbf16>, vector<32x128xbf16>, vector<16x128xf32> -> vector<16x128xf32>
    %58 = arith.truncf %57 : vector<16x128xf32> to vector<16x128xbf16>
    %c1_48 = arith.constant 1 : index
    %c0_49 = arith.constant 0 : index
    %c0_50 = arith.constant 0 : index
    %59 = vector.load %arg7[%c1_48, %c0_49, %c0_50] : memref<4x128x64xbf16, #tpu.memory_space<vmem>>, vector<1x128x64xbf16>
    %60 = vector.shape_cast %59 : vector<1x128x64xbf16> to vector<128x64xbf16>
    %cst_51 = arith.constant dense<0.000000e+00> : vector<16x64xf32>
    %61 = tpu.matmul %58, %60, %cst_51 {dimension_numbers = #tpu.dot_dimension_numbers<[1], [0], [0], [1], [0, 0, 1, 1], [], []>} : vector<16x128xbf16>, vector<128x64xbf16>, vector<16x64xf32> -> vector<16x64xf32>
    %62 = arith.addf %54, %61 : vector<16x64xf32>
    %c2_52 = arith.constant 2 : index
    %c0_53 = arith.constant 0 : index
    %c0_54 = arith.constant 0 : index
    %63 = vector.load %arg6[%c2_52, %c0_53, %c0_54] : memref<4x16x32xbf16, #tpu.memory_space<vmem>>, vector<1x16x32xbf16>
    %64 = vector.shape_cast %63 : vector<1x16x32xbf16> to vector<16x32xbf16>
    %cst_55 = arith.constant dense<0.000000e+00> : vector<16x128xf32>
    %65 = tpu.matmul %64, %45, %cst_55 {dimension_numbers = #tpu.dot_dimension_numbers<[1], [0], [0], [1], [0, 0, 1, 1], [], []>} : vector<16x32xbf16>, vector<32x128xbf16>, vector<16x128xf32> -> vector<16x128xf32>
    %66 = arith.truncf %65 : vector<16x128xf32> to vector<16x128xbf16>
    %c2_56 = arith.constant 2 : index
    %c0_57 = arith.constant 0 : index
    %c0_58 = arith.constant 0 : index
    %67 = vector.load %arg7[%c2_56, %c0_57, %c0_58] : memref<4x128x64xbf16, #tpu.memory_space<vmem>>, vector<1x128x64xbf16>
    %68 = vector.shape_cast %67 : vector<1x128x64xbf16> to vector<128x64xbf16>
    %cst_59 = arith.constant dense<0.000000e+00> : vector<16x64xf32>
    %69 = tpu.matmul %66, %68, %cst_59 {dimension_numbers = #tpu.dot_dimension_numbers<[1], [0], [0], [1], [0, 0, 1, 1], [], []>} : vector<16x128xbf16>, vector<128x64xbf16>, vector<16x64xf32> -> vector<16x64xf32>
    %70 = arith.addf %62, %69 : vector<16x64xf32>
    %c3_60 = arith.constant 3 : index
    %c0_61 = arith.constant 0 : index
    %c0_62 = arith.constant 0 : index
    %71 = vector.load %arg6[%c3_60, %c0_61, %c0_62] : memref<4x16x32xbf16, #tpu.memory_space<vmem>>, vector<1x16x32xbf16>
    %72 = vector.shape_cast %71 : vector<1x16x32xbf16> to vector<16x32xbf16>
    %cst_63 = arith.constant dense<0.000000e+00> : vector<16x128xf32>
    %73 = tpu.matmul %72, %45, %cst_63 {dimension_numbers = #tpu.dot_dimension_numbers<[1], [0], [0], [1], [0, 0, 1, 1], [], []>} : vector<16x32xbf16>, vector<32x128xbf16>, vector<16x128xf32> -> vector<16x128xf32>
    %74 = arith.truncf %73 : vector<16x128xf32> to vector<16x128xbf16>
    %c3_64 = arith.constant 3 : index
    %c0_65 = arith.constant 0 : index
    %c0_66 = arith.constant 0 : index
    %75 = vector.load %arg7[%c3_64, %c0_65, %c0_66] : memref<4x128x64xbf16, #tpu.memory_space<vmem>>, vector<1x128x64xbf16>
    %76 = vector.shape_cast %75 : vector<1x128x64xbf16> to vector<128x64xbf16>
    %cst_67 = arith.constant dense<0.000000e+00> : vector<16x64xf32>
    %77 = tpu.matmul %74, %76, %cst_67 {dimension_numbers = #tpu.dot_dimension_numbers<[1], [0], [0], [1], [0, 0, 1, 1], [], []>} : vector<16x128xbf16>, vector<128x64xbf16>, vector<16x64xf32> -> vector<16x64xf32>
    %78 = arith.addf %70, %77 : vector<16x64xf32>
    %c0_68 = arith.constant 0 : index
    %c0_69 = arith.constant 0 : index
    %79 = vector.load %arg8[%c0_68, %c0_69] : memref<1x64xf32, #tpu.memory_space<vmem>>, vector<1x64xf32>
    %80 = vector.broadcast %79 : vector<1x64xf32> to vector<16x64xf32>
    %81 = arith.addf %78, %80 : vector<16x64xf32>
    %cst_70 = arith.constant 0.000000e+00 : f32
    %82 = vector.broadcast %cst_70 : f32 to vector<16x64xf32>
    %83 = arith.cmpf ogt, %81, %82 : vector<16x64xf32>
    %cst_71 = arith.constant 0.000000e+00 : f32
    %84 = vector.broadcast %cst_71 : f32 to vector<16x64xf32>
    %85 = arith.minimumf %81, %84 : vector<16x64xf32>
    %86 = math.exp %85 : vector<16x64xf32>
    %cst_72 = arith.constant 1.000000e+00 : f32
    %87 = vector.broadcast %cst_72 : f32 to vector<16x64xf32>
    %88 = arith.subf %86, %87 : vector<16x64xf32>
    %89 = arith.select %83, %81, %88 : vector<16x64xi1>, vector<16x64xf32>
    %90 = arith.truncf %89 : vector<16x64xf32> to vector<16x64xbf16>
    %cst_73 = arith.constant 0.000000e+00 : f32
    %91 = vector.broadcast %cst_73 : f32 to vector<8x64xf32>
    %c0_74 = arith.constant 0 : index
    %c0_75 = arith.constant 0 : index
    %c0_76 = arith.constant 0 : index
    %92 = vector.load %arg9[%c0_74, %c0_75, %c0_76] : memref<4x8x16xbf16, #tpu.memory_space<vmem>>, vector<1x8x16xbf16>
    %93 = vector.shape_cast %92 : vector<1x8x16xbf16> to vector<8x16xbf16>
    %cst_77 = arith.constant dense<0.000000e+00> : vector<8x64xf32>
    %94 = tpu.matmul %93, %90, %cst_77 {dimension_numbers = #tpu.dot_dimension_numbers<[1], [0], [0], [1], [0, 0, 1, 1], [], []>} : vector<8x16xbf16>, vector<16x64xbf16>, vector<8x64xf32> -> vector<8x64xf32>
    %95 = arith.truncf %94 : vector<8x64xf32> to vector<8x64xbf16>
    %c0_78 = arith.constant 0 : index
    %c0_79 = arith.constant 0 : index
    %c0_80 = arith.constant 0 : index
    %96 = vector.load %arg10[%c0_78, %c0_79, %c0_80] : memref<4x64x64xbf16, #tpu.memory_space<vmem>>, vector<1x64x64xbf16>
    %97 = vector.shape_cast %96 : vector<1x64x64xbf16> to vector<64x64xbf16>
    %cst_81 = arith.constant dense<0.000000e+00> : vector<8x64xf32>
    %98 = tpu.matmul %95, %97, %cst_81 {dimension_numbers = #tpu.dot_dimension_numbers<[1], [0], [0], [1], [0, 0, 1, 1], [], []>} : vector<8x64xbf16>, vector<64x64xbf16>, vector<8x64xf32> -> vector<8x64xf32>
    %99 = arith.addf %91, %98 : vector<8x64xf32>
    %c1_82 = arith.constant 1 : index
    %c0_83 = arith.constant 0 : index
    %c0_84 = arith.constant 0 : index
    %100 = vector.load %arg9[%c1_82, %c0_83, %c0_84] : memref<4x8x16xbf16, #tpu.memory_space<vmem>>, vector<1x8x16xbf16>
    %101 = vector.shape_cast %100 : vector<1x8x16xbf16> to vector<8x16xbf16>
    %cst_85 = arith.constant dense<0.000000e+00> : vector<8x64xf32>
    %102 = tpu.matmul %101, %90, %cst_85 {dimension_numbers = #tpu.dot_dimension_numbers<[1], [0], [0], [1], [0, 0, 1, 1], [], []>} : vector<8x16xbf16>, vector<16x64xbf16>, vector<8x64xf32> -> vector<8x64xf32>
    %103 = arith.truncf %102 : vector<8x64xf32> to vector<8x64xbf16>
    %c1_86 = arith.constant 1 : index
    %c0_87 = arith.constant 0 : index
    %c0_88 = arith.constant 0 : index
    %104 = vector.load %arg10[%c1_86, %c0_87, %c0_88] : memref<4x64x64xbf16, #tpu.memory_space<vmem>>, vector<1x64x64xbf16>
    %105 = vector.shape_cast %104 : vector<1x64x64xbf16> to vector<64x64xbf16>
    %cst_89 = arith.constant dense<0.000000e+00> : vector<8x64xf32>
    %106 = tpu.matmul %103, %105, %cst_89 {dimension_numbers = #tpu.dot_dimension_numbers<[1], [0], [0], [1], [0, 0, 1, 1], [], []>} : vector<8x64xbf16>, vector<64x64xbf16>, vector<8x64xf32> -> vector<8x64xf32>
    %107 = arith.addf %99, %106 : vector<8x64xf32>
    %c2_90 = arith.constant 2 : index
    %c0_91 = arith.constant 0 : index
    %c0_92 = arith.constant 0 : index
    %108 = vector.load %arg9[%c2_90, %c0_91, %c0_92] : memref<4x8x16xbf16, #tpu.memory_space<vmem>>, vector<1x8x16xbf16>
    %109 = vector.shape_cast %108 : vector<1x8x16xbf16> to vector<8x16xbf16>
    %cst_93 = arith.constant dense<0.000000e+00> : vector<8x64xf32>
    %110 = tpu.matmul %109, %90, %cst_93 {dimension_numbers = #tpu.dot_dimension_numbers<[1], [0], [0], [1], [0, 0, 1, 1], [], []>} : vector<8x16xbf16>, vector<16x64xbf16>, vector<8x64xf32> -> vector<8x64xf32>
    %111 = arith.truncf %110 : vector<8x64xf32> to vector<8x64xbf16>
    %c2_94 = arith.constant 2 : index
    %c0_95 = arith.constant 0 : index
    %c0_96 = arith.constant 0 : index
    %112 = vector.load %arg10[%c2_94, %c0_95, %c0_96] : memref<4x64x64xbf16, #tpu.memory_space<vmem>>, vector<1x64x64xbf16>
    %113 = vector.shape_cast %112 : vector<1x64x64xbf16> to vector<64x64xbf16>
    %cst_97 = arith.constant dense<0.000000e+00> : vector<8x64xf32>
    %114 = tpu.matmul %111, %113, %cst_97 {dimension_numbers = #tpu.dot_dimension_numbers<[1], [0], [0], [1], [0, 0, 1, 1], [], []>} : vector<8x64xbf16>, vector<64x64xbf16>, vector<8x64xf32> -> vector<8x64xf32>
    %115 = arith.addf %107, %114 : vector<8x64xf32>
    %c3_98 = arith.constant 3 : index
    %c0_99 = arith.constant 0 : index
    %c0_100 = arith.constant 0 : index
    %116 = vector.load %arg9[%c3_98, %c0_99, %c0_100] : memref<4x8x16xbf16, #tpu.memory_space<vmem>>, vector<1x8x16xbf16>
    %117 = vector.shape_cast %116 : vector<1x8x16xbf16> to vector<8x16xbf16>
    %cst_101 = arith.constant dense<0.000000e+00> : vector<8x64xf32>
    %118 = tpu.matmul %117, %90, %cst_101 {dimension_numbers = #tpu.dot_dimension_numbers<[1], [0], [0], [1], [0, 0, 1, 1], [], []>} : vector<8x16xbf16>, vector<16x64xbf16>, vector<8x64xf32> -> vector<8x64xf32>
    %119 = arith.truncf %118 : vector<8x64xf32> to vector<8x64xbf16>
    %c3_102 = arith.constant 3 : index
    %c0_103 = arith.constant 0 : index
    %c0_104 = arith.constant 0 : index
    %120 = vector.load %arg10[%c3_102, %c0_103, %c0_104] : memref<4x64x64xbf16, #tpu.memory_space<vmem>>, vector<1x64x64xbf16>
    %121 = vector.shape_cast %120 : vector<1x64x64xbf16> to vector<64x64xbf16>
    %cst_105 = arith.constant dense<0.000000e+00> : vector<8x64xf32>
    %122 = tpu.matmul %119, %121, %cst_105 {dimension_numbers = #tpu.dot_dimension_numbers<[1], [0], [0], [1], [0, 0, 1, 1], [], []>} : vector<8x64xbf16>, vector<64x64xbf16>, vector<8x64xf32> -> vector<8x64xf32>
    %123 = arith.addf %115, %122 : vector<8x64xf32>
    %c0_106 = arith.constant 0 : index
    %c0_107 = arith.constant 0 : index
    %124 = vector.load %arg11[%c0_106, %c0_107] : memref<1x64xf32, #tpu.memory_space<vmem>>, vector<1x64xf32>
    %125 = vector.broadcast %124 : vector<1x64xf32> to vector<8x64xf32>
    %126 = arith.addf %123, %125 : vector<8x64xf32>
    %cst_108 = arith.constant 0.000000e+00 : f32
    %127 = vector.broadcast %cst_108 : f32 to vector<8x64xf32>
    %128 = arith.cmpf ogt, %126, %127 : vector<8x64xf32>
    %cst_109 = arith.constant 0.000000e+00 : f32
    %129 = vector.broadcast %cst_109 : f32 to vector<8x64xf32>
    %130 = arith.minimumf %126, %129 : vector<8x64xf32>
    %131 = math.exp %130 : vector<8x64xf32>
    %cst_110 = arith.constant 1.000000e+00 : f32
    %132 = vector.broadcast %cst_110 : f32 to vector<8x64xf32>
    %133 = arith.subf %131, %132 : vector<8x64xf32>
    %134 = arith.select %128, %126, %133 : vector<8x64xi1>, vector<8x64xf32>
    %135 = arith.truncf %134 : vector<8x64xf32> to vector<8x64xbf16>
    %cst_111 = arith.constant 0.000000e+00 : f32
    %136 = vector.broadcast %cst_111 : f32 to vector<2x16xf32>
    %c0_112 = arith.constant 0 : index
    %c0_113 = arith.constant 0 : index
    %c0_114 = arith.constant 0 : index
    %137 = vector.load %arg12[%c0_112, %c0_113, %c0_114] : memref<4x2x8xbf16, #tpu.memory_space<vmem>>, vector<1x2x8xbf16>
    %138 = vector.shape_cast %137 : vector<1x2x8xbf16> to vector<2x8xbf16>
    %cst_115 = arith.constant dense<0.000000e+00> : vector<2x64xf32>
    %139 = tpu.matmul %138, %135, %cst_115 {dimension_numbers = #tpu.dot_dimension_numbers<[1], [0], [0], [1], [0, 0, 1, 1], [], []>} : vector<2x8xbf16>, vector<8x64xbf16>, vector<2x64xf32> -> vector<2x64xf32>
    %140 = arith.truncf %139 : vector<2x64xf32> to vector<2x64xbf16>
    %c0_116 = arith.constant 0 : index
    %c0_117 = arith.constant 0 : index
    %c0_118 = arith.constant 0 : index
    %141 = vector.load %arg13[%c0_116, %c0_117, %c0_118] : memref<4x64x16xbf16, #tpu.memory_space<vmem>>, vector<1x64x16xbf16>
    %142 = vector.shape_cast %141 : vector<1x64x16xbf16> to vector<64x16xbf16>
    %cst_119 = arith.constant dense<0.000000e+00> : vector<2x16xf32>
    %143 = tpu.matmul %140, %142, %cst_119 {dimension_numbers = #tpu.dot_dimension_numbers<[1], [0], [0], [1], [0, 0, 1, 1], [], []>} : vector<2x64xbf16>, vector<64x16xbf16>, vector<2x16xf32> -> vector<2x16xf32>
    %144 = arith.addf %136, %143 : vector<2x16xf32>
    %c1_120 = arith.constant 1 : index
    %c0_121 = arith.constant 0 : index
    %c0_122 = arith.constant 0 : index
    %145 = vector.load %arg12[%c1_120, %c0_121, %c0_122] : memref<4x2x8xbf16, #tpu.memory_space<vmem>>, vector<1x2x8xbf16>
    %146 = vector.shape_cast %145 : vector<1x2x8xbf16> to vector<2x8xbf16>
    %cst_123 = arith.constant dense<0.000000e+00> : vector<2x64xf32>
    %147 = tpu.matmul %146, %135, %cst_123 {dimension_numbers = #tpu.dot_dimension_numbers<[1], [0], [0], [1], [0, 0, 1, 1], [], []>} : vector<2x8xbf16>, vector<8x64xbf16>, vector<2x64xf32> -> vector<2x64xf32>
    %148 = arith.truncf %147 : vector<2x64xf32> to vector<2x64xbf16>
    %c1_124 = arith.constant 1 : index
    %c0_125 = arith.constant 0 : index
    %c0_126 = arith.constant 0 : index
    %149 = vector.load %arg13[%c1_124, %c0_125, %c0_126] : memref<4x64x16xbf16, #tpu.memory_space<vmem>>, vector<1x64x16xbf16>
    %150 = vector.shape_cast %149 : vector<1x64x16xbf16> to vector<64x16xbf16>
    %cst_127 = arith.constant dense<0.000000e+00> : vector<2x16xf32>
    %151 = tpu.matmul %148, %150, %cst_127 {dimension_numbers = #tpu.dot_dimension_numbers<[1], [0], [0], [1], [0, 0, 1, 1], [], []>} : vector<2x64xbf16>, vector<64x16xbf16>, vector<2x16xf32> -> vector<2x16xf32>
    %152 = arith.addf %144, %151 : vector<2x16xf32>
    %c2_128 = arith.constant 2 : index
    %c0_129 = arith.constant 0 : index
    %c0_130 = arith.constant 0 : index
    %153 = vector.load %arg12[%c2_128, %c0_129, %c0_130] : memref<4x2x8xbf16, #tpu.memory_space<vmem>>, vector<1x2x8xbf16>
    %154 = vector.shape_cast %153 : vector<1x2x8xbf16> to vector<2x8xbf16>
    %cst_131 = arith.constant dense<0.000000e+00> : vector<2x64xf32>
    %155 = tpu.matmul %154, %135, %cst_131 {dimension_numbers = #tpu.dot_dimension_numbers<[1], [0], [0], [1], [0, 0, 1, 1], [], []>} : vector<2x8xbf16>, vector<8x64xbf16>, vector<2x64xf32> -> vector<2x64xf32>
    %156 = arith.truncf %155 : vector<2x64xf32> to vector<2x64xbf16>
    %c2_132 = arith.constant 2 : index
    %c0_133 = arith.constant 0 : index
    %c0_134 = arith.constant 0 : index
    %157 = vector.load %arg13[%c2_132, %c0_133, %c0_134] : memref<4x64x16xbf16, #tpu.memory_space<vmem>>, vector<1x64x16xbf16>
    %158 = vector.shape_cast %157 : vector<1x64x16xbf16> to vector<64x16xbf16>
    %cst_135 = arith.constant dense<0.000000e+00> : vector<2x16xf32>
    %159 = tpu.matmul %156, %158, %cst_135 {dimension_numbers = #tpu.dot_dimension_numbers<[1], [0], [0], [1], [0, 0, 1, 1], [], []>} : vector<2x64xbf16>, vector<64x16xbf16>, vector<2x16xf32> -> vector<2x16xf32>
    %160 = arith.addf %152, %159 : vector<2x16xf32>
    %c3_136 = arith.constant 3 : index
    %c0_137 = arith.constant 0 : index
    %c0_138 = arith.constant 0 : index
    %161 = vector.load %arg12[%c3_136, %c0_137, %c0_138] : memref<4x2x8xbf16, #tpu.memory_space<vmem>>, vector<1x2x8xbf16>
    %162 = vector.shape_cast %161 : vector<1x2x8xbf16> to vector<2x8xbf16>
    %cst_139 = arith.constant dense<0.000000e+00> : vector<2x64xf32>
    %163 = tpu.matmul %162, %135, %cst_139 {dimension_numbers = #tpu.dot_dimension_numbers<[1], [0], [0], [1], [0, 0, 1, 1], [], []>} : vector<2x8xbf16>, vector<8x64xbf16>, vector<2x64xf32> -> vector<2x64xf32>
    %164 = arith.truncf %163 : vector<2x64xf32> to vector<2x64xbf16>
    %c3_140 = arith.constant 3 : index
    %c0_141 = arith.constant 0 : index
    %c0_142 = arith.constant 0 : index
    %165 = vector.load %arg13[%c3_140, %c0_141, %c0_142] : memref<4x64x16xbf16, #tpu.memory_space<vmem>>, vector<1x64x16xbf16>
    %166 = vector.shape_cast %165 : vector<1x64x16xbf16> to vector<64x16xbf16>
    %cst_143 = arith.constant dense<0.000000e+00> : vector<2x16xf32>
    %167 = tpu.matmul %164, %166, %cst_143 {dimension_numbers = #tpu.dot_dimension_numbers<[1], [0], [0], [1], [0, 0, 1, 1], [], []>} : vector<2x64xbf16>, vector<64x16xbf16>, vector<2x16xf32> -> vector<2x16xf32>
    %168 = arith.addf %160, %167 : vector<2x16xf32>
    %c0_144 = arith.constant 0 : index
    %c0_145 = arith.constant 0 : index
    %169 = vector.load %arg14[%c0_144, %c0_145] : memref<1x16xf32, #tpu.memory_space<vmem>>, vector<1x16xf32>
    %170 = vector.broadcast %169 : vector<1x16xf32> to vector<2x16xf32>
    %171 = arith.addf %168, %170 : vector<2x16xf32>
    %cst_146 = arith.constant 0.000000e+00 : f32
    %172 = vector.broadcast %cst_146 : f32 to vector<2x16xf32>
    %173 = arith.cmpf ogt, %171, %172 : vector<2x16xf32>
    %cst_147 = arith.constant 0.000000e+00 : f32
    %174 = vector.broadcast %cst_147 : f32 to vector<2x16xf32>
    %175 = arith.minimumf %171, %174 : vector<2x16xf32>
    %176 = math.exp %175 : vector<2x16xf32>
    %cst_148 = arith.constant 1.000000e+00 : f32
    %177 = vector.broadcast %cst_148 : f32 to vector<2x16xf32>
    %178 = arith.subf %176, %177 : vector<2x16xf32>
    %179 = arith.select %173, %171, %178 : vector<2x16xi1>, vector<2x16xf32>
    %180 = arith.truncf %179 : vector<2x16xf32> to vector<2x16xbf16>
    %cst_149 = arith.constant 0.000000e+00 : f32
    %181 = vector.broadcast %cst_149 : f32 to vector<8x64xf32>
    %c0_150 = arith.constant 0 : index
    %c0_151 = arith.constant 0 : index
    %c0_152 = arith.constant 0 : index
    %182 = vector.load %arg15[%c0_150, %c0_151, %c0_152] : memref<4x8x2xbf16, #tpu.memory_space<vmem>>, vector<1x8x2xbf16>
    %183 = vector.shape_cast %182 : vector<1x8x2xbf16> to vector<8x2xbf16>
    %cst_153 = arith.constant dense<0.000000e+00> : vector<8x16xf32>
    %184 = tpu.matmul %183, %180, %cst_153 {dimension_numbers = #tpu.dot_dimension_numbers<[1], [0], [0], [1], [0, 0, 1, 1], [], []>} : vector<8x2xbf16>, vector<2x16xbf16>, vector<8x16xf32> -> vector<8x16xf32>
    %185 = arith.truncf %184 : vector<8x16xf32> to vector<8x16xbf16>
    %c0_154 = arith.constant 0 : index
    %c0_155 = arith.constant 0 : index
    %c0_156 = arith.constant 0 : index
    %186 = vector.load %arg16[%c0_154, %c0_155, %c0_156] : memref<4x16x64xbf16, #tpu.memory_space<vmem>>, vector<1x16x64xbf16>
    %187 = vector.shape_cast %186 : vector<1x16x64xbf16> to vector<16x64xbf16>
    %cst_157 = arith.constant dense<0.000000e+00> : vector<8x64xf32>
    %188 = tpu.matmul %185, %187, %cst_157 {dimension_numbers = #tpu.dot_dimension_numbers<[1], [0], [0], [1], [0, 0, 1, 1], [], []>} : vector<8x16xbf16>, vector<16x64xbf16>, vector<8x64xf32> -> vector<8x64xf32>
    %189 = arith.addf %181, %188 : vector<8x64xf32>
    %c1_158 = arith.constant 1 : index
    %c0_159 = arith.constant 0 : index
    %c0_160 = arith.constant 0 : index
    %190 = vector.load %arg15[%c1_158, %c0_159, %c0_160] : memref<4x8x2xbf16, #tpu.memory_space<vmem>>, vector<1x8x2xbf16>
    %191 = vector.shape_cast %190 : vector<1x8x2xbf16> to vector<8x2xbf16>
    %cst_161 = arith.constant dense<0.000000e+00> : vector<8x16xf32>
    %192 = tpu.matmul %191, %180, %cst_161 {dimension_numbers = #tpu.dot_dimension_numbers<[1], [0], [0], [1], [0, 0, 1, 1], [], []>} : vector<8x2xbf16>, vector<2x16xbf16>, vector<8x16xf32> -> vector<8x16xf32>
    %193 = arith.truncf %192 : vector<8x16xf32> to vector<8x16xbf16>
    %c1_162 = arith.constant 1 : index
    %c0_163 = arith.constant 0 : index
    %c0_164 = arith.constant 0 : index
    %194 = vector.load %arg16[%c1_162, %c0_163, %c0_164] : memref<4x16x64xbf16, #tpu.memory_space<vmem>>, vector<1x16x64xbf16>
    %195 = vector.shape_cast %194 : vector<1x16x64xbf16> to vector<16x64xbf16>
    %cst_165 = arith.constant dense<0.000000e+00> : vector<8x64xf32>
    %196 = tpu.matmul %193, %195, %cst_165 {dimension_numbers = #tpu.dot_dimension_numbers<[1], [0], [0], [1], [0, 0, 1, 1], [], []>} : vector<8x16xbf16>, vector<16x64xbf16>, vector<8x64xf32> -> vector<8x64xf32>
    %197 = arith.addf %189, %196 : vector<8x64xf32>
    %c2_166 = arith.constant 2 : index
    %c0_167 = arith.constant 0 : index
    %c0_168 = arith.constant 0 : index
    %198 = vector.load %arg15[%c2_166, %c0_167, %c0_168] : memref<4x8x2xbf16, #tpu.memory_space<vmem>>, vector<1x8x2xbf16>
    %199 = vector.shape_cast %198 : vector<1x8x2xbf16> to vector<8x2xbf16>
    %cst_169 = arith.constant dense<0.000000e+00> : vector<8x16xf32>
    %200 = tpu.matmul %199, %180, %cst_169 {dimension_numbers = #tpu.dot_dimension_numbers<[1], [0], [0], [1], [0, 0, 1, 1], [], []>} : vector<8x2xbf16>, vector<2x16xbf16>, vector<8x16xf32> -> vector<8x16xf32>
    %201 = arith.truncf %200 : vector<8x16xf32> to vector<8x16xbf16>
    %c2_170 = arith.constant 2 : index
    %c0_171 = arith.constant 0 : index
    %c0_172 = arith.constant 0 : index
    %202 = vector.load %arg16[%c2_170, %c0_171, %c0_172] : memref<4x16x64xbf16, #tpu.memory_space<vmem>>, vector<1x16x64xbf16>
    %203 = vector.shape_cast %202 : vector<1x16x64xbf16> to vector<16x64xbf16>
    %cst_173 = arith.constant dense<0.000000e+00> : vector<8x64xf32>
    %204 = tpu.matmul %201, %203, %cst_173 {dimension_numbers = #tpu.dot_dimension_numbers<[1], [0], [0], [1], [0, 0, 1, 1], [], []>} : vector<8x16xbf16>, vector<16x64xbf16>, vector<8x64xf32> -> vector<8x64xf32>
    %205 = arith.addf %197, %204 : vector<8x64xf32>
    %c3_174 = arith.constant 3 : index
    %c0_175 = arith.constant 0 : index
    %c0_176 = arith.constant 0 : index
    %206 = vector.load %arg15[%c3_174, %c0_175, %c0_176] : memref<4x8x2xbf16, #tpu.memory_space<vmem>>, vector<1x8x2xbf16>
    %207 = vector.shape_cast %206 : vector<1x8x2xbf16> to vector<8x2xbf16>
    %cst_177 = arith.constant dense<0.000000e+00> : vector<8x16xf32>
    %208 = tpu.matmul %207, %180, %cst_177 {dimension_numbers = #tpu.dot_dimension_numbers<[1], [0], [0], [1], [0, 0, 1, 1], [], []>} : vector<8x2xbf16>, vector<2x16xbf16>, vector<8x16xf32> -> vector<8x16xf32>
    %209 = arith.truncf %208 : vector<8x16xf32> to vector<8x16xbf16>
    %c3_178 = arith.constant 3 : index
    %c0_179 = arith.constant 0 : index
    %c0_180 = arith.constant 0 : index
    %210 = vector.load %arg16[%c3_178, %c0_179, %c0_180] : memref<4x16x64xbf16, #tpu.memory_space<vmem>>, vector<1x16x64xbf16>
    %211 = vector.shape_cast %210 : vector<1x16x64xbf16> to vector<16x64xbf16>
    %cst_181 = arith.constant dense<0.000000e+00> : vector<8x64xf32>
    %212 = tpu.matmul %209, %211, %cst_181 {dimension_numbers = #tpu.dot_dimension_numbers<[1], [0], [0], [1], [0, 0, 1, 1], [], []>} : vector<8x16xbf16>, vector<16x64xbf16>, vector<8x64xf32> -> vector<8x64xf32>
    %213 = arith.addf %205, %212 : vector<8x64xf32>
    %c0_182 = arith.constant 0 : index
    %c0_183 = arith.constant 0 : index
    %214 = vector.load %arg17[%c0_182, %c0_183] : memref<1x64xf32, #tpu.memory_space<vmem>>, vector<1x64xf32>
    %215 = vector.broadcast %214 : vector<1x64xf32> to vector<8x64xf32>
    %216 = arith.addf %213, %215 : vector<8x64xf32>
    %cst_184 = arith.constant 0.000000e+00 : f32
    %217 = vector.broadcast %cst_184 : f32 to vector<8x64xf32>
    %218 = arith.cmpf ogt, %216, %217 : vector<8x64xf32>
    %cst_185 = arith.constant 0.000000e+00 : f32
    %219 = vector.broadcast %cst_185 : f32 to vector<8x64xf32>
    %220 = arith.minimumf %216, %219 : vector<8x64xf32>
    %221 = math.exp %220 : vector<8x64xf32>
    %cst_186 = arith.constant 1.000000e+00 : f32
    %222 = vector.broadcast %cst_186 : f32 to vector<8x64xf32>
    %223 = arith.subf %221, %222 : vector<8x64xf32>
    %224 = arith.select %218, %216, %223 : vector<8x64xi1>, vector<8x64xf32>
    %225 = arith.addf %224, %134 : vector<8x64xf32>
    %226 = arith.truncf %225 : vector<8x64xf32> to vector<8x64xbf16>
    %cst_187 = arith.constant 0.000000e+00 : f32
    %227 = vector.broadcast %cst_187 : f32 to vector<16x64xf32>
    %c0_188 = arith.constant 0 : index
    %c0_189 = arith.constant 0 : index
    %c0_190 = arith.constant 0 : index
    %228 = vector.load %arg18[%c0_188, %c0_189, %c0_190] : memref<4x16x8xbf16, #tpu.memory_space<vmem>>, vector<1x16x8xbf16>
    %229 = vector.shape_cast %228 : vector<1x16x8xbf16> to vector<16x8xbf16>
    %cst_191 = arith.constant dense<0.000000e+00> : vector<16x64xf32>
    %230 = tpu.matmul %229, %226, %cst_191 {dimension_numbers = #tpu.dot_dimension_numbers<[1], [0], [0], [1], [0, 0, 1, 1], [], []>} : vector<16x8xbf16>, vector<8x64xbf16>, vector<16x64xf32> -> vector<16x64xf32>
    %231 = arith.truncf %230 : vector<16x64xf32> to vector<16x64xbf16>
    %c0_192 = arith.constant 0 : index
    %c0_193 = arith.constant 0 : index
    %c0_194 = arith.constant 0 : index
    %232 = vector.load %arg19[%c0_192, %c0_193, %c0_194] : memref<4x64x64xbf16, #tpu.memory_space<vmem>>, vector<1x64x64xbf16>
    %233 = vector.shape_cast %232 : vector<1x64x64xbf16> to vector<64x64xbf16>
    %cst_195 = arith.constant dense<0.000000e+00> : vector<16x64xf32>
    %234 = tpu.matmul %231, %233, %cst_195 {dimension_numbers = #tpu.dot_dimension_numbers<[1], [0], [0], [1], [0, 0, 1, 1], [], []>} : vector<16x64xbf16>, vector<64x64xbf16>, vector<16x64xf32> -> vector<16x64xf32>
    %235 = arith.addf %227, %234 : vector<16x64xf32>
    %c1_196 = arith.constant 1 : index
    %c0_197 = arith.constant 0 : index
    %c0_198 = arith.constant 0 : index
    %236 = vector.load %arg18[%c1_196, %c0_197, %c0_198] : memref<4x16x8xbf16, #tpu.memory_space<vmem>>, vector<1x16x8xbf16>
    %237 = vector.shape_cast %236 : vector<1x16x8xbf16> to vector<16x8xbf16>
    %cst_199 = arith.constant dense<0.000000e+00> : vector<16x64xf32>
    %238 = tpu.matmul %237, %226, %cst_199 {dimension_numbers = #tpu.dot_dimension_numbers<[1], [0], [0], [1], [0, 0, 1, 1], [], []>} : vector<16x8xbf16>, vector<8x64xbf16>, vector<16x64xf32> -> vector<16x64xf32>
    %239 = arith.truncf %238 : vector<16x64xf32> to vector<16x64xbf16>
    %c1_200 = arith.constant 1 : index
    %c0_201 = arith.constant 0 : index
    %c0_202 = arith.constant 0 : index
    %240 = vector.load %arg19[%c1_200, %c0_201, %c0_202] : memref<4x64x64xbf16, #tpu.memory_space<vmem>>, vector<1x64x64xbf16>
    %241 = vector.shape_cast %240 : vector<1x64x64xbf16> to vector<64x64xbf16>
    %cst_203 = arith.constant dense<0.000000e+00> : vector<16x64xf32>
    %242 = tpu.matmul %239, %241, %cst_203 {dimension_numbers = #tpu.dot_dimension_numbers<[1], [0], [0], [1], [0, 0, 1, 1], [], []>} : vector<16x64xbf16>, vector<64x64xbf16>, vector<16x64xf32> -> vector<16x64xf32>
    %243 = arith.addf %235, %242 : vector<16x64xf32>
    %c2_204 = arith.constant 2 : index
    %c0_205 = arith.constant 0 : index
    %c0_206 = arith.constant 0 : index
    %244 = vector.load %arg18[%c2_204, %c0_205, %c0_206] : memref<4x16x8xbf16, #tpu.memory_space<vmem>>, vector<1x16x8xbf16>
    %245 = vector.shape_cast %244 : vector<1x16x8xbf16> to vector<16x8xbf16>
    %cst_207 = arith.constant dense<0.000000e+00> : vector<16x64xf32>
    %246 = tpu.matmul %245, %226, %cst_207 {dimension_numbers = #tpu.dot_dimension_numbers<[1], [0], [0], [1], [0, 0, 1, 1], [], []>} : vector<16x8xbf16>, vector<8x64xbf16>, vector<16x64xf32> -> vector<16x64xf32>
    %247 = arith.truncf %246 : vector<16x64xf32> to vector<16x64xbf16>
    %c2_208 = arith.constant 2 : index
    %c0_209 = arith.constant 0 : index
    %c0_210 = arith.constant 0 : index
    %248 = vector.load %arg19[%c2_208, %c0_209, %c0_210] : memref<4x64x64xbf16, #tpu.memory_space<vmem>>, vector<1x64x64xbf16>
    %249 = vector.shape_cast %248 : vector<1x64x64xbf16> to vector<64x64xbf16>
    %cst_211 = arith.constant dense<0.000000e+00> : vector<16x64xf32>
    %250 = tpu.matmul %247, %249, %cst_211 {dimension_numbers = #tpu.dot_dimension_numbers<[1], [0], [0], [1], [0, 0, 1, 1], [], []>} : vector<16x64xbf16>, vector<64x64xbf16>, vector<16x64xf32> -> vector<16x64xf32>
    %251 = arith.addf %243, %250 : vector<16x64xf32>
    %c3_212 = arith.constant 3 : index
    %c0_213 = arith.constant 0 : index
    %c0_214 = arith.constant 0 : index
    %252 = vector.load %arg18[%c3_212, %c0_213, %c0_214] : memref<4x16x8xbf16, #tpu.memory_space<vmem>>, vector<1x16x8xbf16>
    %253 = vector.shape_cast %252 : vector<1x16x8xbf16> to vector<16x8xbf16>
    %cst_215 = arith.constant dense<0.000000e+00> : vector<16x64xf32>
    %254 = tpu.matmul %253, %226, %cst_215 {dimension_numbers = #tpu.dot_dimension_numbers<[1], [0], [0], [1], [0, 0, 1, 1], [], []>} : vector<16x8xbf16>, vector<8x64xbf16>, vector<16x64xf32> -> vector<16x64xf32>
    %255 = arith.truncf %254 : vector<16x64xf32> to vector<16x64xbf16>
    %c3_216 = arith.constant 3 : index
    %c0_217 = arith.constant 0 : index
    %c0_218 = arith.constant 0 : index
    %256 = vector.load %arg19[%c3_216, %c0_217, %c0_218] : memref<4x64x64xbf16, #tpu.memory_space<vmem>>, vector<1x64x64xbf16>
    %257 = vector.shape_cast %256 : vector<1x64x64xbf16> to vector<64x64xbf16>
    %cst_219 = arith.constant dense<0.000000e+00> : vector<16x64xf32>
    %258 = tpu.matmul %255, %257, %cst_219 {dimension_numbers = #tpu.dot_dimension_numbers<[1], [0], [0], [1], [0, 0, 1, 1], [], []>} : vector<16x64xbf16>, vector<64x64xbf16>, vector<16x64xf32> -> vector<16x64xf32>
    %259 = arith.addf %251, %258 : vector<16x64xf32>
    %c0_220 = arith.constant 0 : index
    %c0_221 = arith.constant 0 : index
    %260 = vector.load %arg20[%c0_220, %c0_221] : memref<1x64xf32, #tpu.memory_space<vmem>>, vector<1x64xf32>
    %261 = vector.broadcast %260 : vector<1x64xf32> to vector<16x64xf32>
    %262 = arith.addf %259, %261 : vector<16x64xf32>
    %cst_222 = arith.constant 0.000000e+00 : f32
    %263 = vector.broadcast %cst_222 : f32 to vector<16x64xf32>
    %264 = arith.cmpf ogt, %262, %263 : vector<16x64xf32>
    %cst_223 = arith.constant 0.000000e+00 : f32
    %265 = vector.broadcast %cst_223 : f32 to vector<16x64xf32>
    %266 = arith.minimumf %262, %265 : vector<16x64xf32>
    %267 = math.exp %266 : vector<16x64xf32>
    %cst_224 = arith.constant 1.000000e+00 : f32
    %268 = vector.broadcast %cst_224 : f32 to vector<16x64xf32>
    %269 = arith.subf %267, %268 : vector<16x64xf32>
    %270 = arith.select %264, %262, %269 : vector<16x64xi1>, vector<16x64xf32>
    %271 = arith.addf %270, %89 : vector<16x64xf32>
    %272 = arith.truncf %271 : vector<16x64xf32> to vector<16x64xbf16>
    %cst_225 = arith.constant 0.000000e+00 : f32
    %273 = vector.broadcast %cst_225 : f32 to vector<32x128xf32>
    %c0_226 = arith.constant 0 : index
    %c0_227 = arith.constant 0 : index
    %c0_228 = arith.constant 0 : index
    %274 = vector.load %arg21[%c0_226, %c0_227, %c0_228] : memref<4x32x16xbf16, #tpu.memory_space<vmem>>, vector<1x32x16xbf16>
    %275 = vector.shape_cast %274 : vector<1x32x16xbf16> to vector<32x16xbf16>
    %cst_229 = arith.constant dense<0.000000e+00> : vector<32x64xf32>
    %276 = tpu.matmul %275, %272, %cst_229 {dimension_numbers = #tpu.dot_dimension_numbers<[1], [0], [0], [1], [0, 0, 1, 1], [], []>} : vector<32x16xbf16>, vector<16x64xbf16>, vector<32x64xf32> -> vector<32x64xf32>
    %277 = arith.truncf %276 : vector<32x64xf32> to vector<32x64xbf16>
    %c0_230 = arith.constant 0 : index
    %c0_231 = arith.constant 0 : index
    %c0_232 = arith.constant 0 : index
    %278 = vector.load %arg22[%c0_230, %c0_231, %c0_232] : memref<4x64x128xbf16, #tpu.memory_space<vmem>>, vector<1x64x128xbf16>
    %279 = vector.shape_cast %278 : vector<1x64x128xbf16> to vector<64x128xbf16>
    %cst_233 = arith.constant dense<0.000000e+00> : vector<32x128xf32>
    %280 = tpu.matmul %277, %279, %cst_233 {dimension_numbers = #tpu.dot_dimension_numbers<[1], [0], [0], [1], [0, 0, 1, 1], [], []>} : vector<32x64xbf16>, vector<64x128xbf16>, vector<32x128xf32> -> vector<32x128xf32>
    %281 = arith.addf %273, %280 : vector<32x128xf32>
    %c1_234 = arith.constant 1 : index
    %c0_235 = arith.constant 0 : index
    %c0_236 = arith.constant 0 : index
    %282 = vector.load %arg21[%c1_234, %c0_235, %c0_236] : memref<4x32x16xbf16, #tpu.memory_space<vmem>>, vector<1x32x16xbf16>
    %283 = vector.shape_cast %282 : vector<1x32x16xbf16> to vector<32x16xbf16>
    %cst_237 = arith.constant dense<0.000000e+00> : vector<32x64xf32>
    %284 = tpu.matmul %283, %272, %cst_237 {dimension_numbers = #tpu.dot_dimension_numbers<[1], [0], [0], [1], [0, 0, 1, 1], [], []>} : vector<32x16xbf16>, vector<16x64xbf16>, vector<32x64xf32> -> vector<32x64xf32>
    %285 = arith.truncf %284 : vector<32x64xf32> to vector<32x64xbf16>
    %c1_238 = arith.constant 1 : index
    %c0_239 = arith.constant 0 : index
    %c0_240 = arith.constant 0 : index
    %286 = vector.load %arg22[%c1_238, %c0_239, %c0_240] : memref<4x64x128xbf16, #tpu.memory_space<vmem>>, vector<1x64x128xbf16>
    %287 = vector.shape_cast %286 : vector<1x64x128xbf16> to vector<64x128xbf16>
    %cst_241 = arith.constant dense<0.000000e+00> : vector<32x128xf32>
    %288 = tpu.matmul %285, %287, %cst_241 {dimension_numbers = #tpu.dot_dimension_numbers<[1], [0], [0], [1], [0, 0, 1, 1], [], []>} : vector<32x64xbf16>, vector<64x128xbf16>, vector<32x128xf32> -> vector<32x128xf32>
    %289 = arith.addf %281, %288 : vector<32x128xf32>
    %c2_242 = arith.constant 2 : index
    %c0_243 = arith.constant 0 : index
    %c0_244 = arith.constant 0 : index
    %290 = vector.load %arg21[%c2_242, %c0_243, %c0_244] : memref<4x32x16xbf16, #tpu.memory_space<vmem>>, vector<1x32x16xbf16>
    %291 = vector.shape_cast %290 : vector<1x32x16xbf16> to vector<32x16xbf16>
    %cst_245 = arith.constant dense<0.000000e+00> : vector<32x64xf32>
    %292 = tpu.matmul %291, %272, %cst_245 {dimension_numbers = #tpu.dot_dimension_numbers<[1], [0], [0], [1], [0, 0, 1, 1], [], []>} : vector<32x16xbf16>, vector<16x64xbf16>, vector<32x64xf32> -> vector<32x64xf32>
    %293 = arith.truncf %292 : vector<32x64xf32> to vector<32x64xbf16>
    %c2_246 = arith.constant 2 : index
    %c0_247 = arith.constant 0 : index
    %c0_248 = arith.constant 0 : index
    %294 = vector.load %arg22[%c2_246, %c0_247, %c0_248] : memref<4x64x128xbf16, #tpu.memory_space<vmem>>, vector<1x64x128xbf16>
    %295 = vector.shape_cast %294 : vector<1x64x128xbf16> to vector<64x128xbf16>
    %cst_249 = arith.constant dense<0.000000e+00> : vector<32x128xf32>
    %296 = tpu.matmul %293, %295, %cst_249 {dimension_numbers = #tpu.dot_dimension_numbers<[1], [0], [0], [1], [0, 0, 1, 1], [], []>} : vector<32x64xbf16>, vector<64x128xbf16>, vector<32x128xf32> -> vector<32x128xf32>
    %297 = arith.addf %289, %296 : vector<32x128xf32>
    %c3_250 = arith.constant 3 : index
    %c0_251 = arith.constant 0 : index
    %c0_252 = arith.constant 0 : index
    %298 = vector.load %arg21[%c3_250, %c0_251, %c0_252] : memref<4x32x16xbf16, #tpu.memory_space<vmem>>, vector<1x32x16xbf16>
    %299 = vector.shape_cast %298 : vector<1x32x16xbf16> to vector<32x16xbf16>
    %cst_253 = arith.constant dense<0.000000e+00> : vector<32x64xf32>
    %300 = tpu.matmul %299, %272, %cst_253 {dimension_numbers = #tpu.dot_dimension_numbers<[1], [0], [0], [1], [0, 0, 1, 1], [], []>} : vector<32x16xbf16>, vector<16x64xbf16>, vector<32x64xf32> -> vector<32x64xf32>
    %301 = arith.truncf %300 : vector<32x64xf32> to vector<32x64xbf16>
    %c3_254 = arith.constant 3 : index
    %c0_255 = arith.constant 0 : index
    %c0_256 = arith.constant 0 : index
    %302 = vector.load %arg22[%c3_254, %c0_255, %c0_256] : memref<4x64x128xbf16, #tpu.memory_space<vmem>>, vector<1x64x128xbf16>
    %303 = vector.shape_cast %302 : vector<1x64x128xbf16> to vector<64x128xbf16>
    %cst_257 = arith.constant dense<0.000000e+00> : vector<32x128xf32>
    %304 = tpu.matmul %301, %303, %cst_257 {dimension_numbers = #tpu.dot_dimension_numbers<[1], [0], [0], [1], [0, 0, 1, 1], [], []>} : vector<32x64xbf16>, vector<64x128xbf16>, vector<32x128xf32> -> vector<32x128xf32>
    %305 = arith.addf %297, %304 : vector<32x128xf32>
    %c0_258 = arith.constant 0 : index
    %c0_259 = arith.constant 0 : index
    %306 = vector.load %arg23[%c0_258, %c0_259] : memref<1x128xf32, #tpu.memory_space<vmem>>, vector<1x128xf32>
    %307 = vector.broadcast %306 : vector<1x128xf32> to vector<32x128xf32>
    %308 = arith.addf %305, %307 : vector<32x128xf32>
    %cst_260 = arith.constant 0.000000e+00 : f32
    %309 = vector.broadcast %cst_260 : f32 to vector<32x128xf32>
    %310 = arith.cmpf ogt, %308, %309 : vector<32x128xf32>
    %cst_261 = arith.constant 0.000000e+00 : f32
    %311 = vector.broadcast %cst_261 : f32 to vector<32x128xf32>
    %312 = arith.minimumf %308, %311 : vector<32x128xf32>
    %313 = math.exp %312 : vector<32x128xf32>
    %cst_262 = arith.constant 1.000000e+00 : f32
    %314 = vector.broadcast %cst_262 : f32 to vector<32x128xf32>
    %315 = arith.subf %313, %314 : vector<32x128xf32>
    %316 = arith.select %310, %308, %315 : vector<32x128xi1>, vector<32x128xf32>
    %317 = arith.addf %316, %44 : vector<32x128xf32>
    %318 = arith.truncf %317 : vector<32x128xf32> to vector<32x128xbf16>
    %cst_263 = arith.constant 0.000000e+00 : f32
    %319 = vector.broadcast %cst_263 : f32 to vector<64x128xf32>
    %c0_264 = arith.constant 0 : index
    %c0_265 = arith.constant 0 : index
    %c0_266 = arith.constant 0 : index
    %320 = vector.load %arg24[%c0_264, %c0_265, %c0_266] : memref<4x64x32xbf16, #tpu.memory_space<vmem>>, vector<1x64x32xbf16>
    %321 = vector.shape_cast %320 : vector<1x64x32xbf16> to vector<64x32xbf16>
    %cst_267 = arith.constant dense<0.000000e+00> : vector<64x128xf32>
    %322 = tpu.matmul %321, %318, %cst_267 {dimension_numbers = #tpu.dot_dimension_numbers<[1], [0], [0], [1], [0, 0, 1, 1], [], []>} : vector<64x32xbf16>, vector<32x128xbf16>, vector<64x128xf32> -> vector<64x128xf32>
    %323 = arith.truncf %322 : vector<64x128xf32> to vector<64x128xbf16>
    %c0_268 = arith.constant 0 : index
    %c0_269 = arith.constant 0 : index
    %c0_270 = arith.constant 0 : index
    %324 = vector.load %arg25[%c0_268, %c0_269, %c0_270] : memref<4x128x128xbf16, #tpu.memory_space<vmem>>, vector<1x128x128xbf16>
    %325 = vector.shape_cast %324 : vector<1x128x128xbf16> to vector<128x128xbf16>
    %cst_271 = arith.constant dense<0.000000e+00> : vector<64x128xf32>
    %326 = tpu.matmul %323, %325, %cst_271 {dimension_numbers = #tpu.dot_dimension_numbers<[1], [0], [0], [1], [0, 0, 1, 1], [], []>} : vector<64x128xbf16>, vector<128x128xbf16>, vector<64x128xf32> -> vector<64x128xf32>
    %327 = arith.addf %319, %326 : vector<64x128xf32>
    %c1_272 = arith.constant 1 : index
    %c0_273 = arith.constant 0 : index
    %c0_274 = arith.constant 0 : index
    %328 = vector.load %arg24[%c1_272, %c0_273, %c0_274] : memref<4x64x32xbf16, #tpu.memory_space<vmem>>, vector<1x64x32xbf16>
    %329 = vector.shape_cast %328 : vector<1x64x32xbf16> to vector<64x32xbf16>
    %cst_275 = arith.constant dense<0.000000e+00> : vector<64x128xf32>
    %330 = tpu.matmul %329, %318, %cst_275 {dimension_numbers = #tpu.dot_dimension_numbers<[1], [0], [0], [1], [0, 0, 1, 1], [], []>} : vector<64x32xbf16>, vector<32x128xbf16>, vector<64x128xf32> -> vector<64x128xf32>
    %331 = arith.truncf %330 : vector<64x128xf32> to vector<64x128xbf16>
    %c1_276 = arith.constant 1 : index
    %c0_277 = arith.constant 0 : index
    %c0_278 = arith.constant 0 : index
    %332 = vector.load %arg25[%c1_276, %c0_277, %c0_278] : memref<4x128x128xbf16, #tpu.memory_space<vmem>>, vector<1x128x128xbf16>
    %333 = vector.shape_cast %332 : vector<1x128x128xbf16> to vector<128x128xbf16>
    %cst_279 = arith.constant dense<0.000000e+00> : vector<64x128xf32>
    %334 = tpu.matmul %331, %333, %cst_279 {dimension_numbers = #tpu.dot_dimension_numbers<[1], [0], [0], [1], [0, 0, 1, 1], [], []>} : vector<64x128xbf16>, vector<128x128xbf16>, vector<64x128xf32> -> vector<64x128xf32>
    %335 = arith.addf %327, %334 : vector<64x128xf32>
    %c2_280 = arith.constant 2 : index
    %c0_281 = arith.constant 0 : index
    %c0_282 = arith.constant 0 : index
    %336 = vector.load %arg24[%c2_280, %c0_281, %c0_282] : memref<4x64x32xbf16, #tpu.memory_space<vmem>>, vector<1x64x32xbf16>
    %337 = vector.shape_cast %336 : vector<1x64x32xbf16> to vector<64x32xbf16>
    %cst_283 = arith.constant dense<0.000000e+00> : vector<64x128xf32>
    %338 = tpu.matmul %337, %318, %cst_283 {dimension_numbers = #tpu.dot_dimension_numbers<[1], [0], [0], [1], [0, 0, 1, 1], [], []>} : vector<64x32xbf16>, vector<32x128xbf16>, vector<64x128xf32> -> vector<64x128xf32>
    %339 = arith.truncf %338 : vector<64x128xf32> to vector<64x128xbf16>
    %c2_284 = arith.constant 2 : index
    %c0_285 = arith.constant 0 : index
    %c0_286 = arith.constant 0 : index
    %340 = vector.load %arg25[%c2_284, %c0_285, %c0_286] : memref<4x128x128xbf16, #tpu.memory_space<vmem>>, vector<1x128x128xbf16>
    %341 = vector.shape_cast %340 : vector<1x128x128xbf16> to vector<128x128xbf16>
    %cst_287 = arith.constant dense<0.000000e+00> : vector<64x128xf32>
    %342 = tpu.matmul %339, %341, %cst_287 {dimension_numbers = #tpu.dot_dimension_numbers<[1], [0], [0], [1], [0, 0, 1, 1], [], []>} : vector<64x128xbf16>, vector<128x128xbf16>, vector<64x128xf32> -> vector<64x128xf32>
    %343 = arith.addf %335, %342 : vector<64x128xf32>
    %c3_288 = arith.constant 3 : index
    %c0_289 = arith.constant 0 : index
    %c0_290 = arith.constant 0 : index
    %344 = vector.load %arg24[%c3_288, %c0_289, %c0_290] : memref<4x64x32xbf16, #tpu.memory_space<vmem>>, vector<1x64x32xbf16>
    %345 = vector.shape_cast %344 : vector<1x64x32xbf16> to vector<64x32xbf16>
    %cst_291 = arith.constant dense<0.000000e+00> : vector<64x128xf32>
    %346 = tpu.matmul %345, %318, %cst_291 {dimension_numbers = #tpu.dot_dimension_numbers<[1], [0], [0], [1], [0, 0, 1, 1], [], []>} : vector<64x32xbf16>, vector<32x128xbf16>, vector<64x128xf32> -> vector<64x128xf32>
    %347 = arith.truncf %346 : vector<64x128xf32> to vector<64x128xbf16>
    %c3_292 = arith.constant 3 : index
    %c0_293 = arith.constant 0 : index
    %c0_294 = arith.constant 0 : index
    %348 = vector.load %arg25[%c3_292, %c0_293, %c0_294] : memref<4x128x128xbf16, #tpu.memory_space<vmem>>, vector<1x128x128xbf16>
    %349 = vector.shape_cast %348 : vector<1x128x128xbf16> to vector<128x128xbf16>
    %cst_295 = arith.constant dense<0.000000e+00> : vector<64x128xf32>
    %350 = tpu.matmul %347, %349, %cst_295 {dimension_numbers = #tpu.dot_dimension_numbers<[1], [0], [0], [1], [0, 0, 1, 1], [], []>} : vector<64x128xbf16>, vector<128x128xbf16>, vector<64x128xf32> -> vector<64x128xf32>
    %351 = arith.addf %343, %350 : vector<64x128xf32>
    %c0_296 = arith.constant 0 : index
    %c0_297 = arith.constant 0 : index
    %352 = vector.load %arg26[%c0_296, %c0_297] : memref<1x128xf32, #tpu.memory_space<vmem>>, vector<1x128xf32>
    %353 = vector.broadcast %352 : vector<1x128xf32> to vector<64x128xf32>
    %354 = arith.addf %351, %353 : vector<64x128xf32>
    %cst_298 = arith.constant 0.000000e+00 : f32
    %355 = vector.broadcast %cst_298 : f32 to vector<64x128xf32>
    %356 = arith.cmpf ogt, %354, %355 : vector<64x128xf32>
    %cst_299 = arith.constant 0.000000e+00 : f32
    %357 = vector.broadcast %cst_299 : f32 to vector<64x128xf32>
    %358 = arith.minimumf %354, %357 : vector<64x128xf32>
    %359 = math.exp %358 : vector<64x128xf32>
    %cst_300 = arith.constant 1.000000e+00 : f32
    %360 = vector.broadcast %cst_300 : f32 to vector<64x128xf32>
    %361 = arith.subf %359, %360 : vector<64x128xf32>
    %362 = arith.select %356, %354, %361 : vector<64x128xi1>, vector<64x128xf32>
    %363 = arith.truncf %362 : vector<64x128xf32> to vector<64x128xbf16>
    %cst_301 = arith.constant 0.000000e+00 : f32
    %364 = vector.broadcast %cst_301 : f32 to vector<64x96xf32>
    %c0_302 = arith.constant 0 : index
    %c0_303 = arith.constant 0 : index
    %c0_304 = arith.constant 0 : index
    %365 = vector.load %arg27[%c0_302, %c0_303, %c0_304] : memref<1x128x96xbf16, #tpu.memory_space<vmem>>, vector<1x128x96xbf16>
    %366 = vector.shape_cast %365 : vector<1x128x96xbf16> to vector<128x96xbf16>
    %cst_305 = arith.constant dense<0.000000e+00> : vector<64x96xf32>
    %367 = tpu.matmul %363, %366, %cst_305 {dimension_numbers = #tpu.dot_dimension_numbers<[1], [0], [0], [1], [0, 0, 1, 1], [], []>} : vector<64x128xbf16>, vector<128x96xbf16>, vector<64x96xf32> -> vector<64x96xf32>
    %368 = arith.addf %364, %367 : vector<64x96xf32>
    %c0_306 = arith.constant 0 : index
    %c0_307 = arith.constant 0 : index
    %369 = vector.load %arg28[%c0_306, %c0_307] : memref<1x96xf32, #tpu.memory_space<vmem>>, vector<1x96xf32>
    %370 = vector.broadcast %369 : vector<1x96xf32> to vector<64x96xf32>
    %371 = arith.addf %368, %370 : vector<64x96xf32>
    %c0_308 = arith.constant 0 : index
    %c0_309 = arith.constant 0 : index
    %372 = vector.load %arg1[%c0_308, %c0_309] : memref<16x64xbf16, #tpu.memory_space<vmem>>, vector<16x64xbf16>
    %cst_310 = arith.constant dense<0.000000e+00> : vector<16x128xf32>
    %373 = tpu.matmul %372, %0, %cst_310 {dimension_numbers = #tpu.dot_dimension_numbers<[1], [0], [0], [1], [0, 0, 1, 1], [], []>} : vector<16x64xbf16>, vector<64x128xbf16>, vector<16x128xf32> -> vector<16x128xf32>
    %374 = arith.truncf %373 : vector<16x128xf32> to vector<16x128xbf16>
    %c0_311 = arith.constant 0 : index
    %c0_312 = arith.constant 0 : index
    %375 = vector.load %arg2[%c0_311, %c0_312] : memref<128x64xbf16, #tpu.memory_space<vmem>>, vector<128x64xbf16>
    %cst_313 = arith.constant dense<0.000000e+00> : vector<16x64xf32>
    %376 = tpu.matmul %374, %375, %cst_313 {dimension_numbers = #tpu.dot_dimension_numbers<[1], [0], [0], [1], [0, 0, 1, 1], [], []>} : vector<16x128xbf16>, vector<128x64xbf16>, vector<16x64xf32> -> vector<16x64xf32>
    %c0_314 = arith.constant 0 : index
    %c0_315 = arith.constant 0 : index
    %377 = vector.load %arg29[%c0_314, %c0_315] : memref<64x96xf32, #tpu.memory_space<vmem>>, vector<64x96xf32>
    tpu.vector_store %arg29[%c0_314, %c0_315], %371 {strides = array<i32>} : memref<64x96xf32, #tpu.memory_space<vmem>>, vector<64x96xf32>,
    %378 = arith.mulf %376, %89 : vector<16x64xf32>
    %c0_316 = arith.constant 0 : index
    %c0_317 = arith.constant 0 : index
    %379 = vector.load %arg30[%c0_316, %c0_317] : memref<16x64xf32, #tpu.memory_space<vmem>>, vector<16x64xf32>
    tpu.vector_store %arg30[%c0_316, %c0_317], %378 {strides = array<i32>} : memref<16x64xf32, #tpu.memory_space<vmem>>, vector<16x64xf32>,
    %cst_318 = arith.constant 1.000000e+00 : f32
    %380 = vector.broadcast %cst_318 : f32 to vector<16x64xf32>
    %381 = arith.subf %380, %376 : vector<16x64xf32>
    %382 = arith.mulf %381, %89 : vector<16x64xf32>
    %c0_319 = arith.constant 0 : index
    %c0_320 = arith.constant 0 : index
    %383 = vector.load %arg31[%c0_319, %c0_320] : memref<16x64xf32, #tpu.memory_space<vmem>>, vector<16x64xf32>
    tpu.vector_store %arg31[%c0_319, %c0_320], %382 {strides = array<i32>} : memref<16x64xf32, #tpu.memory_space<vmem>>, vector<16x64xf32>,
    %c0_321 = arith.constant 0 : index
    %c0_322 = arith.constant 0 : index
    %384 = vector.load %arg32[%c0_321, %c0_322] : memref<64x128xf32, #tpu.memory_space<vmem>>, vector<64x128xf32>
    tpu.vector_store %arg32[%c0_321, %c0_322], %362 {strides = array<i32>} : memref<64x128xf32, #tpu.memory_space<vmem>>, vector<64x128xf32>,
    return
  }
}

</mosaic_0001>

<llo_original>
// kernel: deep_image_harmonization.1
$region0: #{deep_image_harmonization.1}
  #allocation0 [shape = 'u32[]', space=smem, size = 0x4, offset = 0x4, fixed_abs, tag = 'smem constant byte address 0x4 - core index']
  #allocation1 [shape = 'u32[144,128]{1,0:T(1,128)}', space=vmem, size = 0x12000, scoped, tag = 'internal scratch']
  %s0 = inlined_call_operand.smem [shape: u32[33], index: -1, kind: input, shape index: {}]
  %s1 = sld [smem:[%s0]]
  %s2 = scalar_lea.smem %s0, 1
  %s3 = sld [smem:[%s2]]
  %s4 = scalar_lea.smem %s0, 2
  %s5 = sld [smem:[%s4]]
  %s6 = scalar_lea.smem %s0, 3
  %s7 = sld [smem:[%s6]]
  %s8 = scalar_lea.smem %s0, 4
  %s9 = sld [smem:[%s8]]
  %s10 = scalar_lea.smem %s0, 5
  %s11 = sld [smem:[%s10]]
  %s12 = scalar_lea.smem %s0, 6
  %s13 = sld [smem:[%s12]]
  %s14 = scalar_lea.smem %s0, 7
  %s15 = sld [smem:[%s14]]
  %s16 = scalar_lea.smem %s0, 8
  %s17 = sld [smem:[%s16]]
  %s18 = scalar_lea.smem %s0, 9
  %s19 = sld [smem:[%s18]]
  %s20 = scalar_lea.smem %s0, 10
  %s21 = sld [smem:[%s20]]
  %s22 = scalar_lea.smem %s0, 11
  %s23 = sld [smem:[%s22]]
  %s24 = scalar_lea.smem %s0, 12
  %s25 = sld [smem:[%s24]]
  %s26 = scalar_lea.smem %s0, 13
  %s27 = sld [smem:[%s26]]
  %s28 = scalar_lea.smem %s0, 14
  %s29 = sld [smem:[%s28]]
  %s30 = scalar_lea.smem %s0, 15
  %s31 = sld [smem:[%s30]]
  %s32 = scalar_lea.smem %s0, 16
  %s33 = sld [smem:[%s32]]
  %s34 = scalar_lea.smem %s0, 17
  %s35 = sld [smem:[%s34]]
  %s36 = scalar_lea.smem %s0, 18
  %s37 = sld [smem:[%s36]]
  %s38 = scalar_lea.smem %s0, 19
  %s39 = sld [smem:[%s38]]
  %s40 = scalar_lea.smem %s0, 20
  %s41 = sld [smem:[%s40]]
  %s42 = scalar_lea.smem %s0, 21
  %s43 = sld [smem:[%s42]]
  %s44 = scalar_lea.smem %s0, 22
  %s45 = sld [smem:[%s44]]
  %s46 = scalar_lea.smem %s0, 23
  %s47 = sld [smem:[%s46]]
  %s48 = scalar_lea.smem %s0, 24
  %s49 = sld [smem:[%s48]]
  %s50 = scalar_lea.smem %s0, 25
  %s51 = sld [smem:[%s50]]
  %s52 = scalar_lea.smem %s0, 26
  %s53 = sld [smem:[%s52]]
  %s54 = scalar_lea.smem %s0, 27
  %s55 = sld [smem:[%s54]]
  %s56 = scalar_lea.smem %s0, 28
  %s57 = sld [smem:[%s56]]
  %s58 = scalar_lea.smem %s0, 29
  %s59 = sld [smem:[%s58]]
  %s60 = scalar_lea.smem %s0, 30
  %s61 = sld [smem:[%s60]]
  %s62 = scalar_lea.smem %s0, 31
  %s63 = sld [smem:[%s62]]
  %s64 = scalar_lea.smem %s0, 32
  %s65 = sld [smem:[%s64]]
  %66 = xla_tuple %s59, %s61, %s63, %s65
  %s67 = sld [smem:[#allocation0]]
  $region226: #{deep_image_harmonization.1} parent=0
    _
  %s69 = ssub.s32 1, %s67
  %s70 = scalar_select 0, %s69, %s67
  $region1: #{deep_image_harmonization.1} parent=0
    #allocation2 [shape = 'u8[32768]{0}', space=vmem, size = 0x8000, scoped, tag = 'input window, operand 2, single buffered']
    #allocation3 [shape = 's32[1]{0}', space=sflag, size = 0x4, scoped, tag = 'scoped memory for deep_image_harmonization.1']
    #allocation4 [shape = 'u8[32768]{0}', space=vmem, size = 0x8000, scoped, tag = 'input window, operand 3, single buffered']
    #allocation5 [shape = 's32[1]{0}', space=sflag, size = 0x4, scoped, tag = 'scoped memory for deep_image_harmonization.1']
    #allocation6 [shape = 'u8[512]{0}', space=vmem, size = 0x400, scoped, tag = 'input window, operand 5, single buffered']
    #allocation7 [shape = 'u8[512]{0}', space=vmem, size = 0x400, scoped, tag = 'input window, operand 8, single buffered']
    #allocation8 [shape = 's32[1]{0}', space=sflag, size = 0x4, scoped, tag = 'scoped memory for deep_image_harmonization.1']
    #allocation9 [shape = 'u8[8192]{0}', space=vmem, size = 0x2000, scoped, tag = 'input window, operand 9, single buffered']
    #allocation10 [shape = 'u8[512]{0}', space=vmem, size = 0x400, scoped, tag = 'input window, operand 11, single buffered']
    #allocation11 [shape = 's32[1]{0}', space=sflag, size = 0x4, scoped, tag = 'scoped memory for deep_image_harmonization.1']
    #allocation12 [shape = 'u8[2048]{0}', space=vmem, size = 0x800, scoped, tag = 'input window, operand 12, single buffered']
    #allocation13 [shape = 'u8[512]{0}', space=vmem, size = 0x400, scoped, tag = 'input window, operand 14, single buffered']
    #allocation14 [shape = 's32[1]{0}', space=sflag, size = 0x4, scoped, tag = 'scoped memory for deep_image_harmonization.1']
    #allocation15 [shape = 'u8[8192]{0}', space=vmem, size = 0x2000, scoped, tag = 'input window, operand 15, single buffered']
    #allocation16 [shape = 'u8[16384]{0}', space=vmem, size = 0x4000, scoped, tag = 'input window, operand 16, single buffered']
    #allocation17 [shape = 's32[1]{0}', space=sflag, size = 0x4, scoped, tag = 'scoped memory for deep_image_harmonization.1']
    #allocation18 [shape = 'u8[512]{0}', space=vmem, size = 0x400, scoped, tag = 'input window, operand 17, single buffered']
    #allocation19 [shape = 'u8[16384]{0}', space=vmem, size = 0x4000, scoped, tag = 'input window, operand 18, single buffered']
    #allocation20 [shape = 's32[1]{0}', space=sflag, size = 0x4, scoped, tag = 'scoped memory for deep_image_harmonization.1']
    #allocation21 [shape = 'u8[512]{0}', space=vmem, size = 0x400, scoped, tag = 'input window, operand 20, single buffered']
    #allocation22 [shape = 'u8[32768]{0}', space=vmem, size = 0x8000, scoped, tag = 'input window, operand 21, single buffered']
    #allocation23 [shape = 's32[1]{0}', space=sflag, size = 0x4, scoped, tag = 'scoped memory for deep_image_harmonization.1']
    #allocation24 [shape = 'u8[512]{0}', space=vmem, size = 0x400, scoped, tag = 'input window, operand 23, single buffered']
    #allocation25 [shape = 'u8[65536]{0}', space=vmem, size = 0x10000, scoped, tag = 'input window, operand 24, single buffered']
    #allocation26 [shape = 's32[1]{0}', space=sflag, size = 0x4, scoped, tag = 'scoped memory for deep_image_harmonization.1']
    #allocation27 [shape = 'u8[512]{0}', space=vmem, size = 0x400, scoped, tag = 'input window, operand 26, single buffered']
    #allocation28 [shape = 'u8[32768]{0}', space=vmem, size = 0x8000, scoped, tag = 'input window, operand 27, single buffered']
    #allocation29 [shape = 's32[1]{0}', space=sflag, size = 0x4, scoped, tag = 'scoped memory for deep_image_harmonization.1']
    #allocation30 [shape = 'u8[512]{0}', space=vmem, size = 0x400, scoped, tag = 'input window, operand 28, single buffered']
    %71 = vsyncpa [#allocation3], 0
    %72 = vsyncpa [#allocation5], 0
    %73 = vsyncpa [#allocation8], 0
    %74 = vsyncpa [#allocation11], 0
    %75 = vsyncpa [#allocation14], 0
    %76 = vsyncpa [#allocation17], 0
    %77 = vsyncpa [#allocation20], 0
    %78 = vsyncpa [#allocation23], 0
    %79 = vsyncpa [#allocation26], 0
    %80 = vsyncpa [#allocation29], 0
    // Predicated region
    $region2: #{deep_image_harmonization.1} parent=1 // pred_check
      _
    $region3: #{deep_image_harmonization.1} parent=1 // pred_check_branch
      %82 = sbr.rel (0) target = $region5
    $region4: #{deep_image_harmonization.1} parent=1 // pred_region
      _
    $region5: #{deep_image_harmonization.1} parent=1 // pred_fallthru
      _
    // Predicated region
    $region6: #{deep_image_harmonization.1} parent=1 // pred_check
      _
    $region7: #{deep_image_harmonization.1} parent=1 // pred_check_branch
      %84 = sbr.rel (0) target = $region9
    $region8: #{deep_image_harmonization.1} parent=1 // pred_region
      _
    $region9: #{deep_image_harmonization.1} parent=1 // pred_fallthru
      _
    // Predicated region
    $region10: #{deep_image_harmonization.1} parent=1 // pred_check
      _
    $region11: #{deep_image_harmonization.1} parent=1 // pred_check_branch
      %86 = sbr.rel (0) target = $region13
    $region12: #{deep_image_harmonization.1} parent=1 // pred_region
      %s88 = ssub.s32 1024, 1024
      %89 = vsyncadd [#allocation3], %s88
      %s90 = sshll.u32 [#allocation2], 4
      %s91 = int_to_ptr.vmem [resolvable:$true] %s90
      %96 = dma.hbm_to_vmem [thread:$0]  %s5, 1024, %s91, [#allocation3], 64, 64, 4
    $region13: #{deep_image_harmonization.1} parent=1 // pred_fallthru
      _
    // Predicated region
    $region14: #{deep_image_harmonization.1} parent=1 // pred_check
      _
    $region15: #{deep_image_harmonization.1} parent=1 // pred_check_branch
      %98 = sbr.rel (0) target = $region17
    $region16: #{deep_image_harmonization.1} parent=1 // pred_region
      %s100 = ssub.s32 1024, 1024
      %101 = vsyncadd [#allocation5], %s100
      %s102 = sshll.u32 [#allocation4], 4
      %s103 = int_to_ptr.vmem [resolvable:$true] %s102
      %108 = dma.hbm_to_vmem [thread:$0]  %s7, 1024, %s103, [#allocation5], 64, 64, 4
    $region17: #{deep_image_harmonization.1} parent=1 // pred_fallthru
      _
    // Predicated region
    $region18: #{deep_image_harmonization.1} parent=1 // pred_check
      _
    $region19: #{deep_image_harmonization.1} parent=1 // pred_check_branch
      %110 = sbr.rel (0) target = $region21
    $region20: #{deep_image_harmonization.1} parent=1 // pred_region
      _
    $region21: #{deep_image_harmonization.1} parent=1 // pred_fallthru
      _
    // Predicated region
    $region22: #{deep_image_harmonization.1} parent=1 // pred_check
      _
    $region23: #{deep_image_harmonization.1} parent=1 // pred_check_branch
      %112 = sbr.rel (0) target = $region25
    $region24: #{deep_image_harmonization.1} parent=1 // pred_region
      %s114 = ssub.s32 16, 16
      %115 = vsyncadd [#allocation5], %s114
      %s117 = sshll.u32 [#allocation6], 4
      %s118 = int_to_ptr.vmem [resolvable:$true] %s117
      %120 = dma.hbm_to_vmem [thread:$0]  %s11, 16, %s118, [#allocation5]
    $region25: #{deep_image_harmonization.1} parent=1 // pred_fallthru
      _
    // Predicated region
    $region26: #{deep_image_harmonization.1} parent=1 // pred_check
      _
    $region27: #{deep_image_harmonization.1} parent=1 // pred_check_branch
      %122 = sbr.rel (0) target = $region29
    $region28: #{deep_image_harmonization.1} parent=1 // pred_region
      _
    $region29: #{deep_image_harmonization.1} parent=1 // pred_fallthru
      _
    // Predicated region
    $region30: #{deep_image_harmonization.1} parent=1 // pred_check
      _
    $region31: #{deep_image_harmonization.1} parent=1 // pred_check_branch
      %124 = sbr.rel (0) target = $region33
    $region32: #{deep_image_harmonization.1} parent=1 // pred_region
      _
    $region33: #{deep_image_harmonization.1} parent=1 // pred_fallthru
      _
    // Predicated region
    $region34: #{deep_image_harmonization.1} parent=1 // pred_check
      _
    $region35: #{deep_image_harmonization.1} parent=1 // pred_check_branch
      %126 = sbr.rel (0) target = $region37
    $region36: #{deep_image_harmonization.1} parent=1 // pred_region
      %s128 = ssub.s32 16, 16
      %129 = vsyncadd [#allocation8], %s128
      %s131 = sshll.u32 [#allocation7], 4
      %s132 = int_to_ptr.vmem [resolvable:$true] %s131
      %134 = dma.hbm_to_vmem [thread:$0]  %s17, 16, %s132, [#allocation8]
    $region37: #{deep_image_harmonization.1} parent=1 // pred_fallthru
      _
    // Predicated region
    $region38: #{deep_image_harmonization.1} parent=1 // pred_check
      _
    $region39: #{deep_image_harmonization.1} parent=1 // pred_check_branch
      %136 = sbr.rel (0) target = $region41
    $region40: #{deep_image_harmonization.1} parent=1 // pred_region
      %s138 = ssub.s32 256, 256
      %139 = vsyncadd [#allocation8], %s138
      %s140 = sshll.u32 [#allocation9], 4
      %s141 = int_to_ptr.vmem [resolvable:$true] %s140
      %146 = dma.hbm_to_vmem [thread:$0]  %s19, 256, %s141, [#allocation8], 64, 64, 4
    $region41: #{deep_image_harmonization.1} parent=1 // pred_fallthru
      _
    // Predicated region
    $region42: #{deep_image_harmonization.1} parent=1 // pred_check
      _
    $region43: #{deep_image_harmonization.1} parent=1 // pred_check_branch
      %148 = sbr.rel (0) target = $region45
    $region44: #{deep_image_harmonization.1} parent=1 // pred_region
      _
    $region45: #{deep_image_harmonization.1} parent=1 // pred_fallthru
      _
    // Predicated region
    $region46: #{deep_image_harmonization.1} parent=1 // pred_check
      _
    $region47: #{deep_image_harmonization.1} parent=1 // pred_check_branch
      %150 = sbr.rel (0) target = $region49
    $region48: #{deep_image_harmonization.1} parent=1 // pred_region
      %s152 = ssub.s32 16, 16
      %153 = vsyncadd [#allocation11], %s152
      %s155 = sshll.u32 [#allocation10], 4
      %s156 = int_to_ptr.vmem [resolvable:$true] %s155
      %158 = dma.hbm_to_vmem [thread:$0]  %s23, 16, %s156, [#allocation11]
    $region49: #{deep_image_harmonization.1} parent=1 // pred_fallthru
      _
    // Predicated region
    $region50: #{deep_image_harmonization.1} parent=1 // pred_check
      _
    $region51: #{deep_image_harmonization.1} parent=1 // pred_check_branch
      %160 = sbr.rel (0) target = $region53
    $region52: #{deep_image_harmonization.1} parent=1 // pred_region
      %s162 = ssub.s32 64, 64
      %163 = vsyncadd [#allocation11], %s162
      %s164 = sshll.u32 [#allocation12], 4
      %s165 = int_to_ptr.vmem [resolvable:$true] %s164
      %170 = dma.hbm_to_vmem [thread:$0]  %s25, 64, %s165, [#allocation11], 16, 16, 1
    $region53: #{deep_image_harmonization.1} parent=1 // pred_fallthru
      _
    // Predicated region
    $region54: #{deep_image_harmonization.1} parent=1 // pred_check
      _
    $region55: #{deep_image_harmonization.1} parent=1 // pred_check_branch
      %172 = sbr.rel (0) target = $region57
    $region56: #{deep_image_harmonization.1} parent=1 // pred_region
      _
    $region57: #{deep_image_harmonization.1} parent=1 // pred_fallthru
      _
    // Predicated region
    $region58: #{deep_image_harmonization.1} parent=1 // pred_check
      _
    $region59: #{deep_image_harmonization.1} parent=1 // pred_check_branch
      %174 = sbr.rel (0) target = $region61
    $region60: #{deep_image_harmonization.1} parent=1 // pred_region
      %s176 = ssub.s32 16, 16
      %177 = vsyncadd [#allocation14], %s176
      %s179 = sshll.u32 [#allocation13], 4
      %s180 = int_to_ptr.vmem [resolvable:$true] %s179
      %182 = dma.hbm_to_vmem [thread:$0]  %s29, 16, %s180, [#allocation14]
    $region61: #{deep_image_harmonization.1} parent=1 // pred_fallthru
      _
    // Predicated region
    $region62: #{deep_image_harmonization.1} parent=1 // pred_check
      _
    $region63: #{deep_image_harmonization.1} parent=1 // pred_check_branch
      %184 = sbr.rel (0) target = $region65
    $region64: #{deep_image_harmonization.1} parent=1 // pred_region
      %s186 = ssub.s32 256, 256
      %187 = vsyncadd [#allocation14], %s186
      %s188 = sshll.u32 [#allocation15], 4
      %s189 = int_to_ptr.vmem [resolvable:$true] %s188
      %194 = dma.hbm_to_vmem [thread:$0]  %s31, 256, %s189, [#allocation14], 64, 64, 4
    $region65: #{deep_image_harmonization.1} parent=1 // pred_fallthru
      _
    // Predicated region
    $region66: #{deep_image_harmonization.1} parent=1 // pred_check
      _
    $region67: #{deep_image_harmonization.1} parent=1 // pred_check_branch
      %196 = sbr.rel (0) target = $region69
    $region68: #{deep_image_harmonization.1} parent=1 // pred_region
      %s198 = ssub.s32 512, 512
      %199 = vsyncadd [#allocation17], %s198
      %s200 = sshll.u32 [#allocation16], 4
      %s201 = int_to_ptr.vmem [resolvable:$true] %s200
      %206 = dma.hbm_to_vmem [thread:$0]  %s33, 512, %s201, [#allocation17], 64, 64, 4
    $region69: #{deep_image_harmonization.1} parent=1 // pred_fallthru
      _
    // Predicated region
    $region70: #{deep_image_harmonization.1} parent=1 // pred_check
      _
    $region71: #{deep_image_harmonization.1} parent=1 // pred_check_branch
      %208 = sbr.rel (0) target = $region73
    $region72: #{deep_image_harmonization.1} parent=1 // pred_region
      %s210 = ssub.s32 16, 16
      %211 = vsyncadd [#allocation17], %s210
      %s213 = sshll.u32 [#allocation18], 4
      %s214 = int_to_ptr.vmem [resolvable:$true] %s213
      %216 = dma.hbm_to_vmem [thread:$0]  %s35, 16, %s214, [#allocation17]
    $region73: #{deep_image_harmonization.1} parent=1 // pred_fallthru
      _
    // Predicated region
    $region74: #{deep_image_harmonization.1} parent=1 // pred_check
      _
    $region75: #{deep_image_harmonization.1} parent=1 // pred_check_branch
      %218 = sbr.rel (0) target = $region77
    $region76: #{deep_image_harmonization.1} parent=1 // pred_region
      %s220 = ssub.s32 512, 512
      %221 = vsyncadd [#allocation20], %s220
      %s222 = sshll.u32 [#allocation19], 4
      %s223 = int_to_ptr.vmem [resolvable:$true] %s222
      %228 = dma.hbm_to_vmem [thread:$0]  %s37, 512, %s223, [#allocation20], 64, 64, 4
    $region77: #{deep_image_harmonization.1} parent=1 // pred_fallthru
      _
    // Predicated region
    $region78: #{deep_image_harmonization.1} parent=1 // pred_check
      _
    $region79: #{deep_image_harmonization.1} parent=1 // pred_check_branch
      %230 = sbr.rel (0) target = $region81
    $region80: #{deep_image_harmonization.1} parent=1 // pred_region
      _
    $region81: #{deep_image_harmonization.1} parent=1 // pred_fallthru
      _
    // Predicated region
    $region82: #{deep_image_harmonization.1} parent=1 // pred_check
      _
    $region83: #{deep_image_harmonization.1} parent=1 // pred_check_branch
      %232 = sbr.rel (0) target = $region85
    $region84: #{deep_image_harmonization.1} parent=1 // pred_region
      %s234 = ssub.s32 16, 16
      %235 = vsyncadd [#allocation20], %s234
      %s237 = sshll.u32 [#allocation21], 4
      %s238 = int_to_ptr.vmem [resolvable:$true] %s237
      %240 = dma.hbm_to_vmem [thread:$0]  %s41, 16, %s238, [#allocation20]
    $region85: #{deep_image_harmonization.1} parent=1 // pred_fallthru
      _
    // Predicated region
    $region86: #{deep_image_harmonization.1} parent=1 // pred_check
      _
    $region87: #{deep_image_harmonization.1} parent=1 // pred_check_branch
      %242 = sbr.rel (0) target = $region89
    $region88: #{deep_image_harmonization.1} parent=1 // pred_region
      %s244 = ssub.s32 1024, 1024
      %245 = vsyncadd [#allocation23], %s244
      %s246 = sshll.u32 [#allocation22], 4
      %s247 = int_to_ptr.vmem [resolvable:$true] %s246
      %252 = dma.hbm_to_vmem [thread:$0]  %s43, 1024, %s247, [#allocation23], 64, 64, 4
    $region89: #{deep_image_harmonization.1} parent=1 // pred_fallthru
      _
    // Predicated region
    $region90: #{deep_image_harmonization.1} parent=1 // pred_check
      _
    $region91: #{deep_image_harmonization.1} parent=1 // pred_check_branch
      %254 = sbr.rel (0) target = $region93
    $region92: #{deep_image_harmonization.1} parent=1 // pred_region
      _
    $region93: #{deep_image_harmonization.1} parent=1 // pred_fallthru
      _
    // Predicated region
    $region94: #{deep_image_harmonization.1} parent=1 // pred_check
      _
    $region95: #{deep_image_harmonization.1} parent=1 // pred_check_branch
      %256 = sbr.rel (0) target = $region97
    $region96: #{deep_image_harmonization.1} parent=1 // pred_region
      %s258 = ssub.s32 16, 16
      %259 = vsyncadd [#allocation23], %s258
      %s261 = sshll.u32 [#allocation24], 4
      %s262 = int_to_ptr.vmem [resolvable:$true] %s261
      %264 = dma.hbm_to_vmem [thread:$0]  %s47, 16, %s262, [#allocation23]
    $region97: #{deep_image_harmonization.1} parent=1 // pred_fallthru
      _
    // Predicated region
    $region98: #{deep_image_harmonization.1} parent=1 // pred_check
      _
    $region99: #{deep_image_harmonization.1} parent=1 // pred_check_branch
      %266 = sbr.rel (0) target = $region101
    $region100: #{deep_image_harmonization.1} parent=1 // pred_region
      %s268 = ssub.s32 2048, 2048
      %269 = vsyncadd [#allocation26], %s268
      %s270 = sshll.u32 [#allocation25], 4
      %s271 = int_to_ptr.vmem [resolvable:$true] %s270
      %276 = dma.hbm_to_vmem [thread:$0]  %s49, 2048, %s271, [#allocation26], 64, 64, 4
    $region101: #{deep_image_harmonization.1} parent=1 // pred_fallthru
      _
    // Predicated region
    $region102: #{deep_image_harmonization.1} parent=1 // pred_check
      _
    $region103: #{deep_image_harmonization.1} parent=1 // pred_check_branch
      %278 = sbr.rel (0) target = $region105
    $region104: #{deep_image_harmonization.1} parent=1 // pred_region
      _
    $region105: #{deep_image_harmonization.1} parent=1 // pred_fallthru
      _
    // Predicated region
    $region106: #{deep_image_harmonization.1} parent=1 // pred_check
      _
    $region107: #{deep_image_harmonization.1} parent=1 // pred_check_branch
      %280 = sbr.rel (0) target = $region109
    $region108: #{deep_image_harmonization.1} parent=1 // pred_region
      %s282 = ssub.s32 16, 16
      %283 = vsyncadd [#allocation26], %s282
      %s285 = sshll.u32 [#allocation27], 4
      %s286 = int_to_ptr.vmem [resolvable:$true] %s285
      %288 = dma.hbm_to_vmem [thread:$0]  %s53, 16, %s286, [#allocation26]
    $region109: #{deep_image_harmonization.1} parent=1 // pred_fallthru
      _
    // Predicated region
    $region110: #{deep_image_harmonization.1} parent=1 // pred_check
      _
    $region111: #{deep_image_harmonization.1} parent=1 // pred_check_branch
      %290 = sbr.rel (0) target = $region113
    $region112: #{deep_image_harmonization.1} parent=1 // pred_region
      %s292 = ssub.s32 1024, 1024
      %293 = vsyncadd [#allocation29], %s292
      %s294 = sshll.u32 [#allocation28], 4
      %s295 = int_to_ptr.vmem [resolvable:$true] %s294
      %300 = dma.hbm_to_vmem [thread:$0]  %s55, 1024, %s295, [#allocation29], 64, 64, 4
    $region113: #{deep_image_harmonization.1} parent=1 // pred_fallthru
      _
    // Predicated region
    $region114: #{deep_image_harmonization.1} parent=1 // pred_check
      _
    $region115: #{deep_image_harmonization.1} parent=1 // pred_check_branch
      %302 = sbr.rel (0) target = $region117
    $region116: #{deep_image_harmonization.1} parent=1 // pred_region
      %s304 = ssub.s32 16, 16
      %305 = vsyncadd [#allocation29], %s304
      %s307 = sshll.u32 [#allocation30], 4
      %s308 = int_to_ptr.vmem [resolvable:$true] %s307
      %310 = dma.hbm_to_vmem [thread:$0]  %s57, 16, %s308, [#allocation29]
    $region117: #{deep_image_harmonization.1} parent=1 // pred_fallthru
      _
    // Predicated region
    $region118: #{deep_image_harmonization.1} parent=1 // pred_check
      _
    $region119: #{deep_image_harmonization.1} parent=1 // pred_check_branch
      %312 = sbr.rel (0) target = $region121
    $region120: #{deep_image_harmonization.1} parent=1 // pred_region
      %313 = dma.done [#allocation3], 1024
    $region121: #{deep_image_harmonization.1} parent=1 // pred_fallthru
      _
    // Predicated region
    $region122: #{deep_image_harmonization.1} parent=1 // pred_check
      _
    $region123: #{deep_image_harmonization.1} parent=1 // pred_check_branch
      %315 = sbr.rel (0) target = $region125
    $region124: #{deep_image_harmonization.1} parent=1 // pred_region
      %316 = dma.done [#allocation5], 1024
    $region125: #{deep_image_harmonization.1} parent=1 // pred_fallthru
      _
    // Predicated region
    $region126: #{deep_image_harmonization.1} parent=1 // pred_check
      _
    $region127: #{deep_image_harmonization.1} parent=1 // pred_check_branch
      %318 = sbr.rel (0) target = $region129
    $region128: #{deep_image_harmonization.1} parent=1 // pred_region
      %319 = dma.done [#allocation5], 16
    $region129: #{deep_image_harmonization.1} parent=1 // pred_fallthru
      _
    // Predicated region
    $region130: #{deep_image_harmonization.1} parent=1 // pred_check
      _
    $region131: #{deep_image_harmonization.1} parent=1 // pred_check_branch
      %321 = sbr.rel (0) target = $region133
    $region132: #{deep_image_harmonization.1} parent=1 // pred_region
      %322 = dma.done [#allocation8], 16
    $region133: #{deep_image_harmonization.1} parent=1 // pred_fallthru
      _
    // Predicated region
    $region134: #{deep_image_harmonization.1} parent=1 // pred_check
      _
    $region135: #{deep_image_harmonization.1} parent=1 // pred_check_branch
      %324 = sbr.rel (0) target = $region137
    $region136: #{deep_image_harmonization.1} parent=1 // pred_region
      %325 = dma.done [#allocation8], 256
    $region137: #{deep_image_harmonization.1} parent=1 // pred_fallthru
      _
    // Predicated region
    $region138: #{deep_image_harmonization.1} parent=1 // pred_check
      _
    $region139: #{deep_image_harmonization.1} parent=1 // pred_check_branch
      %327 = sbr.rel (0) target = $region141
    $region140: #{deep_image_harmonization.1} parent=1 // pred_region
      %328 = dma.done [#allocation11], 16
    $region141: #{deep_image_harmonization.1} parent=1 // pred_fallthru
      _
    // Predicated region
    $region142: #{deep_image_harmonization.1} parent=1 // pred_check
      _
    $region143: #{deep_image_harmonization.1} parent=1 // pred_check_branch
      %330 = sbr.rel (0) target = $region145
    $region144: #{deep_image_harmonization.1} parent=1 // pred_region
      %331 = dma.done [#allocation11], 64
    $region145: #{deep_image_harmonization.1} parent=1 // pred_fallthru
      _
    // Predicated region
    $region146: #{deep_image_harmonization.1} parent=1 // pred_check
      _
    $region147: #{deep_image_harmonization.1} parent=1 // pred_check_branch
      %333 = sbr.rel (0) target = $region149
    $region148: #{deep_image_harmonization.1} parent=1 // pred_region
      %334 = dma.done [#allocation14], 16
    $region149: #{deep_image_harmonization.1} parent=1 // pred_fallthru
      _
    // Predicated region
    $region150: #{deep_image_harmonization.1} parent=1 // pred_check
      _
    $region151: #{deep_image_harmonization.1} parent=1 // pred_check_branch
      %336 = sbr.rel (0) target = $region153
    $region152: #{deep_image_harmonization.1} parent=1 // pred_region
      %337 = dma.done [#allocation14], 256
    $region153: #{deep_image_harmonization.1} parent=1 // pred_fallthru
      _
    // Predicated region
    $region154: #{deep_image_harmonization.1} parent=1 // pred_check
      _
    $region155: #{deep_image_harmonization.1} parent=1 // pred_check_branch
      %339 = sbr.rel (0) target = $region157
    $region156: #{deep_image_harmonization.1} parent=1 // pred_region
      %340 = dma.done [#allocation17], 512
    $region157: #{deep_image_harmonization.1} parent=1 // pred_fallthru
      _
    // Predicated region
    $region158: #{deep_image_harmonization.1} parent=1 // pred_check
      _
    $region159: #{deep_image_harmonization.1} parent=1 // pred_check_branch
      %342 = sbr.rel (0) target = $region161
    $region160: #{deep_image_harmonization.1} parent=1 // pred_region
      %343 = dma.done [#allocation17], 16
    $region161: #{deep_image_harmonization.1} parent=1 // pred_fallthru
      _
    // Predicated region
    $region162: #{deep_image_harmonization.1} parent=1 // pred_check
      _
    $region163: #{deep_image_harmonization.1} parent=1 // pred_check_branch
      %345 = sbr.rel (0) target = $region165
    $region164: #{deep_image_harmonization.1} parent=1 // pred_region
      %346 = dma.done [#allocation20], 512
    $region165: #{deep_image_harmonization.1} parent=1 // pred_fallthru
      _
    // Predicated region
    $region166: #{deep_image_harmonization.1} parent=1 // pred_check
      _
    $region167: #{deep_image_harmonization.1} parent=1 // pred_check_branch
      %348 = sbr.rel (0) target = $region169
    $region168: #{deep_image_harmonization.1} parent=1 // pred_region
      %349 = dma.done [#allocation20], 16
    $region169: #{deep_image_harmonization.1} parent=1 // pred_fallthru
      _
    // Predicated region
    $region170: #{deep_image_harmonization.1} parent=1 // pred_check
      _
    $region171: #{deep_image_harmonization.1} parent=1 // pred_check_branch
      %351 = sbr.rel (0) target = $region173
    $region172: #{deep_image_harmonization.1} parent=1 // pred_region
      %352 = dma.done [#allocation23], 1024
    $region173: #{deep_image_harmonization.1} parent=1 // pred_fallthru
      _
    // Predicated region
    $region174: #{deep_image_harmonization.1} parent=1 // pred_check
      _
    $region175: #{deep_image_harmonization.1} parent=1 // pred_check_branch
      %354 = sbr.rel (0) target = $region177
    $region176: #{deep_image_harmonization.1} parent=1 // pred_region
      %355 = dma.done [#allocation23], 16
    $region177: #{deep_image_harmonization.1} parent=1 // pred_fallthru
      _
    // Predicated region
    $region178: #{deep_image_harmonization.1} parent=1 // pred_check
      _
    $region179: #{deep_image_harmonization.1} parent=1 // pred_check_branch
      %357 = sbr.rel (0) target = $region181
    $region180: #{deep_image_harmonization.1} parent=1 // pred_region
      %358 = dma.done [#allocation26], 2048
    $region181: #{deep_image_harmonization.1} parent=1 // pred_fallthru
      _
    // Predicated region
    $region182: #{deep_image_harmonization.1} parent=1 // pred_check
      _
    $region183: #{deep_image_harmonization.1} parent=1 // pred_check_branch
      %360 = sbr.rel (0) target = $region185
    $region184: #{deep_image_harmonization.1} parent=1 // pred_region
      %361 = dma.done [#allocation26], 16
    $region185: #{deep_image_harmonization.1} parent=1 // pred_fallthru
      _
    // Predicated region
    $region186: #{deep_image_harmonization.1} parent=1 // pred_check
      _
    $region187: #{deep_image_harmonization.1} parent=1 // pred_check_branch
      %363 = sbr.rel (0) target = $region189
    $region188: #{deep_image_harmonization.1} parent=1 // pred_region
      %364 = dma.done [#allocation29], 1024
    $region189: #{deep_image_harmonization.1} parent=1 // pred_fallthru
      _
    // Predicated region
    $region190: #{deep_image_harmonization.1} parent=1 // pred_check
      _
    $region191: #{deep_image_harmonization.1} parent=1 // pred_check_branch
      %366 = sbr.rel (0) target = $region193
    $region192: #{deep_image_harmonization.1} parent=1 // pred_region
      %367 = dma.done [#allocation29], 16
    $region193: #{deep_image_harmonization.1} parent=1 // pred_fallthru
      _
    %v369 = vld [vmem:[%s1] sm:$0xf]
    %v370 = vld [vmem:[%s1 + $0x4] sm:$0xf]
    %v371 = vld [vmem:[%s1 + $0x8] sm:$0xf]
    %v372 = vld [vmem:[%s1 + $0xc] sm:$0xf]
    %v373 = vld [vmem:[%s1 + $0x10] sm:$0xf]
    %v374 = vld [vmem:[%s1 + $0x14] sm:$0xf]
    %v375 = vld [vmem:[%s1 + $0x18] sm:$0xf]
    %v376 = vld [vmem:[%s1 + $0x1c] sm:$0xf]
    %v377 = vld [vmem:[#allocation4] sm:$0xf]
    %v378 = vld [vmem:[#allocation4 + $0x4] sm:$0xf]
    %v379 = vld [vmem:[#allocation4 + $0x8] sm:$0xf]
    %v380 = vld [vmem:[#allocation4 + $0xc] sm:$0xf]
    %v385 = vunpack.c.l.b16 %v377
    %v386 = vunpack.c.l.b16 %v378
    %v387 = vunpack.c.l.b16 %v379
    %v388 = vunpack.c.l.b16 %v380
    %v389 = vpack.c.b16 %v386, %v385
    %v390 = vpack.c.b16 %v388, %v387
    %v399 = vunpack.c.l.b16 %v369
    %v400 = vunpack.c.l.b16 %v370
    %v401 = vunpack.c.l.b16 %v371
    %v402 = vunpack.c.l.b16 %v372
    %v403 = vunpack.c.l.b16 %v373
    %v404 = vunpack.c.l.b16 %v374
    %v405 = vunpack.c.l.b16 %v375
    %v406 = vunpack.c.l.b16 %v376
    %v407 = vpack.c.b16 %v400, %v399
    %v408 = vpack.c.b16 %v402, %v401
    %v409 = vpack.c.b16 %v404, %v403
    %v410 = vpack.c.b16 %v406, %v405
    %vm415 = vcmask 523264
    %v417 = vsel %vm415, %v389, 0
    %v420 = vsel %vm415, %v390, 0
    %422 = vmatprep.subr.bf16.mxu0 0
    %423 = vmatpush1.bf16.msra.mxu0 %v407
    %424 = vmatprep.subr.bf16.mxu0 0
    %425 = vmatpush1.bf16.msra.mxu0 %v408
    %426 = vmatprep.subr.bf16.mxu0 0
    %427 = vmatpush1.bf16.msra.mxu0 %v409
    %428 = vmatprep.subr.bf16.mxu0 0
    %429 = vmatpush1.bf16.msra.mxu0 %v410
    %430 = vmatprep.subr.bf16.mxu0 0
    %431 = vmatpush1.bf16.msra.mxu0 0
    %432 = vmatprep.subr.bf16.mxu0 0
    %433 = vmatpush1.bf16.msra.mxu0 0
    %434 = vmatprep.subr.bf16.mxu0 0
    %435 = vmatpush1.bf16.msra.mxu0 0
    %436 = vmatprep.subr.bf16.mxu0 0
    %437 = vmatpush1.bf16.msra.mxu0 0
    %438 = vmatprep.subr.bf16.mxu0 0
    %439 = vmatpush1.bf16.msra.mxu0 0
    %440 = vmatprep.subr.bf16.mxu0 0
    %441 = vmatpush1.bf16.msra.mxu0 0
    %442 = vmatprep.subr.bf16.mxu0 0
    %443 = vmatpush1.bf16.msra.mxu0 0
    %444 = vmatprep.subr.bf16.mxu0 0
    %445 = vmatpush1.bf16.msra.mxu0 0
    %446 = vmatprep.subr.bf16.mxu0 0
    %447 = vmatpush1.bf16.msra.mxu0 0
    %448 = vmatprep.subr.bf16.mxu0 0
    %449 = vmatpush1.bf16.msra.mxu0 0
    %450 = vmatprep.subr.bf16.mxu0 0
    %451 = vmatpush1.bf16.msra.mxu0 0
    %452 = vmatprep.subr.bf16.mxu0 0
    %453 = vmatpush1.bf16.msra.mxu0 0
    %454 = vmatprep.mubr.bf16.mxu0 0
    %455 = vmatmul.mubr.bf16.gmra.mrb[0].mxu0 %v417
    %v456 = vpop.f32.mrb[0].mxu0
    %v457 = vadd.f32 0.0, %v456
    %v458 = vpop.f32.mrb[0].mxu0
    %v459 = vpop.f32.mrb[0].mxu0
    %v460 = vadd.f32 0.0, %v459
    %v461 = vpop.f32.mrb[0].mxu0
    %462 = vmatprep.mubr.bf16.mxu0 0
    %463 = vmatmul.mubr.bf16.gmra.mrb[0].mxu0 %v420
    %v464 = vpop.f32.mrb[0].mxu0
    %v465 = vadd.f32 0.0, %v464
    %v466 = vpop.f32.mrb[0].mxu0
    %v467 = vpop.f32.mrb[0].mxu0
    %v468 = vadd.f32 0.0, %v467
    %v469 = vpop.f32.mrb[0].mxu0
    %470 = vdwg.mxu0
    %v471 = vpack.c.bf16 %v460, %v457
    %v472 = vpack.c.bf16 %v468, %v465
    %v473 = vld [vmem:[%s9] sm:$0xf]
    %v474 = vld [vmem:[%s9 + $0x4] sm:$0xf]
    %v475 = vld [vmem:[%s9 + $0x8] sm:$0xf]
    %v476 = vld [vmem:[%s9 + $0xc] sm:$0xf]
    %v477 = vld [vmem:[%s9 + $0x10] sm:$0xf]
    %v478 = vld [vmem:[%s9 + $0x14] sm:$0xf]
    %v479 = vld [vmem:[%s9 + $0x18] sm:$0xf]
    %v480 = vld [vmem:[%s9 + $0x1c] sm:$0xf]
    %v481 = vld [vmem:[%s9 + $0x20] sm:$0xf]
    %v482 = vld [vmem:[%s9 + $0x24] sm:$0xf]
    %v483 = vld [vmem:[%s9 + $0x28] sm:$0xf]
    %v484 = vld [vmem:[%s9 + $0x2c] sm:$0xf]
    %v485 = vld [vmem:[%s9 + $0x30] sm:$0xf]
    %v486 = vld [vmem:[%s9 + $0x34] sm:$0xf]
    %v487 = vld [vmem:[%s9 + $0x38] sm:$0xf]
    %v488 = vld [vmem:[%s9 + $0x3c] sm:$0xf]
    %s489 = scalar_lea.vmem [#allocation4], 16
    %v490 = vld [vmem:[%s489] sm:$0xf]
    %v491 = vld [vmem:[%s489 + $0x4] sm:$0xf]
    %v492 = vld [vmem:[%s489 + $0x8] sm:$0xf]
    %v493 = vld [vmem:[%s489 + $0xc] sm:$0xf]
    %v498 = vunpack.c.l.b16 %v490
    %v499 = vunpack.c.l.b16 %v491
    %v500 = vunpack.c.l.b16 %v492
    %v501 = vunpack.c.l.b16 %v493
    %v502 = vpack.c.b16 %v499, %v498
    %v503 = vpack.c.b16 %v501, %v500
    %v505 = vsel %vm415, %v502, 0
    %v508 = vsel %vm415, %v503, 0
    %510 = vmatprep.subr.bf16.mxu0 0
    %511 = vmatpush1.bf16.msra.mxu0 %v407
    %512 = vmatprep.subr.bf16.mxu0 0
    %513 = vmatpush1.bf16.msra.mxu0 %v408
    %514 = vmatprep.subr.bf16.mxu0 0
    %515 = vmatpush1.bf16.msra.mxu0 %v409
    %516 = vmatprep.subr.bf16.mxu0 0
    %517 = vmatpush1.bf16.msra.mxu0 %v410
    %518 = vmatprep.subr.bf16.mxu0 0
    %519 = vmatpush1.bf16.msra.mxu0 0
    %520 = vmatprep.subr.bf16.mxu0 0
    %521 = vmatpush1.bf16.msra.mxu0 0
    %522 = vmatprep.subr.bf16.mxu0 0
    %523 = vmatpush1.bf16.msra.mxu0 0
    %524 = vmatprep.subr.bf16.mxu0 0
    %525 = vmatpush1.bf16.msra.mxu0 0
    %526 = vmatprep.subr.bf16.mxu0 0
    %527 = vmatpush1.bf16.msra.mxu0 0
    %528 = vmatprep.subr.bf16.mxu0 0
    %529 = vmatpush1.bf16.msra.mxu0 0
    %530 = vmatprep.subr.bf16.mxu0 0
    %531 = vmatpush1.bf16.msra.mxu0 0
    %532 = vmatprep.subr.bf16.mxu0 0
    %533 = vmatpush1.bf16.msra.mxu0 0
    %534 = vmatprep.subr.bf16.mxu0 0
    %535 = vmatpush1.bf16.msra.mxu0 0
    %536 = vmatprep.subr.bf16.mxu0 0
    %537 = vmatpush1.bf16.msra.mxu0 0
    %538 = vmatprep.subr.bf16.mxu0 0
    %539 = vmatpush1.bf16.msra.mxu0 0
    %540 = vmatprep.subr.bf16.mxu0 0
    %541 = vmatpush1.bf16.msra.mxu0 0
    %542 = vmatprep.mubr.bf16.mxu0 0
    %543 = vmatmul.mubr.bf16.gmra.mrb[0].mxu0 %v505
    %v544 = vpop.f32.mrb[0].mxu0
    %v545 = vadd.f32 0.0, %v544
    %v546 = vpop.f32.mrb[0].mxu0
    %v547 = vpop.f32.mrb[0].mxu0
    %v548 = vadd.f32 0.0, %v547
    %v549 = vpop.f32.mrb[0].mxu0
    %550 = vmatprep.mubr.bf16.mxu0 0
    %551 = vmatmul.mubr.bf16.gmra.mrb[0].mxu0 %v508
    %v552 = vpop.f32.mrb[0].mxu0
    %v553 = vadd.f32 0.0, %v552
    %v554 = vpop.f32.mrb[0].mxu0
    %v555 = vpop.f32.mrb[0].mxu0
    %v556 = vadd.f32 0.0, %v555
    %v557 = vpop.f32.mrb[0].mxu0
    %558 = vdwg.mxu0
    %v559 = vpack.c.bf16 %v548, %v545
    %v560 = vpack.c.bf16 %v556, %v553
    %s561 = scalar_lea.vmem %s9, 64
    %v562 = vld [vmem:[%s561] sm:$0xf]
    %v563 = vld [vmem:[%s561 + $0x4] sm:$0xf]
    %v564 = vld [vmem:[%s561 + $0x8] sm:$0xf]
    %v565 = vld [vmem:[%s561 + $0xc] sm:$0xf]
    %v566 = vld [vmem:[%s561 + $0x10] sm:$0xf]
    %v567 = vld [vmem:[%s561 + $0x14] sm:$0xf]
    %v568 = vld [vmem:[%s561 + $0x18] sm:$0xf]
    %v569 = vld [vmem:[%s561 + $0x1c] sm:$0xf]
    %v570 = vld [vmem:[%s561 + $0x20] sm:$0xf]
    %v571 = vld [vmem:[%s561 + $0x24] sm:$0xf]
    %v572 = vld [vmem:[%s561 + $0x28] sm:$0xf]
    %v573 = vld [vmem:[%s561 + $0x2c] sm:$0xf]
    %v574 = vld [vmem:[%s561 + $0x30] sm:$0xf]
    %v575 = vld [vmem:[%s561 + $0x34] sm:$0xf]
    %v576 = vld [vmem:[%s561 + $0x38] sm:$0xf]
    %v577 = vld [vmem:[%s561 + $0x3c] sm:$0xf]
    %v594 = vunpack.c.l.b16 %v562
    %v595 = vunpack.c.l.b16 %v563
    %v596 = vunpack.c.l.b16 %v564
    %v597 = vunpack.c.l.b16 %v565
    %v598 = vunpack.c.l.b16 %v566
    %v599 = vunpack.c.l.b16 %v567
    %v600 = vunpack.c.l.b16 %v568
    %v601 = vunpack.c.l.b16 %v569
    %v602 = vunpack.c.l.b16 %v570
    %v603 = vunpack.c.l.b16 %v571
    %v604 = vunpack.c.l.b16 %v572
    %v605 = vunpack.c.l.b16 %v573
    %v606 = vunpack.c.l.b16 %v574
    %v607 = vunpack.c.l.b16 %v575
    %v608 = vunpack.c.l.b16 %v576
    %v609 = vunpack.c.l.b16 %v577
    %v610 = vpack.c.b16 %v595, %v594
    %v611 = vpack.c.b16 %v597, %v596
    %v612 = vpack.c.b16 %v599, %v598
    %v613 = vpack.c.b16 %v601, %v600
    %v614 = vpack.c.b16 %v603, %v602
    %v615 = vpack.c.b16 %v605, %v604
    %v616 = vpack.c.b16 %v607, %v606
    %v617 = vpack.c.b16 %v609, %v608
    %626 = vmatprep.subr.bf16.mxu0 0
    %627 = vmatpush1.bf16.msra.mxu0 %v610
    %628 = vmatprep.subr.bf16.mxu0 0
    %629 = vmatpush1.bf16.msra.mxu0 %v611
    %630 = vmatprep.subr.bf16.mxu0 0
    %631 = vmatpush1.bf16.msra.mxu0 %v612
    %632 = vmatprep.subr.bf16.mxu0 0
    %633 = vmatpush1.bf16.msra.mxu0 %v613
    %634 = vmatprep.subr.bf16.mxu0 0
    %635 = vmatpush1.bf16.msra.mxu0 %v614
    %636 = vmatprep.subr.bf16.mxu0 0
    %637 = vmatpush1.bf16.msra.mxu0 %v615
    %638 = vmatprep.subr.bf16.mxu0 0
    %639 = vmatpush1.bf16.msra.mxu0 %v616
    %640 = vmatprep.subr.bf16.mxu0 0
    %641 = vmatpush1.bf16.msra.mxu0 %v617
    %642 = vmatprep.subr.bf16.mxu0 0
    %643 = vmatpush1.bf16.msra.mxu0 0
    %644 = vmatprep.subr.bf16.mxu0 0
    %645 = vmatpush1.bf16.msra.mxu0 0
    %646 = vmatprep.subr.bf16.mxu0 0
    %647 = vmatpush1.bf16.msra.mxu0 0
    %648 = vmatprep.subr.bf16.mxu0 0
    %649 = vmatpush1.bf16.msra.mxu0 0
    %650 = vmatprep.subr.bf16.mxu0 0
    %651 = vmatpush1.bf16.msra.mxu0 0
    %652 = vmatprep.subr.bf16.mxu0 0
    %653 = vmatpush1.bf16.msra.mxu0 0
    %654 = vmatprep.subr.bf16.mxu0 0
    %655 = vmatpush1.bf16.msra.mxu0 0
    %656 = vmatprep.subr.bf16.mxu0 0
    %657 = vmatpush1.bf16.msra.mxu0 0
    %658 = vmatprep.mubr.bf16.mxu0 0
    %659 = vmatmul.mubr.bf16.gmra.mrb[0].mxu0 %v559
    %v660 = vpop.f32.mrb[0].mxu0
    %v661 = vadd.f32 0.0, %v660
    %v662 = vpop.f32.mrb[0].mxu0
    %v663 = vpop.f32.mrb[0].mxu0
    %v664 = vadd.f32 0.0, %v663
    %v665 = vpop.f32.mrb[0].mxu0
    %666 = vmatprep.mubr.bf16.mxu0 0
    %667 = vmatmul.mubr.bf16.gmra.mrb[0].mxu0 %v560
    %v668 = vpop.f32.mrb[0].mxu0
    %v669 = vadd.f32 0.0, %v668
    %v670 = vpop.f32.mrb[0].mxu0
    %v671 = vpop.f32.mrb[0].mxu0
    %v672 = vadd.f32 0.0, %v671
    %v673 = vpop.f32.mrb[0].mxu0
    %674 = vdwg.mxu0
    %v691 = vunpack.c.l.b16 %v473
    %v692 = vunpack.c.l.b16 %v474
    %v693 = vunpack.c.l.b16 %v475
    %v694 = vunpack.c.l.b16 %v476
    %v695 = vunpack.c.l.b16 %v477
    %v696 = vunpack.c.l.b16 %v478
    %v697 = vunpack.c.l.b16 %v479
    %v698 = vunpack.c.l.b16 %v480
    %v699 = vunpack.c.l.b16 %v481
    %v700 = vunpack.c.l.b16 %v482
    %v701 = vunpack.c.l.b16 %v483
    %v702 = vunpack.c.l.b16 %v484
    %v703 = vunpack.c.l.b16 %v485
    %v704 = vunpack.c.l.b16 %v486
    %v705 = vunpack.c.l.b16 %v487
    %v706 = vunpack.c.l.b16 %v488
    %v707 = vpack.c.b16 %v692, %v691
    %v708 = vpack.c.b16 %v694, %v693
    %v709 = vpack.c.b16 %v696, %v695
    %v710 = vpack.c.b16 %v698, %v697
    %v711 = vpack.c.b16 %v700, %v699
    %v712 = vpack.c.b16 %v702, %v701
    %v713 = vpack.c.b16 %v704, %v703
    %v714 = vpack.c.b16 %v706, %v705
    %723 = vmatprep.subr.bf16.mxu0 0
    %724 = vmatpush1.bf16.msra.mxu0 %v707
    %725 = vmatprep.subr.bf16.mxu0 0
    %726 = vmatpush1.bf16.msra.mxu0 %v708
    %727 = vmatprep.subr.bf16.mxu0 0
    %728 = vmatpush1.bf16.msra.mxu0 %v709
    %729 = vmatprep.subr.bf16.mxu0 0
    %730 = vmatpush1.bf16.msra.mxu0 %v710
    %731 = vmatprep.subr.bf16.mxu0 0
    %732 = vmatpush1.bf16.msra.mxu0 %v711
    %733 = vmatprep.subr.bf16.mxu0 0
    %734 = vmatpush1.bf16.msra.mxu0 %v712
    %735 = vmatprep.subr.bf16.mxu0 0
    %736 = vmatpush1.bf16.msra.mxu0 %v713
    %737 = vmatprep.subr.bf16.mxu0 0
    %738 = vmatpush1.bf16.msra.mxu0 %v714
    %739 = vmatprep.subr.bf16.mxu0 0
    %740 = vmatpush1.bf16.msra.mxu0 0
    %741 = vmatprep.subr.bf16.mxu0 0
    %742 = vmatpush1.bf16.msra.mxu0 0
    %743 = vmatprep.subr.bf16.mxu0 0
    %744 = vmatpush1.bf16.msra.mxu0 0
    %745 = vmatprep.subr.bf16.mxu0 0
    %746 = vmatpush1.bf16.msra.mxu0 0
    %747 = vmatprep.subr.bf16.mxu0 0
    %748 = vmatpush1.bf16.msra.mxu0 0
    %749 = vmatprep.subr.bf16.mxu0 0
    %750 = vmatpush1.bf16.msra.mxu0 0
    %751 = vmatprep.subr.bf16.mxu0 0
    %752 = vmatpush1.bf16.msra.mxu0 0
    %753 = vmatprep.subr.bf16.mxu0 0
    %754 = vmatpush1.bf16.msra.mxu0 0
    %755 = vmatprep.mubr.bf16.mxu0 0
    %756 = vmatmul.mubr.bf16.gmra.mrb[0].mxu0 %v471
    %v757 = vpop.f32.mrb[0].mxu0
    %v758 = vadd.f32 %v661, %v757
    %v759 = vpop.f32.mrb[0].mxu0
    %v760 = vpop.f32.mrb[0].mxu0
    %v761 = vadd.f32 %v664, %v760
    %v762 = vpop.f32.mrb[0].mxu0
    %763 = vmatprep.mubr.bf16.mxu0 0
    %764 = vmatmul.mubr.bf16.gmra.mrb[0].mxu0 %v472
    %v765 = vpop.f32.mrb[0].mxu0
    %v766 = vadd.f32 %v669, %v765
    %v767 = vpop.f32.mrb[0].mxu0
    %v768 = vpop.f32.mrb[0].mxu0
    %v769 = vadd.f32 %v672, %v768
    %v770 = vpop.f32.mrb[0].mxu0
    %771 = vdwg.mxu0
    %s772 = scalar_lea.vmem [#allocation4], 32
    %v773 = vld [vmem:[%s772] sm:$0xf]
    %v774 = vld [vmem:[%s772 + $0x4] sm:$0xf]
    %v775 = vld [vmem:[%s772 + $0x8] sm:$0xf]
    %v776 = vld [vmem:[%s772 + $0xc] sm:$0xf]
    %v781 = vunpack.c.l.b16 %v773
    %v782 = vunpack.c.l.b16 %v774
    %v783 = vunpack.c.l.b16 %v775
    %v784 = vunpack.c.l.b16 %v776
    %v785 = vpack.c.b16 %v782, %v781
    %v786 = vpack.c.b16 %v784, %v783
    %v788 = vsel %vm415, %v785, 0
    %v791 = vsel %vm415, %v786, 0
    %793 = vmatprep.subr.bf16.mxu0 0
    %794 = vmatpush1.bf16.msra.mxu0 %v407
    %795 = vmatprep.subr.bf16.mxu0 0
    %796 = vmatpush1.bf16.msra.mxu0 %v408
    %797 = vmatprep.subr.bf16.mxu0 0
    %798 = vmatpush1.bf16.msra.mxu0 %v409
    %799 = vmatprep.subr.bf16.mxu0 0
    %800 = vmatpush1.bf16.msra.mxu0 %v410
    %801 = vmatprep.subr.bf16.mxu0 0
    %802 = vmatpush1.bf16.msra.mxu0 0
    %803 = vmatprep.subr.bf16.mxu0 0
    %804 = vmatpush1.bf16.msra.mxu0 0
    %805 = vmatprep.subr.bf16.mxu0 0
    %806 = vmatpush1.bf16.msra.mxu0 0
    %807 = vmatprep.subr.bf16.mxu0 0
    %808 = vmatpush1.bf16.msra.mxu0 0
    %809 = vmatprep.subr.bf16.mxu0 0
    %810 = vmatpush1.bf16.msra.mxu0 0
    %811 = vmatprep.subr.bf16.mxu0 0
    %812 = vmatpush1.bf16.msra.mxu0 0
    %813 = vmatprep.subr.bf16.mxu0 0
    %814 = vmatpush1.bf16.msra.mxu0 0
    %815 = vmatprep.subr.bf16.mxu0 0
    %816 = vmatpush1.bf16.msra.mxu0 0
    %817 = vmatprep.subr.bf16.mxu0 0
    %818 = vmatpush1.bf16.msra.mxu0 0
    %819 = vmatprep.subr.bf16.mxu0 0
    %820 = vmatpush1.bf16.msra.mxu0 0
    %821 = vmatprep.subr.bf16.mxu0 0
    %822 = vmatpush1.bf16.msra.mxu0 0
    %823 = vmatprep.subr.bf16.mxu0 0
    %824 = vmatpush1.bf16.msra.mxu0 0
    %825 = vmatprep.mubr.bf16.mxu0 0
    %826 = vmatmul.mubr.bf16.gmra.mrb[0].mxu0 %v788
    %v827 = vpop.f32.mrb[0].mxu0
    %v828 = vadd.f32 0.0, %v827
    %v829 = vpop.f32.mrb[0].mxu0
    %v830 = vpop.f32.mrb[0].mxu0
    %v831 = vadd.f32 0.0, %v830
    %v832 = vpop.f32.mrb[0].mxu0
    %833 = vmatprep.mubr.bf16.mxu0 0
    %834 = vmatmul.mubr.bf16.gmra.mrb[0].mxu0 %v791
    %v835 = vpop.f32.mrb[0].mxu0
    %v836 = vadd.f32 0.0, %v835
    %v837 = vpop.f32.mrb[0].mxu0
    %v838 = vpop.f32.mrb[0].mxu0
    %v839 = vadd.f32 0.0, %v838
    %v840 = vpop.f32.mrb[0].mxu0
    %841 = vdwg.mxu0
    %v842 = vpack.c.bf16 %v831, %v828
    %v843 = vpack.c.bf16 %v839, %v836
    %s844 = scalar_lea.vmem %s9, 128
    %v845 = vld [vmem:[%s844] sm:$0xf]
    %v846 = vld [vmem:[%s844 + $0x4] sm:$0xf]
    %v847 = vld [vmem:[%s844 + $0x8] sm:$0xf]
    %v848 = vld [vmem:[%s844 + $0xc] sm:$0xf]
    %v849 = vld [vmem:[%s844 + $0x10] sm:$0xf]
    %v850 = vld [vmem:[%s844 + $0x14] sm:$0xf]
    %v851 = vld [vmem:[%s844 + $0x18] sm:$0xf]
    %v852 = vld [vmem:[%s844 + $0x1c] sm:$0xf]
    %v853 = vld [vmem:[%s844 + $0x20] sm:$0xf]
    %v854 = vld [vmem:[%s844 + $0x24] sm:$0xf]
    %v855 = vld [vmem:[%s844 + $0x28] sm:$0xf]
    %v856 = vld [vmem:[%s844 + $0x2c] sm:$0xf]
    %v857 = vld [vmem:[%s844 + $0x30] sm:$0xf]
    %v858 = vld [vmem:[%s844 + $0x34] sm:$0xf]
    %v859 = vld [vmem:[%s844 + $0x38] sm:$0xf]
    %v860 = vld [vmem:[%s844 + $0x3c] sm:$0xf]
    %v877 = vunpack.c.l.b16 %v845
    %v878 = vunpack.c.l.b16 %v846
    %v879 = vunpack.c.l.b16 %v847
    %v880 = vunpack.c.l.b16 %v848
    %v881 = vunpack.c.l.b16 %v849
    %v882 = vunpack.c.l.b16 %v850
    %v883 = vunpack.c.l.b16 %v851
    %v884 = vunpack.c.l.b16 %v852
    %v885 = vunpack.c.l.b16 %v853
    %v886 = vunpack.c.l.b16 %v854
    %v887 = vunpack.c.l.b16 %v855
    %v888 = vunpack.c.l.b16 %v856
    %v889 = vunpack.c.l.b16 %v857
    %v890 = vunpack.c.l.b16 %v858
    %v891 = vunpack.c.l.b16 %v859
    %v892 = vunpack.c.l.b16 %v860
    %v893 = vpack.c.b16 %v878, %v877
    %v894 = vpack.c.b16 %v880, %v879
    %v895 = vpack.c.b16 %v882, %v881
    %v896 = vpack.c.b16 %v884, %v883
    %v897 = vpack.c.b16 %v886, %v885
    %v898 = vpack.c.b16 %v888, %v887
    %v899 = vpack.c.b16 %v890, %v889
    %v900 = vpack.c.b16 %v892, %v891
    %909 = vmatprep.subr.bf16.mxu0 0
    %910 = vmatpush1.bf16.msra.mxu0 %v893
    %911 = vmatprep.subr.bf16.mxu0 0
    %912 = vmatpush1.bf16.msra.mxu0 %v894
    %913 = vmatprep.subr.bf16.mxu0 0
    %914 = vmatpush1.bf16.msra.mxu0 %v895
    %915 = vmatprep.subr.bf16.mxu0 0
    %916 = vmatpush1.bf16.msra.mxu0 %v896
    %917 = vmatprep.subr.bf16.mxu0 0
    %918 = vmatpush1.bf16.msra.mxu0 %v897
    %919 = vmatprep.subr.bf16.mxu0 0
    %920 = vmatpush1.bf16.msra.mxu0 %v898
    %921 = vmatprep.subr.bf16.mxu0 0
    %922 = vmatpush1.bf16.msra.mxu0 %v899
    %923 = vmatprep.subr.bf16.mxu0 0
    %924 = vmatpush1.bf16.msra.mxu0 %v900
    %925 = vmatprep.subr.bf16.mxu0 0
    %926 = vmatpush1.bf16.msra.mxu0 0
    %927 = vmatprep.subr.bf16.mxu0 0
    %928 = vmatpush1.bf16.msra.mxu0 0
    %929 = vmatprep.subr.bf16.mxu0 0
    %930 = vmatpush1.bf16.msra.mxu0 0
    %931 = vmatprep.subr.bf16.mxu0 0
    %932 = vmatpush1.bf16.msra.mxu0 0
    %933 = vmatprep.subr.bf16.mxu0 0
    %934 = vmatpush1.bf16.msra.mxu0 0
    %935 = vmatprep.subr.bf16.mxu0 0
    %936 = vmatpush1.bf16.msra.mxu0 0
    %937 = vmatprep.subr.bf16.mxu0 0
    %938 = vmatpush1.bf16.msra.mxu0 0
    %939 = vmatprep.subr.bf16.mxu0 0
    %940 = vmatpush1.bf16.msra.mxu0 0
    %941 = vmatprep.mubr.bf16.mxu0 0
    %942 = vmatmul.mubr.bf16.gmra.mrb[0].mxu0 %v842
    %v943 = vpop.f32.mrb[0].mxu0
    %v944 = vadd.f32 0.0, %v943
    %v945 = vpop.f32.mrb[0].mxu0
    %v946 = vpop.f32.mrb[0].mxu0
    %v947 = vadd.f32 0.0, %v946
    %v948 = vpop.f32.mrb[0].mxu0
    %949 = vmatprep.mubr.bf16.mxu0 0
    %950 = vmatmul.mubr.bf16.gmra.mrb[0].mxu0 %v843
    %v951 = vpop.f32.mrb[0].mxu0
    %v952 = vadd.f32 0.0, %v951
    %v953 = vpop.f32.mrb[0].mxu0
    %v954 = vpop.f32.mrb[0].mxu0
    %v955 = vadd.f32 0.0, %v954
    %v956 = vpop.f32.mrb[0].mxu0
    %957 = vdwg.mxu0
    %v958 = vadd.f32 %v758, %v944
    %v959 = vadd.f32 %v761, %v947
    %v960 = vadd.f32 %v766, %v952
    %v961 = vadd.f32 %v769, %v955
    %s962 = scalar_lea.vmem [#allocation4], 48
    %v963 = vld [vmem:[%s962] sm:$0xf]
    %v964 = vld [vmem:[%s962 + $0x4] sm:$0xf]
    %v965 = vld [vmem:[%s962 + $0x8] sm:$0xf]
    %v966 = vld [vmem:[%s962 + $0xc] sm:$0xf]
    %v971 = vunpack.c.l.b16 %v963
    %v972 = vunpack.c.l.b16 %v964
    %v973 = vunpack.c.l.b16 %v965
    %v974 = vunpack.c.l.b16 %v966
    %v975 = vpack.c.b16 %v972, %v971
    %v976 = vpack.c.b16 %v974, %v973
    %v978 = vsel %vm415, %v975, 0
    %v981 = vsel %vm415, %v976, 0
    %983 = vmatprep.subr.bf16.mxu0 0
    %984 = vmatpush1.bf16.msra.mxu0 %v407
    %985 = vmatprep.subr.bf16.mxu0 0
    %986 = vmatpush1.bf16.msra.mxu0 %v408
    %987 = vmatprep.subr.bf16.mxu0 0
    %988 = vmatpush1.bf16.msra.mxu0 %v409
    %989 = vmatprep.subr.bf16.mxu0 0
    %990 = vmatpush1.bf16.msra.mxu0 %v410
    %991 = vmatprep.subr.bf16.mxu0 0
    %992 = vmatpush1.bf16.msra.mxu0 0
    %993 = vmatprep.subr.bf16.mxu0 0
    %994 = vmatpush1.bf16.msra.mxu0 0
    %995 = vmatprep.subr.bf16.mxu0 0
    %996 = vmatpush1.bf16.msra.mxu0 0
    %997 = vmatprep.subr.bf16.mxu0 0
    %998 = vmatpush1.bf16.msra.mxu0 0
    %999 = vmatprep.subr.bf16.mxu0 0
    %1000 = vmatpush1.bf16.msra.mxu0 0
    %1001 = vmatprep.subr.bf16.mxu0 0
    %1002 = vmatpush1.bf16.msra.mxu0 0
    %1003 = vmatprep.subr.bf16.mxu0 0
    %1004 = vmatpush1.bf16.msra.mxu0 0
    %1005 = vmatprep.subr.bf16.mxu0 0
    %1006 = vmatpush1.bf16.msra.mxu0 0
    %1007 = vmatprep.subr.bf16.mxu0 0
    %1008 = vmatpush1.bf16.msra.mxu0 0
    %1009 = vmatprep.subr.bf16.mxu0 0
    %1010 = vmatpush1.bf16.msra.mxu0 0
    %1011 = vmatprep.subr.bf16.mxu0 0
    %1012 = vmatpush1.bf16.msra.mxu0 0
    %1013 = vmatprep.subr.bf16.mxu0 0
    %1014 = vmatpush1.bf16.msra.mxu0 0
    %1015 = vmatprep.mubr.bf16.mxu0 0
    %1016 = vmatmul.mubr.bf16.gmra.mrb[0].mxu0 %v978
    %v1017 = vpop.f32.mrb[0].mxu0
    %v1018 = vadd.f32 0.0, %v1017
    %v1019 = vpop.f32.mrb[0].mxu0
    %v1020 = vpop.f32.mrb[0].mxu0
    %v1021 = vadd.f32 0.0, %v1020
    %v1022 = vpop.f32.mrb[0].mxu0
    %1023 = vmatprep.mubr.bf16.mxu0 0
    %1024 = vmatmul.mubr.bf16.gmra.mrb[0].mxu0 %v981
    %v1025 = vpop.f32.mrb[0].mxu0
    %v1026 = vadd.f32 0.0, %v1025
    %v1027 = vpop.f32.mrb[0].mxu0
    %v1028 = vpop.f32.mrb[0].mxu0
    %v1029 = vadd.f32 0.0, %v1028
    %v1030 = vpop.f32.mrb[0].mxu0
    %1031 = vdwg.mxu0
    %v1032 = vpack.c.bf16 %v1021, %v1018
    %v1033 = vpack.c.bf16 %v1029, %v1026
    %s1034 = scalar_lea.vmem %s9, 192
    %v1035 = vld [vmem:[%s1034] sm:$0xf]
    %v1036 = vld [vmem:[%s1034 + $0x4] sm:$0xf]
    %v1037 = vld [vmem:[%s1034 + $0x8] sm:$0xf]
    %v1038 = vld [vmem:[%s1034 + $0xc] sm:$0xf]
    %v1039 = vld [vmem:[%s1034 + $0x10] sm:$0xf]
    %v1040 = vld [vmem:[%s1034 + $0x14] sm:$0xf]
    %v1041 = vld [vmem:[%s1034 + $0x18] sm:$0xf]
    %v1042 = vld [vmem:[%s1034 + $0x1c] sm:$0xf]
    %v1043 = vld [vmem:[%s1034 + $0x20] sm:$0xf]
    %v1044 = vld [vmem:[%s1034 + $0x24] sm:$0xf]
    %v1045 = vld [vmem:[%s1034 + $0x28] sm:$0xf]
    %v1046 = vld [vmem:[%s1034 + $0x2c] sm:$0xf]
    %v1047 = vld [vmem:[%s1034 + $0x30] sm:$0xf]
    %v1048 = vld [vmem:[%s1034 + $0x34] sm:$0xf]
    %v1049 = vld [vmem:[%s1034 + $0x38] sm:$0xf]
    %v1050 = vld [vmem:[%s1034 + $0x3c] sm:$0xf]
    %v1067 = vunpack.c.l.b16 %v1035
    %v1068 = vunpack.c.l.b16 %v1036
    %v1069 = vunpack.c.l.b16 %v1037
    %v1070 = vunpack.c.l.b16 %v1038
    %v1071 = vunpack.c.l.b16 %v1039
    %v1072 = vunpack.c.l.b16 %v1040
    %v1073 = vunpack.c.l.b16 %v1041
    %v1074 = vunpack.c.l.b16 %v1042
    %v1075 = vunpack.c.l.b16 %v1043
    %v1076 = vunpack.c.l.b16 %v1044
    %v1077 = vunpack.c.l.b16 %v1045
    %v1078 = vunpack.c.l.b16 %v1046
    %v1079 = vunpack.c.l.b16 %v1047
    %v1080 = vunpack.c.l.b16 %v1048
    %v1081 = vunpack.c.l.b16 %v1049
    %v1082 = vunpack.c.l.b16 %v1050
    %v1083 = vpack.c.b16 %v1068, %v1067
    %v1084 = vpack.c.b16 %v1070, %v1069
    %v1085 = vpack.c.b16 %v1072, %v1071
    %v1086 = vpack.c.b16 %v1074, %v1073
    %v1087 = vpack.c.b16 %v1076, %v1075
    %v1088 = vpack.c.b16 %v1078, %v1077
    %v1089 = vpack.c.b16 %v1080, %v1079
    %v1090 = vpack.c.b16 %v1082, %v1081
    %1099 = vmatprep.subr.bf16.mxu0 0
    %1100 = vmatpush1.bf16.msra.mxu0 %v1083
    %1101 = vmatprep.subr.bf16.mxu0 0
    %1102 = vmatpush1.bf16.msra.mxu0 %v1084
    %1103 = vmatprep.subr.bf16.mxu0 0
    %1104 = vmatpush1.bf16.msra.mxu0 %v1085
    %1105 = vmatprep.subr.bf16.mxu0 0
    %1106 = vmatpush1.bf16.msra.mxu0 %v1086
    %1107 = vmatprep.subr.bf16.mxu0 0
    %1108 = vmatpush1.bf16.msra.mxu0 %v1087
    %1109 = vmatprep.subr.bf16.mxu0 0
    %1110 = vmatpush1.bf16.msra.mxu0 %v1088
    %1111 = vmatprep.subr.bf16.mxu0 0
    %1112 = vmatpush1.bf16.msra.mxu0 %v1089
    %1113 = vmatprep.subr.bf16.mxu0 0
    %1114 = vmatpush1.bf16.msra.mxu0 %v1090
    %1115 = vmatprep.subr.bf16.mxu0 0
    %1116 = vmatpush1.bf16.msra.mxu0 0
    %1117 = vmatprep.subr.bf16.mxu0 0
    %1118 = vmatpush1.bf16.msra.mxu0 0
    %1119 = vmatprep.subr.bf16.mxu0 0
    %1120 = vmatpush1.bf16.msra.mxu0 0
    %1121 = vmatprep.subr.bf16.mxu0 0
    %1122 = vmatpush1.bf16.msra.mxu0 0
    %1123 = vmatprep.subr.bf16.mxu0 0
    %1124 = vmatpush1.bf16.msra.mxu0 0
    %1125 = vmatprep.subr.bf16.mxu0 0
    %1126 = vmatpush1.bf16.msra.mxu0 0
    %1127 = vmatprep.subr.bf16.mxu0 0
    %1128 = vmatpush1.bf16.msra.mxu0 0
    %1129 = vmatprep.subr.bf16.mxu0 0
    %1130 = vmatpush1.bf16.msra.mxu0 0
    %1131 = vmatprep.mubr.bf16.mxu0 0
    %1132 = vmatmul.mubr.bf16.gmra.mrb[0].mxu0 %v1032
    %v1133 = vpop.f32.mrb[0].mxu0
    %v1134 = vadd.f32 0.0, %v1133
    %v1135 = vpop.f32.mrb[0].mxu0
    %v1136 = vpop.f32.mrb[0].mxu0
    %v1137 = vadd.f32 0.0, %v1136
    %v1138 = vpop.f32.mrb[0].mxu0
    %1139 = vmatprep.mubr.bf16.mxu0 0
    %1140 = vmatmul.mubr.bf16.gmra.mrb[0].mxu0 %v1033
    %v1141 = vpop.f32.mrb[0].mxu0
    %v1142 = vadd.f32 0.0, %v1141
    %v1143 = vpop.f32.mrb[0].mxu0
    %v1144 = vpop.f32.mrb[0].mxu0
    %v1145 = vadd.f32 0.0, %v1144
    %v1146 = vpop.f32.mrb[0].mxu0
    %1147 = vdwg.mxu0
    %v1148 = vadd.f32 %v958, %v1134
    %v1149 = vadd.f32 %v959, %v1137
    %v1150 = vadd.f32 %v960, %v1142
    %v1151 = vadd.f32 %v961, %v1145
    %v1152 = vld [vmem:[#allocation6] sm:$0x1]
    %v1154 = vlaneseq
    %v1155 = vshrl.u32 %v1154, 7
    %v1156 = vsub.s32 0, %v1155
    %v1157 = vrot.slane %v1152, %v1156
    %v1159 = vadd.f32 %v1148, %v1157
    %v1160 = vadd.f32 %v1149, %v1157
    %v1161 = vadd.f32 %v1150, %v1157
    %v1162 = vadd.f32 %v1151, %v1157
    %vm1163 = vcmp.gt.f32.partialorder %v1159, 0.0
    %vm1164 = vcmp.gt.f32.partialorder %v1160, 0.0
    %vm1165 = vcmp.gt.f32.partialorder %v1161, 0.0
    %vm1166 = vcmp.gt.f32.partialorder %v1162, 0.0
    %v1167 = vmin.f32 %v1159, 0.0
    %v1168 = vmin.f32 %v1160, 0.0
    %v1169 = vmin.f32 %v1161, 0.0
    %v1170 = vmin.f32 %v1162, 0.0
    %v1171 = vmul.f32 %v1167, 1.442695
    %v1172 = vpow.pop %v1171
    %v1173 = vmul.f32 %v1168, 1.442695
    %v1174 = vpow.pop %v1173
    %v1175 = vmul.f32 %v1169, 1.442695
    %v1176 = vpow.pop %v1175
    %v1177 = vmul.f32 %v1170, 1.442695
    %v1178 = vpow.pop %v1177
    %v1179 = vsub.f32 %v1172, 1.0
    %v1180 = vsub.f32 %v1174, 1.0
    %v1181 = vsub.f32 %v1176, 1.0
    %v1182 = vsub.f32 %v1178, 1.0
    %v1183 = vsel %vm1163, %v1159, %v1179
    %v1184 = vsel %vm1164, %v1160, %v1180
    %v1185 = vsel %vm1165, %v1161, %v1181
    %v1186 = vsel %vm1166, %v1162, %v1182
    %v1187 = vpack.c.bf16 %v1184, %v1183
    %v1188 = vpack.c.bf16 %v1186, %v1185
    %v1189 = vld [vmem:[%s13] sm:$0xf]
    %v1190 = vld [vmem:[%s13 + $0x4] sm:$0xf]
    %v1193 = vunpack.c.l.b16 %v1189
    %v1194 = vunpack.c.l.b16 %v1190
    %v1195 = vpack.c.b16 %v1194, %v1193
    %vm1196 = vcmask 261120
    %v1198 = vsel %vm1196, %v1195, 0
    %1200 = vmatprep.subr.bf16.mxu0 0
    %1201 = vmatpush1.bf16.msra.mxu0 %v1187
    %1202 = vmatprep.subr.bf16.mxu0 0
    %1203 = vmatpush1.bf16.msra.mxu0 %v1188
    %1204 = vmatprep.subr.bf16.mxu0 0
    %1205 = vmatpush1.bf16.msra.mxu0 0
    %1206 = vmatprep.subr.bf16.mxu0 0
    %1207 = vmatpush1.bf16.msra.mxu0 0
    %1208 = vmatprep.subr.bf16.mxu0 0
    %1209 = vmatpush1.bf16.msra.mxu0 0
    %1210 = vmatprep.subr.bf16.mxu0 0
    %1211 = vmatpush1.bf16.msra.mxu0 0
    %1212 = vmatprep.subr.bf16.mxu0 0
    %1213 = vmatpush1.bf16.msra.mxu0 0
    %1214 = vmatprep.subr.bf16.mxu0 0
    %1215 = vmatpush1.bf16.msra.mxu0 0
    %1216 = vmatprep.subr.bf16.mxu0 0
    %1217 = vmatpush1.bf16.msra.mxu0 0
    %1218 = vmatprep.subr.bf16.mxu0 0
    %1219 = vmatpush1.bf16.msra.mxu0 0
    %1220 = vmatprep.subr.bf16.mxu0 0
    %1221 = vmatpush1.bf16.msra.mxu0 0
    %1222 = vmatprep.subr.bf16.mxu0 0
    %1223 = vmatpush1.bf16.msra.mxu0 0
    %1224 = vmatprep.subr.bf16.mxu0 0
    %1225 = vmatpush1.bf16.msra.mxu0 0
    %1226 = vmatprep.subr.bf16.mxu0 0
    %1227 = vmatpush1.bf16.msra.mxu0 0
    %1228 = vmatprep.subr.bf16.mxu0 0
    %1229 = vmatpush1.bf16.msra.mxu0 0
    %1230 = vmatprep.subr.bf16.mxu0 0
    %1231 = vmatpush1.bf16.msra.mxu0 0
    %1232 = vmatprep.mubr.bf16.mxu0 0
    %1233 = vmatmul.mubr.bf16.gmra.mrb[0].mxu0 %v1198
    %v1234 = vpop.f32.mrb[0].mxu0
    %v1235 = vadd.f32 0.0, %v1234
    %v1236 = vpop.f32.mrb[0].mxu0
    %v1237 = vpop.f32.mrb[0].mxu0
    %v1238 = vadd.f32 0.0, %v1237
    %v1239 = vpop.f32.mrb[0].mxu0
    %1240 = vdwg.mxu0
    %v1241 = vpack.c.bf16 %v1238, %v1235
    %v1242 = vld [vmem:[%s15] sm:$0xf]
    %v1243 = vld [vmem:[%s15 + $0x4] sm:$0xf]
    %v1244 = vld [vmem:[%s15 + $0x8] sm:$0xf]
    %v1245 = vld [vmem:[%s15 + $0xc] sm:$0xf]
    %v1246 = vld [vmem:[%s15 + $0x10] sm:$0xf]
    %v1247 = vld [vmem:[%s15 + $0x14] sm:$0xf]
    %v1248 = vld [vmem:[%s15 + $0x18] sm:$0xf]
    %v1249 = vld [vmem:[%s15 + $0x1c] sm:$0xf]
    %v1250 = vld [vmem:[%s15 + $0x20] sm:$0xf]
    %v1251 = vld [vmem:[%s15 + $0x24] sm:$0xf]
    %v1252 = vld [vmem:[%s15 + $0x28] sm:$0xf]
    %v1253 = vld [vmem:[%s15 + $0x2c] sm:$0xf]
    %v1254 = vld [vmem:[%s15 + $0x30] sm:$0xf]
    %v1255 = vld [vmem:[%s15 + $0x34] sm:$0xf]
    %v1256 = vld [vmem:[%s15 + $0x38] sm:$0xf]
    %v1257 = vld [vmem:[%s15 + $0x3c] sm:$0xf]
    %s1258 = scalar_lea.vmem %s13, 8
    %v1259 = vld [vmem:[%s1258] sm:$0xf]
    %v1260 = vld [vmem:[%s1258 + $0x4] sm:$0xf]
    %v1263 = vunpack.c.l.b16 %v1259
    %v1264 = vunpack.c.l.b16 %v1260
    %v1265 = vpack.c.b16 %v1264, %v1263
    %v1267 = vsel %vm1196, %v1265, 0
    %1269 = vmatprep.subr.bf16.mxu0 0
    %1270 = vmatpush1.bf16.msra.mxu0 %v1187
    %1271 = vmatprep.subr.bf16.mxu0 0
    %1272 = vmatpush1.bf16.msra.mxu0 %v1188
    %1273 = vmatprep.subr.bf16.mxu0 0
    %1274 = vmatpush1.bf16.msra.mxu0 0
    %1275 = vmatprep.subr.bf16.mxu0 0
    %1276 = vmatpush1.bf16.msra.mxu0 0
    %1277 = vmatprep.subr.bf16.mxu0 0
    %1278 = vmatpush1.bf16.msra.mxu0 0
    %1279 = vmatprep.subr.bf16.mxu0 0
    %1280 = vmatpush1.bf16.msra.mxu0 0
    %1281 = vmatprep.subr.bf16.mxu0 0
    %1282 = vmatpush1.bf16.msra.mxu0 0
    %1283 = vmatprep.subr.bf16.mxu0 0
    %1284 = vmatpush1.bf16.msra.mxu0 0
    %1285 = vmatprep.subr.bf16.mxu0 0
    %1286 = vmatpush1.bf16.msra.mxu0 0
    %1287 = vmatprep.subr.bf16.mxu0 0
    %1288 = vmatpush1.bf16.msra.mxu0 0
    %1289 = vmatprep.subr.bf16.mxu0 0
    %1290 = vmatpush1.bf16.msra.mxu0 0
    %1291 = vmatprep.subr.bf16.mxu0 0
    %1292 = vmatpush1.bf16.msra.mxu0 0
    %1293 = vmatprep.subr.bf16.mxu0 0
    %1294 = vmatpush1.bf16.msra.mxu0 0
    %1295 = vmatprep.subr.bf16.mxu0 0
    %1296 = vmatpush1.bf16.msra.mxu0 0
    %1297 = vmatprep.subr.bf16.mxu0 0
    %1298 = vmatpush1.bf16.msra.mxu0 0
    %1299 = vmatprep.subr.bf16.mxu0 0
    %1300 = vmatpush1.bf16.msra.mxu0 0
    %1301 = vmatprep.mubr.bf16.mxu0 0
    %1302 = vmatmul.mubr.bf16.gmra.mrb[0].mxu0 %v1267
    %v1303 = vpop.f32.mrb[0].mxu0
    %v1304 = vadd.f32 0.0, %v1303
    %v1305 = vpop.f32.mrb[0].mxu0
    %v1306 = vpop.f32.mrb[0].mxu0
    %v1307 = vadd.f32 0.0, %v1306
    %v1308 = vpop.f32.mrb[0].mxu0
    %1309 = vdwg.mxu0
    %v1310 = vpack.c.bf16 %v1307, %v1304
    %s1311 = scalar_lea.vmem %s15, 64
    %v1312 = vld [vmem:[%s1311] sm:$0xf]
    %v1313 = vld [vmem:[%s1311 + $0x4] sm:$0xf]
    %v1314 = vld [vmem:[%s1311 + $0x8] sm:$0xf]
    %v1315 = vld [vmem:[%s1311 + $0xc] sm:$0xf]
    %v1316 = vld [vmem:[%s1311 + $0x10] sm:$0xf]
    %v1317 = vld [vmem:[%s1311 + $0x14] sm:$0xf]
    %v1318 = vld [vmem:[%s1311 + $0x18] sm:$0xf]
    %v1319 = vld [vmem:[%s1311 + $0x1c] sm:$0xf]
    %v1320 = vld [vmem:[%s1311 + $0x20] sm:$0xf]
    %v1321 = vld [vmem:[%s1311 + $0x24] sm:$0xf]
    %v1322 = vld [vmem:[%s1311 + $0x28] sm:$0xf]
    %v1323 = vld [vmem:[%s1311 + $0x2c] sm:$0xf]
    %v1324 = vld [vmem:[%s1311 + $0x30] sm:$0xf]
    %v1325 = vld [vmem:[%s1311 + $0x34] sm:$0xf]
    %v1326 = vld [vmem:[%s1311 + $0x38] sm:$0xf]
    %v1327 = vld [vmem:[%s1311 + $0x3c] sm:$0xf]
    %v1344 = vunpack.c.l.b16 %v1312
    %v1345 = vunpack.c.l.b16 %v1313
    %v1346 = vunpack.c.l.b16 %v1314
    %v1347 = vunpack.c.l.b16 %v1315
    %v1348 = vunpack.c.l.b16 %v1316
    %v1349 = vunpack.c.l.b16 %v1317
    %v1350 = vunpack.c.l.b16 %v1318
    %v1351 = vunpack.c.l.b16 %v1319
    %v1352 = vunpack.c.l.b16 %v1320
    %v1353 = vunpack.c.l.b16 %v1321
    %v1354 = vunpack.c.l.b16 %v1322
    %v1355 = vunpack.c.l.b16 %v1323
    %v1356 = vunpack.c.l.b16 %v1324
    %v1357 = vunpack.c.l.b16 %v1325
    %v1358 = vunpack.c.l.b16 %v1326
    %v1359 = vunpack.c.l.b16 %v1327
    %v1360 = vpack.c.b16 %v1345, %v1344
    %v1361 = vpack.c.b16 %v1347, %v1346
    %v1362 = vpack.c.b16 %v1349, %v1348
    %v1363 = vpack.c.b16 %v1351, %v1350
    %v1364 = vpack.c.b16 %v1353, %v1352
    %v1365 = vpack.c.b16 %v1355, %v1354
    %v1366 = vpack.c.b16 %v1357, %v1356
    %v1367 = vpack.c.b16 %v1359, %v1358
    %1376 = vmatprep.subr.bf16.mxu0 0
    %1377 = vmatpush1.bf16.msra.mxu0 %v1360
    %1378 = vmatprep.subr.bf16.mxu0 0
    %1379 = vmatpush1.bf16.msra.mxu0 %v1361
    %1380 = vmatprep.subr.bf16.mxu0 0
    %1381 = vmatpush1.bf16.msra.mxu0 %v1362
    %1382 = vmatprep.subr.bf16.mxu0 0
    %1383 = vmatpush1.bf16.msra.mxu0 %v1363
    %1384 = vmatprep.subr.bf16.mxu0 0
    %1385 = vmatpush1.bf16.msra.mxu0 %v1364
    %1386 = vmatprep.subr.bf16.mxu0 0
    %1387 = vmatpush1.bf16.msra.mxu0 %v1365
    %1388 = vmatprep.subr.bf16.mxu0 0
    %1389 = vmatpush1.bf16.msra.mxu0 %v1366
    %1390 = vmatprep.subr.bf16.mxu0 0
    %1391 = vmatpush1.bf16.msra.mxu0 %v1367
    %1392 = vmatprep.subr.bf16.mxu0 0
    %1393 = vmatpush1.bf16.msra.mxu0 0
    %1394 = vmatprep.subr.bf16.mxu0 0
    %1395 = vmatpush1.bf16.msra.mxu0 0
    %1396 = vmatprep.subr.bf16.mxu0 0
    %1397 = vmatpush1.bf16.msra.mxu0 0
    %1398 = vmatprep.subr.bf16.mxu0 0
    %1399 = vmatpush1.bf16.msra.mxu0 0
    %1400 = vmatprep.subr.bf16.mxu0 0
    %1401 = vmatpush1.bf16.msra.mxu0 0
    %1402 = vmatprep.subr.bf16.mxu0 0
    %1403 = vmatpush1.bf16.msra.mxu0 0
    %1404 = vmatprep.subr.bf16.mxu0 0
    %1405 = vmatpush1.bf16.msra.mxu0 0
    %1406 = vmatprep.subr.bf16.mxu0 0
    %1407 = vmatpush1.bf16.msra.mxu0 0
    %1408 = vmatprep.mubr.bf16.mxu0 0
    %1409 = vmatmul.mubr.bf16.gmra.mrb[0].mxu0 %v1310
    %v1410 = vpop.f32.mrb[0].mxu0
    %v1411 = vadd.f32 0.0, %v1410
    %v1412 = vpop.f32.mrb[0].mxu0
    %v1413 = vpop.f32.mrb[0].mxu0
    %v1414 = vadd.f32 0.0, %v1413
    %v1415 = vpop.f32.mrb[0].mxu0
    %1416 = vdwg.mxu0
    %v1433 = vunpack.c.l.b16 %v1242
    %v1434 = vunpack.c.l.b16 %v1243
    %v1435 = vunpack.c.l.b16 %v1244
    %v1436 = vunpack.c.l.b16 %v1245
    %v1437 = vunpack.c.l.b16 %v1246
    %v1438 = vunpack.c.l.b16 %v1247
    %v1439 = vunpack.c.l.b16 %v1248
    %v1440 = vunpack.c.l.b16 %v1249
    %v1441 = vunpack.c.l.b16 %v1250
    %v1442 = vunpack.c.l.b16 %v1251
    %v1443 = vunpack.c.l.b16 %v1252
    %v1444 = vunpack.c.l.b16 %v1253
    %v1445 = vunpack.c.l.b16 %v1254
    %v1446 = vunpack.c.l.b16 %v1255
    %v1447 = vunpack.c.l.b16 %v1256
    %v1448 = vunpack.c.l.b16 %v1257
    %v1449 = vpack.c.b16 %v1434, %v1433
    %v1450 = vpack.c.b16 %v1436, %v1435
    %v1451 = vpack.c.b16 %v1438, %v1437
    %v1452 = vpack.c.b16 %v1440, %v1439
    %v1453 = vpack.c.b16 %v1442, %v1441
    %v1454 = vpack.c.b16 %v1444, %v1443
    %v1455 = vpack.c.b16 %v1446, %v1445
    %v1456 = vpack.c.b16 %v1448, %v1447
    %1465 = vmatprep.subr.bf16.mxu0 0
    %1466 = vmatpush1.bf16.msra.mxu0 %v1449
    %1467 = vmatprep.subr.bf16.mxu0 0
    %1468 = vmatpush1.bf16.msra.mxu0 %v1450
    %1469 = vmatprep.subr.bf16.mxu0 0
    %1470 = vmatpush1.bf16.msra.mxu0 %v1451
    %1471 = vmatprep.subr.bf16.mxu0 0
    %1472 = vmatpush1.bf16.msra.mxu0 %v1452
    %1473 = vmatprep.subr.bf16.mxu0 0
    %1474 = vmatpush1.bf16.msra.mxu0 %v1453
    %1475 = vmatprep.subr.bf16.mxu0 0
    %1476 = vmatpush1.bf16.msra.mxu0 %v1454
    %1477 = vmatprep.subr.bf16.mxu0 0
    %1478 = vmatpush1.bf16.msra.mxu0 %v1455
    %1479 = vmatprep.subr.bf16.mxu0 0
    %1480 = vmatpush1.bf16.msra.mxu0 %v1456
    %1481 = vmatprep.subr.bf16.mxu0 0
    %1482 = vmatpush1.bf16.msra.mxu0 0
    %1483 = vmatprep.subr.bf16.mxu0 0
    %1484 = vmatpush1.bf16.msra.mxu0 0
    %1485 = vmatprep.subr.bf16.mxu0 0
    %1486 = vmatpush1.bf16.msra.mxu0 0
    %1487 = vmatprep.subr.bf16.mxu0 0
    %1488 = vmatpush1.bf16.msra.mxu0 0
    %1489 = vmatprep.subr.bf16.mxu0 0
    %1490 = vmatpush1.bf16.msra.mxu0 0
    %1491 = vmatprep.subr.bf16.mxu0 0
    %1492 = vmatpush1.bf16.msra.mxu0 0
    %1493 = vmatprep.subr.bf16.mxu0 0
    %1494 = vmatpush1.bf16.msra.mxu0 0
    %1495 = vmatprep.subr.bf16.mxu0 0
    %1496 = vmatpush1.bf16.msra.mxu0 0
    %1497 = vmatprep.mubr.bf16.mxu0 0
    %1498 = vmatmul.mubr.bf16.gmra.mrb[0].mxu0 %v1241
    %v1499 = vpop.f32.mrb[0].mxu0
    %v1500 = vadd.f32 %v1411, %v1499
    %v1501 = vpop.f32.mrb[0].mxu0
    %v1502 = vpop.f32.mrb[0].mxu0
    %v1503 = vadd.f32 %v1414, %v1502
    %v1504 = vpop.f32.mrb[0].mxu0
    %1505 = vdwg.mxu0
    %s1506 = scalar_lea.vmem %s13, 16
    %v1507 = vld [vmem:[%s1506] sm:$0xf]
    %v1508 = vld [vmem:[%s1506 + $0x4] sm:$0xf]
    %v1511 = vunpack.c.l.b16 %v1507
    %v1512 = vunpack.c.l.b16 %v1508
    %v1513 = vpack.c.b16 %v1512, %v1511
    %v1515 = vsel %vm1196, %v1513, 0
    %1517 = vmatprep.subr.bf16.mxu0 0
    %1518 = vmatpush1.bf16.msra.mxu0 %v1187
    %1519 = vmatprep.subr.bf16.mxu0 0
    %1520 = vmatpush1.bf16.msra.mxu0 %v1188
    %1521 = vmatprep.subr.bf16.mxu0 0
    %1522 = vmatpush1.bf16.msra.mxu0 0
    %1523 = vmatprep.subr.bf16.mxu0 0
    %1524 = vmatpush1.bf16.msra.mxu0 0
    %1525 = vmatprep.subr.bf16.mxu0 0
    %1526 = vmatpush1.bf16.msra.mxu0 0
    %1527 = vmatprep.subr.bf16.mxu0 0
    %1528 = vmatpush1.bf16.msra.mxu0 0
    %1529 = vmatprep.subr.bf16.mxu0 0
    %1530 = vmatpush1.bf16.msra.mxu0 0
    %1531 = vmatprep.subr.bf16.mxu0 0
    %1532 = vmatpush1.bf16.msra.mxu0 0
    %1533 = vmatprep.subr.bf16.mxu0 0
    %1534 = vmatpush1.bf16.msra.mxu0 0
    %1535 = vmatprep.subr.bf16.mxu0 0
    %1536 = vmatpush1.bf16.msra.mxu0 0
    %1537 = vmatprep.subr.bf16.mxu0 0
    %1538 = vmatpush1.bf16.msra.mxu0 0
    %1539 = vmatprep.subr.bf16.mxu0 0
    %1540 = vmatpush1.bf16.msra.mxu0 0
    %1541 = vmatprep.subr.bf16.mxu0 0
    %1542 = vmatpush1.bf16.msra.mxu0 0
    %1543 = vmatprep.subr.bf16.mxu0 0
    %1544 = vmatpush1.bf16.msra.mxu0 0
    %1545 = vmatprep.subr.bf16.mxu0 0
    %1546 = vmatpush1.bf16.msra.mxu0 0
    %1547 = vmatprep.subr.bf16.mxu0 0
    %1548 = vmatpush1.bf16.msra.mxu0 0
    %1549 = vmatprep.mubr.bf16.mxu0 0
    %1550 = vmatmul.mubr.bf16.gmra.mrb[0].mxu0 %v1515
    %v1551 = vpop.f32.mrb[0].mxu0
    %v1552 = vadd.f32 0.0, %v1551
    %v1553 = vpop.f32.mrb[0].mxu0
    %v1554 = vpop.f32.mrb[0].mxu0
    %v1555 = vadd.f32 0.0, %v1554
    %v1556 = vpop.f32.mrb[0].mxu0
    %1557 = vdwg.mxu0
    %v1558 = vpack.c.bf16 %v1555, %v1552
    %s1559 = scalar_lea.vmem %s15, 128
    %v1560 = vld [vmem:[%s1559] sm:$0xf]
    %v1561 = vld [vmem:[%s1559 + $0x4] sm:$0xf]
    %v1562 = vld [vmem:[%s1559 + $0x8] sm:$0xf]
    %v1563 = vld [vmem:[%s1559 + $0xc] sm:$0xf]
    %v1564 = vld [vmem:[%s1559 + $0x10] sm:$0xf]
    %v1565 = vld [vmem:[%s1559 + $0x14] sm:$0xf]
    %v1566 = vld [vmem:[%s1559 + $0x18] sm:$0xf]
    %v1567 = vld [vmem:[%s1559 + $0x1c] sm:$0xf]
    %v1568 = vld [vmem:[%s1559 + $0x20] sm:$0xf]
    %v1569 = vld [vmem:[%s1559 + $0x24] sm:$0xf]
    %v1570 = vld [vmem:[%s1559 + $0x28] sm:$0xf]
    %v1571 = vld [vmem:[%s1559 + $0x2c] sm:$0xf]
    %v1572 = vld [vmem:[%s1559 + $0x30] sm:$0xf]
    %v1573 = vld [vmem:[%s1559 + $0x34] sm:$0xf]
    %v1574 = vld [vmem:[%s1559 + $0x38] sm:$0xf]
    %v1575 = vld [vmem:[%s1559 + $0x3c] sm:$0xf]
    %v1592 = vunpack.c.l.b16 %v1560
    %v1593 = vunpack.c.l.b16 %v1561
    %v1594 = vunpack.c.l.b16 %v1562
    %v1595 = vunpack.c.l.b16 %v1563
    %v1596 = vunpack.c.l.b16 %v1564
    %v1597 = vunpack.c.l.b16 %v1565
    %v1598 = vunpack.c.l.b16 %v1566
    %v1599 = vunpack.c.l.b16 %v1567
    %v1600 = vunpack.c.l.b16 %v1568
    %v1601 = vunpack.c.l.b16 %v1569
    %v1602 = vunpack.c.l.b16 %v1570
    %v1603 = vunpack.c.l.b16 %v1571
    %v1604 = vunpack.c.l.b16 %v1572
    %v1605 = vunpack.c.l.b16 %v1573
    %v1606 = vunpack.c.l.b16 %v1574
    %v1607 = vunpack.c.l.b16 %v1575
    %v1608 = vpack.c.b16 %v1593, %v1592
    %v1609 = vpack.c.b16 %v1595, %v1594
    %v1610 = vpack.c.b16 %v1597, %v1596
    %v1611 = vpack.c.b16 %v1599, %v1598
    %v1612 = vpack.c.b16 %v1601, %v1600
    %v1613 = vpack.c.b16 %v1603, %v1602
    %v1614 = vpack.c.b16 %v1605, %v1604
    %v1615 = vpack.c.b16 %v1607, %v1606
    %1624 = vmatprep.subr.bf16.mxu0 0
    %1625 = vmatpush1.bf16.msra.mxu0 %v1608
    %1626 = vmatprep.subr.bf16.mxu0 0
    %1627 = vmatpush1.bf16.msra.mxu0 %v1609
    %1628 = vmatprep.subr.bf16.mxu0 0
    %1629 = vmatpush1.bf16.msra.mxu0 %v1610
    %1630 = vmatprep.subr.bf16.mxu0 0
    %1631 = vmatpush1.bf16.msra.mxu0 %v1611
    %1632 = vmatprep.subr.bf16.mxu0 0
    %1633 = vmatpush1.bf16.msra.mxu0 %v1612
    %1634 = vmatprep.subr.bf16.mxu0 0
    %1635 = vmatpush1.bf16.msra.mxu0 %v1613
    %1636 = vmatprep.subr.bf16.mxu0 0
    %1637 = vmatpush1.bf16.msra.mxu0 %v1614
    %1638 = vmatprep.subr.bf16.mxu0 0
    %1639 = vmatpush1.bf16.msra.mxu0 %v1615
    %1640 = vmatprep.subr.bf16.mxu0 0
    %1641 = vmatpush1.bf16.msra.mxu0 0
    %1642 = vmatprep.subr.bf16.mxu0 0
    %1643 = vmatpush1.bf16.msra.mxu0 0
    %1644 = vmatprep.subr.bf16.mxu0 0
    %1645 = vmatpush1.bf16.msra.mxu0 0
    %1646 = vmatprep.subr.bf16.mxu0 0
    %1647 = vmatpush1.bf16.msra.mxu0 0
    %1648 = vmatprep.subr.bf16.mxu0 0
    %1649 = vmatpush1.bf16.msra.mxu0 0
    %1650 = vmatprep.subr.bf16.mxu0 0
    %1651 = vmatpush1.bf16.msra.mxu0 0
    %1652 = vmatprep.subr.bf16.mxu0 0
    %1653 = vmatpush1.bf16.msra.mxu0 0
    %1654 = vmatprep.subr.bf16.mxu0 0
    %1655 = vmatpush1.bf16.msra.mxu0 0
    %1656 = vmatprep.mubr.bf16.mxu0 0
    %1657 = vmatmul.mubr.bf16.gmra.mrb[0].mxu0 %v1558
    %v1658 = vpop.f32.mrb[0].mxu0
    %v1659 = vadd.f32 0.0, %v1658
    %v1660 = vpop.f32.mrb[0].mxu0
    %v1661 = vpop.f32.mrb[0].mxu0
    %v1662 = vadd.f32 0.0, %v1661
    %v1663 = vpop.f32.mrb[0].mxu0
    %1664 = vdwg.mxu0
    %v1665 = vadd.f32 %v1500, %v1659
    %v1666 = vadd.f32 %v1503, %v1662
    %s1667 = scalar_lea.vmem %s13, 24
    %v1668 = vld [vmem:[%s1667] sm:$0xf]
    %v1669 = vld [vmem:[%s1667 + $0x4] sm:$0xf]
    %v1672 = vunpack.c.l.b16 %v1668
    %v1673 = vunpack.c.l.b16 %v1669
    %v1674 = vpack.c.b16 %v1673, %v1672
    %v1676 = vsel %vm1196, %v1674, 0
    %1678 = vmatprep.subr.bf16.mxu0 0
    %1679 = vmatpush1.bf16.msra.mxu0 %v1187
    %1680 = vmatprep.subr.bf16.mxu0 0
    %1681 = vmatpush1.bf16.msra.mxu0 %v1188
    %1682 = vmatprep.subr.bf16.mxu0 0
    %1683 = vmatpush1.bf16.msra.mxu0 0
    %1684 = vmatprep.subr.bf16.mxu0 0
    %1685 = vmatpush1.bf16.msra.mxu0 0
    %1686 = vmatprep.subr.bf16.mxu0 0
    %1687 = vmatpush1.bf16.msra.mxu0 0
    %1688 = vmatprep.subr.bf16.mxu0 0
    %1689 = vmatpush1.bf16.msra.mxu0 0
    %1690 = vmatprep.subr.bf16.mxu0 0
    %1691 = vmatpush1.bf16.msra.mxu0 0
    %1692 = vmatprep.subr.bf16.mxu0 0
    %1693 = vmatpush1.bf16.msra.mxu0 0
    %1694 = vmatprep.subr.bf16.mxu0 0
    %1695 = vmatpush1.bf16.msra.mxu0 0
    %1696 = vmatprep.subr.bf16.mxu0 0
    %1697 = vmatpush1.bf16.msra.mxu0 0
    %1698 = vmatprep.subr.bf16.mxu0 0
    %1699 = vmatpush1.bf16.msra.mxu0 0
    %1700 = vmatprep.subr.bf16.mxu0 0
    %1701 = vmatpush1.bf16.msra.mxu0 0
    %1702 = vmatprep.subr.bf16.mxu0 0
    %1703 = vmatpush1.bf16.msra.mxu0 0
    %1704 = vmatprep.subr.bf16.mxu0 0
    %1705 = vmatpush1.bf16.msra.mxu0 0
    %1706 = vmatprep.subr.bf16.mxu0 0
    %1707 = vmatpush1.bf16.msra.mxu0 0
    %1708 = vmatprep.subr.bf16.mxu0 0
    %1709 = vmatpush1.bf16.msra.mxu0 0
    %1710 = vmatprep.mubr.bf16.mxu0 0
    %1711 = vmatmul.mubr.bf16.gmra.mrb[0].mxu0 %v1676
    %v1712 = vpop.f32.mrb[0].mxu0
    %v1713 = vadd.f32 0.0, %v1712
    %v1714 = vpop.f32.mrb[0].mxu0
    %v1715 = vpop.f32.mrb[0].mxu0
    %v1716 = vadd.f32 0.0, %v1715
    %v1717 = vpop.f32.mrb[0].mxu0
    %1718 = vdwg.mxu0
    %v1719 = vpack.c.bf16 %v1716, %v1713
    %s1720 = scalar_lea.vmem %s15, 192
    %v1721 = vld [vmem:[%s1720] sm:$0xf]
    %v1722 = vld [vmem:[%s1720 + $0x4] sm:$0xf]
    %v1723 = vld [vmem:[%s1720 + $0x8] sm:$0xf]
    %v1724 = vld [vmem:[%s1720 + $0xc] sm:$0xf]
    %v1725 = vld [vmem:[%s1720 + $0x10] sm:$0xf]
    %v1726 = vld [vmem:[%s1720 + $0x14] sm:$0xf]
    %v1727 = vld [vmem:[%s1720 + $0x18] sm:$0xf]
    %v1728 = vld [vmem:[%s1720 + $0x1c] sm:$0xf]
    %v1729 = vld [vmem:[%s1720 + $0x20] sm:$0xf]
    %v1730 = vld [vmem:[%s1720 + $0x24] sm:$0xf]
    %v1731 = vld [vmem:[%s1720 + $0x28] sm:$0xf]
    %v1732 = vld [vmem:[%s1720 + $0x2c] sm:$0xf]
    %v1733 = vld [vmem:[%s1720 + $0x30] sm:$0xf]
    %v1734 = vld [vmem:[%s1720 + $0x34] sm:$0xf]
    %v1735 = vld [vmem:[%s1720 + $0x38] sm:$0xf]
    %v1736 = vld [vmem:[%s1720 + $0x3c] sm:$0xf]
    %v1753 = vunpack.c.l.b16 %v1721
    %v1754 = vunpack.c.l.b16 %v1722
    %v1755 = vunpack.c.l.b16 %v1723
    %v1756 = vunpack.c.l.b16 %v1724
    %v1757 = vunpack.c.l.b16 %v1725
    %v1758 = vunpack.c.l.b16 %v1726
    %v1759 = vunpack.c.l.b16 %v1727
    %v1760 = vunpack.c.l.b16 %v1728
    %v1761 = vunpack.c.l.b16 %v1729
    %v1762 = vunpack.c.l.b16 %v1730
    %v1763 = vunpack.c.l.b16 %v1731
    %v1764 = vunpack.c.l.b16 %v1732
    %v1765 = vunpack.c.l.b16 %v1733
    %v1766 = vunpack.c.l.b16 %v1734
    %v1767 = vunpack.c.l.b16 %v1735
    %v1768 = vunpack.c.l.b16 %v1736
    %v1769 = vpack.c.b16 %v1754, %v1753
    %v1770 = vpack.c.b16 %v1756, %v1755
    %v1771 = vpack.c.b16 %v1758, %v1757
    %v1772 = vpack.c.b16 %v1760, %v1759
    %v1773 = vpack.c.b16 %v1762, %v1761
    %v1774 = vpack.c.b16 %v1764, %v1763
    %v1775 = vpack.c.b16 %v1766, %v1765
    %v1776 = vpack.c.b16 %v1768, %v1767
    %1785 = vmatprep.subr.bf16.mxu0 0
    %1786 = vmatpush1.bf16.msra.mxu0 %v1769
    %1787 = vmatprep.subr.bf16.mxu0 0
    %1788 = vmatpush1.bf16.msra.mxu0 %v1770
    %1789 = vmatprep.subr.bf16.mxu0 0
    %1790 = vmatpush1.bf16.msra.mxu0 %v1771
    %1791 = vmatprep.subr.bf16.mxu0 0
    %1792 = vmatpush1.bf16.msra.mxu0 %v1772
    %1793 = vmatprep.subr.bf16.mxu0 0
    %1794 = vmatpush1.bf16.msra.mxu0 %v1773
    %1795 = vmatprep.subr.bf16.mxu0 0
    %1796 = vmatpush1.bf16.msra.mxu0 %v1774
    %1797 = vmatprep.subr.bf16.mxu0 0
    %1798 = vmatpush1.bf16.msra.mxu0 %v1775
    %1799 = vmatprep.subr.bf16.mxu0 0
    %1800 = vmatpush1.bf16.msra.mxu0 %v1776
    %1801 = vmatprep.subr.bf16.mxu0 0
    %1802 = vmatpush1.bf16.msra.mxu0 0
    %1803 = vmatprep.subr.bf16.mxu0 0
    %1804 = vmatpush1.bf16.msra.mxu0 0
    %1805 = vmatprep.subr.bf16.mxu0 0
    %1806 = vmatpush1.bf16.msra.mxu0 0
    %1807 = vmatprep.subr.bf16.mxu0 0
    %1808 = vmatpush1.bf16.msra.mxu0 0
    %1809 = vmatprep.subr.bf16.mxu0 0
    %1810 = vmatpush1.bf16.msra.mxu0 0
    %1811 = vmatprep.subr.bf16.mxu0 0
    %1812 = vmatpush1.bf16.msra.mxu0 0
    %1813 = vmatprep.subr.bf16.mxu0 0
    %1814 = vmatpush1.bf16.msra.mxu0 0
    %1815 = vmatprep.subr.bf16.mxu0 0
    %1816 = vmatpush1.bf16.msra.mxu0 0
    %1817 = vmatprep.mubr.bf16.mxu0 0
    %1818 = vmatmul.mubr.bf16.gmra.mrb[0].mxu0 %v1719
    %v1819 = vpop.f32.mrb[0].mxu0
    %v1820 = vadd.f32 0.0, %v1819
    %v1821 = vpop.f32.mrb[0].mxu0
    %v1822 = vpop.f32.mrb[0].mxu0
    %v1823 = vadd.f32 0.0, %v1822
    %v1824 = vpop.f32.mrb[0].mxu0
    %1825 = vdwg.mxu0
    %v1826 = vadd.f32 %v1665, %v1820
    %v1827 = vadd.f32 %v1666, %v1823
    %v1828 = vld [vmem:[#allocation7] sm:$0x1]
    %v1830 = vlaneseq
    %v1831 = vshrl.u32 %v1830, 7
    %v1832 = vsub.s32 0, %v1831
    %v1833 = vrot.slane %v1828, %v1832
    %v1835 = vadd.f32 %v1826, %v1833
    %v1836 = vadd.f32 %v1827, %v1833
    %vm1837 = vcmp.gt.f32.partialorder %v1835, 0.0
    %vm1838 = vcmp.gt.f32.partialorder %v1836, 0.0
    %v1839 = vmin.f32 %v1835, 0.0
    %v1840 = vmin.f32 %v1836, 0.0
    %v1841 = vmul.f32 %v1839, 1.442695
    %v1842 = vpow.pop %v1841
    %v1843 = vmul.f32 %v1840, 1.442695
    %v1844 = vpow.pop %v1843
    %v1845 = vsub.f32 %v1842, 1.0
    %v1846 = vsub.f32 %v1844, 1.0
    %v1847 = vsel %vm1837, %v1835, %v1845
    %v1848 = vsel %vm1838, %v1836, %v1846
    %v1849 = vpack.c.bf16 %v1848, %v1847
    %v1850 = vld [vmem:[#allocation9] sm:$0xf]
    %vm1851 = vcmask 130048
    %v1853 = vsel %vm1851, %v1850, 0
    %1855 = vmatprep.subr.bf16.mxu0 0
    %1856 = vmatpush1.bf16.msra.mxu0 %v1849
    %1857 = vmatprep.subr.bf16.mxu0 0
    %1858 = vmatpush1.bf16.msra.mxu0 0
    %1859 = vmatprep.subr.bf16.mxu0 0
    %1860 = vmatpush1.bf16.msra.mxu0 0
    %1861 = vmatprep.subr.bf16.mxu0 0
    %1862 = vmatpush1.bf16.msra.mxu0 0
    %1863 = vmatprep.subr.bf16.mxu0 0
    %1864 = vmatpush1.bf16.msra.mxu0 0
    %1865 = vmatprep.subr.bf16.mxu0 0
    %1866 = vmatpush1.bf16.msra.mxu0 0
    %1867 = vmatprep.subr.bf16.mxu0 0
    %1868 = vmatpush1.bf16.msra.mxu0 0
    %1869 = vmatprep.subr.bf16.mxu0 0
    %1870 = vmatpush1.bf16.msra.mxu0 0
    %1871 = vmatprep.subr.bf16.mxu0 0
    %1872 = vmatpush1.bf16.msra.mxu0 0
    %1873 = vmatprep.subr.bf16.mxu0 0
    %1874 = vmatpush1.bf16.msra.mxu0 0
    %1875 = vmatprep.subr.bf16.mxu0 0
    %1876 = vmatpush1.bf16.msra.mxu0 0
    %1877 = vmatprep.subr.bf16.mxu0 0
    %1878 = vmatpush1.bf16.msra.mxu0 0
    %1879 = vmatprep.subr.bf16.mxu0 0
    %1880 = vmatpush1.bf16.msra.mxu0 0
    %1881 = vmatprep.subr.bf16.mxu0 0
    %1882 = vmatpush1.bf16.msra.mxu0 0
    %1883 = vmatprep.subr.bf16.mxu0 0
    %1884 = vmatpush1.bf16.msra.mxu0 0
    %1885 = vmatprep.subr.bf16.mxu0 0
    %1886 = vmatpush1.bf16.msra.mxu0 0
    %1887 = vmatprep.mubr.bf16.mxu0 0
    %1888 = vmatmul.mubr.bf16.gmra.mrb[0].mxu0 %v1853
    %v1889 = vpop.f32.mrb[0].mxu0
    %v1890 = vadd.f32 0.0, %v1889
    %v1891 = vpop.f32.mrb[0].mxu0
    %v1892 = vpop.f32.mrb[0].mxu0
    %v1893 = vpop.f32.mrb[0].mxu0
    %1894 = vdwg.mxu0
    %v1895 = vpack.c.bf16 %v1890, %v1890
    %v1896 = vld [vmem:[%s21] sm:$0xf]
    %v1897 = vld [vmem:[%s21 + $0x4] sm:$0xf]
    %v1898 = vld [vmem:[%s21 + $0x8] sm:$0xf]
    %v1899 = vld [vmem:[%s21 + $0xc] sm:$0xf]
    %v1900 = vld [vmem:[%s21 + $0x10] sm:$0xf]
    %v1901 = vld [vmem:[%s21 + $0x14] sm:$0xf]
    %v1902 = vld [vmem:[%s21 + $0x18] sm:$0xf]
    %v1903 = vld [vmem:[%s21 + $0x1c] sm:$0xf]
    %s1904 = scalar_lea.vmem [#allocation9], 4
    %v1905 = vld [vmem:[%s1904] sm:$0xf]
    %v1907 = vsel %vm1851, %v1905, 0
    %1909 = vmatprep.subr.bf16.mxu0 0
    %1910 = vmatpush1.bf16.msra.mxu0 %v1849
    %1911 = vmatprep.subr.bf16.mxu0 0
    %1912 = vmatpush1.bf16.msra.mxu0 0
    %1913 = vmatprep.subr.bf16.mxu0 0
    %1914 = vmatpush1.bf16.msra.mxu0 0
    %1915 = vmatprep.subr.bf16.mxu0 0
    %1916 = vmatpush1.bf16.msra.mxu0 0
    %1917 = vmatprep.subr.bf16.mxu0 0
    %1918 = vmatpush1.bf16.msra.mxu0 0
    %1919 = vmatprep.subr.bf16.mxu0 0
    %1920 = vmatpush1.bf16.msra.mxu0 0
    %1921 = vmatprep.subr.bf16.mxu0 0
    %1922 = vmatpush1.bf16.msra.mxu0 0
    %1923 = vmatprep.subr.bf16.mxu0 0
    %1924 = vmatpush1.bf16.msra.mxu0 0
    %1925 = vmatprep.subr.bf16.mxu0 0
    %1926 = vmatpush1.bf16.msra.mxu0 0
    %1927 = vmatprep.subr.bf16.mxu0 0
    %1928 = vmatpush1.bf16.msra.mxu0 0
    %1929 = vmatprep.subr.bf16.mxu0 0
    %1930 = vmatpush1.bf16.msra.mxu0 0
    %1931 = vmatprep.subr.bf16.mxu0 0
    %1932 = vmatpush1.bf16.msra.mxu0 0
    %1933 = vmatprep.subr.bf16.mxu0 0
    %1934 = vmatpush1.bf16.msra.mxu0 0
    %1935 = vmatprep.subr.bf16.mxu0 0
    %1936 = vmatpush1.bf16.msra.mxu0 0
    %1937 = vmatprep.subr.bf16.mxu0 0
    %1938 = vmatpush1.bf16.msra.mxu0 0
    %1939 = vmatprep.subr.bf16.mxu0 0
    %1940 = vmatpush1.bf16.msra.mxu0 0
    %1941 = vmatprep.mubr.bf16.mxu0 0
    %1942 = vmatmul.mubr.bf16.gmra.mrb[0].mxu0 %v1907
    %v1943 = vpop.f32.mrb[0].mxu0
    %v1944 = vadd.f32 0.0, %v1943
    %v1945 = vpop.f32.mrb[0].mxu0
    %v1946 = vpop.f32.mrb[0].mxu0
    %v1947 = vpop.f32.mrb[0].mxu0
    %1948 = vdwg.mxu0
    %v1949 = vpack.c.bf16 %v1944, %v1944
    %s1950 = scalar_lea.vmem %s21, 32
    %v1951 = vld [vmem:[%s1950] sm:$0xf]
    %v1952 = vld [vmem:[%s1950 + $0x4] sm:$0xf]
    %v1953 = vld [vmem:[%s1950 + $0x8] sm:$0xf]
    %v1954 = vld [vmem:[%s1950 + $0xc] sm:$0xf]
    %v1955 = vld [vmem:[%s1950 + $0x10] sm:$0xf]
    %v1956 = vld [vmem:[%s1950 + $0x14] sm:$0xf]
    %v1957 = vld [vmem:[%s1950 + $0x18] sm:$0xf]
    %v1958 = vld [vmem:[%s1950 + $0x1c] sm:$0xf]
    %v1967 = vunpack.c.l.b16 %v1951
    %v1968 = vunpack.c.l.b16 %v1952
    %v1969 = vunpack.c.l.b16 %v1953
    %v1970 = vunpack.c.l.b16 %v1954
    %v1971 = vunpack.c.l.b16 %v1955
    %v1972 = vunpack.c.l.b16 %v1956
    %v1973 = vunpack.c.l.b16 %v1957
    %v1974 = vunpack.c.l.b16 %v1958
    %v1975 = vpack.c.b16 %v1968, %v1967
    %v1976 = vpack.c.b16 %v1970, %v1969
    %v1977 = vpack.c.b16 %v1972, %v1971
    %v1978 = vpack.c.b16 %v1974, %v1973
    %v1984 = vsel %vm415, %v1949, 0
    %1986 = vmatprep.subr.bf16.mxu0 0
    %1987 = vmatpush1.bf16.msra.mxu0 %v1975
    %1988 = vmatprep.subr.bf16.mxu0 0
    %1989 = vmatpush1.bf16.msra.mxu0 %v1976
    %1990 = vmatprep.subr.bf16.mxu0 0
    %1991 = vmatpush1.bf16.msra.mxu0 %v1977
    %1992 = vmatprep.subr.bf16.mxu0 0
    %1993 = vmatpush1.bf16.msra.mxu0 %v1978
    %1994 = vmatprep.subr.bf16.mxu0 0
    %1995 = vmatpush1.bf16.msra.mxu0 0
    %1996 = vmatprep.subr.bf16.mxu0 0
    %1997 = vmatpush1.bf16.msra.mxu0 0
    %1998 = vmatprep.subr.bf16.mxu0 0
    %1999 = vmatpush1.bf16.msra.mxu0 0
    %2000 = vmatprep.subr.bf16.mxu0 0
    %2001 = vmatpush1.bf16.msra.mxu0 0
    %2002 = vmatprep.subr.bf16.mxu0 0
    %2003 = vmatpush1.bf16.msra.mxu0 0
    %2004 = vmatprep.subr.bf16.mxu0 0
    %2005 = vmatpush1.bf16.msra.mxu0 0
    %2006 = vmatprep.subr.bf16.mxu0 0
    %2007 = vmatpush1.bf16.msra.mxu0 0
    %2008 = vmatprep.subr.bf16.mxu0 0
    %2009 = vmatpush1.bf16.msra.mxu0 0
    %2010 = vmatprep.subr.bf16.mxu0 0
    %2011 = vmatpush1.bf16.msra.mxu0 0
    %2012 = vmatprep.subr.bf16.mxu0 0
    %2013 = vmatpush1.bf16.msra.mxu0 0
    %2014 = vmatprep.subr.bf16.mxu0 0
    %2015 = vmatpush1.bf16.msra.mxu0 0
    %2016 = vmatprep.subr.bf16.mxu0 0
    %2017 = vmatpush1.bf16.msra.mxu0 0
    %2018 = vmatprep.mubr.bf16.mxu0 0
    %2019 = vmatmul.mubr.bf16.gmra.mrb[0].mxu0 %v1984
    %v2020 = vpop.f32.mrb[0].mxu0
    %v2021 = vadd.f32 0.0, %v2020
    %v2022 = vpop.f32.mrb[0].mxu0
    %v2023 = vpop.f32.mrb[0].mxu0
    %v2024 = vpop.f32.mrb[0].mxu0
    %2025 = vdwg.mxu0
    %v2034 = vunpack.c.l.b16 %v1896
    %v2035 = vunpack.c.l.b16 %v1897
    %v2036 = vunpack.c.l.b16 %v1898
    %v2037 = vunpack.c.l.b16 %v1899
    %v2038 = vunpack.c.l.b16 %v1900
    %v2039 = vunpack.c.l.b16 %v1901
    %v2040 = vunpack.c.l.b16 %v1902
    %v2041 = vunpack.c.l.b16 %v1903
    %v2042 = vpack.c.b16 %v2035, %v2034
    %v2043 = vpack.c.b16 %v2037, %v2036
    %v2044 = vpack.c.b16 %v2039, %v2038
    %v2045 = vpack.c.b16 %v2041, %v2040
    %v2051 = vsel %vm415, %v1895, 0
    %2053 = vmatprep.subr.bf16.mxu0 0
    %2054 = vmatpush1.bf16.msra.mxu0 %v2042
    %2055 = vmatprep.subr.bf16.mxu0 0
    %2056 = vmatpush1.bf16.msra.mxu0 %v2043
    %2057 = vmatprep.subr.bf16.mxu0 0
    %2058 = vmatpush1.bf16.msra.mxu0 %v2044
    %2059 = vmatprep.subr.bf16.mxu0 0
    %2060 = vmatpush1.bf16.msra.mxu0 %v2045
    %2061 = vmatprep.subr.bf16.mxu0 0
    %2062 = vmatpush1.bf16.msra.mxu0 0
    %2063 = vmatprep.subr.bf16.mxu0 0
    %2064 = vmatpush1.bf16.msra.mxu0 0
    %2065 = vmatprep.subr.bf16.mxu0 0
    %2066 = vmatpush1.bf16.msra.mxu0 0
    %2067 = vmatprep.subr.bf16.mxu0 0
    %2068 = vmatpush1.bf16.msra.mxu0 0
    %2069 = vmatprep.subr.bf16.mxu0 0
    %2070 = vmatpush1.bf16.msra.mxu0 0
    %2071 = vmatprep.subr.bf16.mxu0 0
    %2072 = vmatpush1.bf16.msra.mxu0 0
    %2073 = vmatprep.subr.bf16.mxu0 0
    %2074 = vmatpush1.bf16.msra.mxu0 0
    %2075 = vmatprep.subr.bf16.mxu0 0
    %2076 = vmatpush1.bf16.msra.mxu0 0
    %2077 = vmatprep.subr.bf16.mxu0 0
    %2078 = vmatpush1.bf16.msra.mxu0 0
    %2079 = vmatprep.subr.bf16.mxu0 0
    %2080 = vmatpush1.bf16.msra.mxu0 0
    %2081 = vmatprep.subr.bf16.mxu0 0
    %2082 = vmatpush1.bf16.msra.mxu0 0
    %2083 = vmatprep.subr.bf16.mxu0 0
    %2084 = vmatpush1.bf16.msra.mxu0 0
    %2085 = vmatprep.mubr.bf16.mxu0 0
    %2086 = vmatmul.mubr.bf16.gmra.mrb[0].mxu0 %v2051
    %v2087 = vpop.f32.mrb[0].mxu0
    %v2088 = vadd.f32 %v2021, %v2087
    %v2089 = vpop.f32.mrb[0].mxu0
    %v2090 = vpop.f32.mrb[0].mxu0
    %v2091 = vpop.f32.mrb[0].mxu0
    %2092 = vdwg.mxu0
    %s2093 = scalar_lea.vmem [#allocation9], 8
    %v2094 = vld [vmem:[%s2093] sm:$0xf]
    %v2096 = vsel %vm1851, %v2094, 0
    %2098 = vmatprep.subr.bf16.mxu0 0
    %2099 = vmatpush1.bf16.msra.mxu0 %v1849
    %2100 = vmatprep.subr.bf16.mxu0 0
    %2101 = vmatpush1.bf16.msra.mxu0 0
    %2102 = vmatprep.subr.bf16.mxu0 0
    %2103 = vmatpush1.bf16.msra.mxu0 0
    %2104 = vmatprep.subr.bf16.mxu0 0
    %2105 = vmatpush1.bf16.msra.mxu0 0
    %2106 = vmatprep.subr.bf16.mxu0 0
    %2107 = vmatpush1.bf16.msra.mxu0 0
    %2108 = vmatprep.subr.bf16.mxu0 0
    %2109 = vmatpush1.bf16.msra.mxu0 0
    %2110 = vmatprep.subr.bf16.mxu0 0
    %2111 = vmatpush1.bf16.msra.mxu0 0
    %2112 = vmatprep.subr.bf16.mxu0 0
    %2113 = vmatpush1.bf16.msra.mxu0 0
    %2114 = vmatprep.subr.bf16.mxu0 0
    %2115 = vmatpush1.bf16.msra.mxu0 0
    %2116 = vmatprep.subr.bf16.mxu0 0
    %2117 = vmatpush1.bf16.msra.mxu0 0
    %2118 = vmatprep.subr.bf16.mxu0 0
    %2119 = vmatpush1.bf16.msra.mxu0 0
    %2120 = vmatprep.subr.bf16.mxu0 0
    %2121 = vmatpush1.bf16.msra.mxu0 0
    %2122 = vmatprep.subr.bf16.mxu0 0
    %2123 = vmatpush1.bf16.msra.mxu0 0
    %2124 = vmatprep.subr.bf16.mxu0 0
    %2125 = vmatpush1.bf16.msra.mxu0 0
    %2126 = vmatprep.subr.bf16.mxu0 0
    %2127 = vmatpush1.bf16.msra.mxu0 0
    %2128 = vmatprep.subr.bf16.mxu0 0
    %2129 = vmatpush1.bf16.msra.mxu0 0
    %2130 = vmatprep.mubr.bf16.mxu0 0
    %2131 = vmatmul.mubr.bf16.gmra.mrb[0].mxu0 %v2096
    %v2132 = vpop.f32.mrb[0].mxu0
    %v2133 = vadd.f32 0.0, %v2132
    %v2134 = vpop.f32.mrb[0].mxu0
    %v2135 = vpop.f32.mrb[0].mxu0
    %v2136 = vpop.f32.mrb[0].mxu0
    %2137 = vdwg.mxu0
    %v2138 = vpack.c.bf16 %v2133, %v2133
    %s2139 = scalar_lea.vmem %s21, 64
    %v2140 = vld [vmem:[%s2139] sm:$0xf]
    %v2141 = vld [vmem:[%s2139 + $0x4] sm:$0xf]
    %v2142 = vld [vmem:[%s2139 + $0x8] sm:$0xf]
    %v2143 = vld [vmem:[%s2139 + $0xc] sm:$0xf]
    %v2144 = vld [vmem:[%s2139 + $0x10] sm:$0xf]
    %v2145 = vld [vmem:[%s2139 + $0x14] sm:$0xf]
    %v2146 = vld [vmem:[%s2139 + $0x18] sm:$0xf]
    %v2147 = vld [vmem:[%s2139 + $0x1c] sm:$0xf]
    %v2156 = vunpack.c.l.b16 %v2140
    %v2157 = vunpack.c.l.b16 %v2141
    %v2158 = vunpack.c.l.b16 %v2142
    %v2159 = vunpack.c.l.b16 %v2143
    %v2160 = vunpack.c.l.b16 %v2144
    %v2161 = vunpack.c.l.b16 %v2145
    %v2162 = vunpack.c.l.b16 %v2146
    %v2163 = vunpack.c.l.b16 %v2147
    %v2164 = vpack.c.b16 %v2157, %v2156
    %v2165 = vpack.c.b16 %v2159, %v2158
    %v2166 = vpack.c.b16 %v2161, %v2160
    %v2167 = vpack.c.b16 %v2163, %v2162
    %v2173 = vsel %vm415, %v2138, 0
    %2175 = vmatprep.subr.bf16.mxu0 0
    %2176 = vmatpush1.bf16.msra.mxu0 %v2164
    %2177 = vmatprep.subr.bf16.mxu0 0
    %2178 = vmatpush1.bf16.msra.mxu0 %v2165
    %2179 = vmatprep.subr.bf16.mxu0 0
    %2180 = vmatpush1.bf16.msra.mxu0 %v2166
    %2181 = vmatprep.subr.bf16.mxu0 0
    %2182 = vmatpush1.bf16.msra.mxu0 %v2167
    %2183 = vmatprep.subr.bf16.mxu0 0
    %2184 = vmatpush1.bf16.msra.mxu0 0
    %2185 = vmatprep.subr.bf16.mxu0 0
    %2186 = vmatpush1.bf16.msra.mxu0 0
    %2187 = vmatprep.subr.bf16.mxu0 0
    %2188 = vmatpush1.bf16.msra.mxu0 0
    %2189 = vmatprep.subr.bf16.mxu0 0
    %2190 = vmatpush1.bf16.msra.mxu0 0
    %2191 = vmatprep.subr.bf16.mxu0 0
    %2192 = vmatpush1.bf16.msra.mxu0 0
    %2193 = vmatprep.subr.bf16.mxu0 0
    %2194 = vmatpush1.bf16.msra.mxu0 0
    %2195 = vmatprep.subr.bf16.mxu0 0
    %2196 = vmatpush1.bf16.msra.mxu0 0
    %2197 = vmatprep.subr.bf16.mxu0 0
    %2198 = vmatpush1.bf16.msra.mxu0 0
    %2199 = vmatprep.subr.bf16.mxu0 0
    %2200 = vmatpush1.bf16.msra.mxu0 0
    %2201 = vmatprep.subr.bf16.mxu0 0
    %2202 = vmatpush1.bf16.msra.mxu0 0
    %2203 = vmatprep.subr.bf16.mxu0 0
    %2204 = vmatpush1.bf16.msra.mxu0 0
    %2205 = vmatprep.subr.bf16.mxu0 0
    %2206 = vmatpush1.bf16.msra.mxu0 0
    %2207 = vmatprep.mubr.bf16.mxu0 0
    %2208 = vmatmul.mubr.bf16.gmra.mrb[0].mxu0 %v2173
    %v2209 = vpop.f32.mrb[0].mxu0
    %v2210 = vadd.f32 0.0, %v2209
    %v2211 = vpop.f32.mrb[0].mxu0
    %v2212 = vpop.f32.mrb[0].mxu0
    %v2213 = vpop.f32.mrb[0].mxu0
    %2214 = vdwg.mxu0
    %v2215 = vadd.f32 %v2088, %v2210
    %s2216 = scalar_lea.vmem [#allocation9], 12
    %v2217 = vld [vmem:[%s2216] sm:$0xf]
    %v2219 = vsel %vm1851, %v2217, 0
    %2221 = vmatprep.subr.bf16.mxu0 0
    %2222 = vmatpush1.bf16.msra.mxu0 %v1849
    %2223 = vmatprep.subr.bf16.mxu0 0
    %2224 = vmatpush1.bf16.msra.mxu0 0
    %2225 = vmatprep.subr.bf16.mxu0 0
    %2226 = vmatpush1.bf16.msra.mxu0 0
    %2227 = vmatprep.subr.bf16.mxu0 0
    %2228 = vmatpush1.bf16.msra.mxu0 0
    %2229 = vmatprep.subr.bf16.mxu0 0
    %2230 = vmatpush1.bf16.msra.mxu0 0
    %2231 = vmatprep.subr.bf16.mxu0 0
    %2232 = vmatpush1.bf16.msra.mxu0 0
    %2233 = vmatprep.subr.bf16.mxu0 0
    %2234 = vmatpush1.bf16.msra.mxu0 0
    %2235 = vmatprep.subr.bf16.mxu0 0
    %2236 = vmatpush1.bf16.msra.mxu0 0
    %2237 = vmatprep.subr.bf16.mxu0 0
    %2238 = vmatpush1.bf16.msra.mxu0 0
    %2239 = vmatprep.subr.bf16.mxu0 0
    %2240 = vmatpush1.bf16.msra.mxu0 0
    %2241 = vmatprep.subr.bf16.mxu0 0
    %2242 = vmatpush1.bf16.msra.mxu0 0
    %2243 = vmatprep.subr.bf16.mxu0 0
    %2244 = vmatpush1.bf16.msra.mxu0 0
    %2245 = vmatprep.subr.bf16.mxu0 0
    %2246 = vmatpush1.bf16.msra.mxu0 0
    %2247 = vmatprep.subr.bf16.mxu0 0
    %2248 = vmatpush1.bf16.msra.mxu0 0
    %2249 = vmatprep.subr.bf16.mxu0 0
    %2250 = vmatpush1.bf16.msra.mxu0 0
    %2251 = vmatprep.subr.bf16.mxu0 0
    %2252 = vmatpush1.bf16.msra.mxu0 0
    %2253 = vmatprep.mubr.bf16.mxu0 0
    %2254 = vmatmul.mubr.bf16.gmra.mrb[0].mxu0 %v2219
    %v2255 = vpop.f32.mrb[0].mxu0
    %v2256 = vadd.f32 0.0, %v2255
    %v2257 = vpop.f32.mrb[0].mxu0
    %v2258 = vpop.f32.mrb[0].mxu0
    %v2259 = vpop.f32.mrb[0].mxu0
    %2260 = vdwg.mxu0
    %v2261 = vpack.c.bf16 %v2256, %v2256
    %s2262 = scalar_lea.vmem %s21, 96
    %v2263 = vld [vmem:[%s2262] sm:$0xf]
    %v2264 = vld [vmem:[%s2262 + $0x4] sm:$0xf]
    %v2265 = vld [vmem:[%s2262 + $0x8] sm:$0xf]
    %v2266 = vld [vmem:[%s2262 + $0xc] sm:$0xf]
    %v2267 = vld [vmem:[%s2262 + $0x10] sm:$0xf]
    %v2268 = vld [vmem:[%s2262 + $0x14] sm:$0xf]
    %v2269 = vld [vmem:[%s2262 + $0x18] sm:$0xf]
    %v2270 = vld [vmem:[%s2262 + $0x1c] sm:$0xf]
    %v2279 = vunpack.c.l.b16 %v2263
    %v2280 = vunpack.c.l.b16 %v2264
    %v2281 = vunpack.c.l.b16 %v2265
    %v2282 = vunpack.c.l.b16 %v2266
    %v2283 = vunpack.c.l.b16 %v2267
    %v2284 = vunpack.c.l.b16 %v2268
    %v2285 = vunpack.c.l.b16 %v2269
    %v2286 = vunpack.c.l.b16 %v2270
    %v2287 = vpack.c.b16 %v2280, %v2279
    %v2288 = vpack.c.b16 %v2282, %v2281
    %v2289 = vpack.c.b16 %v2284, %v2283
    %v2290 = vpack.c.b16 %v2286, %v2285
    %v2296 = vsel %vm415, %v2261, 0
    %2298 = vmatprep.subr.bf16.mxu0 0
    %2299 = vmatpush1.bf16.msra.mxu0 %v2287
    %2300 = vmatprep.subr.bf16.mxu0 0
    %2301 = vmatpush1.bf16.msra.mxu0 %v2288
    %2302 = vmatprep.subr.bf16.mxu0 0
    %2303 = vmatpush1.bf16.msra.mxu0 %v2289
    %2304 = vmatprep.subr.bf16.mxu0 0
    %2305 = vmatpush1.bf16.msra.mxu0 %v2290
    %2306 = vmatprep.subr.bf16.mxu0 0
    %2307 = vmatpush1.bf16.msra.mxu0 0
    %2308 = vmatprep.subr.bf16.mxu0 0
    %2309 = vmatpush1.bf16.msra.mxu0 0
    %2310 = vmatprep.subr.bf16.mxu0 0
    %2311 = vmatpush1.bf16.msra.mxu0 0
    %2312 = vmatprep.subr.bf16.mxu0 0
    %2313 = vmatpush1.bf16.msra.mxu0 0
    %2314 = vmatprep.subr.bf16.mxu0 0
    %2315 = vmatpush1.bf16.msra.mxu0 0
    %2316 = vmatprep.subr.bf16.mxu0 0
    %2317 = vmatpush1.bf16.msra.mxu0 0
    %2318 = vmatprep.subr.bf16.mxu0 0
    %2319 = vmatpush1.bf16.msra.mxu0 0
    %2320 = vmatprep.subr.bf16.mxu0 0
    %2321 = vmatpush1.bf16.msra.mxu0 0
    %2322 = vmatprep.subr.bf16.mxu0 0
    %2323 = vmatpush1.bf16.msra.mxu0 0
    %2324 = vmatprep.subr.bf16.mxu0 0
    %2325 = vmatpush1.bf16.msra.mxu0 0
    %2326 = vmatprep.subr.bf16.mxu0 0
    %2327 = vmatpush1.bf16.msra.mxu0 0
    %2328 = vmatprep.subr.bf16.mxu0 0
    %2329 = vmatpush1.bf16.msra.mxu0 0
    %2330 = vmatprep.mubr.bf16.mxu0 0
    %2331 = vmatmul.mubr.bf16.gmra.mrb[0].mxu0 %v2296
    %v2332 = vpop.f32.mrb[0].mxu0
    %v2333 = vadd.f32 0.0, %v2332
    %v2334 = vpop.f32.mrb[0].mxu0
    %v2335 = vpop.f32.mrb[0].mxu0
    %v2336 = vpop.f32.mrb[0].mxu0
    %2337 = vdwg.mxu0
    %v2338 = vadd.f32 %v2215, %v2333
    %v2339 = vld [vmem:[#allocation10] sm:$0x1]
    %v2341 = vlaneseq
    %v2342 = vshrl.u32 %v2341, 7
    %v2343 = vsub.s32 0, %v2342
    %v2344 = vrot.slane %v2339, %v2343
    %v2346 = vadd.f32 %v2338, %v2344
    %vm2347 = vcmp.gt.f32.partialorder %v2346, 0.0
    %v2348 = vmin.f32 %v2346, 0.0
    %v2349 = vmul.f32 %v2348, 1.442695
    %v2350 = vpow.pop %v2349
    %v2351 = vsub.f32 %v2350, 1.0
    %v2352 = vsel %vm2347, %v2346, %v2351
    %v2353 = vpack.c.bf16 %v2352, %v2352
    %v2354 = vld [vmem:[#allocation12] sm:$0x1]
    %vm2355 = vcmask 64512
    %v2357 = vsel %vm2355, %v2354, 0
    %vm2359 = vcmask 1043456
    %v2361 = vsel %vm2359, %v2353, 0
    %2363 = vmatprep.subr.bf16.mxu0 0
    %2364 = vmatpush1.bf16.msra.mxu0 %v2361
    %2365 = vmatprep.subr.bf16.mxu0 0
    %2366 = vmatpush1.bf16.msra.mxu0 0
    %2367 = vmatprep.subr.bf16.mxu0 0
    %2368 = vmatpush1.bf16.msra.mxu0 0
    %2369 = vmatprep.subr.bf16.mxu0 0
    %2370 = vmatpush1.bf16.msra.mxu0 0
    %2371 = vmatprep.subr.bf16.mxu0 0
    %2372 = vmatpush1.bf16.msra.mxu0 0
    %2373 = vmatprep.subr.bf16.mxu0 0
    %2374 = vmatpush1.bf16.msra.mxu0 0
    %2375 = vmatprep.subr.bf16.mxu0 0
    %2376 = vmatpush1.bf16.msra.mxu0 0
    %2377 = vmatprep.subr.bf16.mxu0 0
    %2378 = vmatpush1.bf16.msra.mxu0 0
    %2379 = vmatprep.subr.bf16.mxu0 0
    %2380 = vmatpush1.bf16.msra.mxu0 0
    %2381 = vmatprep.subr.bf16.mxu0 0
    %2382 = vmatpush1.bf16.msra.mxu0 0
    %2383 = vmatprep.subr.bf16.mxu0 0
    %2384 = vmatpush1.bf16.msra.mxu0 0
    %2385 = vmatprep.subr.bf16.mxu0 0
    %2386 = vmatpush1.bf16.msra.mxu0 0
    %2387 = vmatprep.subr.bf16.mxu0 0
    %2388 = vmatpush1.bf16.msra.mxu0 0
    %2389 = vmatprep.subr.bf16.mxu0 0
    %2390 = vmatpush1.bf16.msra.mxu0 0
    %2391 = vmatprep.subr.bf16.mxu0 0
    %2392 = vmatpush1.bf16.msra.mxu0 0
    %2393 = vmatprep.subr.bf16.mxu0 0
    %2394 = vmatpush1.bf16.msra.mxu0 0
    %2395 = vmatprep.mubr.bf16.mxu0 0
    %2396 = vmatmul.mubr.bf16.gmra.mrb[0].mxu0 %v2357
    %v2397 = vpop.f32.mrb[0].mxu0
    %v2398 = vadd.f32 0.0, %v2397
    %v2399 = vpop.f32.mrb[0].mxu0
    %v2400 = vpop.f32.mrb[0].mxu0
    %v2401 = vpop.f32.mrb[0].mxu0
    %2402 = vdwg.mxu0
    %v2403 = vpack.c.bf16 %v2398, %v2398
    %v2404 = vld [vmem:[%s27] sm:$0xf]
    %v2405 = vld [vmem:[%s27 + $0x4] sm:$0xf]
    %v2406 = vld [vmem:[%s27 + $0x8] sm:$0xf]
    %v2407 = vld [vmem:[%s27 + $0xc] sm:$0xf]
    %v2408 = vld [vmem:[%s27 + $0x10] sm:$0xf]
    %v2409 = vld [vmem:[%s27 + $0x14] sm:$0xf]
    %v2410 = vld [vmem:[%s27 + $0x18] sm:$0xf]
    %v2411 = vld [vmem:[%s27 + $0x1c] sm:$0xf]
    %s2412 = scalar_lea.vmem [#allocation12], 1
    %v2413 = vld [vmem:[%s2412] sm:$0x1]
    %v2415 = vsel %vm2355, %v2413, 0
    %2417 = vmatprep.subr.bf16.mxu0 0
    %2418 = vmatpush1.bf16.msra.mxu0 %v2361
    %2419 = vmatprep.subr.bf16.mxu0 0
    %2420 = vmatpush1.bf16.msra.mxu0 0
    %2421 = vmatprep.subr.bf16.mxu0 0
    %2422 = vmatpush1.bf16.msra.mxu0 0
    %2423 = vmatprep.subr.bf16.mxu0 0
    %2424 = vmatpush1.bf16.msra.mxu0 0
    %2425 = vmatprep.subr.bf16.mxu0 0
    %2426 = vmatpush1.bf16.msra.mxu0 0
    %2427 = vmatprep.subr.bf16.mxu0 0
    %2428 = vmatpush1.bf16.msra.mxu0 0
    %2429 = vmatprep.subr.bf16.mxu0 0
    %2430 = vmatpush1.bf16.msra.mxu0 0
    %2431 = vmatprep.subr.bf16.mxu0 0
    %2432 = vmatpush1.bf16.msra.mxu0 0
    %2433 = vmatprep.subr.bf16.mxu0 0
    %2434 = vmatpush1.bf16.msra.mxu0 0
    %2435 = vmatprep.subr.bf16.mxu0 0
    %2436 = vmatpush1.bf16.msra.mxu0 0
    %2437 = vmatprep.subr.bf16.mxu0 0
    %2438 = vmatpush1.bf16.msra.mxu0 0
    %2439 = vmatprep.subr.bf16.mxu0 0
    %2440 = vmatpush1.bf16.msra.mxu0 0
    %2441 = vmatprep.subr.bf16.mxu0 0
    %2442 = vmatpush1.bf16.msra.mxu0 0
    %2443 = vmatprep.subr.bf16.mxu0 0
    %2444 = vmatpush1.bf16.msra.mxu0 0
    %2445 = vmatprep.subr.bf16.mxu0 0
    %2446 = vmatpush1.bf16.msra.mxu0 0
    %2447 = vmatprep.subr.bf16.mxu0 0
    %2448 = vmatpush1.bf16.msra.mxu0 0
    %2449 = vmatprep.mubr.bf16.mxu0 0
    %2450 = vmatmul.mubr.bf16.gmra.mrb[0].mxu0 %v2415
    %v2451 = vpop.f32.mrb[0].mxu0
    %v2452 = vadd.f32 0.0, %v2451
    %v2453 = vpop.f32.mrb[0].mxu0
    %v2454 = vpop.f32.mrb[0].mxu0
    %v2455 = vpop.f32.mrb[0].mxu0
    %2456 = vdwg.mxu0
    %v2457 = vpack.c.bf16 %v2452, %v2452
    %s2458 = scalar_lea.vmem %s27, 32
    %v2459 = vld [vmem:[%s2458] sm:$0xf]
    %v2460 = vld [vmem:[%s2458 + $0x4] sm:$0xf]
    %v2461 = vld [vmem:[%s2458 + $0x8] sm:$0xf]
    %v2462 = vld [vmem:[%s2458 + $0xc] sm:$0xf]
    %v2463 = vld [vmem:[%s2458 + $0x10] sm:$0xf]
    %v2464 = vld [vmem:[%s2458 + $0x14] sm:$0xf]
    %v2465 = vld [vmem:[%s2458 + $0x18] sm:$0xf]
    %v2466 = vld [vmem:[%s2458 + $0x1c] sm:$0xf]
    %v2475 = vunpack.c.l.b16 %v2459
    %v2476 = vunpack.c.l.b16 %v2460
    %v2477 = vunpack.c.l.b16 %v2461
    %v2478 = vunpack.c.l.b16 %v2462
    %v2479 = vunpack.c.l.b16 %v2463
    %v2480 = vunpack.c.l.b16 %v2464
    %v2481 = vunpack.c.l.b16 %v2465
    %v2482 = vunpack.c.l.b16 %v2466
    %v2483 = vpack.c.b16 %v2476, %v2475
    %v2484 = vpack.c.b16 %v2478, %v2477
    %v2485 = vpack.c.b16 %v2480, %v2479
    %v2486 = vpack.c.b16 %v2482, %v2481
    %v2492 = vsel %vm415, %v2457, 0
    %2494 = vmatprep.subr.bf16.mxu0 0
    %2495 = vmatpush1.bf16.msra.mxu0 %v2483
    %2496 = vmatprep.subr.bf16.mxu0 0
    %2497 = vmatpush1.bf16.msra.mxu0 %v2484
    %2498 = vmatprep.subr.bf16.mxu0 0
    %2499 = vmatpush1.bf16.msra.mxu0 %v2485
    %2500 = vmatprep.subr.bf16.mxu0 0
    %2501 = vmatpush1.bf16.msra.mxu0 %v2486
    %2502 = vmatprep.subr.bf16.mxu0 0
    %2503 = vmatpush1.bf16.msra.mxu0 0
    %2504 = vmatprep.subr.bf16.mxu0 0
    %2505 = vmatpush1.bf16.msra.mxu0 0
    %2506 = vmatprep.subr.bf16.mxu0 0
    %2507 = vmatpush1.bf16.msra.mxu0 0
    %2508 = vmatprep.subr.bf16.mxu0 0
    %2509 = vmatpush1.bf16.msra.mxu0 0
    %2510 = vmatprep.subr.bf16.mxu0 0
    %2511 = vmatpush1.bf16.msra.mxu0 0
    %2512 = vmatprep.subr.bf16.mxu0 0
    %2513 = vmatpush1.bf16.msra.mxu0 0
    %2514 = vmatprep.subr.bf16.mxu0 0
    %2515 = vmatpush1.bf16.msra.mxu0 0
    %2516 = vmatprep.subr.bf16.mxu0 0
    %2517 = vmatpush1.bf16.msra.mxu0 0
    %2518 = vmatprep.subr.bf16.mxu0 0
    %2519 = vmatpush1.bf16.msra.mxu0 0
    %2520 = vmatprep.subr.bf16.mxu0 0
    %2521 = vmatpush1.bf16.msra.mxu0 0
    %2522 = vmatprep.subr.bf16.mxu0 0
    %2523 = vmatpush1.bf16.msra.mxu0 0
    %2524 = vmatprep.subr.bf16.mxu0 0
    %2525 = vmatpush1.bf16.msra.mxu0 0
    %2526 = vmatprep.mubr.bf16.mxu0 0
    %2527 = vmatmul.mubr.bf16.gmra.mrb[0].mxu0 %v2492
    %v2528 = vpop.f32.mrb[0].mxu0
    %v2529 = vadd.f32 0.0, %v2528
    %v2530 = vpop.f32.mrb[0].mxu0
    %v2531 = vpop.f32.mrb[0].mxu0
    %v2532 = vpop.f32.mrb[0].mxu0
    %2533 = vdwg.mxu0
    %v2542 = vunpack.c.l.b16 %v2404
    %v2543 = vunpack.c.l.b16 %v2405
    %v2544 = vunpack.c.l.b16 %v2406
    %v2545 = vunpack.c.l.b16 %v2407
    %v2546 = vunpack.c.l.b16 %v2408
    %v2547 = vunpack.c.l.b16 %v2409
    %v2548 = vunpack.c.l.b16 %v2410
    %v2549 = vunpack.c.l.b16 %v2411
    %v2550 = vpack.c.b16 %v2543, %v2542
    %v2551 = vpack.c.b16 %v2545, %v2544
    %v2552 = vpack.c.b16 %v2547, %v2546
    %v2553 = vpack.c.b16 %v2549, %v2548
    %v2559 = vsel %vm415, %v2403, 0
    %2561 = vmatprep.subr.bf16.mxu0 0
    %2562 = vmatpush1.bf16.msra.mxu0 %v2550
    %2563 = vmatprep.subr.bf16.mxu0 0
    %2564 = vmatpush1.bf16.msra.mxu0 %v2551
    %2565 = vmatprep.subr.bf16.mxu0 0
    %2566 = vmatpush1.bf16.msra.mxu0 %v2552
    %2567 = vmatprep.subr.bf16.mxu0 0
    %2568 = vmatpush1.bf16.msra.mxu0 %v2553
    %2569 = vmatprep.subr.bf16.mxu0 0
    %2570 = vmatpush1.bf16.msra.mxu0 0
    %2571 = vmatprep.subr.bf16.mxu0 0
    %2572 = vmatpush1.bf16.msra.mxu0 0
    %2573 = vmatprep.subr.bf16.mxu0 0
    %2574 = vmatpush1.bf16.msra.mxu0 0
    %2575 = vmatprep.subr.bf16.mxu0 0
    %2576 = vmatpush1.bf16.msra.mxu0 0
    %2577 = vmatprep.subr.bf16.mxu0 0
    %2578 = vmatpush1.bf16.msra.mxu0 0
    %2579 = vmatprep.subr.bf16.mxu0 0
    %2580 = vmatpush1.bf16.msra.mxu0 0
    %2581 = vmatprep.subr.bf16.mxu0 0
    %2582 = vmatpush1.bf16.msra.mxu0 0
    %2583 = vmatprep.subr.bf16.mxu0 0
    %2584 = vmatpush1.bf16.msra.mxu0 0
    %2585 = vmatprep.subr.bf16.mxu0 0
    %2586 = vmatpush1.bf16.msra.mxu0 0
    %2587 = vmatprep.subr.bf16.mxu0 0
    %2588 = vmatpush1.bf16.msra.mxu0 0
    %2589 = vmatprep.subr.bf16.mxu0 0
    %2590 = vmatpush1.bf16.msra.mxu0 0
    %2591 = vmatprep.subr.bf16.mxu0 0
    %2592 = vmatpush1.bf16.msra.mxu0 0
    %2593 = vmatprep.mubr.bf16.mxu0 0
    %2594 = vmatmul.mubr.bf16.gmra.mrb[0].mxu0 %v2559
    %v2595 = vpop.f32.mrb[0].mxu0
    %v2596 = vadd.f32 %v2529, %v2595
    %v2597 = vpop.f32.mrb[0].mxu0
    %v2598 = vpop.f32.mrb[0].mxu0
    %v2599 = vpop.f32.mrb[0].mxu0
    %2600 = vdwg.mxu0
    %s2601 = scalar_lea.vmem [#allocation12], 2
    %v2602 = vld [vmem:[%s2601] sm:$0x1]
    %v2604 = vsel %vm2355, %v2602, 0
    %2606 = vmatprep.subr.bf16.mxu0 0
    %2607 = vmatpush1.bf16.msra.mxu0 %v2361
    %2608 = vmatprep.subr.bf16.mxu0 0
    %2609 = vmatpush1.bf16.msra.mxu0 0
    %2610 = vmatprep.subr.bf16.mxu0 0
    %2611 = vmatpush1.bf16.msra.mxu0 0
    %2612 = vmatprep.subr.bf16.mxu0 0
    %2613 = vmatpush1.bf16.msra.mxu0 0
    %2614 = vmatprep.subr.bf16.mxu0 0
    %2615 = vmatpush1.bf16.msra.mxu0 0
    %2616 = vmatprep.subr.bf16.mxu0 0
    %2617 = vmatpush1.bf16.msra.mxu0 0
    %2618 = vmatprep.subr.bf16.mxu0 0
    %2619 = vmatpush1.bf16.msra.mxu0 0
    %2620 = vmatprep.subr.bf16.mxu0 0
    %2621 = vmatpush1.bf16.msra.mxu0 0
    %2622 = vmatprep.subr.bf16.mxu0 0
    %2623 = vmatpush1.bf16.msra.mxu0 0
    %2624 = vmatprep.subr.bf16.mxu0 0
    %2625 = vmatpush1.bf16.msra.mxu0 0
    %2626 = vmatprep.subr.bf16.mxu0 0
    %2627 = vmatpush1.bf16.msra.mxu0 0
    %2628 = vmatprep.subr.bf16.mxu0 0
    %2629 = vmatpush1.bf16.msra.mxu0 0
    %2630 = vmatprep.subr.bf16.mxu0 0
    %2631 = vmatpush1.bf16.msra.mxu0 0
    %2632 = vmatprep.subr.bf16.mxu0 0
    %2633 = vmatpush1.bf16.msra.mxu0 0
    %2634 = vmatprep.subr.bf16.mxu0 0
    %2635 = vmatpush1.bf16.msra.mxu0 0
    %2636 = vmatprep.subr.bf16.mxu0 0
    %2637 = vmatpush1.bf16.msra.mxu0 0
    %2638 = vmatprep.mubr.bf16.mxu0 0
    %2639 = vmatmul.mubr.bf16.gmra.mrb[0].mxu0 %v2604
    %v2640 = vpop.f32.mrb[0].mxu0
    %v2641 = vadd.f32 0.0, %v2640
    %v2642 = vpop.f32.mrb[0].mxu0
    %v2643 = vpop.f32.mrb[0].mxu0
    %v2644 = vpop.f32.mrb[0].mxu0
    %2645 = vdwg.mxu0
    %v2646 = vpack.c.bf16 %v2641, %v2641
    %s2647 = scalar_lea.vmem %s27, 64
    %v2648 = vld [vmem:[%s2647] sm:$0xf]
    %v2649 = vld [vmem:[%s2647 + $0x4] sm:$0xf]
    %v2650 = vld [vmem:[%s2647 + $0x8] sm:$0xf]
    %v2651 = vld [vmem:[%s2647 + $0xc] sm:$0xf]
    %v2652 = vld [vmem:[%s2647 + $0x10] sm:$0xf]
    %v2653 = vld [vmem:[%s2647 + $0x14] sm:$0xf]
    %v2654 = vld [vmem:[%s2647 + $0x18] sm:$0xf]
    %v2655 = vld [vmem:[%s2647 + $0x1c] sm:$0xf]
    %v2664 = vunpack.c.l.b16 %v2648
    %v2665 = vunpack.c.l.b16 %v2649
    %v2666 = vunpack.c.l.b16 %v2650
    %v2667 = vunpack.c.l.b16 %v2651
    %v2668 = vunpack.c.l.b16 %v2652
    %v2669 = vunpack.c.l.b16 %v2653
    %v2670 = vunpack.c.l.b16 %v2654
    %v2671 = vunpack.c.l.b16 %v2655
    %v2672 = vpack.c.b16 %v2665, %v2664
    %v2673 = vpack.c.b16 %v2667, %v2666
    %v2674 = vpack.c.b16 %v2669, %v2668
    %v2675 = vpack.c.b16 %v2671, %v2670
    %v2681 = vsel %vm415, %v2646, 0
    %2683 = vmatprep.subr.bf16.mxu0 0
    %2684 = vmatpush1.bf16.msra.mxu0 %v2672
    %2685 = vmatprep.subr.bf16.mxu0 0
    %2686 = vmatpush1.bf16.msra.mxu0 %v2673
    %2687 = vmatprep.subr.bf16.mxu0 0
    %2688 = vmatpush1.bf16.msra.mxu0 %v2674
    %2689 = vmatprep.subr.bf16.mxu0 0
    %2690 = vmatpush1.bf16.msra.mxu0 %v2675
    %2691 = vmatprep.subr.bf16.mxu0 0
    %2692 = vmatpush1.bf16.msra.mxu0 0
    %2693 = vmatprep.subr.bf16.mxu0 0
    %2694 = vmatpush1.bf16.msra.mxu0 0
    %2695 = vmatprep.subr.bf16.mxu0 0
    %2696 = vmatpush1.bf16.msra.mxu0 0
    %2697 = vmatprep.subr.bf16.mxu0 0
    %2698 = vmatpush1.bf16.msra.mxu0 0
    %2699 = vmatprep.subr.bf16.mxu0 0
    %2700 = vmatpush1.bf16.msra.mxu0 0
    %2701 = vmatprep.subr.bf16.mxu0 0
    %2702 = vmatpush1.bf16.msra.mxu0 0
    %2703 = vmatprep.subr.bf16.mxu0 0
    %2704 = vmatpush1.bf16.msra.mxu0 0
    %2705 = vmatprep.subr.bf16.mxu0 0
    %2706 = vmatpush1.bf16.msra.mxu0 0
    %2707 = vmatprep.subr.bf16.mxu0 0
    %2708 = vmatpush1.bf16.msra.mxu0 0
    %2709 = vmatprep.subr.bf16.mxu0 0
    %2710 = vmatpush1.bf16.msra.mxu0 0
    %2711 = vmatprep.subr.bf16.mxu0 0
    %2712 = vmatpush1.bf16.msra.mxu0 0
    %2713 = vmatprep.subr.bf16.mxu0 0
    %2714 = vmatpush1.bf16.msra.mxu0 0
    %2715 = vmatprep.mubr.bf16.mxu0 0
    %2716 = vmatmul.mubr.bf16.gmra.mrb[0].mxu0 %v2681
    %v2717 = vpop.f32.mrb[0].mxu0
    %v2718 = vadd.f32 0.0, %v2717
    %v2719 = vpop.f32.mrb[0].mxu0
    %v2720 = vpop.f32.mrb[0].mxu0
    %v2721 = vpop.f32.mrb[0].mxu0
    %2722 = vdwg.mxu0
    %v2723 = vadd.f32 %v2596, %v2718
    %s2724 = scalar_lea.vmem [#allocation12], 3
    %v2725 = vld [vmem:[%s2724] sm:$0x1]
    %v2727 = vsel %vm2355, %v2725, 0
    %2729 = vmatprep.subr.bf16.mxu0 0
    %2730 = vmatpush1.bf16.msra.mxu0 %v2361
    %2731 = vmatprep.subr.bf16.mxu0 0
    %2732 = vmatpush1.bf16.msra.mxu0 0
    %2733 = vmatprep.subr.bf16.mxu0 0
    %2734 = vmatpush1.bf16.msra.mxu0 0
    %2735 = vmatprep.subr.bf16.mxu0 0
    %2736 = vmatpush1.bf16.msra.mxu0 0
    %2737 = vmatprep.subr.bf16.mxu0 0
    %2738 = vmatpush1.bf16.msra.mxu0 0
    %2739 = vmatprep.subr.bf16.mxu0 0
    %2740 = vmatpush1.bf16.msra.mxu0 0
    %2741 = vmatprep.subr.bf16.mxu0 0
    %2742 = vmatpush1.bf16.msra.mxu0 0
    %2743 = vmatprep.subr.bf16.mxu0 0
    %2744 = vmatpush1.bf16.msra.mxu0 0
    %2745 = vmatprep.subr.bf16.mxu0 0
    %2746 = vmatpush1.bf16.msra.mxu0 0
    %2747 = vmatprep.subr.bf16.mxu0 0
    %2748 = vmatpush1.bf16.msra.mxu0 0
    %2749 = vmatprep.subr.bf16.mxu0 0
    %2750 = vmatpush1.bf16.msra.mxu0 0
    %2751 = vmatprep.subr.bf16.mxu0 0
    %2752 = vmatpush1.bf16.msra.mxu0 0
    %2753 = vmatprep.subr.bf16.mxu0 0
    %2754 = vmatpush1.bf16.msra.mxu0 0
    %2755 = vmatprep.subr.bf16.mxu0 0
    %2756 = vmatpush1.bf16.msra.mxu0 0
    %2757 = vmatprep.subr.bf16.mxu0 0
    %2758 = vmatpush1.bf16.msra.mxu0 0
    %2759 = vmatprep.subr.bf16.mxu0 0
    %2760 = vmatpush1.bf16.msra.mxu0 0
    %2761 = vmatprep.mubr.bf16.mxu0 0
    %2762 = vmatmul.mubr.bf16.gmra.mrb[0].mxu0 %v2727
    %v2763 = vpop.f32.mrb[0].mxu0
    %v2764 = vadd.f32 0.0, %v2763
    %v2765 = vpop.f32.mrb[0].mxu0
    %v2766 = vpop.f32.mrb[0].mxu0
    %v2767 = vpop.f32.mrb[0].mxu0
    %2768 = vdwg.mxu0
    %v2769 = vpack.c.bf16 %v2764, %v2764
    %s2770 = scalar_lea.vmem %s27, 96
    %v2771 = vld [vmem:[%s2770] sm:$0xf]
    %v2772 = vld [vmem:[%s2770 + $0x4] sm:$0xf]
    %v2773 = vld [vmem:[%s2770 + $0x8] sm:$0xf]
    %v2774 = vld [vmem:[%s2770 + $0xc] sm:$0xf]
    %v2775 = vld [vmem:[%s2770 + $0x10] sm:$0xf]
    %v2776 = vld [vmem:[%s2770 + $0x14] sm:$0xf]
    %v2777 = vld [vmem:[%s2770 + $0x18] sm:$0xf]
    %v2778 = vld [vmem:[%s2770 + $0x1c] sm:$0xf]
    %v2787 = vunpack.c.l.b16 %v2771
    %v2788 = vunpack.c.l.b16 %v2772
    %v2789 = vunpack.c.l.b16 %v2773
    %v2790 = vunpack.c.l.b16 %v2774
    %v2791 = vunpack.c.l.b16 %v2775
    %v2792 = vunpack.c.l.b16 %v2776
    %v2793 = vunpack.c.l.b16 %v2777
    %v2794 = vunpack.c.l.b16 %v2778
    %v2795 = vpack.c.b16 %v2788, %v2787
    %v2796 = vpack.c.b16 %v2790, %v2789
    %v2797 = vpack.c.b16 %v2792, %v2791
    %v2798 = vpack.c.b16 %v2794, %v2793
    %v2804 = vsel %vm415, %v2769, 0
    %2806 = vmatprep.subr.bf16.mxu0 0
    %2807 = vmatpush1.bf16.msra.mxu0 %v2795
    %2808 = vmatprep.subr.bf16.mxu0 0
    %2809 = vmatpush1.bf16.msra.mxu0 %v2796
    %2810 = vmatprep.subr.bf16.mxu0 0
    %2811 = vmatpush1.bf16.msra.mxu0 %v2797
    %2812 = vmatprep.subr.bf16.mxu0 0
    %2813 = vmatpush1.bf16.msra.mxu0 %v2798
    %2814 = vmatprep.subr.bf16.mxu0 0
    %2815 = vmatpush1.bf16.msra.mxu0 0
    %2816 = vmatprep.subr.bf16.mxu0 0
    %2817 = vmatpush1.bf16.msra.mxu0 0
    %2818 = vmatprep.subr.bf16.mxu0 0
    %2819 = vmatpush1.bf16.msra.mxu0 0
    %2820 = vmatprep.subr.bf16.mxu0 0
    %2821 = vmatpush1.bf16.msra.mxu0 0
    %2822 = vmatprep.subr.bf16.mxu0 0
    %2823 = vmatpush1.bf16.msra.mxu0 0
    %2824 = vmatprep.subr.bf16.mxu0 0
    %2825 = vmatpush1.bf16.msra.mxu0 0
    %2826 = vmatprep.subr.bf16.mxu0 0
    %2827 = vmatpush1.bf16.msra.mxu0 0
    %2828 = vmatprep.subr.bf16.mxu0 0
    %2829 = vmatpush1.bf16.msra.mxu0 0
    %2830 = vmatprep.subr.bf16.mxu0 0
    %2831 = vmatpush1.bf16.msra.mxu0 0
    %2832 = vmatprep.subr.bf16.mxu0 0
    %2833 = vmatpush1.bf16.msra.mxu0 0
    %2834 = vmatprep.subr.bf16.mxu0 0
    %2835 = vmatpush1.bf16.msra.mxu0 0
    %2836 = vmatprep.subr.bf16.mxu0 0
    %2837 = vmatpush1.bf16.msra.mxu0 0
    %2838 = vmatprep.mubr.bf16.mxu0 0
    %2839 = vmatmul.mubr.bf16.gmra.mrb[0].mxu0 %v2804
    %v2840 = vpop.f32.mrb[0].mxu0
    %v2841 = vadd.f32 0.0, %v2840
    %v2842 = vpop.f32.mrb[0].mxu0
    %v2843 = vpop.f32.mrb[0].mxu0
    %v2844 = vpop.f32.mrb[0].mxu0
    %2845 = vdwg.mxu0
    %v2846 = vadd.f32 %v2723, %v2841
    %v2847 = vld [vmem:[#allocation13] sm:$0x1]
    %v2849 = vlaneseq
    %v2850 = vshrl.u32 %v2849, 7
    %v2851 = vsub.s32 0, %v2850
    %v2852 = vrot.slane %v2847, %v2851
    %v2854 = vadd.f32 %v2846, %v2852
    %vm2855 = vcmp.gt.f32.partialorder %v2854, 0.0
    %v2856 = vmin.f32 %v2854, 0.0
    %v2857 = vmul.f32 %v2856, 1.442695
    %v2858 = vpow.pop %v2857
    %v2859 = vsub.f32 %v2858, 1.0
    %v2860 = vsel %vm2855, %v2854, %v2859
    %v2861 = vpack.c.bf16 %v2860, %v2860
    %v2862 = vld [vmem:[#allocation15] sm:$0xf]
    %vm2863 = vcmask 15360
    %v2865 = vsel %vm2863, %v2862, 0
    %vm2867 = vcmask 1040384
    %v2869 = vsel %vm2867, %v2861, 0
    %2871 = vmatprep.subr.bf16.mxu0 0
    %2872 = vmatpush1.bf16.msra.mxu0 %v2869
    %2873 = vmatprep.subr.bf16.mxu0 0
    %2874 = vmatpush1.bf16.msra.mxu0 0
    %2875 = vmatprep.subr.bf16.mxu0 0
    %2876 = vmatpush1.bf16.msra.mxu0 0
    %2877 = vmatprep.subr.bf16.mxu0 0
    %2878 = vmatpush1.bf16.msra.mxu0 0
    %2879 = vmatprep.subr.bf16.mxu0 0
    %2880 = vmatpush1.bf16.msra.mxu0 0
    %2881 = vmatprep.subr.bf16.mxu0 0
    %2882 = vmatpush1.bf16.msra.mxu0 0
    %2883 = vmatprep.subr.bf16.mxu0 0
    %2884 = vmatpush1.bf16.msra.mxu0 0
    %2885 = vmatprep.subr.bf16.mxu0 0
    %2886 = vmatpush1.bf16.msra.mxu0 0
    %2887 = vmatprep.subr.bf16.mxu0 0
    %2888 = vmatpush1.bf16.msra.mxu0 0
    %2889 = vmatprep.subr.bf16.mxu0 0
    %2890 = vmatpush1.bf16.msra.mxu0 0
    %2891 = vmatprep.subr.bf16.mxu0 0
    %2892 = vmatpush1.bf16.msra.mxu0 0
    %2893 = vmatprep.subr.bf16.mxu0 0
    %2894 = vmatpush1.bf16.msra.mxu0 0
    %2895 = vmatprep.subr.bf16.mxu0 0
    %2896 = vmatpush1.bf16.msra.mxu0 0
    %2897 = vmatprep.subr.bf16.mxu0 0
    %2898 = vmatpush1.bf16.msra.mxu0 0
    %2899 = vmatprep.subr.bf16.mxu0 0
    %2900 = vmatpush1.bf16.msra.mxu0 0
    %2901 = vmatprep.subr.bf16.mxu0 0
    %2902 = vmatpush1.bf16.msra.mxu0 0
    %2903 = vmatprep.mubr.bf16.mxu0 0
    %2904 = vmatmul.mubr.bf16.gmra.mrb[0].mxu0 %v2865
    %v2905 = vpop.f32.mrb[0].mxu0
    %v2906 = vadd.f32 0.0, %v2905
    %v2907 = vpop.f32.mrb[0].mxu0
    %v2908 = vpop.f32.mrb[0].mxu0
    %v2909 = vpop.f32.mrb[0].mxu0
    %2910 = vdwg.mxu0
    %v2911 = vpack.c.bf16 %v2906, %v2906
    %v2912 = vld [vmem:[#allocation16] sm:$0xf]
    %v2913 = vld [vmem:[#allocation16 + $0x4] sm:$0xf]
    %s2914 = scalar_lea.vmem [#allocation15], 4
    %v2915 = vld [vmem:[%s2914] sm:$0xf]
    %v2917 = vsel %vm2863, %v2915, 0
    %2919 = vmatprep.subr.bf16.mxu0 0
    %2920 = vmatpush1.bf16.msra.mxu0 %v2869
    %2921 = vmatprep.subr.bf16.mxu0 0
    %2922 = vmatpush1.bf16.msra.mxu0 0
    %2923 = vmatprep.subr.bf16.mxu0 0
    %2924 = vmatpush1.bf16.msra.mxu0 0
    %2925 = vmatprep.subr.bf16.mxu0 0
    %2926 = vmatpush1.bf16.msra.mxu0 0
    %2927 = vmatprep.subr.bf16.mxu0 0
    %2928 = vmatpush1.bf16.msra.mxu0 0
    %2929 = vmatprep.subr.bf16.mxu0 0
    %2930 = vmatpush1.bf16.msra.mxu0 0
    %2931 = vmatprep.subr.bf16.mxu0 0
    %2932 = vmatpush1.bf16.msra.mxu0 0
    %2933 = vmatprep.subr.bf16.mxu0 0
    %2934 = vmatpush1.bf16.msra.mxu0 0
    %2935 = vmatprep.subr.bf16.mxu0 0
    %2936 = vmatpush1.bf16.msra.mxu0 0
    %2937 = vmatprep.subr.bf16.mxu0 0
    %2938 = vmatpush1.bf16.msra.mxu0 0
    %2939 = vmatprep.subr.bf16.mxu0 0
    %2940 = vmatpush1.bf16.msra.mxu0 0
    %2941 = vmatprep.subr.bf16.mxu0 0
    %2942 = vmatpush1.bf16.msra.mxu0 0
    %2943 = vmatprep.subr.bf16.mxu0 0
    %2944 = vmatpush1.bf16.msra.mxu0 0
    %2945 = vmatprep.subr.bf16.mxu0 0
    %2946 = vmatpush1.bf16.msra.mxu0 0
    %2947 = vmatprep.subr.bf16.mxu0 0
    %2948 = vmatpush1.bf16.msra.mxu0 0
    %2949 = vmatprep.subr.bf16.mxu0 0
    %2950 = vmatpush1.bf16.msra.mxu0 0
    %2951 = vmatprep.mubr.bf16.mxu0 0
    %2952 = vmatmul.mubr.bf16.gmra.mrb[0].mxu0 %v2917
    %v2953 = vpop.f32.mrb[0].mxu0
    %v2954 = vadd.f32 0.0, %v2953
    %v2955 = vpop.f32.mrb[0].mxu0
    %v2956 = vpop.f32.mrb[0].mxu0
    %v2957 = vpop.f32.mrb[0].mxu0
    %2958 = vdwg.mxu0
    %v2959 = vpack.c.bf16 %v2954, %v2954
    %s2960 = scalar_lea.vmem [#allocation16], 8
    %v2961 = vld [vmem:[%s2960] sm:$0xf]
    %v2962 = vld [vmem:[%s2960 + $0x4] sm:$0xf]
    %v2965 = vunpack.c.l.b16 %v2961
    %v2966 = vunpack.c.l.b16 %v2962
    %v2967 = vpack.c.b16 %v2966, %v2965
    %v2970 = vsel %vm1851, %v2959, 0
    %2972 = vmatprep.subr.bf16.mxu0 0
    %2973 = vmatpush1.bf16.msra.mxu0 %v2967
    %2974 = vmatprep.subr.bf16.mxu0 0
    %2975 = vmatpush1.bf16.msra.mxu0 0
    %2976 = vmatprep.subr.bf16.mxu0 0
    %2977 = vmatpush1.bf16.msra.mxu0 0
    %2978 = vmatprep.subr.bf16.mxu0 0
    %2979 = vmatpush1.bf16.msra.mxu0 0
    %2980 = vmatprep.subr.bf16.mxu0 0
    %2981 = vmatpush1.bf16.msra.mxu0 0
    %2982 = vmatprep.subr.bf16.mxu0 0
    %2983 = vmatpush1.bf16.msra.mxu0 0
    %2984 = vmatprep.subr.bf16.mxu0 0
    %2985 = vmatpush1.bf16.msra.mxu0 0
    %2986 = vmatprep.subr.bf16.mxu0 0
    %2987 = vmatpush1.bf16.msra.mxu0 0
    %2988 = vmatprep.subr.bf16.mxu0 0
    %2989 = vmatpush1.bf16.msra.mxu0 0
    %2990 = vmatprep.subr.bf16.mxu0 0
    %2991 = vmatpush1.bf16.msra.mxu0 0
    %2992 = vmatprep.subr.bf16.mxu0 0
    %2993 = vmatpush1.bf16.msra.mxu0 0
    %2994 = vmatprep.subr.bf16.mxu0 0
    %2995 = vmatpush1.bf16.msra.mxu0 0
    %2996 = vmatprep.subr.bf16.mxu0 0
    %2997 = vmatpush1.bf16.msra.mxu0 0
    %2998 = vmatprep.subr.bf16.mxu0 0
    %2999 = vmatpush1.bf16.msra.mxu0 0
    %3000 = vmatprep.subr.bf16.mxu0 0
    %3001 = vmatpush1.bf16.msra.mxu0 0
    %3002 = vmatprep.subr.bf16.mxu0 0
    %3003 = vmatpush1.bf16.msra.mxu0 0
    %3004 = vmatprep.mubr.bf16.mxu0 0
    %3005 = vmatmul.mubr.bf16.gmra.mrb[0].mxu0 %v2970
    %v3006 = vpop.f32.mrb[0].mxu0
    %v3007 = vadd.f32 0.0, %v3006
    %v3008 = vpop.f32.mrb[0].mxu0
    %v3009 = vpop.f32.mrb[0].mxu0
    %v3010 = vpop.f32.mrb[0].mxu0
    %3011 = vdwg.mxu0
    %v3014 = vunpack.c.l.b16 %v2912
    %v3015 = vunpack.c.l.b16 %v2913
    %v3016 = vpack.c.b16 %v3015, %v3014
    %v3019 = vsel %vm1851, %v2911, 0
    %3021 = vmatprep.subr.bf16.mxu0 0
    %3022 = vmatpush1.bf16.msra.mxu0 %v3016
    %3023 = vmatprep.subr.bf16.mxu0 0
    %3024 = vmatpush1.bf16.msra.mxu0 0
    %3025 = vmatprep.subr.bf16.mxu0 0
    %3026 = vmatpush1.bf16.msra.mxu0 0
    %3027 = vmatprep.subr.bf16.mxu0 0
    %3028 = vmatpush1.bf16.msra.mxu0 0
    %3029 = vmatprep.subr.bf16.mxu0 0
    %3030 = vmatpush1.bf16.msra.mxu0 0
    %3031 = vmatprep.subr.bf16.mxu0 0
    %3032 = vmatpush1.bf16.msra.mxu0 0
    %3033 = vmatprep.subr.bf16.mxu0 0
    %3034 = vmatpush1.bf16.msra.mxu0 0
    %3035 = vmatprep.subr.bf16.mxu0 0
    %3036 = vmatpush1.bf16.msra.mxu0 0
    %3037 = vmatprep.subr.bf16.mxu0 0
    %3038 = vmatpush1.bf16.msra.mxu0 0
    %3039 = vmatprep.subr.bf16.mxu0 0
    %3040 = vmatpush1.bf16.msra.mxu0 0
    %3041 = vmatprep.subr.bf16.mxu0 0
    %3042 = vmatpush1.bf16.msra.mxu0 0
    %3043 = vmatprep.subr.bf16.mxu0 0
    %3044 = vmatpush1.bf16.msra.mxu0 0
    %3045 = vmatprep.subr.bf16.mxu0 0
    %3046 = vmatpush1.bf16.msra.mxu0 0
    %3047 = vmatprep.subr.bf16.mxu0 0
    %3048 = vmatpush1.bf16.msra.mxu0 0
    %3049 = vmatprep.subr.bf16.mxu0 0
    %3050 = vmatpush1.bf16.msra.mxu0 0
    %3051 = vmatprep.subr.bf16.mxu0 0
    %3052 = vmatpush1.bf16.msra.mxu0 0
    %3053 = vmatprep.mubr.bf16.mxu0 0
    %3054 = vmatmul.mubr.bf16.gmra.mrb[0].mxu0 %v3019
    %v3055 = vpop.f32.mrb[0].mxu0
    %v3056 = vadd.f32 %v3007, %v3055
    %v3057 = vpop.f32.mrb[0].mxu0
    %v3058 = vpop.f32.mrb[0].mxu0
    %v3059 = vpop.f32.mrb[0].mxu0
    %3060 = vdwg.mxu0
    %s3061 = scalar_lea.vmem [#allocation15], 8
    %v3062 = vld [vmem:[%s3061] sm:$0xf]
    %v3064 = vsel %vm2863, %v3062, 0
    %3066 = vmatprep.subr.bf16.mxu0 0
    %3067 = vmatpush1.bf16.msra.mxu0 %v2869
    %3068 = vmatprep.subr.bf16.mxu0 0
    %3069 = vmatpush1.bf16.msra.mxu0 0
    %3070 = vmatprep.subr.bf16.mxu0 0
    %3071 = vmatpush1.bf16.msra.mxu0 0
    %3072 = vmatprep.subr.bf16.mxu0 0
    %3073 = vmatpush1.bf16.msra.mxu0 0
    %3074 = vmatprep.subr.bf16.mxu0 0
    %3075 = vmatpush1.bf16.msra.mxu0 0
    %3076 = vmatprep.subr.bf16.mxu0 0
    %3077 = vmatpush1.bf16.msra.mxu0 0
    %3078 = vmatprep.subr.bf16.mxu0 0
    %3079 = vmatpush1.bf16.msra.mxu0 0
    %3080 = vmatprep.subr.bf16.mxu0 0
    %3081 = vmatpush1.bf16.msra.mxu0 0
    %3082 = vmatprep.subr.bf16.mxu0 0
    %3083 = vmatpush1.bf16.msra.mxu0 0
    %3084 = vmatprep.subr.bf16.mxu0 0
    %3085 = vmatpush1.bf16.msra.mxu0 0
    %3086 = vmatprep.subr.bf16.mxu0 0
    %3087 = vmatpush1.bf16.msra.mxu0 0
    %3088 = vmatprep.subr.bf16.mxu0 0
    %3089 = vmatpush1.bf16.msra.mxu0 0
    %3090 = vmatprep.subr.bf16.mxu0 0
    %3091 = vmatpush1.bf16.msra.mxu0 0
    %3092 = vmatprep.subr.bf16.mxu0 0
    %3093 = vmatpush1.bf16.msra.mxu0 0
    %3094 = vmatprep.subr.bf16.mxu0 0
    %3095 = vmatpush1.bf16.msra.mxu0 0
    %3096 = vmatprep.subr.bf16.mxu0 0
    %3097 = vmatpush1.bf16.msra.mxu0 0
    %3098 = vmatprep.mubr.bf16.mxu0 0
    %3099 = vmatmul.mubr.bf16.gmra.mrb[0].mxu0 %v3064
    %v3100 = vpop.f32.mrb[0].mxu0
    %v3101 = vadd.f32 0.0, %v3100
    %v3102 = vpop.f32.mrb[0].mxu0
    %v3103 = vpop.f32.mrb[0].mxu0
    %v3104 = vpop.f32.mrb[0].mxu0
    %3105 = vdwg.mxu0
    %v3106 = vpack.c.bf16 %v3101, %v3101
    %s3107 = scalar_lea.vmem [#allocation16], 16
    %v3108 = vld [vmem:[%s3107] sm:$0xf]
    %v3109 = vld [vmem:[%s3107 + $0x4] sm:$0xf]
    %v3112 = vunpack.c.l.b16 %v3108
    %v3113 = vunpack.c.l.b16 %v3109
    %v3114 = vpack.c.b16 %v3113, %v3112
    %v3117 = vsel %vm1851, %v3106, 0
    %3119 = vmatprep.subr.bf16.mxu0 0
    %3120 = vmatpush1.bf16.msra.mxu0 %v3114
    %3121 = vmatprep.subr.bf16.mxu0 0
    %3122 = vmatpush1.bf16.msra.mxu0 0
    %3123 = vmatprep.subr.bf16.mxu0 0
    %3124 = vmatpush1.bf16.msra.mxu0 0
    %3125 = vmatprep.subr.bf16.mxu0 0
    %3126 = vmatpush1.bf16.msra.mxu0 0
    %3127 = vmatprep.subr.bf16.mxu0 0
    %3128 = vmatpush1.bf16.msra.mxu0 0
    %3129 = vmatprep.subr.bf16.mxu0 0
    %3130 = vmatpush1.bf16.msra.mxu0 0
    %3131 = vmatprep.subr.bf16.mxu0 0
    %3132 = vmatpush1.bf16.msra.mxu0 0
    %3133 = vmatprep.subr.bf16.mxu0 0
    %3134 = vmatpush1.bf16.msra.mxu0 0
    %3135 = vmatprep.subr.bf16.mxu0 0
    %3136 = vmatpush1.bf16.msra.mxu0 0
    %3137 = vmatprep.subr.bf16.mxu0 0
    %3138 = vmatpush1.bf16.msra.mxu0 0
    %3139 = vmatprep.subr.bf16.mxu0 0
    %3140 = vmatpush1.bf16.msra.mxu0 0
    %3141 = vmatprep.subr.bf16.mxu0 0
    %3142 = vmatpush1.bf16.msra.mxu0 0
    %3143 = vmatprep.subr.bf16.mxu0 0
    %3144 = vmatpush1.bf16.msra.mxu0 0
    %3145 = vmatprep.subr.bf16.mxu0 0
    %3146 = vmatpush1.bf16.msra.mxu0 0
    %3147 = vmatprep.subr.bf16.mxu0 0
    %3148 = vmatpush1.bf16.msra.mxu0 0
    %3149 = vmatprep.subr.bf16.mxu0 0
    %3150 = vmatpush1.bf16.msra.mxu0 0
    %3151 = vmatprep.mubr.bf16.mxu0 0
    %3152 = vmatmul.mubr.bf16.gmra.mrb[0].mxu0 %v3117
    %v3153 = vpop.f32.mrb[0].mxu0
    %v3154 = vadd.f32 0.0, %v3153
    %v3155 = vpop.f32.mrb[0].mxu0
    %v3156 = vpop.f32.mrb[0].mxu0
    %v3157 = vpop.f32.mrb[0].mxu0
    %3158 = vdwg.mxu0
    %v3159 = vadd.f32 %v3056, %v3154
    %s3160 = scalar_lea.vmem [#allocation15], 12
    %v3161 = vld [vmem:[%s3160] sm:$0xf]
    %v3163 = vsel %vm2863, %v3161, 0
    %3165 = vmatprep.subr.bf16.mxu0 0
    %3166 = vmatpush1.bf16.msra.mxu0 %v2869
    %3167 = vmatprep.subr.bf16.mxu0 0
    %3168 = vmatpush1.bf16.msra.mxu0 0
    %3169 = vmatprep.subr.bf16.mxu0 0
    %3170 = vmatpush1.bf16.msra.mxu0 0
    %3171 = vmatprep.subr.bf16.mxu0 0
    %3172 = vmatpush1.bf16.msra.mxu0 0
    %3173 = vmatprep.subr.bf16.mxu0 0
    %3174 = vmatpush1.bf16.msra.mxu0 0
    %3175 = vmatprep.subr.bf16.mxu0 0
    %3176 = vmatpush1.bf16.msra.mxu0 0
    %3177 = vmatprep.subr.bf16.mxu0 0
    %3178 = vmatpush1.bf16.msra.mxu0 0
    %3179 = vmatprep.subr.bf16.mxu0 0
    %3180 = vmatpush1.bf16.msra.mxu0 0
    %3181 = vmatprep.subr.bf16.mxu0 0
    %3182 = vmatpush1.bf16.msra.mxu0 0
    %3183 = vmatprep.subr.bf16.mxu0 0
    %3184 = vmatpush1.bf16.msra.mxu0 0
    %3185 = vmatprep.subr.bf16.mxu0 0
    %3186 = vmatpush1.bf16.msra.mxu0 0
    %3187 = vmatprep.subr.bf16.mxu0 0
    %3188 = vmatpush1.bf16.msra.mxu0 0
    %3189 = vmatprep.subr.bf16.mxu0 0
    %3190 = vmatpush1.bf16.msra.mxu0 0
    %3191 = vmatprep.subr.bf16.mxu0 0
    %3192 = vmatpush1.bf16.msra.mxu0 0
    %3193 = vmatprep.subr.bf16.mxu0 0
    %3194 = vmatpush1.bf16.msra.mxu0 0
    %3195 = vmatprep.subr.bf16.mxu0 0
    %3196 = vmatpush1.bf16.msra.mxu0 0
    %3197 = vmatprep.mubr.bf16.mxu0 0
    %3198 = vmatmul.mubr.bf16.gmra.mrb[0].mxu0 %v3163
    %v3199 = vpop.f32.mrb[0].mxu0
    %v3200 = vadd.f32 0.0, %v3199
    %v3201 = vpop.f32.mrb[0].mxu0
    %v3202 = vpop.f32.mrb[0].mxu0
    %v3203 = vpop.f32.mrb[0].mxu0
    %3204 = vdwg.mxu0
    %v3205 = vpack.c.bf16 %v3200, %v3200
    %s3206 = scalar_lea.vmem [#allocation16], 24
    %v3207 = vld [vmem:[%s3206] sm:$0xf]
    %v3208 = vld [vmem:[%s3206 + $0x4] sm:$0xf]
    %v3211 = vunpack.c.l.b16 %v3207
    %v3212 = vunpack.c.l.b16 %v3208
    %v3213 = vpack.c.b16 %v3212, %v3211
    %v3216 = vsel %vm1851, %v3205, 0
    %3218 = vmatprep.subr.bf16.mxu0 0
    %3219 = vmatpush1.bf16.msra.mxu0 %v3213
    %3220 = vmatprep.subr.bf16.mxu0 0
    %3221 = vmatpush1.bf16.msra.mxu0 0
    %3222 = vmatprep.subr.bf16.mxu0 0
    %3223 = vmatpush1.bf16.msra.mxu0 0
    %3224 = vmatprep.subr.bf16.mxu0 0
    %3225 = vmatpush1.bf16.msra.mxu0 0
    %3226 = vmatprep.subr.bf16.mxu0 0
    %3227 = vmatpush1.bf16.msra.mxu0 0
    %3228 = vmatprep.subr.bf16.mxu0 0
    %3229 = vmatpush1.bf16.msra.mxu0 0
    %3230 = vmatprep.subr.bf16.mxu0 0
    %3231 = vmatpush1.bf16.msra.mxu0 0
    %3232 = vmatprep.subr.bf16.mxu0 0
    %3233 = vmatpush1.bf16.msra.mxu0 0
    %3234 = vmatprep.subr.bf16.mxu0 0
    %3235 = vmatpush1.bf16.msra.mxu0 0
    %3236 = vmatprep.subr.bf16.mxu0 0
    %3237 = vmatpush1.bf16.msra.mxu0 0
    %3238 = vmatprep.subr.bf16.mxu0 0
    %3239 = vmatpush1.bf16.msra.mxu0 0
    %3240 = vmatprep.subr.bf16.mxu0 0
    %3241 = vmatpush1.bf16.msra.mxu0 0
    %3242 = vmatprep.subr.bf16.mxu0 0
    %3243 = vmatpush1.bf16.msra.mxu0 0
    %3244 = vmatprep.subr.bf16.mxu0 0
    %3245 = vmatpush1.bf16.msra.mxu0 0
    %3246 = vmatprep.subr.bf16.mxu0 0
    %3247 = vmatpush1.bf16.msra.mxu0 0
    %3248 = vmatprep.subr.bf16.mxu0 0
    %3249 = vmatpush1.bf16.msra.mxu0 0
    %3250 = vmatprep.mubr.bf16.mxu0 0
    %3251 = vmatmul.mubr.bf16.gmra.mrb[0].mxu0 %v3216
    %v3252 = vpop.f32.mrb[0].mxu0
    %v3253 = vadd.f32 0.0, %v3252
    %v3254 = vpop.f32.mrb[0].mxu0
    %v3255 = vpop.f32.mrb[0].mxu0
    %v3256 = vpop.f32.mrb[0].mxu0
    %3257 = vdwg.mxu0
    %v3258 = vadd.f32 %v3159, %v3253
    %v3259 = vld [vmem:[#allocation18] sm:$0x1]
    %v3261 = vlaneseq
    %v3262 = vshrl.u32 %v3261, 7
    %v3263 = vsub.s32 0, %v3262
    %v3264 = vrot.slane %v3259, %v3263
    %v3266 = vadd.f32 %v3258, %v3264
    %vm3267 = vcmp.gt.f32.partialorder %v3266, 0.0
    %v3268 = vmin.f32 %v3266, 0.0
    %v3269 = vmul.f32 %v3268, 1.442695
    %v3270 = vpow.pop %v3269
    %v3271 = vsub.f32 %v3270, 1.0
    %v3272 = vsel %vm3267, %v3266, %v3271
    %v3273 = vadd.f32 %v3272, %v2352
    %v3274 = vpack.c.bf16 %v3273, %v3273
    %v3275 = vld [vmem:[#allocation19] sm:$0xf]
    %v3276 = vld [vmem:[#allocation19 + $0x4] sm:$0xf]
    %v3279 = vunpack.c.l.b16 %v3275
    %v3280 = vunpack.c.l.b16 %v3276
    %v3281 = vpack.c.b16 %v3280, %v3279
    %v3283 = vsel %vm2355, %v3281, 0
    %v3286 = vsel %vm2359, %v3274, 0
    %3288 = vmatprep.subr.bf16.mxu0 0
    %3289 = vmatpush1.bf16.msra.mxu0 %v3286
    %3290 = vmatprep.subr.bf16.mxu0 0
    %3291 = vmatpush1.bf16.msra.mxu0 0
    %3292 = vmatprep.subr.bf16.mxu0 0
    %3293 = vmatpush1.bf16.msra.mxu0 0
    %3294 = vmatprep.subr.bf16.mxu0 0
    %3295 = vmatpush1.bf16.msra.mxu0 0
    %3296 = vmatprep.subr.bf16.mxu0 0
    %3297 = vmatpush1.bf16.msra.mxu0 0
    %3298 = vmatprep.subr.bf16.mxu0 0
    %3299 = vmatpush1.bf16.msra.mxu0 0
    %3300 = vmatprep.subr.bf16.mxu0 0
    %3301 = vmatpush1.bf16.msra.mxu0 0
    %3302 = vmatprep.subr.bf16.mxu0 0
    %3303 = vmatpush1.bf16.msra.mxu0 0
    %3304 = vmatprep.subr.bf16.mxu0 0
    %3305 = vmatpush1.bf16.msra.mxu0 0
    %3306 = vmatprep.subr.bf16.mxu0 0
    %3307 = vmatpush1.bf16.msra.mxu0 0
    %3308 = vmatprep.subr.bf16.mxu0 0
    %3309 = vmatpush1.bf16.msra.mxu0 0
    %3310 = vmatprep.subr.bf16.mxu0 0
    %3311 = vmatpush1.bf16.msra.mxu0 0
    %3312 = vmatprep.subr.bf16.mxu0 0
    %3313 = vmatpush1.bf16.msra.mxu0 0
    %3314 = vmatprep.subr.bf16.mxu0 0
    %3315 = vmatpush1.bf16.msra.mxu0 0
    %3316 = vmatprep.subr.bf16.mxu0 0
    %3317 = vmatpush1.bf16.msra.mxu0 0
    %3318 = vmatprep.subr.bf16.mxu0 0
    %3319 = vmatpush1.bf16.msra.mxu0 0
    %3320 = vmatprep.mubr.bf16.mxu0 0
    %3321 = vmatmul.mubr.bf16.gmra.mrb[0].mxu0 %v3283
    %v3322 = vpop.f32.mrb[0].mxu0
    %v3323 = vadd.f32 0.0, %v3322
    %v3324 = vpop.f32.mrb[0].mxu0
    %v3325 = vpop.f32.mrb[0].mxu0
    %v3326 = vadd.f32 0.0, %v3325
    %v3327 = vpop.f32.mrb[0].mxu0
    %3328 = vdwg.mxu0
    %v3329 = vpack.c.bf16 %v3326, %v3323
    %v3330 = vld [vmem:[%s39] sm:$0xf]
    %v3331 = vld [vmem:[%s39 + $0x4] sm:$0xf]
    %v3332 = vld [vmem:[%s39 + $0x8] sm:$0xf]
    %v3333 = vld [vmem:[%s39 + $0xc] sm:$0xf]
    %v3334 = vld [vmem:[%s39 + $0x10] sm:$0xf]
    %v3335 = vld [vmem:[%s39 + $0x14] sm:$0xf]
    %v3336 = vld [vmem:[%s39 + $0x18] sm:$0xf]
    %v3337 = vld [vmem:[%s39 + $0x1c] sm:$0xf]
    %s3338 = scalar_lea.vmem [#allocation19], 8
    %v3339 = vld [vmem:[%s3338] sm:$0xf]
    %v3340 = vld [vmem:[%s3338 + $0x4] sm:$0xf]
    %v3343 = vunpack.c.l.b16 %v3339
    %v3344 = vunpack.c.l.b16 %v3340
    %v3345 = vpack.c.b16 %v3344, %v3343
    %v3347 = vsel %vm2355, %v3345, 0
    %3349 = vmatprep.subr.bf16.mxu0 0
    %3350 = vmatpush1.bf16.msra.mxu0 %v3286
    %3351 = vmatprep.subr.bf16.mxu0 0
    %3352 = vmatpush1.bf16.msra.mxu0 0
    %3353 = vmatprep.subr.bf16.mxu0 0
    %3354 = vmatpush1.bf16.msra.mxu0 0
    %3355 = vmatprep.subr.bf16.mxu0 0
    %3356 = vmatpush1.bf16.msra.mxu0 0
    %3357 = vmatprep.subr.bf16.mxu0 0
    %3358 = vmatpush1.bf16.msra.mxu0 0
    %3359 = vmatprep.subr.bf16.mxu0 0
    %3360 = vmatpush1.bf16.msra.mxu0 0
    %3361 = vmatprep.subr.bf16.mxu0 0
    %3362 = vmatpush1.bf16.msra.mxu0 0
    %3363 = vmatprep.subr.bf16.mxu0 0
    %3364 = vmatpush1.bf16.msra.mxu0 0
    %3365 = vmatprep.subr.bf16.mxu0 0
    %3366 = vmatpush1.bf16.msra.mxu0 0
    %3367 = vmatprep.subr.bf16.mxu0 0
    %3368 = vmatpush1.bf16.msra.mxu0 0
    %3369 = vmatprep.subr.bf16.mxu0 0
    %3370 = vmatpush1.bf16.msra.mxu0 0
    %3371 = vmatprep.subr.bf16.mxu0 0
    %3372 = vmatpush1.bf16.msra.mxu0 0
    %3373 = vmatprep.subr.bf16.mxu0 0
    %3374 = vmatpush1.bf16.msra.mxu0 0
    %3375 = vmatprep.subr.bf16.mxu0 0
    %3376 = vmatpush1.bf16.msra.mxu0 0
    %3377 = vmatprep.subr.bf16.mxu0 0
    %3378 = vmatpush1.bf16.msra.mxu0 0
    %3379 = vmatprep.subr.bf16.mxu0 0
    %3380 = vmatpush1.bf16.msra.mxu0 0
    %3381 = vmatprep.mubr.bf16.mxu0 0
    %3382 = vmatmul.mubr.bf16.gmra.mrb[0].mxu0 %v3347
    %v3383 = vpop.f32.mrb[0].mxu0
    %v3384 = vadd.f32 0.0, %v3383
    %v3385 = vpop.f32.mrb[0].mxu0
    %v3386 = vpop.f32.mrb[0].mxu0
    %v3387 = vadd.f32 0.0, %v3386
    %v3388 = vpop.f32.mrb[0].mxu0
    %3389 = vdwg.mxu0
    %v3390 = vpack.c.bf16 %v3387, %v3384
    %s3391 = scalar_lea.vmem %s39, 32
    %v3392 = vld [vmem:[%s3391] sm:$0xf]
    %v3393 = vld [vmem:[%s3391 + $0x4] sm:$0xf]
    %v3394 = vld [vmem:[%s3391 + $0x8] sm:$0xf]
    %v3395 = vld [vmem:[%s3391 + $0xc] sm:$0xf]
    %v3396 = vld [vmem:[%s3391 + $0x10] sm:$0xf]
    %v3397 = vld [vmem:[%s3391 + $0x14] sm:$0xf]
    %v3398 = vld [vmem:[%s3391 + $0x18] sm:$0xf]
    %v3399 = vld [vmem:[%s3391 + $0x1c] sm:$0xf]
    %v3408 = vunpack.c.l.b16 %v3392
    %v3409 = vunpack.c.l.b16 %v3393
    %v3410 = vunpack.c.l.b16 %v3394
    %v3411 = vunpack.c.l.b16 %v3395
    %v3412 = vunpack.c.l.b16 %v3396
    %v3413 = vunpack.c.l.b16 %v3397
    %v3414 = vunpack.c.l.b16 %v3398
    %v3415 = vunpack.c.l.b16 %v3399
    %v3416 = vpack.c.b16 %v3409, %v3408
    %v3417 = vpack.c.b16 %v3411, %v3410
    %v3418 = vpack.c.b16 %v3413, %v3412
    %v3419 = vpack.c.b16 %v3415, %v3414
    %v3425 = vsel %vm415, %v3390, 0
    %3427 = vmatprep.subr.bf16.mxu0 0
    %3428 = vmatpush1.bf16.msra.mxu0 %v3416
    %3429 = vmatprep.subr.bf16.mxu0 0
    %3430 = vmatpush1.bf16.msra.mxu0 %v3417
    %3431 = vmatprep.subr.bf16.mxu0 0
    %3432 = vmatpush1.bf16.msra.mxu0 %v3418
    %3433 = vmatprep.subr.bf16.mxu0 0
    %3434 = vmatpush1.bf16.msra.mxu0 %v3419
    %3435 = vmatprep.subr.bf16.mxu0 0
    %3436 = vmatpush1.bf16.msra.mxu0 0
    %3437 = vmatprep.subr.bf16.mxu0 0
    %3438 = vmatpush1.bf16.msra.mxu0 0
    %3439 = vmatprep.subr.bf16.mxu0 0
    %3440 = vmatpush1.bf16.msra.mxu0 0
    %3441 = vmatprep.subr.bf16.mxu0 0
    %3442 = vmatpush1.bf16.msra.mxu0 0
    %3443 = vmatprep.subr.bf16.mxu0 0
    %3444 = vmatpush1.bf16.msra.mxu0 0
    %3445 = vmatprep.subr.bf16.mxu0 0
    %3446 = vmatpush1.bf16.msra.mxu0 0
    %3447 = vmatprep.subr.bf16.mxu0 0
    %3448 = vmatpush1.bf16.msra.mxu0 0
    %3449 = vmatprep.subr.bf16.mxu0 0
    %3450 = vmatpush1.bf16.msra.mxu0 0
    %3451 = vmatprep.subr.bf16.mxu0 0
    %3452 = vmatpush1.bf16.msra.mxu0 0
    %3453 = vmatprep.subr.bf16.mxu0 0
    %3454 = vmatpush1.bf16.msra.mxu0 0
    %3455 = vmatprep.subr.bf16.mxu0 0
    %3456 = vmatpush1.bf16.msra.mxu0 0
    %3457 = vmatprep.subr.bf16.mxu0 0
    %3458 = vmatpush1.bf16.msra.mxu0 0
    %3459 = vmatprep.mubr.bf16.mxu0 0
    %3460 = vmatmul.mubr.bf16.gmra.mrb[0].mxu0 %v3425
    %v3461 = vpop.f32.mrb[0].mxu0
    %v3462 = vadd.f32 0.0, %v3461
    %v3463 = vpop.f32.mrb[0].mxu0
    %v3464 = vpop.f32.mrb[0].mxu0
    %v3465 = vadd.f32 0.0, %v3464
    %v3466 = vpop.f32.mrb[0].mxu0
    %3467 = vdwg.mxu0
    %v3476 = vunpack.c.l.b16 %v3330
    %v3477 = vunpack.c.l.b16 %v3331
    %v3478 = vunpack.c.l.b16 %v3332
    %v3479 = vunpack.c.l.b16 %v3333
    %v3480 = vunpack.c.l.b16 %v3334
    %v3481 = vunpack.c.l.b16 %v3335
    %v3482 = vunpack.c.l.b16 %v3336
    %v3483 = vunpack.c.l.b16 %v3337
    %v3484 = vpack.c.b16 %v3477, %v3476
    %v3485 = vpack.c.b16 %v3479, %v3478
    %v3486 = vpack.c.b16 %v3481, %v3480
    %v3487 = vpack.c.b16 %v3483, %v3482
    %v3493 = vsel %vm415, %v3329, 0
    %3495 = vmatprep.subr.bf16.mxu0 0
    %3496 = vmatpush1.bf16.msra.mxu0 %v3484
    %3497 = vmatprep.subr.bf16.mxu0 0
    %3498 = vmatpush1.bf16.msra.mxu0 %v3485
    %3499 = vmatprep.subr.bf16.mxu0 0
    %3500 = vmatpush1.bf16.msra.mxu0 %v3486
    %3501 = vmatprep.subr.bf16.mxu0 0
    %3502 = vmatpush1.bf16.msra.mxu0 %v3487
    %3503 = vmatprep.subr.bf16.mxu0 0
    %3504 = vmatpush1.bf16.msra.mxu0 0
    %3505 = vmatprep.subr.bf16.mxu0 0
    %3506 = vmatpush1.bf16.msra.mxu0 0
    %3507 = vmatprep.subr.bf16.mxu0 0
    %3508 = vmatpush1.bf16.msra.mxu0 0
    %3509 = vmatprep.subr.bf16.mxu0 0
    %3510 = vmatpush1.bf16.msra.mxu0 0
    %3511 = vmatprep.subr.bf16.mxu0 0
    %3512 = vmatpush1.bf16.msra.mxu0 0
    %3513 = vmatprep.subr.bf16.mxu0 0
    %3514 = vmatpush1.bf16.msra.mxu0 0
    %3515 = vmatprep.subr.bf16.mxu0 0
    %3516 = vmatpush1.bf16.msra.mxu0 0
    %3517 = vmatprep.subr.bf16.mxu0 0
    %3518 = vmatpush1.bf16.msra.mxu0 0
    %3519 = vmatprep.subr.bf16.mxu0 0
    %3520 = vmatpush1.bf16.msra.mxu0 0
    %3521 = vmatprep.subr.bf16.mxu0 0
    %3522 = vmatpush1.bf16.msra.mxu0 0
    %3523 = vmatprep.subr.bf16.mxu0 0
    %3524 = vmatpush1.bf16.msra.mxu0 0
    %3525 = vmatprep.subr.bf16.mxu0 0
    %3526 = vmatpush1.bf16.msra.mxu0 0
    %3527 = vmatprep.mubr.bf16.mxu0 0
    %3528 = vmatmul.mubr.bf16.gmra.mrb[0].mxu0 %v3493
    %v3529 = vpop.f32.mrb[0].mxu0
    %v3530 = vadd.f32 %v3462, %v3529
    %v3531 = vpop.f32.mrb[0].mxu0
    %v3532 = vpop.f32.mrb[0].mxu0
    %v3533 = vadd.f32 %v3465, %v3532
    %v3534 = vpop.f32.mrb[0].mxu0
    %3535 = vdwg.mxu0
    %s3536 = scalar_lea.vmem [#allocation19], 16
    %v3537 = vld [vmem:[%s3536] sm:$0xf]
    %v3538 = vld [vmem:[%s3536 + $0x4] sm:$0xf]
    %v3541 = vunpack.c.l.b16 %v3537
    %v3542 = vunpack.c.l.b16 %v3538
    %v3543 = vpack.c.b16 %v3542, %v3541
    %v3545 = vsel %vm2355, %v3543, 0
    %3547 = vmatprep.subr.bf16.mxu0 0
    %3548 = vmatpush1.bf16.msra.mxu0 %v3286
    %3549 = vmatprep.subr.bf16.mxu0 0
    %3550 = vmatpush1.bf16.msra.mxu0 0
    %3551 = vmatprep.subr.bf16.mxu0 0
    %3552 = vmatpush1.bf16.msra.mxu0 0
    %3553 = vmatprep.subr.bf16.mxu0 0
    %3554 = vmatpush1.bf16.msra.mxu0 0
    %3555 = vmatprep.subr.bf16.mxu0 0
    %3556 = vmatpush1.bf16.msra.mxu0 0
    %3557 = vmatprep.subr.bf16.mxu0 0
    %3558 = vmatpush1.bf16.msra.mxu0 0
    %3559 = vmatprep.subr.bf16.mxu0 0
    %3560 = vmatpush1.bf16.msra.mxu0 0
    %3561 = vmatprep.subr.bf16.mxu0 0
    %3562 = vmatpush1.bf16.msra.mxu0 0
    %3563 = vmatprep.subr.bf16.mxu0 0
    %3564 = vmatpush1.bf16.msra.mxu0 0
    %3565 = vmatprep.subr.bf16.mxu0 0
    %3566 = vmatpush1.bf16.msra.mxu0 0
    %3567 = vmatprep.subr.bf16.mxu0 0
    %3568 = vmatpush1.bf16.msra.mxu0 0
    %3569 = vmatprep.subr.bf16.mxu0 0
    %3570 = vmatpush1.bf16.msra.mxu0 0
    %3571 = vmatprep.subr.bf16.mxu0 0
    %3572 = vmatpush1.bf16.msra.mxu0 0
    %3573 = vmatprep.subr.bf16.mxu0 0
    %3574 = vmatpush1.bf16.msra.mxu0 0
    %3575 = vmatprep.subr.bf16.mxu0 0
    %3576 = vmatpush1.bf16.msra.mxu0 0
    %3577 = vmatprep.subr.bf16.mxu0 0
    %3578 = vmatpush1.bf16.msra.mxu0 0
    %3579 = vmatprep.mubr.bf16.mxu0 0
    %3580 = vmatmul.mubr.bf16.gmra.mrb[0].mxu0 %v3545
    %v3581 = vpop.f32.mrb[0].mxu0
    %v3582 = vadd.f32 0.0, %v3581
    %v3583 = vpop.f32.mrb[0].mxu0
    %v3584 = vpop.f32.mrb[0].mxu0
    %v3585 = vadd.f32 0.0, %v3584
    %v3586 = vpop.f32.mrb[0].mxu0
    %3587 = vdwg.mxu0
    %v3588 = vpack.c.bf16 %v3585, %v3582
    %s3589 = scalar_lea.vmem %s39, 64
    %v3590 = vld [vmem:[%s3589] sm:$0xf]
    %v3591 = vld [vmem:[%s3589 + $0x4] sm:$0xf]
    %v3592 = vld [vmem:[%s3589 + $0x8] sm:$0xf]
    %v3593 = vld [vmem:[%s3589 + $0xc] sm:$0xf]
    %v3594 = vld [vmem:[%s3589 + $0x10] sm:$0xf]
    %v3595 = vld [vmem:[%s3589 + $0x14] sm:$0xf]
    %v3596 = vld [vmem:[%s3589 + $0x18] sm:$0xf]
    %v3597 = vld [vmem:[%s3589 + $0x1c] sm:$0xf]
    %v3606 = vunpack.c.l.b16 %v3590
    %v3607 = vunpack.c.l.b16 %v3591
    %v3608 = vunpack.c.l.b16 %v3592
    %v3609 = vunpack.c.l.b16 %v3593
    %v3610 = vunpack.c.l.b16 %v3594
    %v3611 = vunpack.c.l.b16 %v3595
    %v3612 = vunpack.c.l.b16 %v3596
    %v3613 = vunpack.c.l.b16 %v3597
    %v3614 = vpack.c.b16 %v3607, %v3606
    %v3615 = vpack.c.b16 %v3609, %v3608
    %v3616 = vpack.c.b16 %v3611, %v3610
    %v3617 = vpack.c.b16 %v3613, %v3612
    %v3623 = vsel %vm415, %v3588, 0
    %3625 = vmatprep.subr.bf16.mxu0 0
    %3626 = vmatpush1.bf16.msra.mxu0 %v3614
    %3627 = vmatprep.subr.bf16.mxu0 0
    %3628 = vmatpush1.bf16.msra.mxu0 %v3615
    %3629 = vmatprep.subr.bf16.mxu0 0
    %3630 = vmatpush1.bf16.msra.mxu0 %v3616
    %3631 = vmatprep.subr.bf16.mxu0 0
    %3632 = vmatpush1.bf16.msra.mxu0 %v3617
    %3633 = vmatprep.subr.bf16.mxu0 0
    %3634 = vmatpush1.bf16.msra.mxu0 0
    %3635 = vmatprep.subr.bf16.mxu0 0
    %3636 = vmatpush1.bf16.msra.mxu0 0
    %3637 = vmatprep.subr.bf16.mxu0 0
    %3638 = vmatpush1.bf16.msra.mxu0 0
    %3639 = vmatprep.subr.bf16.mxu0 0
    %3640 = vmatpush1.bf16.msra.mxu0 0
    %3641 = vmatprep.subr.bf16.mxu0 0
    %3642 = vmatpush1.bf16.msra.mxu0 0
    %3643 = vmatprep.subr.bf16.mxu0 0
    %3644 = vmatpush1.bf16.msra.mxu0 0
    %3645 = vmatprep.subr.bf16.mxu0 0
    %3646 = vmatpush1.bf16.msra.mxu0 0
    %3647 = vmatprep.subr.bf16.mxu0 0
    %3648 = vmatpush1.bf16.msra.mxu0 0
    %3649 = vmatprep.subr.bf16.mxu0 0
    %3650 = vmatpush1.bf16.msra.mxu0 0
    %3651 = vmatprep.subr.bf16.mxu0 0
    %3652 = vmatpush1.bf16.msra.mxu0 0
    %3653 = vmatprep.subr.bf16.mxu0 0
    %3654 = vmatpush1.bf16.msra.mxu0 0
    %3655 = vmatprep.subr.bf16.mxu0 0
    %3656 = vmatpush1.bf16.msra.mxu0 0
    %3657 = vmatprep.mubr.bf16.mxu0 0
    %3658 = vmatmul.mubr.bf16.gmra.mrb[0].mxu0 %v3623
    %v3659 = vpop.f32.mrb[0].mxu0
    %v3660 = vadd.f32 0.0, %v3659
    %v3661 = vpop.f32.mrb[0].mxu0
    %v3662 = vpop.f32.mrb[0].mxu0
    %v3663 = vadd.f32 0.0, %v3662
    %v3664 = vpop.f32.mrb[0].mxu0
    %3665 = vdwg.mxu0
    %v3666 = vadd.f32 %v3530, %v3660
    %v3667 = vadd.f32 %v3533, %v3663
    %s3668 = scalar_lea.vmem [#allocation19], 24
    %v3669 = vld [vmem:[%s3668] sm:$0xf]
    %v3670 = vld [vmem:[%s3668 + $0x4] sm:$0xf]
    %v3673 = vunpack.c.l.b16 %v3669
    %v3674 = vunpack.c.l.b16 %v3670
    %v3675 = vpack.c.b16 %v3674, %v3673
    %v3677 = vsel %vm2355, %v3675, 0
    %3679 = vmatprep.subr.bf16.mxu0 0
    %3680 = vmatpush1.bf16.msra.mxu0 %v3286
    %3681 = vmatprep.subr.bf16.mxu0 0
    %3682 = vmatpush1.bf16.msra.mxu0 0
    %3683 = vmatprep.subr.bf16.mxu0 0
    %3684 = vmatpush1.bf16.msra.mxu0 0
    %3685 = vmatprep.subr.bf16.mxu0 0
    %3686 = vmatpush1.bf16.msra.mxu0 0
    %3687 = vmatprep.subr.bf16.mxu0 0
    %3688 = vmatpush1.bf16.msra.mxu0 0
    %3689 = vmatprep.subr.bf16.mxu0 0
    %3690 = vmatpush1.bf16.msra.mxu0 0
    %3691 = vmatprep.subr.bf16.mxu0 0
    %3692 = vmatpush1.bf16.msra.mxu0 0
    %3693 = vmatprep.subr.bf16.mxu0 0
    %3694 = vmatpush1.bf16.msra.mxu0 0
    %3695 = vmatprep.subr.bf16.mxu0 0
    %3696 = vmatpush1.bf16.msra.mxu0 0
    %3697 = vmatprep.subr.bf16.mxu0 0
    %3698 = vmatpush1.bf16.msra.mxu0 0
    %3699 = vmatprep.subr.bf16.mxu0 0
    %3700 = vmatpush1.bf16.msra.mxu0 0
    %3701 = vmatprep.subr.bf16.mxu0 0
    %3702 = vmatpush1.bf16.msra.mxu0 0
    %3703 = vmatprep.subr.bf16.mxu0 0
    %3704 = vmatpush1.bf16.msra.mxu0 0
    %3705 = vmatprep.subr.bf16.mxu0 0
    %3706 = vmatpush1.bf16.msra.mxu0 0
    %3707 = vmatprep.subr.bf16.mxu0 0
    %3708 = vmatpush1.bf16.msra.mxu0 0
    %3709 = vmatprep.subr.bf16.mxu0 0
    %3710 = vmatpush1.bf16.msra.mxu0 0
    %3711 = vmatprep.mubr.bf16.mxu0 0
    %3712 = vmatmul.mubr.bf16.gmra.mrb[0].mxu0 %v3677
    %v3713 = vpop.f32.mrb[0].mxu0
    %v3714 = vadd.f32 0.0, %v3713
    %v3715 = vpop.f32.mrb[0].mxu0
    %v3716 = vpop.f32.mrb[0].mxu0
    %v3717 = vadd.f32 0.0, %v3716
    %v3718 = vpop.f32.mrb[0].mxu0
    %3719 = vdwg.mxu0
    %v3720 = vpack.c.bf16 %v3717, %v3714
    %s3721 = scalar_lea.vmem %s39, 96
    %v3722 = vld [vmem:[%s3721] sm:$0xf]
    %v3723 = vld [vmem:[%s3721 + $0x4] sm:$0xf]
    %v3724 = vld [vmem:[%s3721 + $0x8] sm:$0xf]
    %v3725 = vld [vmem:[%s3721 + $0xc] sm:$0xf]
    %v3726 = vld [vmem:[%s3721 + $0x10] sm:$0xf]
    %v3727 = vld [vmem:[%s3721 + $0x14] sm:$0xf]
    %v3728 = vld [vmem:[%s3721 + $0x18] sm:$0xf]
    %v3729 = vld [vmem:[%s3721 + $0x1c] sm:$0xf]
    %v3738 = vunpack.c.l.b16 %v3722
    %v3739 = vunpack.c.l.b16 %v3723
    %v3740 = vunpack.c.l.b16 %v3724
    %v3741 = vunpack.c.l.b16 %v3725
    %v3742 = vunpack.c.l.b16 %v3726
    %v3743 = vunpack.c.l.b16 %v3727
    %v3744 = vunpack.c.l.b16 %v3728
    %v3745 = vunpack.c.l.b16 %v3729
    %v3746 = vpack.c.b16 %v3739, %v3738
    %v3747 = vpack.c.b16 %v3741, %v3740
    %v3748 = vpack.c.b16 %v3743, %v3742
    %v3749 = vpack.c.b16 %v3745, %v3744
    %v3755 = vsel %vm415, %v3720, 0
    %3757 = vmatprep.subr.bf16.mxu0 0
    %3758 = vmatpush1.bf16.msra.mxu0 %v3746
    %3759 = vmatprep.subr.bf16.mxu0 0
    %3760 = vmatpush1.bf16.msra.mxu0 %v3747
    %3761 = vmatprep.subr.bf16.mxu0 0
    %3762 = vmatpush1.bf16.msra.mxu0 %v3748
    %3763 = vmatprep.subr.bf16.mxu0 0
    %3764 = vmatpush1.bf16.msra.mxu0 %v3749
    %3765 = vmatprep.subr.bf16.mxu0 0
    %3766 = vmatpush1.bf16.msra.mxu0 0
    %3767 = vmatprep.subr.bf16.mxu0 0
    %3768 = vmatpush1.bf16.msra.mxu0 0
    %3769 = vmatprep.subr.bf16.mxu0 0
    %3770 = vmatpush1.bf16.msra.mxu0 0
    %3771 = vmatprep.subr.bf16.mxu0 0
    %3772 = vmatpush1.bf16.msra.mxu0 0
    %3773 = vmatprep.subr.bf16.mxu0 0
    %3774 = vmatpush1.bf16.msra.mxu0 0
    %3775 = vmatprep.subr.bf16.mxu0 0
    %3776 = vmatpush1.bf16.msra.mxu0 0
    %3777 = vmatprep.subr.bf16.mxu0 0
    %3778 = vmatpush1.bf16.msra.mxu0 0
    %3779 = vmatprep.subr.bf16.mxu0 0
    %3780 = vmatpush1.bf16.msra.mxu0 0
    %3781 = vmatprep.subr.bf16.mxu0 0
    %3782 = vmatpush1.bf16.msra.mxu0 0
    %3783 = vmatprep.subr.bf16.mxu0 0
    %3784 = vmatpush1.bf16.msra.mxu0 0
    %3785 = vmatprep.subr.bf16.mxu0 0
    %3786 = vmatpush1.bf16.msra.mxu0 0
    %3787 = vmatprep.subr.bf16.mxu0 0
    %3788 = vmatpush1.bf16.msra.mxu0 0
    %3789 = vmatprep.mubr.bf16.mxu0 0
    %3790 = vmatmul.mubr.bf16.gmra.mrb[0].mxu0 %v3755
    %v3791 = vpop.f32.mrb[0].mxu0
    %v3792 = vadd.f32 0.0, %v3791
    %v3793 = vpop.f32.mrb[0].mxu0
    %v3794 = vpop.f32.mrb[0].mxu0
    %v3795 = vadd.f32 0.0, %v3794
    %v3796 = vpop.f32.mrb[0].mxu0
    %3797 = vdwg.mxu0
    %v3798 = vadd.f32 %v3666, %v3792
    %v3799 = vadd.f32 %v3667, %v3795
    %v3800 = vld [vmem:[#allocation21] sm:$0x1]
    %v3802 = vlaneseq
    %v3803 = vshrl.u32 %v3802, 7
    %v3804 = vsub.s32 0, %v3803
    %v3805 = vrot.slane %v3800, %v3804
    %v3807 = vadd.f32 %v3798, %v3805
    %v3808 = vadd.f32 %v3799, %v3805
    %vm3809 = vcmp.gt.f32.partialorder %v3807, 0.0
    %vm3810 = vcmp.gt.f32.partialorder %v3808, 0.0
    %v3811 = vmin.f32 %v3807, 0.0
    %v3812 = vmin.f32 %v3808, 0.0
    %v3813 = vmul.f32 %v3811, 1.442695
    %v3814 = vpow.pop %v3813
    %v3815 = vmul.f32 %v3812, 1.442695
    %v3816 = vpow.pop %v3815
    %v3817 = vsub.f32 %v3814, 1.0
    %v3818 = vsub.f32 %v3816, 1.0
    %v3819 = vsel %vm3809, %v3807, %v3817
    %v3820 = vsel %vm3810, %v3808, %v3818
    %v3821 = vadd.f32 %v3819, %v1847
    %v3822 = vadd.f32 %v3820, %v1848
    %v3823 = vpack.c.bf16 %v3822, %v3821
    %v3824 = vld [vmem:[#allocation22] sm:$0xf]
    %v3825 = vld [vmem:[#allocation22 + $0x4] sm:$0xf]
    %v3826 = vld [vmem:[#allocation22 + $0x8] sm:$0xf]
    %v3827 = vld [vmem:[#allocation22 + $0xc] sm:$0xf]
    %v3832 = vunpack.c.l.b16 %v3824
    %v3833 = vunpack.c.l.b16 %v3825
    %v3834 = vunpack.c.l.b16 %v3826
    %v3835 = vunpack.c.l.b16 %v3827
    %v3836 = vpack.c.b16 %v3833, %v3832
    %v3837 = vpack.c.b16 %v3835, %v3834
    %v3839 = vsel %vm1851, %v3836, 0
    %v3842 = vsel %vm1851, %v3837, 0
    %3844 = vmatprep.subr.bf16.mxu0 0
    %3845 = vmatpush1.bf16.msra.mxu0 %v3823
    %3846 = vmatprep.subr.bf16.mxu0 0
    %3847 = vmatpush1.bf16.msra.mxu0 0
    %3848 = vmatprep.subr.bf16.mxu0 0
    %3849 = vmatpush1.bf16.msra.mxu0 0
    %3850 = vmatprep.subr.bf16.mxu0 0
    %3851 = vmatpush1.bf16.msra.mxu0 0
    %3852 = vmatprep.subr.bf16.mxu0 0
    %3853 = vmatpush1.bf16.msra.mxu0 0
    %3854 = vmatprep.subr.bf16.mxu0 0
    %3855 = vmatpush1.bf16.msra.mxu0 0
    %3856 = vmatprep.subr.bf16.mxu0 0
    %3857 = vmatpush1.bf16.msra.mxu0 0
    %3858 = vmatprep.subr.bf16.mxu0 0
    %3859 = vmatpush1.bf16.msra.mxu0 0
    %3860 = vmatprep.subr.bf16.mxu0 0
    %3861 = vmatpush1.bf16.msra.mxu0 0
    %3862 = vmatprep.subr.bf16.mxu0 0
    %3863 = vmatpush1.bf16.msra.mxu0 0
    %3864 = vmatprep.subr.bf16.mxu0 0
    %3865 = vmatpush1.bf16.msra.mxu0 0
    %3866 = vmatprep.subr.bf16.mxu0 0
    %3867 = vmatpush1.bf16.msra.mxu0 0
    %3868 = vmatprep.subr.bf16.mxu0 0
    %3869 = vmatpush1.bf16.msra.mxu0 0
    %3870 = vmatprep.subr.bf16.mxu0 0
    %3871 = vmatpush1.bf16.msra.mxu0 0
    %3872 = vmatprep.subr.bf16.mxu0 0
    %3873 = vmatpush1.bf16.msra.mxu0 0
    %3874 = vmatprep.subr.bf16.mxu0 0
    %3875 = vmatpush1.bf16.msra.mxu0 0
    %3876 = vmatprep.mubr.bf16.mxu0 0
    %3877 = vmatmul.mubr.bf16.gmra.mrb[0].mxu0 %v3839
    %v3878 = vpop.f32.mrb[0].mxu0
    %v3879 = vadd.f32 0.0, %v3878
    %v3880 = vpop.f32.mrb[0].mxu0
    %v3881 = vpop.f32.mrb[0].mxu0
    %v3882 = vadd.f32 0.0, %v3881
    %v3883 = vpop.f32.mrb[0].mxu0
    %3884 = vmatprep.mubr.bf16.mxu0 0
    %3885 = vmatmul.mubr.bf16.gmra.mrb[0].mxu0 %v3842
    %v3886 = vpop.f32.mrb[0].mxu0
    %v3887 = vadd.f32 0.0, %v3886
    %v3888 = vpop.f32.mrb[0].mxu0
    %v3889 = vpop.f32.mrb[0].mxu0
    %v3890 = vadd.f32 0.0, %v3889
    %v3891 = vpop.f32.mrb[0].mxu0
    %3892 = vdwg.mxu0
    %v3893 = vpack.c.bf16 %v3882, %v3879
    %v3894 = vpack.c.bf16 %v3890, %v3887
    %v3895 = vld [vmem:[%s45] sm:$0xf]
    %v3896 = vld [vmem:[%s45 + $0x4] sm:$0xf]
    %v3897 = vld [vmem:[%s45 + $0x8] sm:$0xf]
    %v3898 = vld [vmem:[%s45 + $0xc] sm:$0xf]
    %v3899 = vld [vmem:[%s45 + $0x10] sm:$0xf]
    %v3900 = vld [vmem:[%s45 + $0x14] sm:$0xf]
    %v3901 = vld [vmem:[%s45 + $0x18] sm:$0xf]
    %v3902 = vld [vmem:[%s45 + $0x1c] sm:$0xf]
    %s3903 = scalar_lea.vmem [#allocation22], 16
    %v3904 = vld [vmem:[%s3903] sm:$0xf]
    %v3905 = vld [vmem:[%s3903 + $0x4] sm:$0xf]
    %v3906 = vld [vmem:[%s3903 + $0x8] sm:$0xf]
    %v3907 = vld [vmem:[%s3903 + $0xc] sm:$0xf]
    %v3912 = vunpack.c.l.b16 %v3904
    %v3913 = vunpack.c.l.b16 %v3905
    %v3914 = vunpack.c.l.b16 %v3906
    %v3915 = vunpack.c.l.b16 %v3907
    %v3916 = vpack.c.b16 %v3913, %v3912
    %v3917 = vpack.c.b16 %v3915, %v3914
    %v3919 = vsel %vm1851, %v3916, 0
    %v3922 = vsel %vm1851, %v3917, 0
    %3924 = vmatprep.subr.bf16.mxu0 0
    %3925 = vmatpush1.bf16.msra.mxu0 %v3823
    %3926 = vmatprep.subr.bf16.mxu0 0
    %3927 = vmatpush1.bf16.msra.mxu0 0
    %3928 = vmatprep.subr.bf16.mxu0 0
    %3929 = vmatpush1.bf16.msra.mxu0 0
    %3930 = vmatprep.subr.bf16.mxu0 0
    %3931 = vmatpush1.bf16.msra.mxu0 0
    %3932 = vmatprep.subr.bf16.mxu0 0
    %3933 = vmatpush1.bf16.msra.mxu0 0
    %3934 = vmatprep.subr.bf16.mxu0 0
    %3935 = vmatpush1.bf16.msra.mxu0 0
    %3936 = vmatprep.subr.bf16.mxu0 0
    %3937 = vmatpush1.bf16.msra.mxu0 0
    %3938 = vmatprep.subr.bf16.mxu0 0
    %3939 = vmatpush1.bf16.msra.mxu0 0
    %3940 = vmatprep.subr.bf16.mxu0 0
    %3941 = vmatpush1.bf16.msra.mxu0 0
    %3942 = vmatprep.subr.bf16.mxu0 0
    %3943 = vmatpush1.bf16.msra.mxu0 0
    %3944 = vmatprep.subr.bf16.mxu0 0
    %3945 = vmatpush1.bf16.msra.mxu0 0
    %3946 = vmatprep.subr.bf16.mxu0 0
    %3947 = vmatpush1.bf16.msra.mxu0 0
    %3948 = vmatprep.subr.bf16.mxu0 0
    %3949 = vmatpush1.bf16.msra.mxu0 0
    %3950 = vmatprep.subr.bf16.mxu0 0
    %3951 = vmatpush1.bf16.msra.mxu0 0
    %3952 = vmatprep.subr.bf16.mxu0 0
    %3953 = vmatpush1.bf16.msra.mxu0 0
    %3954 = vmatprep.subr.bf16.mxu0 0
    %3955 = vmatpush1.bf16.msra.mxu0 0
    %3956 = vmatprep.mubr.bf16.mxu0 0
    %3957 = vmatmul.mubr.bf16.gmra.mrb[0].mxu0 %v3919
    %v3958 = vpop.f32.mrb[0].mxu0
    %v3959 = vadd.f32 0.0, %v3958
    %v3960 = vpop.f32.mrb[0].mxu0
    %v3961 = vpop.f32.mrb[0].mxu0
    %v3962 = vadd.f32 0.0, %v3961
    %v3963 = vpop.f32.mrb[0].mxu0
    %3964 = vmatprep.mubr.bf16.mxu0 0
    %3965 = vmatmul.mubr.bf16.gmra.mrb[0].mxu0 %v3922
    %v3966 = vpop.f32.mrb[0].mxu0
    %v3967 = vadd.f32 0.0, %v3966
    %v3968 = vpop.f32.mrb[0].mxu0
    %v3969 = vpop.f32.mrb[0].mxu0
    %v3970 = vadd.f32 0.0, %v3969
    %v3971 = vpop.f32.mrb[0].mxu0
    %3972 = vdwg.mxu0
    %v3973 = vpack.c.bf16 %v3962, %v3959
    %v3974 = vpack.c.bf16 %v3970, %v3967
    %s3975 = scalar_lea.vmem %s45, 32
    %v3976 = vld [vmem:[%s3975] sm:$0xf]
    %v3977 = vld [vmem:[%s3975 + $0x4] sm:$0xf]
    %v3978 = vld [vmem:[%s3975 + $0x8] sm:$0xf]
    %v3979 = vld [vmem:[%s3975 + $0xc] sm:$0xf]
    %v3980 = vld [vmem:[%s3975 + $0x10] sm:$0xf]
    %v3981 = vld [vmem:[%s3975 + $0x14] sm:$0xf]
    %v3982 = vld [vmem:[%s3975 + $0x18] sm:$0xf]
    %v3983 = vld [vmem:[%s3975 + $0x1c] sm:$0xf]
    %v3992 = vunpack.c.l.b16 %v3976
    %v3993 = vunpack.c.l.b16 %v3977
    %v3994 = vunpack.c.l.b16 %v3978
    %v3995 = vunpack.c.l.b16 %v3979
    %v3996 = vunpack.c.l.b16 %v3980
    %v3997 = vunpack.c.l.b16 %v3981
    %v3998 = vunpack.c.l.b16 %v3982
    %v3999 = vunpack.c.l.b16 %v3983
    %v4000 = vpack.c.b16 %v3993, %v3992
    %v4001 = vpack.c.b16 %v3995, %v3994
    %v4002 = vpack.c.b16 %v3997, %v3996
    %v4003 = vpack.c.b16 %v3999, %v3998
    %v4009 = vsel %vm415, %v3973, 0
    %v4012 = vsel %vm415, %v3974, 0
    %4014 = vmatprep.subr.bf16.mxu0 0
    %4015 = vmatpush1.bf16.msra.mxu0 %v4000
    %4016 = vmatprep.subr.bf16.mxu0 0
    %4017 = vmatpush1.bf16.msra.mxu0 %v4001
    %4018 = vmatprep.subr.bf16.mxu0 0
    %4019 = vmatpush1.bf16.msra.mxu0 %v4002
    %4020 = vmatprep.subr.bf16.mxu0 0
    %4021 = vmatpush1.bf16.msra.mxu0 %v4003
    %4022 = vmatprep.subr.bf16.mxu0 0
    %4023 = vmatpush1.bf16.msra.mxu0 0
    %4024 = vmatprep.subr.bf16.mxu0 0
    %4025 = vmatpush1.bf16.msra.mxu0 0
    %4026 = vmatprep.subr.bf16.mxu0 0
    %4027 = vmatpush1.bf16.msra.mxu0 0
    %4028 = vmatprep.subr.bf16.mxu0 0
    %4029 = vmatpush1.bf16.msra.mxu0 0
    %4030 = vmatprep.subr.bf16.mxu0 0
    %4031 = vmatpush1.bf16.msra.mxu0 0
    %4032 = vmatprep.subr.bf16.mxu0 0
    %4033 = vmatpush1.bf16.msra.mxu0 0
    %4034 = vmatprep.subr.bf16.mxu0 0
    %4035 = vmatpush1.bf16.msra.mxu0 0
    %4036 = vmatprep.subr.bf16.mxu0 0
    %4037 = vmatpush1.bf16.msra.mxu0 0
    %4038 = vmatprep.subr.bf16.mxu0 0
    %4039 = vmatpush1.bf16.msra.mxu0 0
    %4040 = vmatprep.subr.bf16.mxu0 0
    %4041 = vmatpush1.bf16.msra.mxu0 0
    %4042 = vmatprep.subr.bf16.mxu0 0
    %4043 = vmatpush1.bf16.msra.mxu0 0
    %4044 = vmatprep.subr.bf16.mxu0 0
    %4045 = vmatpush1.bf16.msra.mxu0 0
    %4046 = vmatprep.mubr.bf16.mxu0 0
    %4047 = vmatmul.mubr.bf16.gmra.mrb[0].mxu0 %v4009
    %v4048 = vpop.f32.mrb[0].mxu0
    %v4049 = vadd.f32 0.0, %v4048
    %v4050 = vpop.f32.mrb[0].mxu0
    %v4051 = vpop.f32.mrb[0].mxu0
    %v4052 = vadd.f32 0.0, %v4051
    %v4053 = vpop.f32.mrb[0].mxu0
    %4054 = vmatprep.mubr.bf16.mxu0 0
    %4055 = vmatmul.mubr.bf16.gmra.mrb[0].mxu0 %v4012
    %v4056 = vpop.f32.mrb[0].mxu0
    %v4057 = vadd.f32 0.0, %v4056
    %v4058 = vpop.f32.mrb[0].mxu0
    %v4059 = vpop.f32.mrb[0].mxu0
    %v4060 = vadd.f32 0.0, %v4059
    %v4061 = vpop.f32.mrb[0].mxu0
    %4062 = vdwg.mxu0
    %v4071 = vunpack.c.l.b16 %v3895
    %v4072 = vunpack.c.l.b16 %v3896
    %v4073 = vunpack.c.l.b16 %v3897
    %v4074 = vunpack.c.l.b16 %v3898
    %v4075 = vunpack.c.l.b16 %v3899
    %v4076 = vunpack.c.l.b16 %v3900
    %v4077 = vunpack.c.l.b16 %v3901
    %v4078 = vunpack.c.l.b16 %v3902
    %v4079 = vpack.c.b16 %v4072, %v4071
    %v4080 = vpack.c.b16 %v4074, %v4073
    %v4081 = vpack.c.b16 %v4076, %v4075
    %v4082 = vpack.c.b16 %v4078, %v4077
    %v4088 = vsel %vm415, %v3893, 0
    %v4091 = vsel %vm415, %v3894, 0
    %4093 = vmatprep.subr.bf16.mxu0 0
    %4094 = vmatpush1.bf16.msra.mxu0 %v4079
    %4095 = vmatprep.subr.bf16.mxu0 0
    %4096 = vmatpush1.bf16.msra.mxu0 %v4080
    %4097 = vmatprep.subr.bf16.mxu0 0
    %4098 = vmatpush1.bf16.msra.mxu0 %v4081
    %4099 = vmatprep.subr.bf16.mxu0 0
    %4100 = vmatpush1.bf16.msra.mxu0 %v4082
    %4101 = vmatprep.subr.bf16.mxu0 0
    %4102 = vmatpush1.bf16.msra.mxu0 0
    %4103 = vmatprep.subr.bf16.mxu0 0
    %4104 = vmatpush1.bf16.msra.mxu0 0
    %4105 = vmatprep.subr.bf16.mxu0 0
    %4106 = vmatpush1.bf16.msra.mxu0 0
    %4107 = vmatprep.subr.bf16.mxu0 0
    %4108 = vmatpush1.bf16.msra.mxu0 0
    %4109 = vmatprep.subr.bf16.mxu0 0
    %4110 = vmatpush1.bf16.msra.mxu0 0
    %4111 = vmatprep.subr.bf16.mxu0 0
    %4112 = vmatpush1.bf16.msra.mxu0 0
    %4113 = vmatprep.subr.bf16.mxu0 0
    %4114 = vmatpush1.bf16.msra.mxu0 0
    %4115 = vmatprep.subr.bf16.mxu0 0
    %4116 = vmatpush1.bf16.msra.mxu0 0
    %4117 = vmatprep.subr.bf16.mxu0 0
    %4118 = vmatpush1.bf16.msra.mxu0 0
    %4119 = vmatprep.subr.bf16.mxu0 0
    %4120 = vmatpush1.bf16.msra.mxu0 0
    %4121 = vmatprep.subr.bf16.mxu0 0
    %4122 = vmatpush1.bf16.msra.mxu0 0
    %4123 = vmatprep.subr.bf16.mxu0 0
    %4124 = vmatpush1.bf16.msra.mxu0 0
    %4125 = vmatprep.mubr.bf16.mxu0 0
    %4126 = vmatmul.mubr.bf16.gmra.mrb[0].mxu0 %v4088
    %v4127 = vpop.f32.mrb[0].mxu0
    %v4128 = vadd.f32 %v4049, %v4127
    %v4129 = vpop.f32.mrb[0].mxu0
    %v4130 = vpop.f32.mrb[0].mxu0
    %v4131 = vadd.f32 %v4052, %v4130
    %v4132 = vpop.f32.mrb[0].mxu0
    %4133 = vmatprep.mubr.bf16.mxu0 0
    %4134 = vmatmul.mubr.bf16.gmra.mrb[0].mxu0 %v4091
    %v4135 = vpop.f32.mrb[0].mxu0
    %v4136 = vadd.f32 %v4057, %v4135
    %v4137 = vpop.f32.mrb[0].mxu0
    %v4138 = vpop.f32.mrb[0].mxu0
    %v4139 = vadd.f32 %v4060, %v4138
    %v4140 = vpop.f32.mrb[0].mxu0
    %4141 = vdwg.mxu0
    %s4142 = scalar_lea.vmem [#allocation22], 32
    %v4143 = vld [vmem:[%s4142] sm:$0xf]
    %v4144 = vld [vmem:[%s4142 + $0x4] sm:$0xf]
    %v4145 = vld [vmem:[%s4142 + $0x8] sm:$0xf]
    %v4146 = vld [vmem:[%s4142 + $0xc] sm:$0xf]
    %v4151 = vunpack.c.l.b16 %v4143
    %v4152 = vunpack.c.l.b16 %v4144
    %v4153 = vunpack.c.l.b16 %v4145
    %v4154 = vunpack.c.l.b16 %v4146
    %v4155 = vpack.c.b16 %v4152, %v4151
    %v4156 = vpack.c.b16 %v4154, %v4153
    %v4158 = vsel %vm1851, %v4155, 0
    %v4161 = vsel %vm1851, %v4156, 0
    %4163 = vmatprep.subr.bf16.mxu0 0
    %4164 = vmatpush1.bf16.msra.mxu0 %v3823
    %4165 = vmatprep.subr.bf16.mxu0 0
    %4166 = vmatpush1.bf16.msra.mxu0 0
    %4167 = vmatprep.subr.bf16.mxu0 0
    %4168 = vmatpush1.bf16.msra.mxu0 0
    %4169 = vmatprep.subr.bf16.mxu0 0
    %4170 = vmatpush1.bf16.msra.mxu0 0
    %4171 = vmatprep.subr.bf16.mxu0 0
    %4172 = vmatpush1.bf16.msra.mxu0 0
    %4173 = vmatprep.subr.bf16.mxu0 0
    %4174 = vmatpush1.bf16.msra.mxu0 0
    %4175 = vmatprep.subr.bf16.mxu0 0
    %4176 = vmatpush1.bf16.msra.mxu0 0
    %4177 = vmatprep.subr.bf16.mxu0 0
    %4178 = vmatpush1.bf16.msra.mxu0 0
    %4179 = vmatprep.subr.bf16.mxu0 0
    %4180 = vmatpush1.bf16.msra.mxu0 0
    %4181 = vmatprep.subr.bf16.mxu0 0
    %4182 = vmatpush1.bf16.msra.mxu0 0
    %4183 = vmatprep.subr.bf16.mxu0 0
    %4184 = vmatpush1.bf16.msra.mxu0 0
    %4185 = vmatprep.subr.bf16.mxu0 0
    %4186 = vmatpush1.bf16.msra.mxu0 0
    %4187 = vmatprep.subr.bf16.mxu0 0
    %4188 = vmatpush1.bf16.msra.mxu0 0
    %4189 = vmatprep.subr.bf16.mxu0 0
    %4190 = vmatpush1.bf16.msra.mxu0 0
    %4191 = vmatprep.subr.bf16.mxu0 0
    %4192 = vmatpush1.bf16.msra.mxu0 0
    %4193 = vmatprep.subr.bf16.mxu0 0
    %4194 = vmatpush1.bf16.msra.mxu0 0
    %4195 = vmatprep.mubr.bf16.mxu0 0
    %4196 = vmatmul.mubr.bf16.gmra.mrb[0].mxu0 %v4158
    %v4197 = vpop.f32.mrb[0].mxu0
    %v4198 = vadd.f32 0.0, %v4197
    %v4199 = vpop.f32.mrb[0].mxu0
    %v4200 = vpop.f32.mrb[0].mxu0
    %v4201 = vadd.f32 0.0, %v4200
    %v4202 = vpop.f32.mrb[0].mxu0
    %4203 = vmatprep.mubr.bf16.mxu0 0
    %4204 = vmatmul.mubr.bf16.gmra.mrb[0].mxu0 %v4161
    %v4205 = vpop.f32.mrb[0].mxu0
    %v4206 = vadd.f32 0.0, %v4205
    %v4207 = vpop.f32.mrb[0].mxu0
    %v4208 = vpop.f32.mrb[0].mxu0
    %v4209 = vadd.f32 0.0, %v4208
    %v4210 = vpop.f32.mrb[0].mxu0
    %4211 = vdwg.mxu0
    %v4212 = vpack.c.bf16 %v4201, %v4198
    %v4213 = vpack.c.bf16 %v4209, %v4206
    %s4214 = scalar_lea.vmem %s45, 64
    %v4215 = vld [vmem:[%s4214] sm:$0xf]
    %v4216 = vld [vmem:[%s4214 + $0x4] sm:$0xf]
    %v4217 = vld [vmem:[%s4214 + $0x8] sm:$0xf]
    %v4218 = vld [vmem:[%s4214 + $0xc] sm:$0xf]
    %v4219 = vld [vmem:[%s4214 + $0x10] sm:$0xf]
    %v4220 = vld [vmem:[%s4214 + $0x14] sm:$0xf]
    %v4221 = vld [vmem:[%s4214 + $0x18] sm:$0xf]
    %v4222 = vld [vmem:[%s4214 + $0x1c] sm:$0xf]
    %v4231 = vunpack.c.l.b16 %v4215
    %v4232 = vunpack.c.l.b16 %v4216
    %v4233 = vunpack.c.l.b16 %v4217
    %v4234 = vunpack.c.l.b16 %v4218
    %v4235 = vunpack.c.l.b16 %v4219
    %v4236 = vunpack.c.l.b16 %v4220
    %v4237 = vunpack.c.l.b16 %v4221
    %v4238 = vunpack.c.l.b16 %v4222
    %v4239 = vpack.c.b16 %v4232, %v4231
    %v4240 = vpack.c.b16 %v4234, %v4233
    %v4241 = vpack.c.b16 %v4236, %v4235
    %v4242 = vpack.c.b16 %v4238, %v4237
    %v4248 = vsel %vm415, %v4212, 0
    %v4251 = vsel %vm415, %v4213, 0
    %4253 = vmatprep.subr.bf16.mxu0 0
    %4254 = vmatpush1.bf16.msra.mxu0 %v4239
    %4255 = vmatprep.subr.bf16.mxu0 0
    %4256 = vmatpush1.bf16.msra.mxu0 %v4240
    %4257 = vmatprep.subr.bf16.mxu0 0
    %4258 = vmatpush1.bf16.msra.mxu0 %v4241
    %4259 = vmatprep.subr.bf16.mxu0 0
    %4260 = vmatpush1.bf16.msra.mxu0 %v4242
    %4261 = vmatprep.subr.bf16.mxu0 0
    %4262 = vmatpush1.bf16.msra.mxu0 0
    %4263 = vmatprep.subr.bf16.mxu0 0
    %4264 = vmatpush1.bf16.msra.mxu0 0
    %4265 = vmatprep.subr.bf16.mxu0 0
    %4266 = vmatpush1.bf16.msra.mxu0 0
    %4267 = vmatprep.subr.bf16.mxu0 0
    %4268 = vmatpush1.bf16.msra.mxu0 0
    %4269 = vmatprep.subr.bf16.mxu0 0
    %4270 = vmatpush1.bf16.msra.mxu0 0
    %4271 = vmatprep.subr.bf16.mxu0 0
    %4272 = vmatpush1.bf16.msra.mxu0 0
    %4273 = vmatprep.subr.bf16.mxu0 0
    %4274 = vmatpush1.bf16.msra.mxu0 0
    %4275 = vmatprep.subr.bf16.mxu0 0
    %4276 = vmatpush1.bf16.msra.mxu0 0
    %4277 = vmatprep.subr.bf16.mxu0 0
    %4278 = vmatpush1.bf16.msra.mxu0 0
    %4279 = vmatprep.subr.bf16.mxu0 0
    %4280 = vmatpush1.bf16.msra.mxu0 0
    %4281 = vmatprep.subr.bf16.mxu0 0
    %4282 = vmatpush1.bf16.msra.mxu0 0
    %4283 = vmatprep.subr.bf16.mxu0 0
    %4284 = vmatpush1.bf16.msra.mxu0 0
    %4285 = vmatprep.mubr.bf16.mxu0 0
    %4286 = vmatmul.mubr.bf16.gmra.mrb[0].mxu0 %v4248
    %v4287 = vpop.f32.mrb[0].mxu0
    %v4288 = vadd.f32 0.0, %v4287
    %v4289 = vpop.f32.mrb[0].mxu0
    %v4290 = vpop.f32.mrb[0].mxu0
    %v4291 = vadd.f32 0.0, %v4290
    %v4292 = vpop.f32.mrb[0].mxu0
    %4293 = vmatprep.mubr.bf16.mxu0 0
    %4294 = vmatmul.mubr.bf16.gmra.mrb[0].mxu0 %v4251
    %v4295 = vpop.f32.mrb[0].mxu0
    %v4296 = vadd.f32 0.0, %v4295
    %v4297 = vpop.f32.mrb[0].mxu0
    %v4298 = vpop.f32.mrb[0].mxu0
    %v4299 = vadd.f32 0.0, %v4298
    %v4300 = vpop.f32.mrb[0].mxu0
    %4301 = vdwg.mxu0
    %v4302 = vadd.f32 %v4128, %v4288
    %v4303 = vadd.f32 %v4131, %v4291
    %v4304 = vadd.f32 %v4136, %v4296
    %v4305 = vadd.f32 %v4139, %v4299
    %s4306 = scalar_lea.vmem [#allocation22], 48
    %v4307 = vld [vmem:[%s4306] sm:$0xf]
    %v4308 = vld [vmem:[%s4306 + $0x4] sm:$0xf]
    %v4309 = vld [vmem:[%s4306 + $0x8] sm:$0xf]
    %v4310 = vld [vmem:[%s4306 + $0xc] sm:$0xf]
    %v4315 = vunpack.c.l.b16 %v4307
    %v4316 = vunpack.c.l.b16 %v4308
    %v4317 = vunpack.c.l.b16 %v4309
    %v4318 = vunpack.c.l.b16 %v4310
    %v4319 = vpack.c.b16 %v4316, %v4315
    %v4320 = vpack.c.b16 %v4318, %v4317
    %v4322 = vsel %vm1851, %v4319, 0
    %v4325 = vsel %vm1851, %v4320, 0
    %4327 = vmatprep.subr.bf16.mxu0 0
    %4328 = vmatpush1.bf16.msra.mxu0 %v3823
    %4329 = vmatprep.subr.bf16.mxu0 0
    %4330 = vmatpush1.bf16.msra.mxu0 0
    %4331 = vmatprep.subr.bf16.mxu0 0
    %4332 = vmatpush1.bf16.msra.mxu0 0
    %4333 = vmatprep.subr.bf16.mxu0 0
    %4334 = vmatpush1.bf16.msra.mxu0 0
    %4335 = vmatprep.subr.bf16.mxu0 0
    %4336 = vmatpush1.bf16.msra.mxu0 0
    %4337 = vmatprep.subr.bf16.mxu0 0
    %4338 = vmatpush1.bf16.msra.mxu0 0
    %4339 = vmatprep.subr.bf16.mxu0 0
    %4340 = vmatpush1.bf16.msra.mxu0 0
    %4341 = vmatprep.subr.bf16.mxu0 0
    %4342 = vmatpush1.bf16.msra.mxu0 0
    %4343 = vmatprep.subr.bf16.mxu0 0
    %4344 = vmatpush1.bf16.msra.mxu0 0
    %4345 = vmatprep.subr.bf16.mxu0 0
    %4346 = vmatpush1.bf16.msra.mxu0 0
    %4347 = vmatprep.subr.bf16.mxu0 0
    %4348 = vmatpush1.bf16.msra.mxu0 0
    %4349 = vmatprep.subr.bf16.mxu0 0
    %4350 = vmatpush1.bf16.msra.mxu0 0
    %4351 = vmatprep.subr.bf16.mxu0 0
    %4352 = vmatpush1.bf16.msra.mxu0 0
    %4353 = vmatprep.subr.bf16.mxu0 0
    %4354 = vmatpush1.bf16.msra.mxu0 0
    %4355 = vmatprep.subr.bf16.mxu0 0
    %4356 = vmatpush1.bf16.msra.mxu0 0
    %4357 = vmatprep.subr.bf16.mxu0 0
    %4358 = vmatpush1.bf16.msra.mxu0 0
    %4359 = vmatprep.mubr.bf16.mxu0 0
    %4360 = vmatmul.mubr.bf16.gmra.mrb[0].mxu0 %v4322
    %v4361 = vpop.f32.mrb[0].mxu0
    %v4362 = vadd.f32 0.0, %v4361
    %v4363 = vpop.f32.mrb[0].mxu0
    %v4364 = vpop.f32.mrb[0].mxu0
    %v4365 = vadd.f32 0.0, %v4364
    %v4366 = vpop.f32.mrb[0].mxu0
    %4367 = vmatprep.mubr.bf16.mxu0 0
    %4368 = vmatmul.mubr.bf16.gmra.mrb[0].mxu0 %v4325
    %v4369 = vpop.f32.mrb[0].mxu0
    %v4370 = vadd.f32 0.0, %v4369
    %v4371 = vpop.f32.mrb[0].mxu0
    %v4372 = vpop.f32.mrb[0].mxu0
    %v4373 = vadd.f32 0.0, %v4372
    %v4374 = vpop.f32.mrb[0].mxu0
    %4375 = vdwg.mxu0
    %v4376 = vpack.c.bf16 %v4365, %v4362
    %v4377 = vpack.c.bf16 %v4373, %v4370
    %s4378 = scalar_lea.vmem %s45, 96
    %v4379 = vld [vmem:[%s4378] sm:$0xf]
    %v4380 = vld [vmem:[%s4378 + $0x4] sm:$0xf]
    %v4381 = vld [vmem:[%s4378 + $0x8] sm:$0xf]
    %v4382 = vld [vmem:[%s4378 + $0xc] sm:$0xf]
    %v4383 = vld [vmem:[%s4378 + $0x10] sm:$0xf]
    %v4384 = vld [vmem:[%s4378 + $0x14] sm:$0xf]
    %v4385 = vld [vmem:[%s4378 + $0x18] sm:$0xf]
    %v4386 = vld [vmem:[%s4378 + $0x1c] sm:$0xf]
    %v4395 = vunpack.c.l.b16 %v4379
    %v4396 = vunpack.c.l.b16 %v4380
    %v4397 = vunpack.c.l.b16 %v4381
    %v4398 = vunpack.c.l.b16 %v4382
    %v4399 = vunpack.c.l.b16 %v4383
    %v4400 = vunpack.c.l.b16 %v4384
    %v4401 = vunpack.c.l.b16 %v4385
    %v4402 = vunpack.c.l.b16 %v4386
    %v4403 = vpack.c.b16 %v4396, %v4395
    %v4404 = vpack.c.b16 %v4398, %v4397
    %v4405 = vpack.c.b16 %v4400, %v4399
    %v4406 = vpack.c.b16 %v4402, %v4401
    %v4412 = vsel %vm415, %v4376, 0
    %v4415 = vsel %vm415, %v4377, 0
    %4417 = vmatprep.subr.bf16.mxu0 0
    %4418 = vmatpush1.bf16.msra.mxu0 %v4403
    %4419 = vmatprep.subr.bf16.mxu0 0
    %4420 = vmatpush1.bf16.msra.mxu0 %v4404
    %4421 = vmatprep.subr.bf16.mxu0 0
    %4422 = vmatpush1.bf16.msra.mxu0 %v4405
    %4423 = vmatprep.subr.bf16.mxu0 0
    %4424 = vmatpush1.bf16.msra.mxu0 %v4406
    %4425 = vmatprep.subr.bf16.mxu0 0
    %4426 = vmatpush1.bf16.msra.mxu0 0
    %4427 = vmatprep.subr.bf16.mxu0 0
    %4428 = vmatpush1.bf16.msra.mxu0 0
    %4429 = vmatprep.subr.bf16.mxu0 0
    %4430 = vmatpush1.bf16.msra.mxu0 0
    %4431 = vmatprep.subr.bf16.mxu0 0
    %4432 = vmatpush1.bf16.msra.mxu0 0
    %4433 = vmatprep.subr.bf16.mxu0 0
    %4434 = vmatpush1.bf16.msra.mxu0 0
    %4435 = vmatprep.subr.bf16.mxu0 0
    %4436 = vmatpush1.bf16.msra.mxu0 0
    %4437 = vmatprep.subr.bf16.mxu0 0
    %4438 = vmatpush1.bf16.msra.mxu0 0
    %4439 = vmatprep.subr.bf16.mxu0 0
    %4440 = vmatpush1.bf16.msra.mxu0 0
    %4441 = vmatprep.subr.bf16.mxu0 0
    %4442 = vmatpush1.bf16.msra.mxu0 0
    %4443 = vmatprep.subr.bf16.mxu0 0
    %4444 = vmatpush1.bf16.msra.mxu0 0
    %4445 = vmatprep.subr.bf16.mxu0 0
    %4446 = vmatpush1.bf16.msra.mxu0 0
    %4447 = vmatprep.subr.bf16.mxu0 0
    %4448 = vmatpush1.bf16.msra.mxu0 0
    %4449 = vmatprep.mubr.bf16.mxu0 0
    %4450 = vmatmul.mubr.bf16.gmra.mrb[0].mxu0 %v4412
    %v4451 = vpop.f32.mrb[0].mxu0
    %v4452 = vadd.f32 0.0, %v4451
    %v4453 = vpop.f32.mrb[0].mxu0
    %v4454 = vpop.f32.mrb[0].mxu0
    %v4455 = vadd.f32 0.0, %v4454
    %v4456 = vpop.f32.mrb[0].mxu0
    %4457 = vmatprep.mubr.bf16.mxu0 0
    %4458 = vmatmul.mubr.bf16.gmra.mrb[0].mxu0 %v4415
    %v4459 = vpop.f32.mrb[0].mxu0
    %v4460 = vadd.f32 0.0, %v4459
    %v4461 = vpop.f32.mrb[0].mxu0
    %v4462 = vpop.f32.mrb[0].mxu0
    %v4463 = vadd.f32 0.0, %v4462
    %v4464 = vpop.f32.mrb[0].mxu0
    %4465 = vdwg.mxu0
    %v4466 = vadd.f32 %v4302, %v4452
    %v4467 = vadd.f32 %v4303, %v4455
    %v4468 = vadd.f32 %v4304, %v4460
    %v4469 = vadd.f32 %v4305, %v4463
    %v4470 = vld [vmem:[#allocation24] sm:$0x1]
    %v4472 = vlaneseq
    %v4473 = vshrl.u32 %v4472, 7
    %v4474 = vsub.s32 0, %v4473
    %v4475 = vrot.slane %v4470, %v4474
    %v4477 = vadd.f32 %v4466, %v4475
    %v4478 = vadd.f32 %v4467, %v4475
    %v4479 = vadd.f32 %v4468, %v4475
    %v4480 = vadd.f32 %v4469, %v4475
    %vm4481 = vcmp.gt.f32.partialorder %v4477, 0.0
    %vm4482 = vcmp.gt.f32.partialorder %v4478, 0.0
    %vm4483 = vcmp.gt.f32.partialorder %v4479, 0.0
    %vm4484 = vcmp.gt.f32.partialorder %v4480, 0.0
    %v4485 = vmin.f32 %v4477, 0.0
    %v4486 = vmin.f32 %v4478, 0.0
    %v4487 = vmin.f32 %v4479, 0.0
    %v4488 = vmin.f32 %v4480, 0.0
    %v4489 = vmul.f32 %v4485, 1.442695
    %v4490 = vpow.pop %v4489
    %v4491 = vmul.f32 %v4486, 1.442695
    %v4492 = vpow.pop %v4491
    %v4493 = vmul.f32 %v4487, 1.442695
    %v4494 = vpow.pop %v4493
    %v4495 = vmul.f32 %v4488, 1.442695
    %v4496 = vpow.pop %v4495
    %v4497 = vsub.f32 %v4490, 1.0
    %v4498 = vsub.f32 %v4492, 1.0
    %v4499 = vsub.f32 %v4494, 1.0
    %v4500 = vsub.f32 %v4496, 1.0
    %v4501 = vsel %vm4481, %v4477, %v4497
    %v4502 = vsel %vm4482, %v4478, %v4498
    %v4503 = vsel %vm4483, %v4479, %v4499
    %v4504 = vsel %vm4484, %v4480, %v4500
    %v4505 = vadd.f32 %v4501, %v1183
    %v4506 = vadd.f32 %v4502, %v1184
    %v4507 = vadd.f32 %v4503, %v1185
    %v4508 = vadd.f32 %v4504, %v1186
    %v4509 = vpack.c.bf16 %v4506, %v4505
    %v4510 = vpack.c.bf16 %v4508, %v4507
    %v4511 = vld [vmem:[#allocation25] sm:$0xf]
    %v4512 = vld [vmem:[#allocation25 + $0x4] sm:$0xf]
    %v4513 = vld [vmem:[#allocation25 + $0x8] sm:$0xf]
    %v4514 = vld [vmem:[#allocation25 + $0xc] sm:$0xf]
    %v4515 = vld [vmem:[#allocation25 + $0x10] sm:$0xf]
    %v4516 = vld [vmem:[#allocation25 + $0x14] sm:$0xf]
    %v4517 = vld [vmem:[#allocation25 + $0x18] sm:$0xf]
    %v4518 = vld [vmem:[#allocation25 + $0x1c] sm:$0xf]
    %v4527 = vunpack.c.l.b16 %v4511
    %v4528 = vunpack.c.l.b16 %v4512
    %v4529 = vunpack.c.l.b16 %v4513
    %v4530 = vunpack.c.l.b16 %v4514
    %v4531 = vunpack.c.l.b16 %v4515
    %v4532 = vunpack.c.l.b16 %v4516
    %v4533 = vunpack.c.l.b16 %v4517
    %v4534 = vunpack.c.l.b16 %v4518
    %v4535 = vpack.c.b16 %v4528, %v4527
    %v4536 = vpack.c.b16 %v4530, %v4529
    %v4537 = vpack.c.b16 %v4532, %v4531
    %v4538 = vpack.c.b16 %v4534, %v4533
    %v4540 = vsel %vm1196, %v4535, 0
    %v4543 = vsel %vm1196, %v4536, 0
    %v4546 = vsel %vm1196, %v4537, 0
    %v4549 = vsel %vm1196, %v4538, 0
    %4551 = vmatprep.subr.bf16.mxu0 0
    %4552 = vmatpush1.bf16.msra.mxu0 %v4509
    %4553 = vmatprep.subr.bf16.mxu0 0
    %4554 = vmatpush1.bf16.msra.mxu0 %v4510
    %4555 = vmatprep.subr.bf16.mxu0 0
    %4556 = vmatpush1.bf16.msra.mxu0 0
    %4557 = vmatprep.subr.bf16.mxu0 0
    %4558 = vmatpush1.bf16.msra.mxu0 0
    %4559 = vmatprep.subr.bf16.mxu0 0
    %4560 = vmatpush1.bf16.msra.mxu0 0
    %4561 = vmatprep.subr.bf16.mxu0 0
    %4562 = vmatpush1.bf16.msra.mxu0 0
    %4563 = vmatprep.subr.bf16.mxu0 0
    %4564 = vmatpush1.bf16.msra.mxu0 0
    %4565 = vmatprep.subr.bf16.mxu0 0
    %4566 = vmatpush1.bf16.msra.mxu0 0
    %4567 = vmatprep.subr.bf16.mxu0 0
    %4568 = vmatpush1.bf16.msra.mxu0 0
    %4569 = vmatprep.subr.bf16.mxu0 0
    %4570 = vmatpush1.bf16.msra.mxu0 0
    %4571 = vmatprep.subr.bf16.mxu0 0
    %4572 = vmatpush1.bf16.msra.mxu0 0
    %4573 = vmatprep.subr.bf16.mxu0 0
    %4574 = vmatpush1.bf16.msra.mxu0 0
    %4575 = vmatprep.subr.bf16.mxu0 0
    %4576 = vmatpush1.bf16.msra.mxu0 0
    %4577 = vmatprep.subr.bf16.mxu0 0
    %4578 = vmatpush1.bf16.msra.mxu0 0
    %4579 = vmatprep.subr.bf16.mxu0 0
    %4580 = vmatpush1.bf16.msra.mxu0 0
    %4581 = vmatprep.subr.bf16.mxu0 0
    %4582 = vmatpush1.bf16.msra.mxu0 0
    %4583 = vmatprep.mubr.bf16.mxu0 0
    %4584 = vmatmul.mubr.bf16.gmra.mrb[0].mxu0 %v4540
    %v4585 = vpop.f32.mrb[0].mxu0
    %v4586 = vadd.f32 0.0, %v4585
    %v4587 = vpop.f32.mrb[0].mxu0
    %v4588 = vpop.f32.mrb[0].mxu0
    %v4589 = vadd.f32 0.0, %v4588
    %v4590 = vpop.f32.mrb[0].mxu0
    %4591 = vmatprep.mubr.bf16.mxu0 0
    %4592 = vmatmul.mubr.bf16.gmra.mrb[0].mxu0 %v4543
    %v4593 = vpop.f32.mrb[0].mxu0
    %v4594 = vadd.f32 0.0, %v4593
    %v4595 = vpop.f32.mrb[0].mxu0
    %v4596 = vpop.f32.mrb[0].mxu0
    %v4597 = vadd.f32 0.0, %v4596
    %v4598 = vpop.f32.mrb[0].mxu0
    %4599 = vmatprep.mubr.bf16.mxu0 0
    %4600 = vmatmul.mubr.bf16.gmra.mrb[0].mxu0 %v4546
    %v4601 = vpop.f32.mrb[0].mxu0
    %v4602 = vadd.f32 0.0, %v4601
    %v4603 = vpop.f32.mrb[0].mxu0
    %v4604 = vpop.f32.mrb[0].mxu0
    %v4605 = vadd.f32 0.0, %v4604
    %v4606 = vpop.f32.mrb[0].mxu0
    %4607 = vmatprep.mubr.bf16.mxu0 0
    %4608 = vmatmul.mubr.bf16.gmra.mrb[0].mxu0 %v4549
    %v4609 = vpop.f32.mrb[0].mxu0
    %v4610 = vadd.f32 0.0, %v4609
    %v4611 = vpop.f32.mrb[0].mxu0
    %v4612 = vpop.f32.mrb[0].mxu0
    %v4613 = vadd.f32 0.0, %v4612
    %v4614 = vpop.f32.mrb[0].mxu0
    %4615 = vdwg.mxu0
    %v4616 = vpack.c.bf16 %v4589, %v4586
    %v4617 = vpack.c.bf16 %v4597, %v4594
    %v4618 = vpack.c.bf16 %v4605, %v4602
    %v4619 = vpack.c.bf16 %v4613, %v4610
    %v4620 = vld [vmem:[%s51] sm:$0xf]
    %v4621 = vld [vmem:[%s51 + $0x4] sm:$0xf]
    %v4622 = vld [vmem:[%s51 + $0x8] sm:$0xf]
    %v4623 = vld [vmem:[%s51 + $0xc] sm:$0xf]
    %v4624 = vld [vmem:[%s51 + $0x10] sm:$0xf]
    %v4625 = vld [vmem:[%s51 + $0x14] sm:$0xf]
    %v4626 = vld [vmem:[%s51 + $0x18] sm:$0xf]
    %v4627 = vld [vmem:[%s51 + $0x1c] sm:$0xf]
    %v4628 = vld [vmem:[%s51 + $0x20] sm:$0xf]
    %v4629 = vld [vmem:[%s51 + $0x24] sm:$0xf]
    %v4630 = vld [vmem:[%s51 + $0x28] sm:$0xf]
    %v4631 = vld [vmem:[%s51 + $0x2c] sm:$0xf]
    %v4632 = vld [vmem:[%s51 + $0x30] sm:$0xf]
    %v4633 = vld [vmem:[%s51 + $0x34] sm:$0xf]
    %v4634 = vld [vmem:[%s51 + $0x38] sm:$0xf]
    %v4635 = vld [vmem:[%s51 + $0x3c] sm:$0xf]
    %s4636 = scalar_lea.vmem [#allocation25], 32
    %v4637 = vld [vmem:[%s4636] sm:$0xf]
    %v4638 = vld [vmem:[%s4636 + $0x4] sm:$0xf]
    %v4639 = vld [vmem:[%s4636 + $0x8] sm:$0xf]
    %v4640 = vld [vmem:[%s4636 + $0xc] sm:$0xf]
    %v4641 = vld [vmem:[%s4636 + $0x10] sm:$0xf]
    %v4642 = vld [vmem:[%s4636 + $0x14] sm:$0xf]
    %v4643 = vld [vmem:[%s4636 + $0x18] sm:$0xf]
    %v4644 = vld [vmem:[%s4636 + $0x1c] sm:$0xf]
    %v4653 = vunpack.c.l.b16 %v4637
    %v4654 = vunpack.c.l.b16 %v4638
    %v4655 = vunpack.c.l.b16 %v4639
    %v4656 = vunpack.c.l.b16 %v4640
    %v4657 = vunpack.c.l.b16 %v4641
    %v4658 = vunpack.c.l.b16 %v4642
    %v4659 = vunpack.c.l.b16 %v4643
    %v4660 = vunpack.c.l.b16 %v4644
    %v4661 = vpack.c.b16 %v4654, %v4653
    %v4662 = vpack.c.b16 %v4656, %v4655
    %v4663 = vpack.c.b16 %v4658, %v4657
    %v4664 = vpack.c.b16 %v4660, %v4659
    %v4666 = vsel %vm1196, %v4661, 0
    %v4669 = vsel %vm1196, %v4662, 0
    %v4672 = vsel %vm1196, %v4663, 0
    %v4675 = vsel %vm1196, %v4664, 0
    %4677 = vmatprep.subr.bf16.mxu0 0
    %4678 = vmatpush1.bf16.msra.mxu0 %v4509
    %4679 = vmatprep.subr.bf16.mxu0 0
    %4680 = vmatpush1.bf16.msra.mxu0 %v4510
    %4681 = vmatprep.subr.bf16.mxu0 0
    %4682 = vmatpush1.bf16.msra.mxu0 0
    %4683 = vmatprep.subr.bf16.mxu0 0
    %4684 = vmatpush1.bf16.msra.mxu0 0
    %4685 = vmatprep.subr.bf16.mxu0 0
    %4686 = vmatpush1.bf16.msra.mxu0 0
    %4687 = vmatprep.subr.bf16.mxu0 0
    %4688 = vmatpush1.bf16.msra.mxu0 0
    %4689 = vmatprep.subr.bf16.mxu0 0
    %4690 = vmatpush1.bf16.msra.mxu0 0
    %4691 = vmatprep.subr.bf16.mxu0 0
    %4692 = vmatpush1.bf16.msra.mxu0 0
    %4693 = vmatprep.subr.bf16.mxu0 0
    %4694 = vmatpush1.bf16.msra.mxu0 0
    %4695 = vmatprep.subr.bf16.mxu0 0
    %4696 = vmatpush1.bf16.msra.mxu0 0
    %4697 = vmatprep.subr.bf16.mxu0 0
    %4698 = vmatpush1.bf16.msra.mxu0 0
    %4699 = vmatprep.subr.bf16.mxu0 0
    %4700 = vmatpush1.bf16.msra.mxu0 0
    %4701 = vmatprep.subr.bf16.mxu0 0
    %4702 = vmatpush1.bf16.msra.mxu0 0
    %4703 = vmatprep.subr.bf16.mxu0 0
    %4704 = vmatpush1.bf16.msra.mxu0 0
    %4705 = vmatprep.subr.bf16.mxu0 0
    %4706 = vmatpush1.bf16.msra.mxu0 0
    %4707 = vmatprep.subr.bf16.mxu0 0
    %4708 = vmatpush1.bf16.msra.mxu0 0
    %4709 = vmatprep.mubr.bf16.mxu0 0
    %4710 = vmatmul.mubr.bf16.gmra.mrb[0].mxu0 %v4666
    %v4711 = vpop.f32.mrb[0].mxu0
    %v4712 = vadd.f32 0.0, %v4711
    %v4713 = vpop.f32.mrb[0].mxu0
    %v4714 = vpop.f32.mrb[0].mxu0
    %v4715 = vadd.f32 0.0, %v4714
    %v4716 = vpop.f32.mrb[0].mxu0
    %4717 = vmatprep.mubr.bf16.mxu0 0
    %4718 = vmatmul.mubr.bf16.gmra.mrb[0].mxu0 %v4669
    %v4719 = vpop.f32.mrb[0].mxu0
    %v4720 = vadd.f32 0.0, %v4719
    %v4721 = vpop.f32.mrb[0].mxu0
    %v4722 = vpop.f32.mrb[0].mxu0
    %v4723 = vadd.f32 0.0, %v4722
    %v4724 = vpop.f32.mrb[0].mxu0
    %4725 = vmatprep.mubr.bf16.mxu0 0
    %4726 = vmatmul.mubr.bf16.gmra.mrb[0].mxu0 %v4672
    %v4727 = vpop.f32.mrb[0].mxu0
    %v4728 = vadd.f32 0.0, %v4727
    %v4729 = vpop.f32.mrb[0].mxu0
    %v4730 = vpop.f32.mrb[0].mxu0
    %v4731 = vadd.f32 0.0, %v4730
    %v4732 = vpop.f32.mrb[0].mxu0
    %4733 = vmatprep.mubr.bf16.mxu0 0
    %4734 = vmatmul.mubr.bf16.gmra.mrb[0].mxu0 %v4675
    %v4735 = vpop.f32.mrb[0].mxu0
    %v4736 = vadd.f32 0.0, %v4735
    %v4737 = vpop.f32.mrb[0].mxu0
    %v4738 = vpop.f32.mrb[0].mxu0
    %v4739 = vadd.f32 0.0, %v4738
    %v4740 = vpop.f32.mrb[0].mxu0
    %4741 = vdwg.mxu0
    %v4742 = vpack.c.bf16 %v4715, %v4712
    %v4743 = vpack.c.bf16 %v4723, %v4720
    %v4744 = vpack.c.bf16 %v4731, %v4728
    %v4745 = vpack.c.bf16 %v4739, %v4736
    %s4746 = scalar_lea.vmem %s51, 64
    %v4747 = vld [vmem:[%s4746] sm:$0xf]
    %v4748 = vld [vmem:[%s4746 + $0x4] sm:$0xf]
    %v4749 = vld [vmem:[%s4746 + $0x8] sm:$0xf]
    %v4750 = vld [vmem:[%s4746 + $0xc] sm:$0xf]
    %v4751 = vld [vmem:[%s4746 + $0x10] sm:$0xf]
    %v4752 = vld [vmem:[%s4746 + $0x14] sm:$0xf]
    %v4753 = vld [vmem:[%s4746 + $0x18] sm:$0xf]
    %v4754 = vld [vmem:[%s4746 + $0x1c] sm:$0xf]
    %v4755 = vld [vmem:[%s4746 + $0x20] sm:$0xf]
    %v4756 = vld [vmem:[%s4746 + $0x24] sm:$0xf]
    %v4757 = vld [vmem:[%s4746 + $0x28] sm:$0xf]
    %v4758 = vld [vmem:[%s4746 + $0x2c] sm:$0xf]
    %v4759 = vld [vmem:[%s4746 + $0x30] sm:$0xf]
    %v4760 = vld [vmem:[%s4746 + $0x34] sm:$0xf]
    %v4761 = vld [vmem:[%s4746 + $0x38] sm:$0xf]
    %v4762 = vld [vmem:[%s4746 + $0x3c] sm:$0xf]
    %v4779 = vunpack.c.l.b16 %v4747
    %v4780 = vunpack.c.l.b16 %v4748
    %v4781 = vunpack.c.l.b16 %v4749
    %v4782 = vunpack.c.l.b16 %v4750
    %v4783 = vunpack.c.l.b16 %v4751
    %v4784 = vunpack.c.l.b16 %v4752
    %v4785 = vunpack.c.l.b16 %v4753
    %v4786 = vunpack.c.l.b16 %v4754
    %v4787 = vunpack.c.l.b16 %v4755
    %v4788 = vunpack.c.l.b16 %v4756
    %v4789 = vunpack.c.l.b16 %v4757
    %v4790 = vunpack.c.l.b16 %v4758
    %v4791 = vunpack.c.l.b16 %v4759
    %v4792 = vunpack.c.l.b16 %v4760
    %v4793 = vunpack.c.l.b16 %v4761
    %v4794 = vunpack.c.l.b16 %v4762
    %v4795 = vpack.c.b16 %v4780, %v4779
    %v4796 = vpack.c.b16 %v4782, %v4781
    %v4797 = vpack.c.b16 %v4784, %v4783
    %v4798 = vpack.c.b16 %v4786, %v4785
    %v4799 = vpack.c.b16 %v4788, %v4787
    %v4800 = vpack.c.b16 %v4790, %v4789
    %v4801 = vpack.c.b16 %v4792, %v4791
    %v4802 = vpack.c.b16 %v4794, %v4793
    %4811 = vmatprep.subr.bf16.mxu0 0
    %4812 = vmatpush1.bf16.msra.mxu0 %v4795
    %4813 = vmatprep.subr.bf16.mxu0 0
    %4814 = vmatpush1.bf16.msra.mxu0 %v4796
    %4815 = vmatprep.subr.bf16.mxu0 0
    %4816 = vmatpush1.bf16.msra.mxu0 %v4797
    %4817 = vmatprep.subr.bf16.mxu0 0
    %4818 = vmatpush1.bf16.msra.mxu0 %v4798
    %4819 = vmatprep.subr.bf16.mxu0 0
    %4820 = vmatpush1.bf16.msra.mxu0 %v4799
    %4821 = vmatprep.subr.bf16.mxu0 0
    %4822 = vmatpush1.bf16.msra.mxu0 %v4800
    %4823 = vmatprep.subr.bf16.mxu0 0
    %4824 = vmatpush1.bf16.msra.mxu0 %v4801
    %4825 = vmatprep.subr.bf16.mxu0 0
    %4826 = vmatpush1.bf16.msra.mxu0 %v4802
    %4827 = vmatprep.subr.bf16.mxu0 0
    %4828 = vmatpush1.bf16.msra.mxu0 0
    %4829 = vmatprep.subr.bf16.mxu0 0
    %4830 = vmatpush1.bf16.msra.mxu0 0
    %4831 = vmatprep.subr.bf16.mxu0 0
    %4832 = vmatpush1.bf16.msra.mxu0 0
    %4833 = vmatprep.subr.bf16.mxu0 0
    %4834 = vmatpush1.bf16.msra.mxu0 0
    %4835 = vmatprep.subr.bf16.mxu0 0
    %4836 = vmatpush1.bf16.msra.mxu0 0
    %4837 = vmatprep.subr.bf16.mxu0 0
    %4838 = vmatpush1.bf16.msra.mxu0 0
    %4839 = vmatprep.subr.bf16.mxu0 0
    %4840 = vmatpush1.bf16.msra.mxu0 0
    %4841 = vmatprep.subr.bf16.mxu0 0
    %4842 = vmatpush1.bf16.msra.mxu0 0
    %4843 = vmatprep.mubr.bf16.mxu0 0
    %4844 = vmatmul.mubr.bf16.gmra.mrb[0].mxu0 %v4742
    %v4845 = vpop.f32.mrb[0].mxu0
    %v4846 = vadd.f32 0.0, %v4845
    %v4847 = vpop.f32.mrb[0].mxu0
    %v4848 = vpop.f32.mrb[0].mxu0
    %v4849 = vadd.f32 0.0, %v4848
    %v4850 = vpop.f32.mrb[0].mxu0
    %4851 = vmatprep.mubr.bf16.mxu0 0
    %4852 = vmatmul.mubr.bf16.gmra.mrb[0].mxu0 %v4743
    %v4853 = vpop.f32.mrb[0].mxu0
    %v4854 = vadd.f32 0.0, %v4853
    %v4855 = vpop.f32.mrb[0].mxu0
    %v4856 = vpop.f32.mrb[0].mxu0
    %v4857 = vadd.f32 0.0, %v4856
    %v4858 = vpop.f32.mrb[0].mxu0
    %4859 = vmatprep.mubr.bf16.mxu0 0
    %4860 = vmatmul.mubr.bf16.gmra.mrb[0].mxu0 %v4744
    %v4861 = vpop.f32.mrb[0].mxu0
    %v4862 = vadd.f32 0.0, %v4861
    %v4863 = vpop.f32.mrb[0].mxu0
    %v4864 = vpop.f32.mrb[0].mxu0
    %v4865 = vadd.f32 0.0, %v4864
    %v4866 = vpop.f32.mrb[0].mxu0
    %4867 = vmatprep.mubr.bf16.mxu0 0
    %4868 = vmatmul.mubr.bf16.gmra.mrb[0].mxu0 %v4745
    %v4869 = vpop.f32.mrb[0].mxu0
    %v4870 = vadd.f32 0.0, %v4869
    %v4871 = vpop.f32.mrb[0].mxu0
    %v4872 = vpop.f32.mrb[0].mxu0
    %v4873 = vadd.f32 0.0, %v4872
    %v4874 = vpop.f32.mrb[0].mxu0
    %4875 = vdwg.mxu0
    %v4892 = vunpack.c.l.b16 %v4620
    %v4893 = vunpack.c.l.b16 %v4621
    %v4894 = vunpack.c.l.b16 %v4622
    %v4895 = vunpack.c.l.b16 %v4623
    %v4896 = vunpack.c.l.b16 %v4624
    %v4897 = vunpack.c.l.b16 %v4625
    %v4898 = vunpack.c.l.b16 %v4626
    %v4899 = vunpack.c.l.b16 %v4627
    %v4900 = vunpack.c.l.b16 %v4628
    %v4901 = vunpack.c.l.b16 %v4629
    %v4902 = vunpack.c.l.b16 %v4630
    %v4903 = vunpack.c.l.b16 %v4631
    %v4904 = vunpack.c.l.b16 %v4632
    %v4905 = vunpack.c.l.b16 %v4633
    %v4906 = vunpack.c.l.b16 %v4634
    %v4907 = vunpack.c.l.b16 %v4635
    %v4908 = vpack.c.b16 %v4893, %v4892
    %v4909 = vpack.c.b16 %v4895, %v4894
    %v4910 = vpack.c.b16 %v4897, %v4896
    %v4911 = vpack.c.b16 %v4899, %v4898
    %v4912 = vpack.c.b16 %v4901, %v4900
    %v4913 = vpack.c.b16 %v4903, %v4902
    %v4914 = vpack.c.b16 %v4905, %v4904
    %v4915 = vpack.c.b16 %v4907, %v4906
    %4924 = vmatprep.subr.bf16.mxu0 0
    %4925 = vmatpush1.bf16.msra.mxu0 %v4908
    %4926 = vmatprep.subr.bf16.mxu0 0
    %4927 = vmatpush1.bf16.msra.mxu0 %v4909
    %4928 = vmatprep.subr.bf16.mxu0 0
    %4929 = vmatpush1.bf16.msra.mxu0 %v4910
    %4930 = vmatprep.subr.bf16.mxu0 0
    %4931 = vmatpush1.bf16.msra.mxu0 %v4911
    %4932 = vmatprep.subr.bf16.mxu0 0
    %4933 = vmatpush1.bf16.msra.mxu0 %v4912
    %4934 = vmatprep.subr.bf16.mxu0 0
    %4935 = vmatpush1.bf16.msra.mxu0 %v4913
    %4936 = vmatprep.subr.bf16.mxu0 0
    %4937 = vmatpush1.bf16.msra.mxu0 %v4914
    %4938 = vmatprep.subr.bf16.mxu0 0
    %4939 = vmatpush1.bf16.msra.mxu0 %v4915
    %4940 = vmatprep.subr.bf16.mxu0 0
    %4941 = vmatpush1.bf16.msra.mxu0 0
    %4942 = vmatprep.subr.bf16.mxu0 0
    %4943 = vmatpush1.bf16.msra.mxu0 0
    %4944 = vmatprep.subr.bf16.mxu0 0
    %4945 = vmatpush1.bf16.msra.mxu0 0
    %4946 = vmatprep.subr.bf16.mxu0 0
    %4947 = vmatpush1.bf16.msra.mxu0 0
    %4948 = vmatprep.subr.bf16.mxu0 0
    %4949 = vmatpush1.bf16.msra.mxu0 0
    %4950 = vmatprep.subr.bf16.mxu0 0
    %4951 = vmatpush1.bf16.msra.mxu0 0
    %4952 = vmatprep.subr.bf16.mxu0 0
    %4953 = vmatpush1.bf16.msra.mxu0 0
    %4954 = vmatprep.subr.bf16.mxu0 0
    %4955 = vmatpush1.bf16.msra.mxu0 0
    %4956 = vmatprep.mubr.bf16.mxu0 0
    %4957 = vmatmul.mubr.bf16.gmra.mrb[0].mxu0 %v4616
    %v4958 = vpop.f32.mrb[0].mxu0
    %v4959 = vadd.f32 %v4846, %v4958
    %v4960 = vpop.f32.mrb[0].mxu0
    %v4961 = vpop.f32.mrb[0].mxu0
    %v4962 = vadd.f32 %v4849, %v4961
    %v4963 = vpop.f32.mrb[0].mxu0
    %4964 = vmatprep.mubr.bf16.mxu0 0
    %4965 = vmatmul.mubr.bf16.gmra.mrb[0].mxu0 %v4617
    %v4966 = vpop.f32.mrb[0].mxu0
    %v4967 = vadd.f32 %v4854, %v4966
    %v4968 = vpop.f32.mrb[0].mxu0
    %v4969 = vpop.f32.mrb[0].mxu0
    %v4970 = vadd.f32 %v4857, %v4969
    %v4971 = vpop.f32.mrb[0].mxu0
    %4972 = vmatprep.mubr.bf16.mxu0 0
    %4973 = vmatmul.mubr.bf16.gmra.mrb[0].mxu0 %v4618
    %v4974 = vpop.f32.mrb[0].mxu0
    %v4975 = vadd.f32 %v4862, %v4974
    %v4976 = vpop.f32.mrb[0].mxu0
    %v4977 = vpop.f32.mrb[0].mxu0
    %v4978 = vadd.f32 %v4865, %v4977
    %v4979 = vpop.f32.mrb[0].mxu0
    %4980 = vmatprep.mubr.bf16.mxu0 0
    %4981 = vmatmul.mubr.bf16.gmra.mrb[0].mxu0 %v4619
    %v4982 = vpop.f32.mrb[0].mxu0
    %v4983 = vadd.f32 %v4870, %v4982
    %v4984 = vpop.f32.mrb[0].mxu0
    %v4985 = vpop.f32.mrb[0].mxu0
    %v4986 = vadd.f32 %v4873, %v4985
    %v4987 = vpop.f32.mrb[0].mxu0
    %4988 = vdwg.mxu0
    %s4989 = scalar_lea.vmem [#allocation25], 64
    %v4990 = vld [vmem:[%s4989] sm:$0xf]
    %v4991 = vld [vmem:[%s4989 + $0x4] sm:$0xf]
    %v4992 = vld [vmem:[%s4989 + $0x8] sm:$0xf]
    %v4993 = vld [vmem:[%s4989 + $0xc] sm:$0xf]
    %v4994 = vld [vmem:[%s4989 + $0x10] sm:$0xf]
    %v4995 = vld [vmem:[%s4989 + $0x14] sm:$0xf]
    %v4996 = vld [vmem:[%s4989 + $0x18] sm:$0xf]
    %v4997 = vld [vmem:[%s4989 + $0x1c] sm:$0xf]
    %v5006 = vunpack.c.l.b16 %v4990
    %v5007 = vunpack.c.l.b16 %v4991
    %v5008 = vunpack.c.l.b16 %v4992
    %v5009 = vunpack.c.l.b16 %v4993
    %v5010 = vunpack.c.l.b16 %v4994
    %v5011 = vunpack.c.l.b16 %v4995
    %v5012 = vunpack.c.l.b16 %v4996
    %v5013 = vunpack.c.l.b16 %v4997
    %v5014 = vpack.c.b16 %v5007, %v5006
    %v5015 = vpack.c.b16 %v5009, %v5008
    %v5016 = vpack.c.b16 %v5011, %v5010
    %v5017 = vpack.c.b16 %v5013, %v5012
    %v5019 = vsel %vm1196, %v5014, 0
    %v5022 = vsel %vm1196, %v5015, 0
    %v5025 = vsel %vm1196, %v5016, 0
    %v5028 = vsel %vm1196, %v5017, 0
    %5030 = vmatprep.subr.bf16.mxu0 0
    %5031 = vmatpush1.bf16.msra.mxu0 %v4509
    %5032 = vmatprep.subr.bf16.mxu0 0
    %5033 = vmatpush1.bf16.msra.mxu0 %v4510
    %5034 = vmatprep.subr.bf16.mxu0 0
    %5035 = vmatpush1.bf16.msra.mxu0 0
    %5036 = vmatprep.subr.bf16.mxu0 0
    %5037 = vmatpush1.bf16.msra.mxu0 0
    %5038 = vmatprep.subr.bf16.mxu0 0
    %5039 = vmatpush1.bf16.msra.mxu0 0
    %5040 = vmatprep.subr.bf16.mxu0 0
    %5041 = vmatpush1.bf16.msra.mxu0 0
    %5042 = vmatprep.subr.bf16.mxu0 0
    %5043 = vmatpush1.bf16.msra.mxu0 0
    %5044 = vmatprep.subr.bf16.mxu0 0
    %5045 = vmatpush1.bf16.msra.mxu0 0
    %5046 = vmatprep.subr.bf16.mxu0 0
    %5047 = vmatpush1.bf16.msra.mxu0 0
    %5048 = vmatprep.subr.bf16.mxu0 0
    %5049 = vmatpush1.bf16.msra.mxu0 0
    %5050 = vmatprep.subr.bf16.mxu0 0
    %5051 = vmatpush1.bf16.msra.mxu0 0
    %5052 = vmatprep.subr.bf16.mxu0 0
    %5053 = vmatpush1.bf16.msra.mxu0 0
    %5054 = vmatprep.subr.bf16.mxu0 0
    %5055 = vmatpush1.bf16.msra.mxu0 0
    %5056 = vmatprep.subr.bf16.mxu0 0
    %5057 = vmatpush1.bf16.msra.mxu0 0
    %5058 = vmatprep.subr.bf16.mxu0 0
    %5059 = vmatpush1.bf16.msra.mxu0 0
    %5060 = vmatprep.subr.bf16.mxu0 0
    %5061 = vmatpush1.bf16.msra.mxu0 0
    %5062 = vmatprep.mubr.bf16.mxu0 0
    %5063 = vmatmul.mubr.bf16.gmra.mrb[0].mxu0 %v5019
    %v5064 = vpop.f32.mrb[0].mxu0
    %v5065 = vadd.f32 0.0, %v5064
    %v5066 = vpop.f32.mrb[0].mxu0
    %v5067 = vpop.f32.mrb[0].mxu0
    %v5068 = vadd.f32 0.0, %v5067
    %v5069 = vpop.f32.mrb[0].mxu0
    %5070 = vmatprep.mubr.bf16.mxu0 0
    %5071 = vmatmul.mubr.bf16.gmra.mrb[0].mxu0 %v5022
    %v5072 = vpop.f32.mrb[0].mxu0
    %v5073 = vadd.f32 0.0, %v5072
    %v5074 = vpop.f32.mrb[0].mxu0
    %v5075 = vpop.f32.mrb[0].mxu0
    %v5076 = vadd.f32 0.0, %v5075
    %v5077 = vpop.f32.mrb[0].mxu0
    %5078 = vmatprep.mubr.bf16.mxu0 0
    %5079 = vmatmul.mubr.bf16.gmra.mrb[0].mxu0 %v5025
    %v5080 = vpop.f32.mrb[0].mxu0
    %v5081 = vadd.f32 0.0, %v5080
    %v5082 = vpop.f32.mrb[0].mxu0
    %v5083 = vpop.f32.mrb[0].mxu0
    %v5084 = vadd.f32 0.0, %v5083
    %v5085 = vpop.f32.mrb[0].mxu0
    %5086 = vmatprep.mubr.bf16.mxu0 0
    %5087 = vmatmul.mubr.bf16.gmra.mrb[0].mxu0 %v5028
    %v5088 = vpop.f32.mrb[0].mxu0
    %v5089 = vadd.f32 0.0, %v5088
    %v5090 = vpop.f32.mrb[0].mxu0
    %v5091 = vpop.f32.mrb[0].mxu0
    %v5092 = vadd.f32 0.0, %v5091
    %v5093 = vpop.f32.mrb[0].mxu0
    %5094 = vdwg.mxu0
    %v5095 = vpack.c.bf16 %v5068, %v5065
    %v5096 = vpack.c.bf16 %v5076, %v5073
    %v5097 = vpack.c.bf16 %v5084, %v5081
    %v5098 = vpack.c.bf16 %v5092, %v5089
    %s5099 = scalar_lea.vmem %s51, 128
    %v5100 = vld [vmem:[%s5099] sm:$0xf]
    %v5101 = vld [vmem:[%s5099 + $0x4] sm:$0xf]
    %v5102 = vld [vmem:[%s5099 + $0x8] sm:$0xf]
    %v5103 = vld [vmem:[%s5099 + $0xc] sm:$0xf]
    %v5104 = vld [vmem:[%s5099 + $0x10] sm:$0xf]
    %v5105 = vld [vmem:[%s5099 + $0x14] sm:$0xf]
    %v5106 = vld [vmem:[%s5099 + $0x18] sm:$0xf]
    %v5107 = vld [vmem:[%s5099 + $0x1c] sm:$0xf]
    %v5108 = vld [vmem:[%s5099 + $0x20] sm:$0xf]
    %v5109 = vld [vmem:[%s5099 + $0x24] sm:$0xf]
    %v5110 = vld [vmem:[%s5099 + $0x28] sm:$0xf]
    %v5111 = vld [vmem:[%s5099 + $0x2c] sm:$0xf]
    %v5112 = vld [vmem:[%s5099 + $0x30] sm:$0xf]
    %v5113 = vld [vmem:[%s5099 + $0x34] sm:$0xf]
    %v5114 = vld [vmem:[%s5099 + $0x38] sm:$0xf]
    %v5115 = vld [vmem:[%s5099 + $0x3c] sm:$0xf]
    %v5132 = vunpack.c.l.b16 %v5100
    %v5133 = vunpack.c.l.b16 %v5101
    %v5134 = vunpack.c.l.b16 %v5102
    %v5135 = vunpack.c.l.b16 %v5103
    %v5136 = vunpack.c.l.b16 %v5104
    %v5137 = vunpack.c.l.b16 %v5105
    %v5138 = vunpack.c.l.b16 %v5106
    %v5139 = vunpack.c.l.b16 %v5107
    %v5140 = vunpack.c.l.b16 %v5108
    %v5141 = vunpack.c.l.b16 %v5109
    %v5142 = vunpack.c.l.b16 %v5110
    %v5143 = vunpack.c.l.b16 %v5111
    %v5144 = vunpack.c.l.b16 %v5112
    %v5145 = vunpack.c.l.b16 %v5113
    %v5146 = vunpack.c.l.b16 %v5114
    %v5147 = vunpack.c.l.b16 %v5115
    %v5148 = vpack.c.b16 %v5133, %v5132
    %v5149 = vpack.c.b16 %v5135, %v5134
    %v5150 = vpack.c.b16 %v5137, %v5136
    %v5151 = vpack.c.b16 %v5139, %v5138
    %v5152 = vpack.c.b16 %v5141, %v5140
    %v5153 = vpack.c.b16 %v5143, %v5142
    %v5154 = vpack.c.b16 %v5145, %v5144
    %v5155 = vpack.c.b16 %v5147, %v5146
    %5164 = vmatprep.subr.bf16.mxu0 0
    %5165 = vmatpush1.bf16.msra.mxu0 %v5148
    %5166 = vmatprep.subr.bf16.mxu0 0
    %5167 = vmatpush1.bf16.msra.mxu0 %v5149
    %5168 = vmatprep.subr.bf16.mxu0 0
    %5169 = vmatpush1.bf16.msra.mxu0 %v5150
    %5170 = vmatprep.subr.bf16.mxu0 0
    %5171 = vmatpush1.bf16.msra.mxu0 %v5151
    %5172 = vmatprep.subr.bf16.mxu0 0
    %5173 = vmatpush1.bf16.msra.mxu0 %v5152
    %5174 = vmatprep.subr.bf16.mxu0 0
    %5175 = vmatpush1.bf16.msra.mxu0 %v5153
    %5176 = vmatprep.subr.bf16.mxu0 0
    %5177 = vmatpush1.bf16.msra.mxu0 %v5154
    %5178 = vmatprep.subr.bf16.mxu0 0
    %5179 = vmatpush1.bf16.msra.mxu0 %v5155
    %5180 = vmatprep.subr.bf16.mxu0 0
    %5181 = vmatpush1.bf16.msra.mxu0 0
    %5182 = vmatprep.subr.bf16.mxu0 0
    %5183 = vmatpush1.bf16.msra.mxu0 0
    %5184 = vmatprep.subr.bf16.mxu0 0
    %5185 = vmatpush1.bf16.msra.mxu0 0
    %5186 = vmatprep.subr.bf16.mxu0 0
    %5187 = vmatpush1.bf16.msra.mxu0 0
    %5188 = vmatprep.subr.bf16.mxu0 0
    %5189 = vmatpush1.bf16.msra.mxu0 0
    %5190 = vmatprep.subr.bf16.mxu0 0
    %5191 = vmatpush1.bf16.msra.mxu0 0
    %5192 = vmatprep.subr.bf16.mxu0 0
    %5193 = vmatpush1.bf16.msra.mxu0 0
    %5194 = vmatprep.subr.bf16.mxu0 0
    %5195 = vmatpush1.bf16.msra.mxu0 0
    %5196 = vmatprep.mubr.bf16.mxu0 0
    %5197 = vmatmul.mubr.bf16.gmra.mrb[0].mxu0 %v5095
    %v5198 = vpop.f32.mrb[0].mxu0
    %v5199 = vadd.f32 0.0, %v5198
    %v5200 = vpop.f32.mrb[0].mxu0
    %v5201 = vpop.f32.mrb[0].mxu0
    %v5202 = vadd.f32 0.0, %v5201
    %v5203 = vpop.f32.mrb[0].mxu0
    %5204 = vmatprep.mubr.bf16.mxu0 0
    %5205 = vmatmul.mubr.bf16.gmra.mrb[0].mxu0 %v5096
    %v5206 = vpop.f32.mrb[0].mxu0
    %v5207 = vadd.f32 0.0, %v5206
    %v5208 = vpop.f32.mrb[0].mxu0
    %v5209 = vpop.f32.mrb[0].mxu0
    %v5210 = vadd.f32 0.0, %v5209
    %v5211 = vpop.f32.mrb[0].mxu0
    %5212 = vmatprep.mubr.bf16.mxu0 0
    %5213 = vmatmul.mubr.bf16.gmra.mrb[0].mxu0 %v5097
    %v5214 = vpop.f32.mrb[0].mxu0
    %v5215 = vadd.f32 0.0, %v5214
    %v5216 = vpop.f32.mrb[0].mxu0
    %v5217 = vpop.f32.mrb[0].mxu0
    %v5218 = vadd.f32 0.0, %v5217
    %v5219 = vpop.f32.mrb[0].mxu0
    %5220 = vmatprep.mubr.bf16.mxu0 0
    %5221 = vmatmul.mubr.bf16.gmra.mrb[0].mxu0 %v5098
    %v5222 = vpop.f32.mrb[0].mxu0
    %v5223 = vadd.f32 0.0, %v5222
    %v5224 = vpop.f32.mrb[0].mxu0
    %v5225 = vpop.f32.mrb[0].mxu0
    %v5226 = vadd.f32 0.0, %v5225
    %v5227 = vpop.f32.mrb[0].mxu0
    %5228 = vdwg.mxu0
    %v5229 = vadd.f32 %v4959, %v5199
    %v5230 = vadd.f32 %v4962, %v5202
    %v5231 = vadd.f32 %v4967, %v5207
    %v5232 = vadd.f32 %v4970, %v5210
    %v5233 = vadd.f32 %v4975, %v5215
    %v5234 = vadd.f32 %v4978, %v5218
    %v5235 = vadd.f32 %v4983, %v5223
    %v5236 = vadd.f32 %v4986, %v5226
    %s5237 = scalar_lea.vmem [#allocation25], 96
    %v5238 = vld [vmem:[%s5237] sm:$0xf]
    %v5239 = vld [vmem:[%s5237 + $0x4] sm:$0xf]
    %v5240 = vld [vmem:[%s5237 + $0x8] sm:$0xf]
    %v5241 = vld [vmem:[%s5237 + $0xc] sm:$0xf]
    %v5242 = vld [vmem:[%s5237 + $0x10] sm:$0xf]
    %v5243 = vld [vmem:[%s5237 + $0x14] sm:$0xf]
    %v5244 = vld [vmem:[%s5237 + $0x18] sm:$0xf]
    %v5245 = vld [vmem:[%s5237 + $0x1c] sm:$0xf]
    %v5254 = vunpack.c.l.b16 %v5238
    %v5255 = vunpack.c.l.b16 %v5239
    %v5256 = vunpack.c.l.b16 %v5240
    %v5257 = vunpack.c.l.b16 %v5241
    %v5258 = vunpack.c.l.b16 %v5242
    %v5259 = vunpack.c.l.b16 %v5243
    %v5260 = vunpack.c.l.b16 %v5244
    %v5261 = vunpack.c.l.b16 %v5245
    %v5262 = vpack.c.b16 %v5255, %v5254
    %v5263 = vpack.c.b16 %v5257, %v5256
    %v5264 = vpack.c.b16 %v5259, %v5258
    %v5265 = vpack.c.b16 %v5261, %v5260
    %v5267 = vsel %vm1196, %v5262, 0
    %v5270 = vsel %vm1196, %v5263, 0
    %v5273 = vsel %vm1196, %v5264, 0
    %v5276 = vsel %vm1196, %v5265, 0
    %5278 = vmatprep.subr.bf16.mxu0 0
    %5279 = vmatpush1.bf16.msra.mxu0 %v4509
    %5280 = vmatprep.subr.bf16.mxu0 0
    %5281 = vmatpush1.bf16.msra.mxu0 %v4510
    %5282 = vmatprep.subr.bf16.mxu0 0
    %5283 = vmatpush1.bf16.msra.mxu0 0
    %5284 = vmatprep.subr.bf16.mxu0 0
    %5285 = vmatpush1.bf16.msra.mxu0 0
    %5286 = vmatprep.subr.bf16.mxu0 0
    %5287 = vmatpush1.bf16.msra.mxu0 0
    %5288 = vmatprep.subr.bf16.mxu0 0
    %5289 = vmatpush1.bf16.msra.mxu0 0
    %5290 = vmatprep.subr.bf16.mxu0 0
    %5291 = vmatpush1.bf16.msra.mxu0 0
    %5292 = vmatprep.subr.bf16.mxu0 0
    %5293 = vmatpush1.bf16.msra.mxu0 0
    %5294 = vmatprep.subr.bf16.mxu0 0
    %5295 = vmatpush1.bf16.msra.mxu0 0
    %5296 = vmatprep.subr.bf16.mxu0 0
    %5297 = vmatpush1.bf16.msra.mxu0 0
    %5298 = vmatprep.subr.bf16.mxu0 0
    %5299 = vmatpush1.bf16.msra.mxu0 0
    %5300 = vmatprep.subr.bf16.mxu0 0
    %5301 = vmatpush1.bf16.msra.mxu0 0
    %5302 = vmatprep.subr.bf16.mxu0 0
    %5303 = vmatpush1.bf16.msra.mxu0 0
    %5304 = vmatprep.subr.bf16.mxu0 0
    %5305 = vmatpush1.bf16.msra.mxu0 0
    %5306 = vmatprep.subr.bf16.mxu0 0
    %5307 = vmatpush1.bf16.msra.mxu0 0
    %5308 = vmatprep.subr.bf16.mxu0 0
    %5309 = vmatpush1.bf16.msra.mxu0 0
    %5310 = vmatprep.mubr.bf16.mxu0 0
    %5311 = vmatmul.mubr.bf16.gmra.mrb[0].mxu0 %v5267
    %v5312 = vpop.f32.mrb[0].mxu0
    %v5313 = vadd.f32 0.0, %v5312
    %v5314 = vpop.f32.mrb[0].mxu0
    %v5315 = vpop.f32.mrb[0].mxu0
    %v5316 = vadd.f32 0.0, %v5315
    %v5317 = vpop.f32.mrb[0].mxu0
    %5318 = vmatprep.mubr.bf16.mxu0 0
    %5319 = vmatmul.mubr.bf16.gmra.mrb[0].mxu0 %v5270
    %v5320 = vpop.f32.mrb[0].mxu0
    %v5321 = vadd.f32 0.0, %v5320
    %v5322 = vpop.f32.mrb[0].mxu0
    %v5323 = vpop.f32.mrb[0].mxu0
    %v5324 = vadd.f32 0.0, %v5323
    %v5325 = vpop.f32.mrb[0].mxu0
    %5326 = vmatprep.mubr.bf16.mxu0 0
    %5327 = vmatmul.mubr.bf16.gmra.mrb[0].mxu0 %v5273
    %v5328 = vpop.f32.mrb[0].mxu0
    %v5329 = vadd.f32 0.0, %v5328
    %v5330 = vpop.f32.mrb[0].mxu0
    %v5331 = vpop.f32.mrb[0].mxu0
    %v5332 = vadd.f32 0.0, %v5331
    %v5333 = vpop.f32.mrb[0].mxu0
    %5334 = vmatprep.mubr.bf16.mxu0 0
    %5335 = vmatmul.mubr.bf16.gmra.mrb[0].mxu0 %v5276
    %v5336 = vpop.f32.mrb[0].mxu0
    %v5337 = vadd.f32 0.0, %v5336
    %v5338 = vpop.f32.mrb[0].mxu0
    %v5339 = vpop.f32.mrb[0].mxu0
    %v5340 = vadd.f32 0.0, %v5339
    %v5341 = vpop.f32.mrb[0].mxu0
    %5342 = vdwg.mxu0
    %v5343 = vpack.c.bf16 %v5316, %v5313
    %v5344 = vpack.c.bf16 %v5324, %v5321
    %v5345 = vpack.c.bf16 %v5332, %v5329
    %v5346 = vpack.c.bf16 %v5340, %v5337
    %s5347 = scalar_lea.vmem %s51, 192
    %v5348 = vld [vmem:[%s5347] sm:$0xf]
    %v5349 = vld [vmem:[%s5347 + $0x4] sm:$0xf]
    %v5350 = vld [vmem:[%s5347 + $0x8] sm:$0xf]
    %v5351 = vld [vmem:[%s5347 + $0xc] sm:$0xf]
    %v5352 = vld [vmem:[%s5347 + $0x10] sm:$0xf]
    %v5353 = vld [vmem:[%s5347 + $0x14] sm:$0xf]
    %v5354 = vld [vmem:[%s5347 + $0x18] sm:$0xf]
    %v5355 = vld [vmem:[%s5347 + $0x1c] sm:$0xf]
    %v5356 = vld [vmem:[%s5347 + $0x20] sm:$0xf]
    %v5357 = vld [vmem:[%s5347 + $0x24] sm:$0xf]
    %v5358 = vld [vmem:[%s5347 + $0x28] sm:$0xf]
    %v5359 = vld [vmem:[%s5347 + $0x2c] sm:$0xf]
    %v5360 = vld [vmem:[%s5347 + $0x30] sm:$0xf]
    %v5361 = vld [vmem:[%s5347 + $0x34] sm:$0xf]
    %v5362 = vld [vmem:[%s5347 + $0x38] sm:$0xf]
    %v5363 = vld [vmem:[%s5347 + $0x3c] sm:$0xf]
    %v5380 = vunpack.c.l.b16 %v5348
    %v5381 = vunpack.c.l.b16 %v5349
    %v5382 = vunpack.c.l.b16 %v5350
    %v5383 = vunpack.c.l.b16 %v5351
    %v5384 = vunpack.c.l.b16 %v5352
    %v5385 = vunpack.c.l.b16 %v5353
    %v5386 = vunpack.c.l.b16 %v5354
    %v5387 = vunpack.c.l.b16 %v5355
    %v5388 = vunpack.c.l.b16 %v5356
    %v5389 = vunpack.c.l.b16 %v5357
    %v5390 = vunpack.c.l.b16 %v5358
    %v5391 = vunpack.c.l.b16 %v5359
    %v5392 = vunpack.c.l.b16 %v5360
    %v5393 = vunpack.c.l.b16 %v5361
    %v5394 = vunpack.c.l.b16 %v5362
    %v5395 = vunpack.c.l.b16 %v5363
    %v5396 = vpack.c.b16 %v5381, %v5380
    %v5397 = vpack.c.b16 %v5383, %v5382
    %v5398 = vpack.c.b16 %v5385, %v5384
    %v5399 = vpack.c.b16 %v5387, %v5386
    %v5400 = vpack.c.b16 %v5389, %v5388
    %v5401 = vpack.c.b16 %v5391, %v5390
    %v5402 = vpack.c.b16 %v5393, %v5392
    %v5403 = vpack.c.b16 %v5395, %v5394
    %5412 = vmatprep.subr.bf16.mxu0 0
    %5413 = vmatpush1.bf16.msra.mxu0 %v5396
    %5414 = vmatprep.subr.bf16.mxu0 0
    %5415 = vmatpush1.bf16.msra.mxu0 %v5397
    %5416 = vmatprep.subr.bf16.mxu0 0
    %5417 = vmatpush1.bf16.msra.mxu0 %v5398
    %5418 = vmatprep.subr.bf16.mxu0 0
    %5419 = vmatpush1.bf16.msra.mxu0 %v5399
    %5420 = vmatprep.subr.bf16.mxu0 0
    %5421 = vmatpush1.bf16.msra.mxu0 %v5400
    %5422 = vmatprep.subr.bf16.mxu0 0
    %5423 = vmatpush1.bf16.msra.mxu0 %v5401
    %5424 = vmatprep.subr.bf16.mxu0 0
    %5425 = vmatpush1.bf16.msra.mxu0 %v5402
    %5426 = vmatprep.subr.bf16.mxu0 0
    %5427 = vmatpush1.bf16.msra.mxu0 %v5403
    %5428 = vmatprep.subr.bf16.mxu0 0
    %5429 = vmatpush1.bf16.msra.mxu0 0
    %5430 = vmatprep.subr.bf16.mxu0 0
    %5431 = vmatpush1.bf16.msra.mxu0 0
    %5432 = vmatprep.subr.bf16.mxu0 0
    %5433 = vmatpush1.bf16.msra.mxu0 0
    %5434 = vmatprep.subr.bf16.mxu0 0
    %5435 = vmatpush1.bf16.msra.mxu0 0
    %5436 = vmatprep.subr.bf16.mxu0 0
    %5437 = vmatpush1.bf16.msra.mxu0 0
    %5438 = vmatprep.subr.bf16.mxu0 0
    %5439 = vmatpush1.bf16.msra.mxu0 0
    %5440 = vmatprep.subr.bf16.mxu0 0
    %5441 = vmatpush1.bf16.msra.mxu0 0
    %5442 = vmatprep.subr.bf16.mxu0 0
    %5443 = vmatpush1.bf16.msra.mxu0 0
    %5444 = vmatprep.mubr.bf16.mxu0 0
    %5445 = vmatmul.mubr.bf16.gmra.mrb[0].mxu0 %v5343
    %v5446 = vpop.f32.mrb[0].mxu0
    %v5447 = vadd.f32 0.0, %v5446
    %v5448 = vpop.f32.mrb[0].mxu0
    %v5449 = vpop.f32.mrb[0].mxu0
    %v5450 = vadd.f32 0.0, %v5449
    %v5451 = vpop.f32.mrb[0].mxu0
    %5452 = vmatprep.mubr.bf16.mxu0 0
    %5453 = vmatmul.mubr.bf16.gmra.mrb[0].mxu0 %v5344
    %v5454 = vpop.f32.mrb[0].mxu0
    %v5455 = vadd.f32 0.0, %v5454
    %v5456 = vpop.f32.mrb[0].mxu0
    %v5457 = vpop.f32.mrb[0].mxu0
    %v5458 = vadd.f32 0.0, %v5457
    %v5459 = vpop.f32.mrb[0].mxu0
    %5460 = vmatprep.mubr.bf16.mxu0 0
    %5461 = vmatmul.mubr.bf16.gmra.mrb[0].mxu0 %v5345
    %v5462 = vpop.f32.mrb[0].mxu0
    %v5463 = vadd.f32 0.0, %v5462
    %v5464 = vpop.f32.mrb[0].mxu0
    %v5465 = vpop.f32.mrb[0].mxu0
    %v5466 = vadd.f32 0.0, %v5465
    %v5467 = vpop.f32.mrb[0].mxu0
    %5468 = vmatprep.mubr.bf16.mxu0 0
    %5469 = vmatmul.mubr.bf16.gmra.mrb[0].mxu0 %v5346
    %v5470 = vpop.f32.mrb[0].mxu0
    %v5471 = vadd.f32 0.0, %v5470
    %v5472 = vpop.f32.mrb[0].mxu0
    %v5473 = vpop.f32.mrb[0].mxu0
    %v5474 = vadd.f32 0.0, %v5473
    %v5475 = vpop.f32.mrb[0].mxu0
    %5476 = vdwg.mxu0
    %v5477 = vadd.f32 %v5229, %v5447
    %v5478 = vadd.f32 %v5230, %v5450
    %v5479 = vadd.f32 %v5231, %v5455
    %v5480 = vadd.f32 %v5232, %v5458
    %v5481 = vadd.f32 %v5233, %v5463
    %v5482 = vadd.f32 %v5234, %v5466
    %v5483 = vadd.f32 %v5235, %v5471
    %v5484 = vadd.f32 %v5236, %v5474
    %v5485 = vld [vmem:[#allocation27] sm:$0x1]
    %v5487 = vlaneseq
    %v5488 = vshrl.u32 %v5487, 7
    %v5489 = vsub.s32 0, %v5488
    %v5490 = vrot.slane %v5485, %v5489
    %v5492 = vadd.f32 %v5477, %v5490
    %v5493 = vadd.f32 %v5478, %v5490
    %v5494 = vadd.f32 %v5479, %v5490
    %v5495 = vadd.f32 %v5480, %v5490
    %v5496 = vadd.f32 %v5481, %v5490
    %v5497 = vadd.f32 %v5482, %v5490
    %v5498 = vadd.f32 %v5483, %v5490
    %v5499 = vadd.f32 %v5484, %v5490
    %vm5500 = vcmp.gt.f32.partialorder %v5492, 0.0
    %vm5501 = vcmp.gt.f32.partialorder %v5493, 0.0
    %vm5502 = vcmp.gt.f32.partialorder %v5494, 0.0
    %vm5503 = vcmp.gt.f32.partialorder %v5495, 0.0
    %vm5504 = vcmp.gt.f32.partialorder %v5496, 0.0
    %vm5505 = vcmp.gt.f32.partialorder %v5497, 0.0
    %vm5506 = vcmp.gt.f32.partialorder %v5498, 0.0
    %vm5507 = vcmp.gt.f32.partialorder %v5499, 0.0
    %v5508 = vmin.f32 %v5492, 0.0
    %v5509 = vmin.f32 %v5493, 0.0
    %v5510 = vmin.f32 %v5494, 0.0
    %v5511 = vmin.f32 %v5495, 0.0
    %v5512 = vmin.f32 %v5496, 0.0
    %v5513 = vmin.f32 %v5497, 0.0
    %v5514 = vmin.f32 %v5498, 0.0
    %v5515 = vmin.f32 %v5499, 0.0
    %v5516 = vmul.f32 %v5508, 1.442695
    %v5517 = vpow.pop %v5516
    %v5518 = vmul.f32 %v5509, 1.442695
    %v5519 = vpow.pop %v5518
    %v5520 = vmul.f32 %v5510, 1.442695
    %v5521 = vpow.pop %v5520
    %v5522 = vmul.f32 %v5511, 1.442695
    %v5523 = vpow.pop %v5522
    %v5524 = vmul.f32 %v5512, 1.442695
    %v5525 = vpow.pop %v5524
    %v5526 = vmul.f32 %v5513, 1.442695
    %v5527 = vpow.pop %v5526
    %v5528 = vmul.f32 %v5514, 1.442695
    %v5529 = vpow.pop %v5528
    %v5530 = vmul.f32 %v5515, 1.442695
    %v5531 = vpow.pop %v5530
    %v5532 = vsub.f32 %v5517, 1.0
    %v5533 = vsub.f32 %v5519, 1.0
    %v5534 = vsub.f32 %v5521, 1.0
    %v5535 = vsub.f32 %v5523, 1.0
    %v5536 = vsub.f32 %v5525, 1.0
    %v5537 = vsub.f32 %v5527, 1.0
    %v5538 = vsub.f32 %v5529, 1.0
    %v5539 = vsub.f32 %v5531, 1.0
    %v5540 = vsel %vm5500, %v5492, %v5532
    %v5541 = vsel %vm5501, %v5493, %v5533
    %v5542 = vsel %vm5502, %v5494, %v5534
    %v5543 = vsel %vm5503, %v5495, %v5535
    %v5544 = vsel %vm5504, %v5496, %v5536
    %v5545 = vsel %vm5505, %v5497, %v5537
    %v5546 = vsel %vm5506, %v5498, %v5538
    %v5547 = vsel %vm5507, %v5499, %v5539
    %v5548 = vpack.c.bf16 %v5541, %v5540
    %v5549 = vpack.c.bf16 %v5543, %v5542
    %v5550 = vpack.c.bf16 %v5545, %v5544
    %v5551 = vpack.c.bf16 %v5547, %v5546
    %v5552 = vld [vmem:[#allocation28] sm:$0xf]
    %v5553 = vld [vmem:[#allocation28 + $0x4] sm:$0xf]
    %v5554 = vld [vmem:[#allocation28 + $0x8] sm:$0xf]
    %v5555 = vld [vmem:[#allocation28 + $0xc] sm:$0xf]
    %v5556 = vld [vmem:[#allocation28 + $0x10] sm:$0xf]
    %v5557 = vld [vmem:[#allocation28 + $0x14] sm:$0xf]
    %v5558 = vld [vmem:[#allocation28 + $0x18] sm:$0xf]
    %v5559 = vld [vmem:[#allocation28 + $0x1c] sm:$0xf]
    %v5560 = vld [vmem:[#allocation28 + $0x20] sm:$0xf]
    %v5561 = vld [vmem:[#allocation28 + $0x24] sm:$0xf]
    %v5562 = vld [vmem:[#allocation28 + $0x28] sm:$0xf]
    %v5563 = vld [vmem:[#allocation28 + $0x2c] sm:$0xf]
    %v5564 = vld [vmem:[#allocation28 + $0x30] sm:$0xf]
    %v5565 = vld [vmem:[#allocation28 + $0x34] sm:$0xf]
    %v5566 = vld [vmem:[#allocation28 + $0x38] sm:$0xf]
    %v5567 = vld [vmem:[#allocation28 + $0x3c] sm:$0xf]
    %v5568 = vld [vmem:[#allocation30] sm:$0x1]
    %v5570 = vlaneseq
    %v5571 = vshrl.u32 %v5570, 7
    %v5572 = vsub.s32 0, %v5571
    %v5573 = vrot.slane %v5568, %v5572
    %v5591 = vunpack.c.l.b16 %v5552
    %v5592 = vunpack.c.l.b16 %v5553
    %v5593 = vunpack.c.l.b16 %v5554
    %v5594 = vunpack.c.l.b16 %v5555
    %v5595 = vunpack.c.l.b16 %v5556
    %v5596 = vunpack.c.l.b16 %v5557
    %v5597 = vunpack.c.l.b16 %v5558
    %v5598 = vunpack.c.l.b16 %v5559
    %v5599 = vunpack.c.l.b16 %v5560
    %v5600 = vunpack.c.l.b16 %v5561
    %v5601 = vunpack.c.l.b16 %v5562
    %v5602 = vunpack.c.l.b16 %v5563
    %v5603 = vunpack.c.l.b16 %v5564
    %v5604 = vunpack.c.l.b16 %v5565
    %v5605 = vunpack.c.l.b16 %v5566
    %v5606 = vunpack.c.l.b16 %v5567
    %v5607 = vpack.c.b16 %v5592, %v5591
    %v5608 = vpack.c.b16 %v5594, %v5593
    %v5609 = vpack.c.b16 %v5596, %v5595
    %v5610 = vpack.c.b16 %v5598, %v5597
    %v5611 = vpack.c.b16 %v5600, %v5599
    %v5612 = vpack.c.b16 %v5602, %v5601
    %v5613 = vpack.c.b16 %v5604, %v5603
    %v5614 = vpack.c.b16 %v5606, %v5605
    %5623 = vmatprep.subr.bf16.mxu0 0
    %5624 = vmatpush1.bf16.msra.mxu0 %v5607
    %5625 = vmatprep.subr.bf16.mxu0 0
    %5626 = vmatpush1.bf16.msra.mxu0 %v5608
    %5627 = vmatprep.subr.bf16.mxu0 0
    %5628 = vmatpush1.bf16.msra.mxu0 %v5609
    %5629 = vmatprep.subr.bf16.mxu0 0
    %5630 = vmatpush1.bf16.msra.mxu0 %v5610
    %5631 = vmatprep.subr.bf16.mxu0 0
    %5632 = vmatpush1.bf16.msra.mxu0 %v5611
    %5633 = vmatprep.subr.bf16.mxu0 0
    %5634 = vmatpush1.bf16.msra.mxu0 %v5612
    %5635 = vmatprep.subr.bf16.mxu0 0
    %5636 = vmatpush1.bf16.msra.mxu0 %v5613
    %5637 = vmatprep.subr.bf16.mxu0 0
    %5638 = vmatpush1.bf16.msra.mxu0 %v5614
    %5639 = vmatprep.subr.bf16.mxu0 0
    %5640 = vmatpush1.bf16.msra.mxu0 0
    %5641 = vmatprep.subr.bf16.mxu0 0
    %5642 = vmatpush1.bf16.msra.mxu0 0
    %5643 = vmatprep.subr.bf16.mxu0 0
    %5644 = vmatpush1.bf16.msra.mxu0 0
    %5645 = vmatprep.subr.bf16.mxu0 0
    %5646 = vmatpush1.bf16.msra.mxu0 0
    %5647 = vmatprep.subr.bf16.mxu0 0
    %5648 = vmatpush1.bf16.msra.mxu0 0
    %5649 = vmatprep.subr.bf16.mxu0 0
    %5650 = vmatpush1.bf16.msra.mxu0 0
    %5651 = vmatprep.subr.bf16.mxu0 0
    %5652 = vmatpush1.bf16.msra.mxu0 0
    %5653 = vmatprep.subr.bf16.mxu0 0
    %5654 = vmatpush1.bf16.msra.mxu0 0
    %5655 = vmatprep.mubr.bf16.mxu0 0
    %5656 = vmatmul.mubr.bf16.gmra.mrb[0].mxu0 %v5548
    %v5657 = vpop.f32.mrb[0].mxu0
    %v5658 = vadd.f32 %v5573, %v5657
    %v5659 = vpop.f32.mrb[0].mxu0
    %v5660 = vpop.f32.mrb[0].mxu0
    %v5661 = vadd.f32 %v5573, %v5660
    %v5662 = vpop.f32.mrb[0].mxu0
    %5663 = vmatprep.mubr.bf16.mxu0 0
    %5664 = vmatmul.mubr.bf16.gmra.mrb[0].mxu0 %v5549
    %v5665 = vpop.f32.mrb[0].mxu0
    %v5666 = vadd.f32 %v5573, %v5665
    %v5667 = vpop.f32.mrb[0].mxu0
    %v5668 = vpop.f32.mrb[0].mxu0
    %v5669 = vadd.f32 %v5573, %v5668
    %v5670 = vpop.f32.mrb[0].mxu0
    %5671 = vmatprep.mubr.bf16.mxu0 0
    %5672 = vmatmul.mubr.bf16.gmra.mrb[0].mxu0 %v5550
    %v5673 = vpop.f32.mrb[0].mxu0
    %v5674 = vadd.f32 %v5573, %v5673
    %v5675 = vpop.f32.mrb[0].mxu0
    %v5676 = vpop.f32.mrb[0].mxu0
    %v5677 = vadd.f32 %v5573, %v5676
    %v5678 = vpop.f32.mrb[0].mxu0
    %5679 = vmatprep.mubr.bf16.mxu0 0
    %5680 = vmatmul.mubr.bf16.gmra.mrb[0].mxu0 %v5551
    %v5681 = vpop.f32.mrb[0].mxu0
    %v5682 = vadd.f32 %v5573, %v5681
    %v5683 = vpop.f32.mrb[0].mxu0
    %v5684 = vpop.f32.mrb[0].mxu0
    %v5685 = vadd.f32 %v5573, %v5684
    %v5686 = vpop.f32.mrb[0].mxu0
    %5687 = vdwg.mxu0
    %v5688 = vld [vmem:[%s3] sm:$0xf]
    %v5689 = vld [vmem:[%s3 + $0x4] sm:$0xf]
    %v5692 = vunpack.c.l.b16 %v5688
    %v5693 = vunpack.c.l.b16 %v5689
    %v5694 = vpack.c.b16 %v5693, %v5692
    %v5696 = vsel %vm415, %v5694, 0
    %5698 = vmatprep.subr.bf16.mxu0 0
    %5699 = vmatpush1.bf16.msra.mxu0 %v407
    %5700 = vmatprep.subr.bf16.mxu0 0
    %5701 = vmatpush1.bf16.msra.mxu0 %v408
    %5702 = vmatprep.subr.bf16.mxu0 0
    %5703 = vmatpush1.bf16.msra.mxu0 %v409
    %5704 = vmatprep.subr.bf16.mxu0 0
    %5705 = vmatpush1.bf16.msra.mxu0 %v410
    %5706 = vmatprep.subr.bf16.mxu0 0
    %5707 = vmatpush1.bf16.msra.mxu0 0
    %5708 = vmatprep.subr.bf16.mxu0 0
    %5709 = vmatpush1.bf16.msra.mxu0 0
    %5710 = vmatprep.subr.bf16.mxu0 0
    %5711 = vmatpush1.bf16.msra.mxu0 0
    %5712 = vmatprep.subr.bf16.mxu0 0
    %5713 = vmatpush1.bf16.msra.mxu0 0
    %5714 = vmatprep.subr.bf16.mxu0 0
    %5715 = vmatpush1.bf16.msra.mxu0 0
    %5716 = vmatprep.subr.bf16.mxu0 0
    %5717 = vmatpush1.bf16.msra.mxu0 0
    %5718 = vmatprep.subr.bf16.mxu0 0
    %5719 = vmatpush1.bf16.msra.mxu0 0
    %5720 = vmatprep.subr.bf16.mxu0 0
    %5721 = vmatpush1.bf16.msra.mxu0 0
    %5722 = vmatprep.subr.bf16.mxu0 0
    %5723 = vmatpush1.bf16.msra.mxu0 0
    %5724 = vmatprep.subr.bf16.mxu0 0
    %5725 = vmatpush1.bf16.msra.mxu0 0
    %5726 = vmatprep.subr.bf16.mxu0 0
    %5727 = vmatpush1.bf16.msra.mxu0 0
    %5728 = vmatprep.subr.bf16.mxu0 0
    %5729 = vmatpush1.bf16.msra.mxu0 0
    %5730 = vmatprep.mubr.bf16.mxu0 0
    %5731 = vmatmul.mubr.bf16.gmra.mrb[0].mxu0 %v5696
    %v5732 = vpop.f32.mrb[0].mxu0
    %v5733 = vadd.f32 0.0, %v5732
    %v5734 = vpop.f32.mrb[0].mxu0
    %v5735 = vpop.f32.mrb[0].mxu0
    %v5736 = vadd.f32 0.0, %v5735
    %v5737 = vpop.f32.mrb[0].mxu0
    %5738 = vdwg.mxu0
    %v5739 = vpack.c.bf16 %v5736, %v5733
    %v5740 = vld [vmem:[#allocation2] sm:$0xf]
    %v5741 = vld [vmem:[#allocation2 + $0x4] sm:$0xf]
    %v5742 = vld [vmem:[#allocation2 + $0x8] sm:$0xf]
    %v5743 = vld [vmem:[#allocation2 + $0xc] sm:$0xf]
    %v5744 = vld [vmem:[#allocation2 + $0x10] sm:$0xf]
    %v5745 = vld [vmem:[#allocation2 + $0x14] sm:$0xf]
    %v5746 = vld [vmem:[#allocation2 + $0x18] sm:$0xf]
    %v5747 = vld [vmem:[#allocation2 + $0x1c] sm:$0xf]
    %v5748 = vld [vmem:[#allocation2 + $0x20] sm:$0xf]
    %v5749 = vld [vmem:[#allocation2 + $0x24] sm:$0xf]
    %v5750 = vld [vmem:[#allocation2 + $0x28] sm:$0xf]
    %v5751 = vld [vmem:[#allocation2 + $0x2c] sm:$0xf]
    %v5752 = vld [vmem:[#allocation2 + $0x30] sm:$0xf]
    %v5753 = vld [vmem:[#allocation2 + $0x34] sm:$0xf]
    %v5754 = vld [vmem:[#allocation2 + $0x38] sm:$0xf]
    %v5755 = vld [vmem:[#allocation2 + $0x3c] sm:$0xf]
    %v5772 = vunpack.c.l.b16 %v5740
    %v5773 = vunpack.c.l.b16 %v5741
    %v5774 = vunpack.c.l.b16 %v5742
    %v5775 = vunpack.c.l.b16 %v5743
    %v5776 = vunpack.c.l.b16 %v5744
    %v5777 = vunpack.c.l.b16 %v5745
    %v5778 = vunpack.c.l.b16 %v5746
    %v5779 = vunpack.c.l.b16 %v5747
    %v5780 = vunpack.c.l.b16 %v5748
    %v5781 = vunpack.c.l.b16 %v5749
    %v5782 = vunpack.c.l.b16 %v5750
    %v5783 = vunpack.c.l.b16 %v5751
    %v5784 = vunpack.c.l.b16 %v5752
    %v5785 = vunpack.c.l.b16 %v5753
    %v5786 = vunpack.c.l.b16 %v5754
    %v5787 = vunpack.c.l.b16 %v5755
    %v5788 = vpack.c.b16 %v5773, %v5772
    %v5789 = vpack.c.b16 %v5775, %v5774
    %v5790 = vpack.c.b16 %v5777, %v5776
    %v5791 = vpack.c.b16 %v5779, %v5778
    %v5792 = vpack.c.b16 %v5781, %v5780
    %v5793 = vpack.c.b16 %v5783, %v5782
    %v5794 = vpack.c.b16 %v5785, %v5784
    %v5795 = vpack.c.b16 %v5787, %v5786
    %5804 = vmatprep.subr.bf16.mxu0 0
    %5805 = vmatpush1.bf16.msra.mxu0 %v5788
    %5806 = vmatprep.subr.bf16.mxu0 0
    %5807 = vmatpush1.bf16.msra.mxu0 %v5789
    %5808 = vmatprep.subr.bf16.mxu0 0
    %5809 = vmatpush1.bf16.msra.mxu0 %v5790
    %5810 = vmatprep.subr.bf16.mxu0 0
    %5811 = vmatpush1.bf16.msra.mxu0 %v5791
    %5812 = vmatprep.subr.bf16.mxu0 0
    %5813 = vmatpush1.bf16.msra.mxu0 %v5792
    %5814 = vmatprep.subr.bf16.mxu0 0
    %5815 = vmatpush1.bf16.msra.mxu0 %v5793
    %5816 = vmatprep.subr.bf16.mxu0 0
    %5817 = vmatpush1.bf16.msra.mxu0 %v5794
    %5818 = vmatprep.subr.bf16.mxu0 0
    %5819 = vmatpush1.bf16.msra.mxu0 %v5795
    %5820 = vmatprep.subr.bf16.mxu0 0
    %5821 = vmatpush1.bf16.msra.mxu0 0
    %5822 = vmatprep.subr.bf16.mxu0 0
    %5823 = vmatpush1.bf16.msra.mxu0 0
    %5824 = vmatprep.subr.bf16.mxu0 0
    %5825 = vmatpush1.bf16.msra.mxu0 0
    %5826 = vmatprep.subr.bf16.mxu0 0
    %5827 = vmatpush1.bf16.msra.mxu0 0
    %5828 = vmatprep.subr.bf16.mxu0 0
    %5829 = vmatpush1.bf16.msra.mxu0 0
    %5830 = vmatprep.subr.bf16.mxu0 0
    %5831 = vmatpush1.bf16.msra.mxu0 0
    %5832 = vmatprep.subr.bf16.mxu0 0
    %5833 = vmatpush1.bf16.msra.mxu0 0
    %5834 = vmatprep.subr.bf16.mxu0 0
    %5835 = vmatpush1.bf16.msra.mxu0 0
    %5836 = vmatprep.mubr.bf16.mxu0 0
    %5837 = vmatmul.mubr.bf16.gmra.mrb[0].mxu0 %v5739
    %v5838 = vpop.f32.mrb[0].mxu0
    %v5839 = vadd.f32 0.0, %v5838
    %v5840 = vpop.f32.mrb[0].mxu0
    %v5841 = vpop.f32.mrb[0].mxu0
    %v5842 = vadd.f32 0.0, %v5841
    %v5843 = vpop.f32.mrb[0].mxu0
    %5844 = vdwg.mxu0
    %vm5845 = vcmask 785408
    %5846 = vst.msk [vmem:[%s59] sm:$0xff] %vm5845, %v5658
    %5847 = vst.msk [vmem:[%s59 + $0x8] sm:$0xff] %vm5845, %v5661
    %5848 = vst.msk [vmem:[%s59 + $0x10] sm:$0xff] %vm5845, %v5666
    %5849 = vst.msk [vmem:[%s59 + $0x18] sm:$0xff] %vm5845, %v5669
    %5850 = vst.msk [vmem:[%s59 + $0x20] sm:$0xff] %vm5845, %v5674
    %5851 = vst.msk [vmem:[%s59 + $0x28] sm:$0xff] %vm5845, %v5677
    %5852 = vst.msk [vmem:[%s59 + $0x30] sm:$0xff] %vm5845, %v5682
    %5853 = vst.msk [vmem:[%s59 + $0x38] sm:$0xff] %vm5845, %v5685
    %v5854 = vmul.f32 %v5839, %v1847
    %v5855 = vmul.f32 %v5842, %v1848
    %5856 = vst.msk [vmem:[%s61] sm:$0xff] %vm415, %v5854
    %5857 = vst.msk [vmem:[%s61 + $0x8] sm:$0xff] %vm415, %v5855
    %v5858 = vsub.f32 1.0, %v5839
    %v5859 = vsub.f32 1.0, %v5842
    %v5860 = vmul.f32 %v5858, %v1847
    %v5861 = vmul.f32 %v5859, %v1848
    %5862 = vst.msk [vmem:[%s63] sm:$0xff] %vm415, %v5860
    %5863 = vst.msk [vmem:[%s63 + $0x8] sm:$0xff] %vm415, %v5861
    %5864 = vst [vmem:[%s65] sm:$0xff] %v5540
    %5865 = vst [vmem:[%s65 + $0x8] sm:$0xff] %v5541
    %5866 = vst [vmem:[%s65 + $0x10] sm:$0xff] %v5542
    %5867 = vst [vmem:[%s65 + $0x18] sm:$0xff] %v5543
    %5868 = vst [vmem:[%s65 + $0x20] sm:$0xff] %v5544
    %5869 = vst [vmem:[%s65 + $0x28] sm:$0xff] %v5545
    %5870 = vst [vmem:[%s65 + $0x30] sm:$0xff] %v5546
    %5871 = vst [vmem:[%s65 + $0x38] sm:$0xff] %v5547
    // Predicated region
    $region194: #{deep_image_harmonization.1} parent=1 // pred_check
      _
    $region195: #{deep_image_harmonization.1} parent=1 // pred_check_branch
      %5873 = sbr.rel (0) target = $region197
    $region196: #{deep_image_harmonization.1} parent=1 // pred_region
      _
    $region197: #{deep_image_harmonization.1} parent=1 // pred_fallthru
      _
    // Predicated region
    $region198: #{deep_image_harmonization.1} parent=1 // pred_check
      _
    $region199: #{deep_image_harmonization.1} parent=1 // pred_check_branch
      %5875 = sbr.rel (0) target = $region201
    $region200: #{deep_image_harmonization.1} parent=1 // pred_region
      _
    $region201: #{deep_image_harmonization.1} parent=1 // pred_fallthru
      _
    // Predicated region
    $region202: #{deep_image_harmonization.1} parent=1 // pred_check
      _
    $region203: #{deep_image_harmonization.1} parent=1 // pred_check_branch
      %5877 = sbr.rel (0) target = $region205
    $region204: #{deep_image_harmonization.1} parent=1 // pred_region
      _
    $region205: #{deep_image_harmonization.1} parent=1 // pred_fallthru
      _
    // Predicated region
    $region206: #{deep_image_harmonization.1} parent=1 // pred_check
      _
    $region207: #{deep_image_harmonization.1} parent=1 // pred_check_branch
      %5879 = sbr.rel (0) target = $region209
    $region208: #{deep_image_harmonization.1} parent=1 // pred_region
      _
    $region209: #{deep_image_harmonization.1} parent=1 // pred_fallthru
      _
    // Predicated region
    $region210: #{deep_image_harmonization.1} parent=1 // pred_check
      _
    $region211: #{deep_image_harmonization.1} parent=1 // pred_check_branch
      %5881 = sbr.rel (0) target = $region213
    $region212: #{deep_image_harmonization.1} parent=1 // pred_region
      _
    $region213: #{deep_image_harmonization.1} parent=1 // pred_fallthru
      _
    // Predicated region
    $region214: #{deep_image_harmonization.1} parent=1 // pred_check
      _
    $region215: #{deep_image_harmonization.1} parent=1 // pred_check_branch
      %5883 = sbr.rel (0) target = $region217
    $region216: #{deep_image_harmonization.1} parent=1 // pred_region
      _
    $region217: #{deep_image_harmonization.1} parent=1 // pred_fallthru
      _
    // Predicated region
    $region218: #{deep_image_harmonization.1} parent=1 // pred_check
      _
    $region219: #{deep_image_harmonization.1} parent=1 // pred_check_branch
      %5885 = sbr.rel (0) target = $region221
    $region220: #{deep_image_harmonization.1} parent=1 // pred_region
      _
    $region221: #{deep_image_harmonization.1} parent=1 // pred_fallthru
      _
    // Predicated region
    $region222: #{deep_image_harmonization.1} parent=1 // pred_check
      _
    $region223: #{deep_image_harmonization.1} parent=1 // pred_check_branch
      %5887 = sbr.rel (0) target = $region225
    $region224: #{deep_image_harmonization.1} parent=1 // pred_region
      _
    $region225: #{deep_image_harmonization.1} parent=1 // pred_fallthru
      _
    %5888 = vsyncpa [#allocation3], 1
    %5889 = vsyncpa [#allocation5], 1
    %5890 = vsyncpa [#allocation8], 1
    %5891 = vsyncpa [#allocation11], 1
    %5892 = vsyncpa [#allocation14], 1
    %5893 = vsyncpa [#allocation17], 1
    %5894 = vsyncpa [#allocation20], 1
    %5895 = vsyncpa [#allocation23], 1
    %5896 = vsyncpa [#allocation26], 1
    %5897 = vsyncpa [#allocation29], 1

</llo_original>
